<compile_context>
chip_gen: v6e
topology: v6e:2x2x1
jax: 0.10.0
libtpu: 0.0.40
codegen_flags: <defaults>
</compile_context>

<pallas_src>
import functools

import jax
import jax.numpy as jnp
from jax import lax
from jax.experimental import pallas as pl
from jax.experimental.pallas import tpu as pltpu

_VMEM_LIMIT = 48 * 1024 * 1024


def _row_tile(n):
    for t in (512, 256, 128, 64, 32, 16, 8):
        if t <= n and n % t == 0:
            return t
    return n


# ----------------------------------------------------------------------------
# Dense kernels (row-tiled, weights resident, bf16 MXU inputs, f32 accumulate)
# ----------------------------------------------------------------------------
def _linear_kernel(x_ref, w_ref, b_ref, o_ref, *, relu):
    y = jnp.dot(x_ref[...].astype(jnp.bfloat16), w_ref[...],
                preferred_element_type=jnp.float32) + b_ref[...]
    if relu:
        y = jnp.maximum(y, 0.0)
    o_ref[...] = y.astype(o_ref.dtype)


def linear(x, w, b, *, relu=False, out_dtype=jnp.float32):
    n, k = x.shape
    dout = w.shape[1]
    tm = _row_tile(n)
    return pl.pallas_call(
        functools.partial(_linear_kernel, relu=relu),
        out_shape=jax.ShapeDtypeStruct((n, dout), out_dtype),
        grid=(n // tm,),
        in_specs=[
            pl.BlockSpec((tm, k), lambda i: (i, 0)),
            pl.BlockSpec((k, dout), lambda i: (0, 0)),
            pl.BlockSpec((1, dout), lambda i: (0, 0)),
        ],
        out_specs=pl.BlockSpec((tm, dout), lambda i: (i, 0)),
        compiler_params=pltpu.CompilerParams(
            dimension_semantics=("parallel",),
            vmem_limit_bytes=_VMEM_LIMIT),
    )(x, w, b.reshape(1, -1))


def _linear_residual_kernel(x_ref, w_ref, b_ref, r_ref, o_ref):
    y = jnp.dot(x_ref[...].astype(jnp.bfloat16), w_ref[...],
                preferred_element_type=jnp.float32) + b_ref[...]
    y = jnp.maximum(y, 0.0)                         # relu0(fc0(x))
    o_ref[...] = (y + r_ref[...]).astype(o_ref.dtype)   # += residual


def linear_relu_residual(x, w, b, residual):
    n, k = x.shape
    dout = w.shape[1]
    tm = _row_tile(n)
    return pl.pallas_call(
        _linear_residual_kernel,
        out_shape=jax.ShapeDtypeStruct((n, dout), jnp.float32),
        grid=(n // tm,),
        in_specs=[
            pl.BlockSpec((tm, k), lambda i: (i, 0)),
            pl.BlockSpec((k, dout), lambda i: (0, 0)),
            pl.BlockSpec((1, dout), lambda i: (0, 0)),
            pl.BlockSpec((tm, dout), lambda i: (i, 0)),
        ],
        out_specs=pl.BlockSpec((tm, dout), lambda i: (i, 0)),
        compiler_params=pltpu.CompilerParams(
            dimension_semantics=("parallel",),
            vmem_limit_bytes=_VMEM_LIMIT),
    )(x, w, b.reshape(1, -1), residual)


def _mlp_head_kernel(x_ref, w1_ref, b1_ref, w2_ref, b2_ref, o_ref):
    h = jnp.dot(x_ref[...].astype(jnp.bfloat16), w1_ref[...],
                preferred_element_type=jnp.float32) + b1_ref[...]
    h = jnp.maximum(h, 0.0)                         # relu1(fc1(x))
    y = jnp.dot(h.astype(jnp.bfloat16), w2_ref[...],
                preferred_element_type=jnp.float32) + b2_ref[...]   # fc2 (lane padded)
    o_ref[...] = y.astype(o_ref.dtype)


def mlp_head(x, w1, b1, w2, b2):
    n, k = x.shape
    f = w1.shape[1]
    dout = w2.shape[1]
    tm = _row_tile(n)
    return pl.pallas_call(
        _mlp_head_kernel,
        out_shape=jax.ShapeDtypeStruct((n, dout), jnp.float32),
        grid=(n // tm,),
        in_specs=[
            pl.BlockSpec((tm, k), lambda i: (i, 0)),
            pl.BlockSpec((k, f), lambda i: (0, 0)),
            pl.BlockSpec((1, f), lambda i: (0, 0)),
            pl.BlockSpec((f, dout), lambda i: (0, 0)),
            pl.BlockSpec((1, dout), lambda i: (0, 0)),
        ],
        out_specs=pl.BlockSpec((tm, dout), lambda i: (i, 0)),
        compiler_params=pltpu.CompilerParams(
            dimension_semantics=("parallel",),
            vmem_limit_bytes=_VMEM_LIMIT),
    )(x, w1, b1.reshape(1, -1), w2, b2.reshape(1, -1))


# ----------------------------------------------------------------------------
# Fused bidirectional LSTM layer with packed-sequence semantics.
#   gx_ref:  (T, BB, 8H) bf16  precomputed x@W_ih + b for [fwd | bwd]
#   whh_*:   (H, 4H) bf16      recurrent weights per direction
#   len_ref: (BB, 1) int32     true sequence lengths
#   y_ref:   (T, BB, 2H) f32   fwd -> [..., :H], bwd -> [..., H:]; zero at pads
# Gate packing (prepared at weight-prep time): [i, f, o | g].
# ----------------------------------------------------------------------------
def _bilstm_kernel(gx_ref, whh_f_ref, whh_b_ref, len_ref, y_ref,
                   hf, cf, hb, cb, *, T, H):
    G = 4 * H
    hf[...] = jnp.zeros_like(hf)
    cf[...] = jnp.zeros_like(cf)
    hb[...] = jnp.zeros_like(hb)
    cb[...] = jnp.zeros_like(cb)
    lengths = len_ref[...]                                  # (BB, 1) int32

    def cell(gx_t, h_prev, c_prev, whh_ref, t):
        gates = gx_t.astype(jnp.float32) + jnp.dot(
            h_prev.astype(jnp.bfloat16), whh_ref[...],
            preferred_element_type=jnp.float32)             # (BB, 4H) f32
        sig = jax.nn.sigmoid(gates[:, :3 * H])              # one EUP slab: i, f, o
        g_g = jnp.tanh(gates[:, 3 * H:])
        i_g = sig[:, :H]
        f_g = sig[:, H:2 * H]
        o_g = sig[:, 2 * H:]
        c_new = f_g * c_prev + i_g * g_g
        h_new = o_g * jnp.tanh(c_new)
        active = t < lengths                                # (BB, 1) bool
        h_keep = jnp.where(active, h_new, h_prev)
        c_keep = jnp.where(active, c_new, c_prev)
        y_out = jnp.where(active, h_new, 0.0)
        return h_keep, c_keep, y_out

    def step(i, carry):
        tf = i
        tb = T - 1 - i
        # forward direction (time ascending)
        h_n, c_n, y_f = cell(gx_ref[tf, :, :G], hf[...], cf[...], whh_f_ref, tf)
        hf[...] = h_n
        cf[...] = c_n
        y_ref[tf, :, :H] = y_f.astype(y_ref.dtype)
        # backward direction (time descending)
        h_n, c_n, y_b = cell(gx_ref[tb, :, G:], hb[...], cb[...], whh_b_ref, tb)
        hb[...] = h_n
        cb[...] = c_n
        y_ref[tb, :, H:] = y_b.astype(y_ref.dtype)
        return carry

    unroll = 8 if T % 8 == 0 else (4 if T % 4 == 0 else (2 if T % 2 == 0 else 1))
    lax.fori_loop(0, T, step, 0, unroll=unroll)


def bilstm_layer(gx, whh_f, whh_b, lens_b1):
    T, B, G8 = gx.shape
    H = whh_f.shape[0]
    assert G8 == 8 * H
    bb = B                                   # batch block (full B always legal)
    for cand in (32, 16):
        if B % cand == 0:
            bb = cand
            break
    return pl.pallas_call(
        functools.partial(_bilstm_kernel, T=T, H=H),
        out_shape=jax.ShapeDtypeStruct((T, B, 2 * H), jnp.float32),
        grid=(B // bb,),
        in_specs=[
            pl.BlockSpec((T, bb, 8 * H), lambda i: (0, i, 0)),
            pl.BlockSpec((H, 4 * H), lambda i: (0, 0)),
            pl.BlockSpec((H, 4 * H), lambda i: (0, 0)),
            pl.BlockSpec((bb, 1), lambda i: (i, 0)),
        ],
        out_specs=pl.BlockSpec((T, bb, 2 * H), lambda i: (0, i, 0)),
        scratch_shapes=[pltpu.VMEM((bb, H), jnp.float32) for _ in range(4)],
        compiler_params=pltpu.CompilerParams(
            dimension_semantics=("parallel",),
            vmem_limit_bytes=_VMEM_LIMIT),
    )(gx, whh_f, whh_b, lens_b1)


# ----------------------------------------------------------------------------
# Full module forward
# ----------------------------------------------------------------------------
def ner_lstm_bidi_forward(prepared, x, sequence_lengths, *, out_dim):
    """x: (B, T, D) f32; sequence_lengths: (B,) int (sorted desc, max == T)."""
    B, T, D = x.shape
    H = prepared["fc_in_w"].shape[1]
    B_pad = ((B + 7) // 8) * 8
    lens = sequence_lengths.astype(jnp.int32)
    if B_pad != B:
        x = jnp.pad(x, ((0, B_pad - B), (0, 0), (0, 0)))
        lens = jnp.pad(lens, (0, B_pad - B))       # padded rows: length 0 => masked
    lens_b1 = lens.reshape(B_pad, 1)

    # single up-front transpose to time-major; downstream stays (T, B, .)
    x_tm = jnp.transpose(x, (1, 0, 2)).reshape(T * B_pad, D)

    # fc_in + relu
    h = linear(x_tm, prepared["fc_in_w"], prepared["fc_in_b"], relu=True)   # (T*Bp, H)
    residual = h

    layer_in = h
    for layer in range(2):
        # hoisted input projection for BOTH directions (+ bias): one big matmul
        gx = linear(layer_in, prepared[f"wih_cat_l{layer}"],
                    prepared[f"b_cat_l{layer}"], relu=False,
                    out_dtype=jnp.bfloat16)                                 # (T*Bp, 8H)
        y = bilstm_layer(gx.reshape(T, B_pad, 8 * H),
                         prepared[f"whh_f_l{layer}"],
                         prepared[f"whh_b_l{layer}"], lens_b1)              # (T, Bp, 2H)
        layer_in = y.reshape(T * B_pad, 2 * H)

    # fc0 + relu + residual (fused)
    y = linear_relu_residual(layer_in, prepared["fc0_w"], prepared["fc0_b"], residual)
    # fc1 + relu + fc2 (fused; logits lane-padded to 128 inside the kernel)
    y = mlp_head(y, prepared["fc1_w"], prepared["fc1_b"],
                 prepared["fc2_w"], prepared["fc2_b"])                      # (T*Bp, OUT_PAD)
    out_pad = prepared["fc2_w"].shape[1]
    y = jnp.transpose(y.reshape(T, B_pad, out_pad), (1, 0, 2))
    return y[:B, :, :out_dim]


# ----------------------------------------------------------------------------
# Parameter preparation: gate reorder [i,f,g,o]->[i,f,o,g], fwd/bwd W_ih concat,
# bf16 weight casts, lane-padded fc2.
# ----------------------------------------------------------------------------
def prepare_params(p):
    H = p["fc_in_w"].shape[1]

    def reorder(a):   # last axis of size 4H: [i,f,g,o] -> [i,f,o,g]
        return jnp.concatenate([a[..., :2 * H], a[..., 3 * H:4 * H],
                                a[..., 2 * H:3 * H]], axis=-1)

    q = {
        "fc_in_w": p["fc_in_w"].astype(jnp.bfloat16),
        "fc_in_b": p["fc_in_b"].astype(jnp.float32),
        "fc0_w": p["fc0_w"].astype(jnp.bfloat16),
        "fc0_b": p["fc0_b"].astype(jnp.float32),
        "fc1_w": p["fc1_w"].astype(jnp.bfloat16),
        "fc1_b": p["fc1_b"].astype(jnp.float32),
    }
    for layer in range(2):
        wih = jnp.concatenate([reorder(p[f"lstm_wih_l{layer}_f"]),
                               reorder(p[f"lstm_wih_l{layer}_b"])], axis=-1)
        bias = jnp.concatenate([reorder(p[f"lstm_b_l{layer}_f"]),
                                reorder(p[f"lstm_b_l{layer}_b"])], axis=-1)
        q[f"wih_cat_l{layer}"] = wih.astype(jnp.bfloat16)             # (Din, 8H)
        q[f"b_cat_l{layer}"] = bias.astype(jnp.float32)               # (8H,)
        q[f"whh_f_l{layer}"] = reorder(p[f"lstm_whh_l{layer}_f"]).astype(jnp.bfloat16)
        q[f"whh_b_l{layer}"] = reorder(p[f"lstm_whh_l{layer}_b"]).astype(jnp.bfloat16)

    fc1_dim, out_dim = p["fc2_w"].shape
    out_pad = max(128, ((out_dim + 127) // 128) * 128)
    w2 = jnp.zeros((fc1_dim, out_pad), jnp.float32).at[:, :out_dim].set(p["fc2_w"])
    b2 = jnp.zeros((out_pad,), jnp.float32).at[:out_dim].set(p["fc2_b"])
    q["fc2_w"] = w2.astype(jnp.bfloat16)
    q["fc2_b"] = b2
    return q


# ----------------------------------------------------------------------------
# Pure-JAX f32 reference (PyTorch semantics, gate order i,f,g,o)
# ----------------------------------------------------------------------------
def _reference_forward(params, x, sequence_lengths):
    B, T, D = x.shape
    H = params["fc_in_w"].shape[1]
    lens = sequence_lengths.astype(jnp.int32)

    h = jnp.maximum(x @ params["fc_in_w"] + params["fc_in_b"], 0.0)
    residual = h

    def run_dir(inp, wih, whh, b, reverse):
        def cell(carry, t):
            hp, cp = carry
            x_t = inp[:, t, :]
            gates = x_t @ wih + hp @ whh + b
            i_g = jax.nn.sigmoid(gates[:, :H])
            f_g = jax.nn.sigmoid(gates[:, H:2 * H])
            g_g = jnp.tanh(gates[:, 2 * H:3 * H])
            o_g = jax.nn.sigmoid(gates[:, 3 * H:])
            c_n = f_g * cp + i_g * g_g
            h_n = o_g * jnp.tanh(c_n)
            act = (t < lens)[:, None]
            return (jnp.where(act, h_n, hp), jnp.where(act, c_n, cp)), jnp.where(act, h_n, 0.0)

        ts = jnp.arange(T)[::-1] if reverse else jnp.arange(T)
        init = (jnp.zeros((B, H)), jnp.zeros((B, H)))
        _, ys = lax.scan(cell, init, ts)
        ys = ys[::-1] if reverse else ys
        return jnp.transpose(ys, (1, 0, 2))

    layer_in = h
    for layer in range(2):
        f = run_dir(layer_in, params[f"lstm_wih_l{layer}_f"],
                    params[f"lstm_whh_l{layer}_f"], params[f"lstm_b_l{layer}_f"], False)
        bw = run_dir(layer_in, params[f"lstm_wih_l{layer}_b"],
                     params[f"lstm_whh_l{layer}_b"], params[f"lstm_b_l{layer}_b"], True)
        layer_in = jnp.concatenate([f, bw], axis=-1)

    y = jnp.maximum(layer_in @ params["fc0_w"] + params["fc0_b"], 0.0) + residual
    y = jnp.maximum(y @ params["fc1_w"] + params["fc1_b"], 0.0)
    y = y @ params["fc2_w"] + params["fc2_b"]
    return y


# ----------------------------------------------------------------------------
# Deterministic parameter init (PyTorch layout transposed; gate order i,f,g,o)
# ----------------------------------------------------------------------------
def init_params(key, input_dim, hidden, fc1_dim, out_dim):
    def nxt():
        nonlocal key
        key, sub = jax.random.split(key)
        return sub

    def u(shape, fan_in):
        bound = 1.0 / jnp.sqrt(fan_in)
        return jax.random.uniform(nxt(), shape, jnp.float32, -bound, bound)

    p = {}
    p["fc_in_w"] = u((input_dim, hidden), input_dim)
    p["fc_in_b"] = u((hidden,), input_dim)
    for layer in range(2):
        din = hidden if layer == 0 else 2 * hidden
        for dname in ("f", "b"):
            p[f"lstm_wih_l{layer}_{dname}"] = u((din, 4 * hidden), hidden)
            p[f"lstm_whh_l{layer}_{dname}"] = u((hidden, 4 * hidden), hidden)
            # combined b_ih + b_hh
            p[f"lstm_b_l{layer}_{dname}"] = (u((4 * hidden,), hidden)
                                             + u((4 * hidden,), hidden))
    p["fc0_w"] = u((2 * hidden, hidden), 2 * hidden)
    p["fc0_b"] = u((hidden,), 2 * hidden)
    p["fc1_w"] = u((hidden, fc1_dim), hidden)
    p["fc1_b"] = u((fc1_dim,), hidden)
    p["fc2_w"] = u((fc1_dim, out_dim), fc1_dim)
    p["fc2_b"] = u((out_dim,), fc1_dim)
    return p


if __name__ == "__main__":
    # Small shapes consistent with the module (module defaults 300/512 scaled down;
    # H kept a multiple of 128 so gate slices are lane-aligned).
    B, T = 2, 8
    INPUT_DIM, HIDDEN, FC1_DIM, OUT_DIM = 128, 128, 64, 9

    key = jax.random.PRNGKey(0)
    key, kx = jax.random.split(key)
    params = init_params(key, INPUT_DIM, HIDDEN, FC1_DIM, OUT_DIM)
    prepared = prepare_params(params)

    x = jax.random.normal(kx, (B, T, INPUT_DIM), jnp.float32)
    # pack_padded_sequence expects lengths sorted descending, max == T
    sequence_lengths = jnp.array([T, 5], dtype=jnp.int32)

    fwd = jax.jit(functools.partial(ner_lstm_bidi_forward, out_dim=OUT_DIM))
    out = jax.block_until_ready(fwd(prepared, x, sequence_lengths))

    ref = _reference_forward(params, x, sequence_lengths)
    assert out.shape == (B, T, OUT_DIM), out.shape
    max_err = float(jnp.max(jnp.abs(out - ref)))
    assert jnp.allclose(out, ref, rtol=2e-2, atol=2e-2), \
        f"mismatch vs reference (max abs err={max_err})"

    print("KERNEL_OK")
</pallas_src>

<mosaic_0001>
module attributes {stable_mosaic.version = 11 : i64} {
  func.func @_linear_kernel(%arg0: i32, %arg1: memref<64x128xf32, #tpu.memory_space<vmem>>, %arg2: memref<128x1024xbf16, #tpu.memory_space<vmem>>, %arg3: memref<1x1024xf32, #tpu.memory_space<vmem>>, %arg4: memref<64x1024xbf16, #tpu.memory_space<vmem>>) attributes {dimension_semantics = [#tpu.dimension_semantics<parallel>], iteration_bounds = array<i64: 1>, scalar_prefetch = 0 : i64, scratch_operands = 0 : i64, tpu.core_type = #tpu.core_type<tc>, window_params = [{transform_indices = @transform_0, window_bounds = array<i64: 64, 128>}, {pipeline_mode = #tpu.pipeline_mode<synchronous>, transform_indices = @transform_1, window_bounds = array<i64: 128, 1024>}, {pipeline_mode = #tpu.pipeline_mode<synchronous>, transform_indices = @transform_2, window_bounds = array<i64: 1, 1024>}, {transform_indices = @transform_3, window_bounds = array<i64: 64, 1024>}]} {
    %c0 = arith.constant 0 : index
    %c0_0 = arith.constant 0 : index
    %0 = vector.load %arg1[%c0, %c0_0] : memref<64x128xf32, #tpu.memory_space<vmem>>, vector<64x128xf32>
    %1 = arith.truncf %0 : vector<64x128xf32> to vector<64x128xbf16>
    %c0_1 = arith.constant 0 : index
    %c0_2 = arith.constant 0 : index
    %2 = vector.load %arg2[%c0_1, %c0_2] : memref<128x1024xbf16, #tpu.memory_space<vmem>>, vector<128x1024xbf16>
    %cst = arith.constant dense<0.000000e+00> : vector<64x1024xf32>
    %3 = tpu.matmul %1, %2, %cst {dimension_numbers = #tpu.dot_dimension_numbers<[1], [0], [0], [1], [0, 0, 1, 1], [], []>} : vector<64x128xbf16>, vector<128x1024xbf16>, vector<64x1024xf32> -> vector<64x1024xf32>
    %c0_3 = arith.constant 0 : index
    %c0_4 = arith.constant 0 : index
    %4 = vector.load %arg3[%c0_3, %c0_4] : memref<1x1024xf32, #tpu.memory_space<vmem>>, vector<1x1024xf32>
    %5 = vector.broadcast %4 : vector<1x1024xf32> to vector<64x1024xf32>
    %6 = arith.addf %3, %5 : vector<64x1024xf32>
    %7 = arith.truncf %6 : vector<64x1024xf32> to vector<64x1024xbf16>
    %c0_5 = arith.constant 0 : index
    %c0_6 = arith.constant 0 : index
    %8 = vector.load %arg4[%c0_5, %c0_6] : memref<64x1024xbf16, #tpu.memory_space<vmem>>, vector<64x1024xbf16>
    tpu.vector_store %arg4[%c0_5, %c0_6], %7 {strides = array<i32>} : memref<64x1024xbf16, #tpu.memory_space<vmem>>, vector<64x1024xbf16>,
    return
  }
  func.func @transform_0(%arg0: i32) -> (i32, i32) {
    %c0_i32 = arith.constant 0 : i32
    %c0_i32_0 = arith.constant 0 : i32
    return %arg0, %c0_i32 : i32, i32
  }
  func.func @transform_1(%arg0: i32) -> (i32, i32) {
    %c0_i32 = arith.constant 0 : i32
    %c0_i32_0 = arith.constant 0 : i32
    %c0_i32_1 = arith.constant 0 : i32
    return %c0_i32, %c0_i32_0 : i32, i32
  }
  func.func @transform_2(%arg0: i32) -> (i32, i32) {
    %c0_i32 = arith.constant 0 : i32
    %c0_i32_0 = arith.constant 0 : i32
    %c0_i32_1 = arith.constant 0 : i32
    return %c0_i32, %c0_i32_0 : i32, i32
  }
  func.func @transform_3(%arg0: i32) -> (i32, i32) {
    %c0_i32 = arith.constant 0 : i32
    %c0_i32_0 = arith.constant 0 : i32
    return %arg0, %c0_i32 : i32, i32
  }
}

module attributes {stable_mosaic.version = 11 : i64} {
  func.func @_linear_kernel(%arg0: i32, %arg1: memref<64x128xf32, #tpu.memory_space<vmem>>, %arg2: memref<128x128xbf16, #tpu.memory_space<vmem>>, %arg3: memref<1x128xf32, #tpu.memory_space<vmem>>, %arg4: memref<64x128xf32, #tpu.memory_space<vmem>>) attributes {dimension_semantics = [#tpu.dimension_semantics<parallel>], iteration_bounds = array<i64: 1>, scalar_prefetch = 0 : i64, scratch_operands = 0 : i64, tpu.core_type = #tpu.core_type<tc>, window_params = [{transform_indices = @transform_0, window_bounds = array<i64: 64, 128>}, {pipeline_mode = #tpu.pipeline_mode<synchronous>, transform_indices = @transform_1, window_bounds = array<i64: 128, 128>}, {pipeline_mode = #tpu.pipeline_mode<synchronous>, transform_indices = @transform_2, window_bounds = array<i64: 1, 128>}, {transform_indices = @transform_3, window_bounds = array<i64: 64, 128>}]} {
    %c0 = arith.constant 0 : index
    %c0_0 = arith.constant 0 : index
    %0 = vector.load %arg1[%c0, %c0_0] : memref<64x128xf32, #tpu.memory_space<vmem>>, vector<64x128xf32>
    %1 = arith.truncf %0 : vector<64x128xf32> to vector<64x128xbf16>
    %c0_1 = arith.constant 0 : index
    %c0_2 = arith.constant 0 : index
    %2 = vector.load %arg2[%c0_1, %c0_2] : memref<128x128xbf16, #tpu.memory_space<vmem>>, vector<128x128xbf16>
    %cst = arith.constant dense<0.000000e+00> : vector<64x128xf32>
    %3 = tpu.matmul %1, %2, %cst {dimension_numbers = #tpu.dot_dimension_numbers<[1], [0], [0], [1], [0, 0, 1, 1], [], []>} : vector<64x128xbf16>, vector<128x128xbf16>, vector<64x128xf32> -> vector<64x128xf32>
    %c0_3 = arith.constant 0 : index
    %c0_4 = arith.constant 0 : index
    %4 = vector.load %arg3[%c0_3, %c0_4] : memref<1x128xf32, #tpu.memory_space<vmem>>, vector<1x128xf32>
    %5 = vector.broadcast %4 : vector<1x128xf32> to vector<64x128xf32>
    %6 = arith.addf %3, %5 : vector<64x128xf32>
    %cst_5 = arith.constant 0.000000e+00 : f32
    %7 = vector.broadcast %cst_5 : f32 to vector<64x128xf32>
    %8 = arith.maximumf %6, %7 : vector<64x128xf32>
    %c0_6 = arith.constant 0 : index
    %c0_7 = arith.constant 0 : index
    %9 = vector.load %arg4[%c0_6, %c0_7] : memref<64x128xf32, #tpu.memory_space<vmem>>, vector<64x128xf32>
    tpu.vector_store %arg4[%c0_6, %c0_7], %8 {strides = array<i32>} : memref<64x128xf32, #tpu.memory_space<vmem>>, vector<64x128xf32>,
    return
  }
  func.func @transform_0(%arg0: i32) -> (i32, i32) {
    %c0_i32 = arith.constant 0 : i32
    %c0_i32_0 = arith.constant 0 : i32
    return %arg0, %c0_i32 : i32, i32
  }
  func.func @transform_1(%arg0: i32) -> (i32, i32) {
    %c0_i32 = arith.constant 0 : i32
    %c0_i32_0 = arith.constant 0 : i32
    %c0_i32_1 = arith.constant 0 : i32
    return %c0_i32, %c0_i32_0 : i32, i32
  }
  func.func @transform_2(%arg0: i32) -> (i32, i32) {
    %c0_i32 = arith.constant 0 : i32
    %c0_i32_0 = arith.constant 0 : i32
    %c0_i32_1 = arith.constant 0 : i32
    return %c0_i32, %c0_i32_0 : i32, i32
  }
  func.func @transform_3(%arg0: i32) -> (i32, i32) {
    %c0_i32 = arith.constant 0 : i32
    %c0_i32_0 = arith.constant 0 : i32
    return %arg0, %c0_i32 : i32, i32
  }
}

module attributes {stable_mosaic.version = 11 : i64} {
  func.func @_linear_kernel(%arg0: i32, %arg1: memref<64x256xf32, #tpu.memory_space<vmem>>, %arg2: memref<256x1024xbf16, #tpu.memory_space<vmem>>, %arg3: memref<1x1024xf32, #tpu.memory_space<vmem>>, %arg4: memref<64x1024xbf16, #tpu.memory_space<vmem>>) attributes {dimension_semantics = [#tpu.dimension_semantics<parallel>], iteration_bounds = array<i64: 1>, scalar_prefetch = 0 : i64, scratch_operands = 0 : i64, tpu.core_type = #tpu.core_type<tc>, window_params = [{transform_indices = @transform_0, window_bounds = array<i64: 64, 256>}, {pipeline_mode = #tpu.pipeline_mode<synchronous>, transform_indices = @transform_1, window_bounds = array<i64: 256, 1024>}, {pipeline_mode = #tpu.pipeline_mode<synchronous>, transform_indices = @transform_2, window_bounds = array<i64: 1, 1024>}, {transform_indices = @transform_3, window_bounds = array<i64: 64, 1024>}]} {
    %c0 = arith.constant 0 : index
    %c0_0 = arith.constant 0 : index
    %0 = vector.load %arg1[%c0, %c0_0] : memref<64x256xf32, #tpu.memory_space<vmem>>, vector<64x256xf32>
    %1 = arith.truncf %0 : vector<64x256xf32> to vector<64x256xbf16>
    %c0_1 = arith.constant 0 : index
    %c0_2 = arith.constant 0 : index
    %2 = vector.load %arg2[%c0_1, %c0_2] : memref<256x1024xbf16, #tpu.memory_space<vmem>>, vector<256x1024xbf16>
    %cst = arith.constant dense<0.000000e+00> : vector<64x1024xf32>
    %3 = tpu.matmul %1, %2, %cst {dimension_numbers = #tpu.dot_dimension_numbers<[1], [0], [0], [1], [0, 0, 1, 1], [], []>} : vector<64x256xbf16>, vector<256x1024xbf16>, vector<64x1024xf32> -> vector<64x1024xf32>
    %c0_3 = arith.constant 0 : index
    %c0_4 = arith.constant 0 : index
    %4 = vector.load %arg3[%c0_3, %c0_4] : memref<1x1024xf32, #tpu.memory_space<vmem>>, vector<1x1024xf32>
    %5 = vector.broadcast %4 : vector<1x1024xf32> to vector<64x1024xf32>
    %6 = arith.addf %3, %5 : vector<64x1024xf32>
    %7 = arith.truncf %6 : vector<64x1024xf32> to vector<64x1024xbf16>
    %c0_5 = arith.constant 0 : index
    %c0_6 = arith.constant 0 : index
    %8 = vector.load %arg4[%c0_5, %c0_6] : memref<64x1024xbf16, #tpu.memory_space<vmem>>, vector<64x1024xbf16>
    tpu.vector_store %arg4[%c0_5, %c0_6], %7 {strides = array<i32>} : memref<64x1024xbf16, #tpu.memory_space<vmem>>, vector<64x1024xbf16>,
    return
  }
  func.func @transform_0(%arg0: i32) -> (i32, i32) {
    %c0_i32 = arith.constant 0 : i32
    %c0_i32_0 = arith.constant 0 : i32
    return %arg0, %c0_i32 : i32, i32
  }
  func.func @transform_1(%arg0: i32) -> (i32, i32) {
    %c0_i32 = arith.constant 0 : i32
    %c0_i32_0 = arith.constant 0 : i32
    %c0_i32_1 = arith.constant 0 : i32
    return %c0_i32, %c0_i32_0 : i32, i32
  }
  func.func @transform_2(%arg0: i32) -> (i32, i32) {
    %c0_i32 = arith.constant 0 : i32
    %c0_i32_0 = arith.constant 0 : i32
    %c0_i32_1 = arith.constant 0 : i32
    return %c0_i32, %c0_i32_0 : i32, i32
  }
  func.func @transform_3(%arg0: i32) -> (i32, i32) {
    %c0_i32 = arith.constant 0 : i32
    %c0_i32_0 = arith.constant 0 : i32
    return %arg0, %c0_i32 : i32, i32
  }
}

module attributes {stable_mosaic.version = 11 : i64} {
  func.func @_bilstm_kernel(%arg0: i32, %arg1: memref<8x8x1024xbf16, #tpu.memory_space<vmem>>, %arg2: memref<128x512xbf16, #tpu.memory_space<vmem>>, %arg3: memref<128x512xbf16, #tpu.memory_space<vmem>>, %arg4: memref<8x1xi32, #tpu.memory_space<vmem>>, %arg5: memref<8x8x256xf32, #tpu.memory_space<vmem>>, %arg6: memref<8x128xf32, #tpu.memory_space<vmem>>, %arg7: memref<8x128xf32, #tpu.memory_space<vmem>>, %arg8: memref<8x128xf32, #tpu.memory_space<vmem>>, %arg9: memref<8x128xf32, #tpu.memory_space<vmem>>) attributes {dimension_semantics = [#tpu.dimension_semantics<parallel>], iteration_bounds = array<i64: 1>, scalar_prefetch = 0 : i64, scratch_operands = 4 : i64, tpu.core_type = #tpu.core_type<tc>, window_params = [{transform_indices = @transform_0, window_bounds = array<i64: 8, 8, 1024>}, {pipeline_mode = #tpu.pipeline_mode<synchronous>, transform_indices = @transform_1, window_bounds = array<i64: 128, 512>}, {pipeline_mode = #tpu.pipeline_mode<synchronous>, transform_indices = @transform_2, window_bounds = array<i64: 128, 512>}, {transform_indices = @transform_3, window_bounds = array<i64: 8, 1>}, {transform_indices = @transform_4, window_bounds = array<i64: 8, 8, 256>}]} {
    %cst = arith.constant 0.000000e+00 : f32
    %0 = vector.broadcast %cst : f32 to vector<8x128xf32>
    %c0 = arith.constant 0 : index
    %c0_0 = arith.constant 0 : index
    %1 = vector.load %arg6[%c0, %c0_0] : memref<8x128xf32, #tpu.memory_space<vmem>>, vector<8x128xf32>
    tpu.vector_store %arg6[%c0, %c0_0], %0 {strides = array<i32>} : memref<8x128xf32, #tpu.memory_space<vmem>>, vector<8x128xf32>,
    %cst_1 = arith.constant 0.000000e+00 : f32
    %2 = vector.broadcast %cst_1 : f32 to vector<8x128xf32>
    %c0_2 = arith.constant 0 : index
    %c0_3 = arith.constant 0 : index
    %3 = vector.load %arg7[%c0_2, %c0_3] : memref<8x128xf32, #tpu.memory_space<vmem>>, vector<8x128xf32>
    tpu.vector_store %arg7[%c0_2, %c0_3], %2 {strides = array<i32>} : memref<8x128xf32, #tpu.memory_space<vmem>>, vector<8x128xf32>,
    %cst_4 = arith.constant 0.000000e+00 : f32
    %4 = vector.broadcast %cst_4 : f32 to vector<8x128xf32>
    %c0_5 = arith.constant 0 : index
    %c0_6 = arith.constant 0 : index
    %5 = vector.load %arg8[%c0_5, %c0_6] : memref<8x128xf32, #tpu.memory_space<vmem>>, vector<8x128xf32>
    tpu.vector_store %arg8[%c0_5, %c0_6], %4 {strides = array<i32>} : memref<8x128xf32, #tpu.memory_space<vmem>>, vector<8x128xf32>,
    %cst_7 = arith.constant 0.000000e+00 : f32
    %6 = vector.broadcast %cst_7 : f32 to vector<8x128xf32>
    %c0_8 = arith.constant 0 : index
    %c0_9 = arith.constant 0 : index
    %7 = vector.load %arg9[%c0_8, %c0_9] : memref<8x128xf32, #tpu.memory_space<vmem>>, vector<8x128xf32>
    tpu.vector_store %arg9[%c0_8, %c0_9], %6 {strides = array<i32>} : memref<8x128xf32, #tpu.memory_space<vmem>>, vector<8x128xf32>,
    %c0_10 = arith.constant 0 : index
    %c0_11 = arith.constant 0 : index
    %8 = vector.load %arg4[%c0_10, %c0_11] : memref<8x1xi32, #tpu.memory_space<vmem>>, vector<8x1xi32>
    %c0_i32 = arith.constant 0 : i32
    %c7_i32 = arith.constant 7 : i32
    %9 = arith.subi %c7_i32, %c0_i32 : i32
    %10 = arith.index_cast %c0_i32 : i32 to index
    %c0_12 = arith.constant 0 : index
    %c0_13 = arith.constant 0 : index
    %11 = vector.load %arg1[%10, %c0_12, %c0_13] : memref<8x8x1024xbf16, #tpu.memory_space<vmem>>, vector<1x8x512xbf16>
    %12 = vector.shape_cast %11 : vector<1x8x512xbf16> to vector<8x512xbf16>
    %c0_14 = arith.constant 0 : index
    %c0_15 = arith.constant 0 : index
    %13 = vector.load %arg6[%c0_14, %c0_15] : memref<8x128xf32, #tpu.memory_space<vmem>>, vector<8x128xf32>
    %c0_16 = arith.constant 0 : index
    %c0_17 = arith.constant 0 : index
    %14 = vector.load %arg7[%c0_16, %c0_17] : memref<8x128xf32, #tpu.memory_space<vmem>>, vector<8x128xf32>
    %15 = arith.extf %12 : vector<8x512xbf16> to vector<8x512xf32>
    %16 = arith.truncf %13 : vector<8x128xf32> to vector<8x128xbf16>
    %c0_18 = arith.constant 0 : index
    %c0_19 = arith.constant 0 : index
    %17 = vector.load %arg2[%c0_18, %c0_19] : memref<128x512xbf16, #tpu.memory_space<vmem>>, vector<128x512xbf16>
    %cst_20 = arith.constant dense<0.000000e+00> : vector<8x512xf32>
    %18 = tpu.matmul %16, %17, %cst_20 {dimension_numbers = #tpu.dot_dimension_numbers<[1], [0], [0], [1], [0, 0, 1, 1], [], []>} : vector<8x128xbf16>, vector<128x512xbf16>, vector<8x512xf32> -> vector<8x512xf32>
    %19 = arith.addf %15, %18 : vector<8x512xf32>
    %20 = vector.extract_strided_slice %19 {offsets = [0, 0], sizes = [8, 384], strides = [1, 1]} : vector<8x512xf32> to vector<8x384xf32>
    %21 = arith.negf %20 : vector<8x384xf32>
    %22 = math.exp %21 : vector<8x384xf32>
    %cst_21 = arith.constant 1.000000e+00 : f32
    %23 = vector.broadcast %cst_21 : f32 to vector<8x384xf32>
    %24 = arith.addf %23, %22 : vector<8x384xf32>
    %25 = arith.divf %23, %24 : vector<8x384xf32>
    %26 = vector.extract_strided_slice %19 {offsets = [0, 384], sizes = [8, 128], strides = [1, 1]} : vector<8x512xf32> to vector<8x128xf32>
    %27 = math.tanh %26 : vector<8x128xf32>
    %28 = vector.extract_strided_slice %25 {offsets = [0, 0], sizes = [8, 128], strides = [1, 1]} : vector<8x384xf32> to vector<8x128xf32>
    %29 = vector.extract_strided_slice %25 {offsets = [0, 128], sizes = [8, 128], strides = [1, 1]} : vector<8x384xf32> to vector<8x128xf32>
    %30 = vector.extract_strided_slice %25 {offsets = [0, 256], sizes = [8, 128], strides = [1, 1]} : vector<8x384xf32> to vector<8x128xf32>
    %31 = arith.mulf %29, %14 : vector<8x128xf32>
    %32 = arith.mulf %28, %27 : vector<8x128xf32>
    %33 = arith.addf %31, %32 : vector<8x128xf32>
    %34 = math.tanh %33 : vector<8x128xf32>
    %35 = arith.mulf %30, %34 : vector<8x128xf32>
    %36 = vector.broadcast %c0_i32 : i32 to vector<8x1xi32>
    %37 = arith.cmpi slt, %36, %8 : vector<8x1xi32>
    %38 = vector.shape_cast %37 : vector<8x1xi1> to vector<8x1xi1>
    %39 = vector.broadcast %38 : vector<8x1xi1> to vector<8x128xi1>
    %40 = arith.select %39, %35, %13 : vector<8x128xi1>, vector<8x128xf32>
    %41 = vector.shape_cast %37 : vector<8x1xi1> to vector<8x1xi1>
    %42 = vector.broadcast %41 : vector<8x1xi1> to vector<8x128xi1>
    %43 = arith.select %42, %33, %14 : vector<8x128xi1>, vector<8x128xf32>
    %cst_22 = arith.constant 0.000000e+00 : f32
    %44 = vector.shape_cast %37 : vector<8x1xi1> to vector<8x1xi1>
    %45 = vector.broadcast %44 : vector<8x1xi1> to vector<8x128xi1>
    %46 = vector.broadcast %cst_22 : f32 to vector<8x128xf32>
    %47 = arith.select %45, %35, %46 : vector<8x128xi1>, vector<8x128xf32>
    %c0_23 = arith.constant 0 : index
    %c0_24 = arith.constant 0 : index
    %48 = vector.load %arg6[%c0_23, %c0_24] : memref<8x128xf32, #tpu.memory_space<vmem>>, vector<8x128xf32>
    tpu.vector_store %arg6[%c0_23, %c0_24], %40 {strides = array<i32>} : memref<8x128xf32, #tpu.memory_space<vmem>>, vector<8x128xf32>,
    %c0_25 = arith.constant 0 : index
    %c0_26 = arith.constant 0 : index
    %49 = vector.load %arg7[%c0_25, %c0_26] : memref<8x128xf32, #tpu.memory_space<vmem>>, vector<8x128xf32>
    tpu.vector_store %arg7[%c0_25, %c0_26], %43 {strides = array<i32>} : memref<8x128xf32, #tpu.memory_space<vmem>>, vector<8x128xf32>,
    %50 = arith.index_cast %c0_i32 : i32 to index
    %c0_27 = arith.constant 0 : index
    %c0_28 = arith.constant 0 : index
    %51 = vector.load %arg5[%50, %c0_27, %c0_28] : memref<8x8x256xf32, #tpu.memory_space<vmem>>, vector<1x8x128xf32>
    %52 = vector.shape_cast %51 : vector<1x8x128xf32> to vector<8x128xf32>
    %53 = vector.shape_cast %47 : vector<8x128xf32> to vector<1x8x128xf32>
    tpu.vector_store %arg5[%50, %c0_27, %c0_28], %53 {strides = array<i32>} : memref<8x8x256xf32, #tpu.memory_space<vmem>>, vector<1x8x128xf32>,
    %54 = arith.index_cast %9 : i32 to index
    %c0_29 = arith.constant 0 : index
    %c512 = arith.constant 512 : index
    %55 = vector.load %arg1[%54, %c0_29, %c512] : memref<8x8x1024xbf16, #tpu.memory_space<vmem>>, vector<1x8x512xbf16>
    %56 = vector.shape_cast %55 : vector<1x8x512xbf16> to vector<8x512xbf16>
    %c0_30 = arith.constant 0 : index
    %c0_31 = arith.constant 0 : index
    %57 = vector.load %arg8[%c0_30, %c0_31] : memref<8x128xf32, #tpu.memory_space<vmem>>, vector<8x128xf32>
    %c0_32 = arith.constant 0 : index
    %c0_33 = arith.constant 0 : index
    %58 = vector.load %arg9[%c0_32, %c0_33] : memref<8x128xf32, #tpu.memory_space<vmem>>, vector<8x128xf32>
    %59 = arith.extf %56 : vector<8x512xbf16> to vector<8x512xf32>
    %60 = arith.truncf %57 : vector<8x128xf32> to vector<8x128xbf16>
    %c0_34 = arith.constant 0 : index
    %c0_35 = arith.constant 0 : index
    %61 = vector.load %arg3[%c0_34, %c0_35] : memref<128x512xbf16, #tpu.memory_space<vmem>>, vector<128x512xbf16>
    %cst_36 = arith.constant dense<0.000000e+00> : vector<8x512xf32>
    %62 = tpu.matmul %60, %61, %cst_36 {dimension_numbers = #tpu.dot_dimension_numbers<[1], [0], [0], [1], [0, 0, 1, 1], [], []>} : vector<8x128xbf16>, vector<128x512xbf16>, vector<8x512xf32> -> vector<8x512xf32>
    %63 = arith.addf %59, %62 : vector<8x512xf32>
    %64 = vector.extract_strided_slice %63 {offsets = [0, 0], sizes = [8, 384], strides = [1, 1]} : vector<8x512xf32> to vector<8x384xf32>
    %65 = arith.negf %64 : vector<8x384xf32>
    %66 = math.exp %65 : vector<8x384xf32>
    %cst_37 = arith.constant 1.000000e+00 : f32
    %67 = vector.broadcast %cst_37 : f32 to vector<8x384xf32>
    %68 = arith.addf %67, %66 : vector<8x384xf32>
    %69 = arith.divf %67, %68 : vector<8x384xf32>
    %70 = vector.extract_strided_slice %63 {offsets = [0, 384], sizes = [8, 128], strides = [1, 1]} : vector<8x512xf32> to vector<8x128xf32>
    %71 = math.tanh %70 : vector<8x128xf32>
    %72 = vector.extract_strided_slice %69 {offsets = [0, 0], sizes = [8, 128], strides = [1, 1]} : vector<8x384xf32> to vector<8x128xf32>
    %73 = vector.extract_strided_slice %69 {offsets = [0, 128], sizes = [8, 128], strides = [1, 1]} : vector<8x384xf32> to vector<8x128xf32>
    %74 = vector.extract_strided_slice %69 {offsets = [0, 256], sizes = [8, 128], strides = [1, 1]} : vector<8x384xf32> to vector<8x128xf32>
    %75 = arith.mulf %73, %58 : vector<8x128xf32>
    %76 = arith.mulf %72, %71 : vector<8x128xf32>
    %77 = arith.addf %75, %76 : vector<8x128xf32>
    %78 = math.tanh %77 : vector<8x128xf32>
    %79 = arith.mulf %74, %78 : vector<8x128xf32>
    %80 = vector.broadcast %9 : i32 to vector<8x1xi32>
    %81 = arith.cmpi slt, %80, %8 : vector<8x1xi32>
    %82 = vector.shape_cast %81 : vector<8x1xi1> to vector<8x1xi1>
    %83 = vector.broadcast %82 : vector<8x1xi1> to vector<8x128xi1>
    %84 = arith.select %83, %79, %57 : vector<8x128xi1>, vector<8x128xf32>
    %85 = vector.shape_cast %81 : vector<8x1xi1> to vector<8x1xi1>
    %86 = vector.broadcast %85 : vector<8x1xi1> to vector<8x128xi1>
    %87 = arith.select %86, %77, %58 : vector<8x128xi1>, vector<8x128xf32>
    %cst_38 = arith.constant 0.000000e+00 : f32
    %88 = vector.shape_cast %81 : vector<8x1xi1> to vector<8x1xi1>
    %89 = vector.broadcast %88 : vector<8x1xi1> to vector<8x128xi1>
    %90 = vector.broadcast %cst_38 : f32 to vector<8x128xf32>
    %91 = arith.select %89, %79, %90 : vector<8x128xi1>, vector<8x128xf32>
    %c0_39 = arith.constant 0 : index
    %c0_40 = arith.constant 0 : index
    %92 = vector.load %arg8[%c0_39, %c0_40] : memref<8x128xf32, #tpu.memory_space<vmem>>, vector<8x128xf32>
    tpu.vector_store %arg8[%c0_39, %c0_40], %84 {strides = array<i32>} : memref<8x128xf32, #tpu.memory_space<vmem>>, vector<8x128xf32>,
    %c0_41 = arith.constant 0 : index
    %c0_42 = arith.constant 0 : index
    %93 = vector.load %arg9[%c0_41, %c0_42] : memref<8x128xf32, #tpu.memory_space<vmem>>, vector<8x128xf32>
    tpu.vector_store %arg9[%c0_41, %c0_42], %87 {strides = array<i32>} : memref<8x128xf32, #tpu.memory_space<vmem>>, vector<8x128xf32>,
    %94 = arith.index_cast %9 : i32 to index
    %c0_43 = arith.constant 0 : index
    %c128 = arith.constant 128 : index
    %95 = vector.load %arg5[%94, %c0_43, %c128] : memref<8x8x256xf32, #tpu.memory_space<vmem>>, vector<1x8x128xf32>
    %96 = vector.shape_cast %95 : vector<1x8x128xf32> to vector<8x128xf32>
    %97 = vector.shape_cast %91 : vector<8x128xf32> to vector<1x8x128xf32>
    tpu.vector_store %arg5[%94, %c0_43, %c128], %97 {strides = array<i32>} : memref<8x8x256xf32, #tpu.memory_space<vmem>>, vector<1x8x128xf32>,
    %c1_i32 = arith.constant 1 : i32
    %c7_i32_44 = arith.constant 7 : i32
    %98 = arith.subi %c7_i32_44, %c1_i32 : i32
    %99 = arith.index_cast %c1_i32 : i32 to index
    %c0_45 = arith.constant 0 : index
    %c0_46 = arith.constant 0 : index
    %100 = vector.load %arg1[%99, %c0_45, %c0_46] : memref<8x8x1024xbf16, #tpu.memory_space<vmem>>, vector<1x8x512xbf16>
    %101 = vector.shape_cast %100 : vector<1x8x512xbf16> to vector<8x512xbf16>
    %c0_47 = arith.constant 0 : index
    %c0_48 = arith.constant 0 : index
    %102 = vector.load %arg6[%c0_47, %c0_48] : memref<8x128xf32, #tpu.memory_space<vmem>>, vector<8x128xf32>
    %c0_49 = arith.constant 0 : index
    %c0_50 = arith.constant 0 : index
    %103 = vector.load %arg7[%c0_49, %c0_50] : memref<8x128xf32, #tpu.memory_space<vmem>>, vector<8x128xf32>
    %104 = arith.extf %101 : vector<8x512xbf16> to vector<8x512xf32>
    %105 = arith.truncf %102 : vector<8x128xf32> to vector<8x128xbf16>
    %c0_51 = arith.constant 0 : index
    %c0_52 = arith.constant 0 : index
    %106 = vector.load %arg2[%c0_51, %c0_52] : memref<128x512xbf16, #tpu.memory_space<vmem>>, vector<128x512xbf16>
    %cst_53 = arith.constant dense<0.000000e+00> : vector<8x512xf32>
    %107 = tpu.matmul %105, %106, %cst_53 {dimension_numbers = #tpu.dot_dimension_numbers<[1], [0], [0], [1], [0, 0, 1, 1], [], []>} : vector<8x128xbf16>, vector<128x512xbf16>, vector<8x512xf32> -> vector<8x512xf32>
    %108 = arith.addf %104, %107 : vector<8x512xf32>
    %109 = vector.extract_strided_slice %108 {offsets = [0, 0], sizes = [8, 384], strides = [1, 1]} : vector<8x512xf32> to vector<8x384xf32>
    %110 = arith.negf %109 : vector<8x384xf32>
    %111 = math.exp %110 : vector<8x384xf32>
    %cst_54 = arith.constant 1.000000e+00 : f32
    %112 = vector.broadcast %cst_54 : f32 to vector<8x384xf32>
    %113 = arith.addf %112, %111 : vector<8x384xf32>
    %114 = arith.divf %112, %113 : vector<8x384xf32>
    %115 = vector.extract_strided_slice %108 {offsets = [0, 384], sizes = [8, 128], strides = [1, 1]} : vector<8x512xf32> to vector<8x128xf32>
    %116 = math.tanh %115 : vector<8x128xf32>
    %117 = vector.extract_strided_slice %114 {offsets = [0, 0], sizes = [8, 128], strides = [1, 1]} : vector<8x384xf32> to vector<8x128xf32>
    %118 = vector.extract_strided_slice %114 {offsets = [0, 128], sizes = [8, 128], strides = [1, 1]} : vector<8x384xf32> to vector<8x128xf32>
    %119 = vector.extract_strided_slice %114 {offsets = [0, 256], sizes = [8, 128], strides = [1, 1]} : vector<8x384xf32> to vector<8x128xf32>
    %120 = arith.mulf %118, %103 : vector<8x128xf32>
    %121 = arith.mulf %117, %116 : vector<8x128xf32>
    %122 = arith.addf %120, %121 : vector<8x128xf32>
    %123 = math.tanh %122 : vector<8x128xf32>
    %124 = arith.mulf %119, %123 : vector<8x128xf32>
    %125 = vector.broadcast %c1_i32 : i32 to vector<8x1xi32>
    %126 = arith.cmpi slt, %125, %8 : vector<8x1xi32>
    %127 = vector.shape_cast %126 : vector<8x1xi1> to vector<8x1xi1>
    %128 = vector.broadcast %127 : vector<8x1xi1> to vector<8x128xi1>
    %129 = arith.select %128, %124, %102 : vector<8x128xi1>, vector<8x128xf32>
    %130 = vector.shape_cast %126 : vector<8x1xi1> to vector<8x1xi1>
    %131 = vector.broadcast %130 : vector<8x1xi1> to vector<8x128xi1>
    %132 = arith.select %131, %122, %103 : vector<8x128xi1>, vector<8x128xf32>
    %cst_55 = arith.constant 0.000000e+00 : f32
    %133 = vector.shape_cast %126 : vector<8x1xi1> to vector<8x1xi1>
    %134 = vector.broadcast %133 : vector<8x1xi1> to vector<8x128xi1>
    %135 = vector.broadcast %cst_55 : f32 to vector<8x128xf32>
    %136 = arith.select %134, %124, %135 : vector<8x128xi1>, vector<8x128xf32>
    %c0_56 = arith.constant 0 : index
    %c0_57 = arith.constant 0 : index
    %137 = vector.load %arg6[%c0_56, %c0_57] : memref<8x128xf32, #tpu.memory_space<vmem>>, vector<8x128xf32>
    tpu.vector_store %arg6[%c0_56, %c0_57], %129 {strides = array<i32>} : memref<8x128xf32, #tpu.memory_space<vmem>>, vector<8x128xf32>,
    %c0_58 = arith.constant 0 : index
    %c0_59 = arith.constant 0 : index
    %138 = vector.load %arg7[%c0_58, %c0_59] : memref<8x128xf32, #tpu.memory_space<vmem>>, vector<8x128xf32>
    tpu.vector_store %arg7[%c0_58, %c0_59], %132 {strides = array<i32>} : memref<8x128xf32, #tpu.memory_space<vmem>>, vector<8x128xf32>,
    %139 = arith.index_cast %c1_i32 : i32 to index
    %c0_60 = arith.constant 0 : index
    %c0_61 = arith.constant 0 : index
    %140 = vector.load %arg5[%139, %c0_60, %c0_61] : memref<8x8x256xf32, #tpu.memory_space<vmem>>, vector<1x8x128xf32>
    %141 = vector.shape_cast %140 : vector<1x8x128xf32> to vector<8x128xf32>
    %142 = vector.shape_cast %136 : vector<8x128xf32> to vector<1x8x128xf32>
    tpu.vector_store %arg5[%139, %c0_60, %c0_61], %142 {strides = array<i32>} : memref<8x8x256xf32, #tpu.memory_space<vmem>>, vector<1x8x128xf32>,
    %143 = arith.index_cast %98 : i32 to index
    %c0_62 = arith.constant 0 : index
    %c512_63 = arith.constant 512 : index
    %144 = vector.load %arg1[%143, %c0_62, %c512_63] : memref<8x8x1024xbf16, #tpu.memory_space<vmem>>, vector<1x8x512xbf16>
    %145 = vector.shape_cast %144 : vector<1x8x512xbf16> to vector<8x512xbf16>
    %c0_64 = arith.constant 0 : index
    %c0_65 = arith.constant 0 : index
    %146 = vector.load %arg8[%c0_64, %c0_65] : memref<8x128xf32, #tpu.memory_space<vmem>>, vector<8x128xf32>
    %c0_66 = arith.constant 0 : index
    %c0_67 = arith.constant 0 : index
    %147 = vector.load %arg9[%c0_66, %c0_67] : memref<8x128xf32, #tpu.memory_space<vmem>>, vector<8x128xf32>
    %148 = arith.extf %145 : vector<8x512xbf16> to vector<8x512xf32>
    %149 = arith.truncf %146 : vector<8x128xf32> to vector<8x128xbf16>
    %c0_68 = arith.constant 0 : index
    %c0_69 = arith.constant 0 : index
    %150 = vector.load %arg3[%c0_68, %c0_69] : memref<128x512xbf16, #tpu.memory_space<vmem>>, vector<128x512xbf16>
    %cst_70 = arith.constant dense<0.000000e+00> : vector<8x512xf32>
    %151 = tpu.matmul %149, %150, %cst_70 {dimension_numbers = #tpu.dot_dimension_numbers<[1], [0], [0], [1], [0, 0, 1, 1], [], []>} : vector<8x128xbf16>, vector<128x512xbf16>, vector<8x512xf32> -> vector<8x512xf32>
    %152 = arith.addf %148, %151 : vector<8x512xf32>
    %153 = vector.extract_strided_slice %152 {offsets = [0, 0], sizes = [8, 384], strides = [1, 1]} : vector<8x512xf32> to vector<8x384xf32>
    %154 = arith.negf %153 : vector<8x384xf32>
    %155 = math.exp %154 : vector<8x384xf32>
    %cst_71 = arith.constant 1.000000e+00 : f32
    %156 = vector.broadcast %cst_71 : f32 to vector<8x384xf32>
    %157 = arith.addf %156, %155 : vector<8x384xf32>
    %158 = arith.divf %156, %157 : vector<8x384xf32>
    %159 = vector.extract_strided_slice %152 {offsets = [0, 384], sizes = [8, 128], strides = [1, 1]} : vector<8x512xf32> to vector<8x128xf32>
    %160 = math.tanh %159 : vector<8x128xf32>
    %161 = vector.extract_strided_slice %158 {offsets = [0, 0], sizes = [8, 128], strides = [1, 1]} : vector<8x384xf32> to vector<8x128xf32>
    %162 = vector.extract_strided_slice %158 {offsets = [0, 128], sizes = [8, 128], strides = [1, 1]} : vector<8x384xf32> to vector<8x128xf32>
    %163 = vector.extract_strided_slice %158 {offsets = [0, 256], sizes = [8, 128], strides = [1, 1]} : vector<8x384xf32> to vector<8x128xf32>
    %164 = arith.mulf %162, %147 : vector<8x128xf32>
    %165 = arith.mulf %161, %160 : vector<8x128xf32>
    %166 = arith.addf %164, %165 : vector<8x128xf32>
    %167 = math.tanh %166 : vector<8x128xf32>
    %168 = arith.mulf %163, %167 : vector<8x128xf32>
    %169 = vector.broadcast %98 : i32 to vector<8x1xi32>
    %170 = arith.cmpi slt, %169, %8 : vector<8x1xi32>
    %171 = vector.shape_cast %170 : vector<8x1xi1> to vector<8x1xi1>
    %172 = vector.broadcast %171 : vector<8x1xi1> to vector<8x128xi1>
    %173 = arith.select %172, %168, %146 : vector<8x128xi1>, vector<8x128xf32>
    %174 = vector.shape_cast %170 : vector<8x1xi1> to vector<8x1xi1>
    %175 = vector.broadcast %174 : vector<8x1xi1> to vector<8x128xi1>
    %176 = arith.select %175, %166, %147 : vector<8x128xi1>, vector<8x128xf32>
    %cst_72 = arith.constant 0.000000e+00 : f32
    %177 = vector.shape_cast %170 : vector<8x1xi1> to vector<8x1xi1>
    %178 = vector.broadcast %177 : vector<8x1xi1> to vector<8x128xi1>
    %179 = vector.broadcast %cst_72 : f32 to vector<8x128xf32>
    %180 = arith.select %178, %168, %179 : vector<8x128xi1>, vector<8x128xf32>
    %c0_73 = arith.constant 0 : index
    %c0_74 = arith.constant 0 : index
    %181 = vector.load %arg8[%c0_73, %c0_74] : memref<8x128xf32, #tpu.memory_space<vmem>>, vector<8x128xf32>
    tpu.vector_store %arg8[%c0_73, %c0_74], %173 {strides = array<i32>} : memref<8x128xf32, #tpu.memory_space<vmem>>, vector<8x128xf32>,
    %c0_75 = arith.constant 0 : index
    %c0_76 = arith.constant 0 : index
    %182 = vector.load %arg9[%c0_75, %c0_76] : memref<8x128xf32, #tpu.memory_space<vmem>>, vector<8x128xf32>
    tpu.vector_store %arg9[%c0_75, %c0_76], %176 {strides = array<i32>} : memref<8x128xf32, #tpu.memory_space<vmem>>, vector<8x128xf32>,
    %183 = arith.index_cast %98 : i32 to index
    %c0_77 = arith.constant 0 : index
    %c128_78 = arith.constant 128 : index
    %184 = vector.load %arg5[%183, %c0_77, %c128_78] : memref<8x8x256xf32, #tpu.memory_space<vmem>>, vector<1x8x128xf32>
    %185 = vector.shape_cast %184 : vector<1x8x128xf32> to vector<8x128xf32>
    %186 = vector.shape_cast %180 : vector<8x128xf32> to vector<1x8x128xf32>
    tpu.vector_store %arg5[%183, %c0_77, %c128_78], %186 {strides = array<i32>} : memref<8x8x256xf32, #tpu.memory_space<vmem>>, vector<1x8x128xf32>,
    %c2_i32 = arith.constant 2 : i32
    %c7_i32_79 = arith.constant 7 : i32
    %187 = arith.subi %c7_i32_79, %c2_i32 : i32
    %188 = arith.index_cast %c2_i32 : i32 to index
    %c0_80 = arith.constant 0 : index
    %c0_81 = arith.constant 0 : index
    %189 = vector.load %arg1[%188, %c0_80, %c0_81] : memref<8x8x1024xbf16, #tpu.memory_space<vmem>>, vector<1x8x512xbf16>
    %190 = vector.shape_cast %189 : vector<1x8x512xbf16> to vector<8x512xbf16>
    %c0_82 = arith.constant 0 : index
    %c0_83 = arith.constant 0 : index
    %191 = vector.load %arg6[%c0_82, %c0_83] : memref<8x128xf32, #tpu.memory_space<vmem>>, vector<8x128xf32>
    %c0_84 = arith.constant 0 : index
    %c0_85 = arith.constant 0 : index
    %192 = vector.load %arg7[%c0_84, %c0_85] : memref<8x128xf32, #tpu.memory_space<vmem>>, vector<8x128xf32>
    %193 = arith.extf %190 : vector<8x512xbf16> to vector<8x512xf32>
    %194 = arith.truncf %191 : vector<8x128xf32> to vector<8x128xbf16>
    %c0_86 = arith.constant 0 : index
    %c0_87 = arith.constant 0 : index
    %195 = vector.load %arg2[%c0_86, %c0_87] : memref<128x512xbf16, #tpu.memory_space<vmem>>, vector<128x512xbf16>
    %cst_88 = arith.constant dense<0.000000e+00> : vector<8x512xf32>
    %196 = tpu.matmul %194, %195, %cst_88 {dimension_numbers = #tpu.dot_dimension_numbers<[1], [0], [0], [1], [0, 0, 1, 1], [], []>} : vector<8x128xbf16>, vector<128x512xbf16>, vector<8x512xf32> -> vector<8x512xf32>
    %197 = arith.addf %193, %196 : vector<8x512xf32>
    %198 = vector.extract_strided_slice %197 {offsets = [0, 0], sizes = [8, 384], strides = [1, 1]} : vector<8x512xf32> to vector<8x384xf32>
    %199 = arith.negf %198 : vector<8x384xf32>
    %200 = math.exp %199 : vector<8x384xf32>
    %cst_89 = arith.constant 1.000000e+00 : f32
    %201 = vector.broadcast %cst_89 : f32 to vector<8x384xf32>
    %202 = arith.addf %201, %200 : vector<8x384xf32>
    %203 = arith.divf %201, %202 : vector<8x384xf32>
    %204 = vector.extract_strided_slice %197 {offsets = [0, 384], sizes = [8, 128], strides = [1, 1]} : vector<8x512xf32> to vector<8x128xf32>
    %205 = math.tanh %204 : vector<8x128xf32>
    %206 = vector.extract_strided_slice %203 {offsets = [0, 0], sizes = [8, 128], strides = [1, 1]} : vector<8x384xf32> to vector<8x128xf32>
    %207 = vector.extract_strided_slice %203 {offsets = [0, 128], sizes = [8, 128], strides = [1, 1]} : vector<8x384xf32> to vector<8x128xf32>
    %208 = vector.extract_strided_slice %203 {offsets = [0, 256], sizes = [8, 128], strides = [1, 1]} : vector<8x384xf32> to vector<8x128xf32>
    %209 = arith.mulf %207, %192 : vector<8x128xf32>
    %210 = arith.mulf %206, %205 : vector<8x128xf32>
    %211 = arith.addf %209, %210 : vector<8x128xf32>
    %212 = math.tanh %211 : vector<8x128xf32>
    %213 = arith.mulf %208, %212 : vector<8x128xf32>
    %214 = vector.broadcast %c2_i32 : i32 to vector<8x1xi32>
    %215 = arith.cmpi slt, %214, %8 : vector<8x1xi32>
    %216 = vector.shape_cast %215 : vector<8x1xi1> to vector<8x1xi1>
    %217 = vector.broadcast %216 : vector<8x1xi1> to vector<8x128xi1>
    %218 = arith.select %217, %213, %191 : vector<8x128xi1>, vector<8x128xf32>
    %219 = vector.shape_cast %215 : vector<8x1xi1> to vector<8x1xi1>
    %220 = vector.broadcast %219 : vector<8x1xi1> to vector<8x128xi1>
    %221 = arith.select %220, %211, %192 : vector<8x128xi1>, vector<8x128xf32>
    %cst_90 = arith.constant 0.000000e+00 : f32
    %222 = vector.shape_cast %215 : vector<8x1xi1> to vector<8x1xi1>
    %223 = vector.broadcast %222 : vector<8x1xi1> to vector<8x128xi1>
    %224 = vector.broadcast %cst_90 : f32 to vector<8x128xf32>
    %225 = arith.select %223, %213, %224 : vector<8x128xi1>, vector<8x128xf32>
    %c0_91 = arith.constant 0 : index
    %c0_92 = arith.constant 0 : index
    %226 = vector.load %arg6[%c0_91, %c0_92] : memref<8x128xf32, #tpu.memory_space<vmem>>, vector<8x128xf32>
    tpu.vector_store %arg6[%c0_91, %c0_92], %218 {strides = array<i32>} : memref<8x128xf32, #tpu.memory_space<vmem>>, vector<8x128xf32>,
    %c0_93 = arith.constant 0 : index
    %c0_94 = arith.constant 0 : index
    %227 = vector.load %arg7[%c0_93, %c0_94] : memref<8x128xf32, #tpu.memory_space<vmem>>, vector<8x128xf32>
    tpu.vector_store %arg7[%c0_93, %c0_94], %221 {strides = array<i32>} : memref<8x128xf32, #tpu.memory_space<vmem>>, vector<8x128xf32>,
    %228 = arith.index_cast %c2_i32 : i32 to index
    %c0_95 = arith.constant 0 : index
    %c0_96 = arith.constant 0 : index
    %229 = vector.load %arg5[%228, %c0_95, %c0_96] : memref<8x8x256xf32, #tpu.memory_space<vmem>>, vector<1x8x128xf32>
    %230 = vector.shape_cast %229 : vector<1x8x128xf32> to vector<8x128xf32>
    %231 = vector.shape_cast %225 : vector<8x128xf32> to vector<1x8x128xf32>
    tpu.vector_store %arg5[%228, %c0_95, %c0_96], %231 {strides = array<i32>} : memref<8x8x256xf32, #tpu.memory_space<vmem>>, vector<1x8x128xf32>,
    %232 = arith.index_cast %187 : i32 to index
    %c0_97 = arith.constant 0 : index
    %c512_98 = arith.constant 512 : index
    %233 = vector.load %arg1[%232, %c0_97, %c512_98] : memref<8x8x1024xbf16, #tpu.memory_space<vmem>>, vector<1x8x512xbf16>
    %234 = vector.shape_cast %233 : vector<1x8x512xbf16> to vector<8x512xbf16>
    %c0_99 = arith.constant 0 : index
    %c0_100 = arith.constant 0 : index
    %235 = vector.load %arg8[%c0_99, %c0_100] : memref<8x128xf32, #tpu.memory_space<vmem>>, vector<8x128xf32>
    %c0_101 = arith.constant 0 : index
    %c0_102 = arith.constant 0 : index
    %236 = vector.load %arg9[%c0_101, %c0_102] : memref<8x128xf32, #tpu.memory_space<vmem>>, vector<8x128xf32>
    %237 = arith.extf %234 : vector<8x512xbf16> to vector<8x512xf32>
    %238 = arith.truncf %235 : vector<8x128xf32> to vector<8x128xbf16>
    %c0_103 = arith.constant 0 : index
    %c0_104 = arith.constant 0 : index
    %239 = vector.load %arg3[%c0_103, %c0_104] : memref<128x512xbf16, #tpu.memory_space<vmem>>, vector<128x512xbf16>
    %cst_105 = arith.constant dense<0.000000e+00> : vector<8x512xf32>
    %240 = tpu.matmul %238, %239, %cst_105 {dimension_numbers = #tpu.dot_dimension_numbers<[1], [0], [0], [1], [0, 0, 1, 1], [], []>} : vector<8x128xbf16>, vector<128x512xbf16>, vector<8x512xf32> -> vector<8x512xf32>
    %241 = arith.addf %237, %240 : vector<8x512xf32>
    %242 = vector.extract_strided_slice %241 {offsets = [0, 0], sizes = [8, 384], strides = [1, 1]} : vector<8x512xf32> to vector<8x384xf32>
    %243 = arith.negf %242 : vector<8x384xf32>
    %244 = math.exp %243 : vector<8x384xf32>
    %cst_106 = arith.constant 1.000000e+00 : f32
    %245 = vector.broadcast %cst_106 : f32 to vector<8x384xf32>
    %246 = arith.addf %245, %244 : vector<8x384xf32>
    %247 = arith.divf %245, %246 : vector<8x384xf32>
    %248 = vector.extract_strided_slice %241 {offsets = [0, 384], sizes = [8, 128], strides = [1, 1]} : vector<8x512xf32> to vector<8x128xf32>
    %249 = math.tanh %248 : vector<8x128xf32>
    %250 = vector.extract_strided_slice %247 {offsets = [0, 0], sizes = [8, 128], strides = [1, 1]} : vector<8x384xf32> to vector<8x128xf32>
    %251 = vector.extract_strided_slice %247 {offsets = [0, 128], sizes = [8, 128], strides = [1, 1]} : vector<8x384xf32> to vector<8x128xf32>
    %252 = vector.extract_strided_slice %247 {offsets = [0, 256], sizes = [8, 128], strides = [1, 1]} : vector<8x384xf32> to vector<8x128xf32>
    %253 = arith.mulf %251, %236 : vector<8x128xf32>
    %254 = arith.mulf %250, %249 : vector<8x128xf32>
    %255 = arith.addf %253, %254 : vector<8x128xf32>
    %256 = math.tanh %255 : vector<8x128xf32>
    %257 = arith.mulf %252, %256 : vector<8x128xf32>
    %258 = vector.broadcast %187 : i32 to vector<8x1xi32>
    %259 = arith.cmpi slt, %258, %8 : vector<8x1xi32>
    %260 = vector.shape_cast %259 : vector<8x1xi1> to vector<8x1xi1>
    %261 = vector.broadcast %260 : vector<8x1xi1> to vector<8x128xi1>
    %262 = arith.select %261, %257, %235 : vector<8x128xi1>, vector<8x128xf32>
    %263 = vector.shape_cast %259 : vector<8x1xi1> to vector<8x1xi1>
    %264 = vector.broadcast %263 : vector<8x1xi1> to vector<8x128xi1>
    %265 = arith.select %264, %255, %236 : vector<8x128xi1>, vector<8x128xf32>
    %cst_107 = arith.constant 0.000000e+00 : f32
    %266 = vector.shape_cast %259 : vector<8x1xi1> to vector<8x1xi1>
    %267 = vector.broadcast %266 : vector<8x1xi1> to vector<8x128xi1>
    %268 = vector.broadcast %cst_107 : f32 to vector<8x128xf32>
    %269 = arith.select %267, %257, %268 : vector<8x128xi1>, vector<8x128xf32>
    %c0_108 = arith.constant 0 : index
    %c0_109 = arith.constant 0 : index
    %270 = vector.load %arg8[%c0_108, %c0_109] : memref<8x128xf32, #tpu.memory_space<vmem>>, vector<8x128xf32>
    tpu.vector_store %arg8[%c0_108, %c0_109], %262 {strides = array<i32>} : memref<8x128xf32, #tpu.memory_space<vmem>>, vector<8x128xf32>,
    %c0_110 = arith.constant 0 : index
    %c0_111 = arith.constant 0 : index
    %271 = vector.load %arg9[%c0_110, %c0_111] : memref<8x128xf32, #tpu.memory_space<vmem>>, vector<8x128xf32>
    tpu.vector_store %arg9[%c0_110, %c0_111], %265 {strides = array<i32>} : memref<8x128xf32, #tpu.memory_space<vmem>>, vector<8x128xf32>,
    %272 = arith.index_cast %187 : i32 to index
    %c0_112 = arith.constant 0 : index
    %c128_113 = arith.constant 128 : index
    %273 = vector.load %arg5[%272, %c0_112, %c128_113] : memref<8x8x256xf32, #tpu.memory_space<vmem>>, vector<1x8x128xf32>
    %274 = vector.shape_cast %273 : vector<1x8x128xf32> to vector<8x128xf32>
    %275 = vector.shape_cast %269 : vector<8x128xf32> to vector<1x8x128xf32>
    tpu.vector_store %arg5[%272, %c0_112, %c128_113], %275 {strides = array<i32>} : memref<8x8x256xf32, #tpu.memory_space<vmem>>, vector<1x8x128xf32>,
    %c3_i32 = arith.constant 3 : i32
    %c7_i32_114 = arith.constant 7 : i32
    %276 = arith.subi %c7_i32_114, %c3_i32 : i32
    %277 = arith.index_cast %c3_i32 : i32 to index
    %c0_115 = arith.constant 0 : index
    %c0_116 = arith.constant 0 : index
    %278 = vector.load %arg1[%277, %c0_115, %c0_116] : memref<8x8x1024xbf16, #tpu.memory_space<vmem>>, vector<1x8x512xbf16>
    %279 = vector.shape_cast %278 : vector<1x8x512xbf16> to vector<8x512xbf16>
    %c0_117 = arith.constant 0 : index
    %c0_118 = arith.constant 0 : index
    %280 = vector.load %arg6[%c0_117, %c0_118] : memref<8x128xf32, #tpu.memory_space<vmem>>, vector<8x128xf32>
    %c0_119 = arith.constant 0 : index
    %c0_120 = arith.constant 0 : index
    %281 = vector.load %arg7[%c0_119, %c0_120] : memref<8x128xf32, #tpu.memory_space<vmem>>, vector<8x128xf32>
    %282 = arith.extf %279 : vector<8x512xbf16> to vector<8x512xf32>
    %283 = arith.truncf %280 : vector<8x128xf32> to vector<8x128xbf16>
    %c0_121 = arith.constant 0 : index
    %c0_122 = arith.constant 0 : index
    %284 = vector.load %arg2[%c0_121, %c0_122] : memref<128x512xbf16, #tpu.memory_space<vmem>>, vector<128x512xbf16>
    %cst_123 = arith.constant dense<0.000000e+00> : vector<8x512xf32>
    %285 = tpu.matmul %283, %284, %cst_123 {dimension_numbers = #tpu.dot_dimension_numbers<[1], [0], [0], [1], [0, 0, 1, 1], [], []>} : vector<8x128xbf16>, vector<128x512xbf16>, vector<8x512xf32> -> vector<8x512xf32>
    %286 = arith.addf %282, %285 : vector<8x512xf32>
    %287 = vector.extract_strided_slice %286 {offsets = [0, 0], sizes = [8, 384], strides = [1, 1]} : vector<8x512xf32> to vector<8x384xf32>
    %288 = arith.negf %287 : vector<8x384xf32>
    %289 = math.exp %288 : vector<8x384xf32>
    %cst_124 = arith.constant 1.000000e+00 : f32
    %290 = vector.broadcast %cst_124 : f32 to vector<8x384xf32>
    %291 = arith.addf %290, %289 : vector<8x384xf32>
    %292 = arith.divf %290, %291 : vector<8x384xf32>
    %293 = vector.extract_strided_slice %286 {offsets = [0, 384], sizes = [8, 128], strides = [1, 1]} : vector<8x512xf32> to vector<8x128xf32>
    %294 = math.tanh %293 : vector<8x128xf32>
    %295 = vector.extract_strided_slice %292 {offsets = [0, 0], sizes = [8, 128], strides = [1, 1]} : vector<8x384xf32> to vector<8x128xf32>
    %296 = vector.extract_strided_slice %292 {offsets = [0, 128], sizes = [8, 128], strides = [1, 1]} : vector<8x384xf32> to vector<8x128xf32>
    %297 = vector.extract_strided_slice %292 {offsets = [0, 256], sizes = [8, 128], strides = [1, 1]} : vector<8x384xf32> to vector<8x128xf32>
    %298 = arith.mulf %296, %281 : vector<8x128xf32>
    %299 = arith.mulf %295, %294 : vector<8x128xf32>
    %300 = arith.addf %298, %299 : vector<8x128xf32>
    %301 = math.tanh %300 : vector<8x128xf32>
    %302 = arith.mulf %297, %301 : vector<8x128xf32>
    %303 = vector.broadcast %c3_i32 : i32 to vector<8x1xi32>
    %304 = arith.cmpi slt, %303, %8 : vector<8x1xi32>
    %305 = vector.shape_cast %304 : vector<8x1xi1> to vector<8x1xi1>
    %306 = vector.broadcast %305 : vector<8x1xi1> to vector<8x128xi1>
    %307 = arith.select %306, %302, %280 : vector<8x128xi1>, vector<8x128xf32>
    %308 = vector.shape_cast %304 : vector<8x1xi1> to vector<8x1xi1>
    %309 = vector.broadcast %308 : vector<8x1xi1> to vector<8x128xi1>
    %310 = arith.select %309, %300, %281 : vector<8x128xi1>, vector<8x128xf32>
    %cst_125 = arith.constant 0.000000e+00 : f32
    %311 = vector.shape_cast %304 : vector<8x1xi1> to vector<8x1xi1>
    %312 = vector.broadcast %311 : vector<8x1xi1> to vector<8x128xi1>
    %313 = vector.broadcast %cst_125 : f32 to vector<8x128xf32>
    %314 = arith.select %312, %302, %313 : vector<8x128xi1>, vector<8x128xf32>
    %c0_126 = arith.constant 0 : index
    %c0_127 = arith.constant 0 : index
    %315 = vector.load %arg6[%c0_126, %c0_127] : memref<8x128xf32, #tpu.memory_space<vmem>>, vector<8x128xf32>
    tpu.vector_store %arg6[%c0_126, %c0_127], %307 {strides = array<i32>} : memref<8x128xf32, #tpu.memory_space<vmem>>, vector<8x128xf32>,
    %c0_128 = arith.constant 0 : index
    %c0_129 = arith.constant 0 : index
    %316 = vector.load %arg7[%c0_128, %c0_129] : memref<8x128xf32, #tpu.memory_space<vmem>>, vector<8x128xf32>
    tpu.vector_store %arg7[%c0_128, %c0_129], %310 {strides = array<i32>} : memref<8x128xf32, #tpu.memory_space<vmem>>, vector<8x128xf32>,
    %317 = arith.index_cast %c3_i32 : i32 to index
    %c0_130 = arith.constant 0 : index
    %c0_131 = arith.constant 0 : index
    %318 = vector.load %arg5[%317, %c0_130, %c0_131] : memref<8x8x256xf32, #tpu.memory_space<vmem>>, vector<1x8x128xf32>
    %319 = vector.shape_cast %318 : vector<1x8x128xf32> to vector<8x128xf32>
    %320 = vector.shape_cast %314 : vector<8x128xf32> to vector<1x8x128xf32>
    tpu.vector_store %arg5[%317, %c0_130, %c0_131], %320 {strides = array<i32>} : memref<8x8x256xf32, #tpu.memory_space<vmem>>, vector<1x8x128xf32>,
    %321 = arith.index_cast %276 : i32 to index
    %c0_132 = arith.constant 0 : index
    %c512_133 = arith.constant 512 : index
    %322 = vector.load %arg1[%321, %c0_132, %c512_133] : memref<8x8x1024xbf16, #tpu.memory_space<vmem>>, vector<1x8x512xbf16>
    %323 = vector.shape_cast %322 : vector<1x8x512xbf16> to vector<8x512xbf16>
    %c0_134 = arith.constant 0 : index
    %c0_135 = arith.constant 0 : index
    %324 = vector.load %arg8[%c0_134, %c0_135] : memref<8x128xf32, #tpu.memory_space<vmem>>, vector<8x128xf32>
    %c0_136 = arith.constant 0 : index
    %c0_137 = arith.constant 0 : index
    %325 = vector.load %arg9[%c0_136, %c0_137] : memref<8x128xf32, #tpu.memory_space<vmem>>, vector<8x128xf32>
    %326 = arith.extf %323 : vector<8x512xbf16> to vector<8x512xf32>
    %327 = arith.truncf %324 : vector<8x128xf32> to vector<8x128xbf16>
    %c0_138 = arith.constant 0 : index
    %c0_139 = arith.constant 0 : index
    %328 = vector.load %arg3[%c0_138, %c0_139] : memref<128x512xbf16, #tpu.memory_space<vmem>>, vector<128x512xbf16>
    %cst_140 = arith.constant dense<0.000000e+00> : vector<8x512xf32>
    %329 = tpu.matmul %327, %328, %cst_140 {dimension_numbers = #tpu.dot_dimension_numbers<[1], [0], [0], [1], [0, 0, 1, 1], [], []>} : vector<8x128xbf16>, vector<128x512xbf16>, vector<8x512xf32> -> vector<8x512xf32>
    %330 = arith.addf %326, %329 : vector<8x512xf32>
    %331 = vector.extract_strided_slice %330 {offsets = [0, 0], sizes = [8, 384], strides = [1, 1]} : vector<8x512xf32> to vector<8x384xf32>
    %332 = arith.negf %331 : vector<8x384xf32>
    %333 = math.exp %332 : vector<8x384xf32>
    %cst_141 = arith.constant 1.000000e+00 : f32
    %334 = vector.broadcast %cst_141 : f32 to vector<8x384xf32>
    %335 = arith.addf %334, %333 : vector<8x384xf32>
    %336 = arith.divf %334, %335 : vector<8x384xf32>
    %337 = vector.extract_strided_slice %330 {offsets = [0, 384], sizes = [8, 128], strides = [1, 1]} : vector<8x512xf32> to vector<8x128xf32>
    %338 = math.tanh %337 : vector<8x128xf32>
    %339 = vector.extract_strided_slice %336 {offsets = [0, 0], sizes = [8, 128], strides = [1, 1]} : vector<8x384xf32> to vector<8x128xf32>
    %340 = vector.extract_strided_slice %336 {offsets = [0, 128], sizes = [8, 128], strides = [1, 1]} : vector<8x384xf32> to vector<8x128xf32>
    %341 = vector.extract_strided_slice %336 {offsets = [0, 256], sizes = [8, 128], strides = [1, 1]} : vector<8x384xf32> to vector<8x128xf32>
    %342 = arith.mulf %340, %325 : vector<8x128xf32>
    %343 = arith.mulf %339, %338 : vector<8x128xf32>
    %344 = arith.addf %342, %343 : vector<8x128xf32>
    %345 = math.tanh %344 : vector<8x128xf32>
    %346 = arith.mulf %341, %345 : vector<8x128xf32>
    %347 = vector.broadcast %276 : i32 to vector<8x1xi32>
    %348 = arith.cmpi slt, %347, %8 : vector<8x1xi32>
    %349 = vector.shape_cast %348 : vector<8x1xi1> to vector<8x1xi1>
    %350 = vector.broadcast %349 : vector<8x1xi1> to vector<8x128xi1>
    %351 = arith.select %350, %346, %324 : vector<8x128xi1>, vector<8x128xf32>
    %352 = vector.shape_cast %348 : vector<8x1xi1> to vector<8x1xi1>
    %353 = vector.broadcast %352 : vector<8x1xi1> to vector<8x128xi1>
    %354 = arith.select %353, %344, %325 : vector<8x128xi1>, vector<8x128xf32>
    %cst_142 = arith.constant 0.000000e+00 : f32
    %355 = vector.shape_cast %348 : vector<8x1xi1> to vector<8x1xi1>
    %356 = vector.broadcast %355 : vector<8x1xi1> to vector<8x128xi1>
    %357 = vector.broadcast %cst_142 : f32 to vector<8x128xf32>
    %358 = arith.select %356, %346, %357 : vector<8x128xi1>, vector<8x128xf32>
    %c0_143 = arith.constant 0 : index
    %c0_144 = arith.constant 0 : index
    %359 = vector.load %arg8[%c0_143, %c0_144] : memref<8x128xf32, #tpu.memory_space<vmem>>, vector<8x128xf32>
    tpu.vector_store %arg8[%c0_143, %c0_144], %351 {strides = array<i32>} : memref<8x128xf32, #tpu.memory_space<vmem>>, vector<8x128xf32>,
    %c0_145 = arith.constant 0 : index
    %c0_146 = arith.constant 0 : index
    %360 = vector.load %arg9[%c0_145, %c0_146] : memref<8x128xf32, #tpu.memory_space<vmem>>, vector<8x128xf32>
    tpu.vector_store %arg9[%c0_145, %c0_146], %354 {strides = array<i32>} : memref<8x128xf32, #tpu.memory_space<vmem>>, vector<8x128xf32>,
    %361 = arith.index_cast %276 : i32 to index
    %c0_147 = arith.constant 0 : index
    %c128_148 = arith.constant 128 : index
    %362 = vector.load %arg5[%361, %c0_147, %c128_148] : memref<8x8x256xf32, #tpu.memory_space<vmem>>, vector<1x8x128xf32>
    %363 = vector.shape_cast %362 : vector<1x8x128xf32> to vector<8x128xf32>
    %364 = vector.shape_cast %358 : vector<8x128xf32> to vector<1x8x128xf32>
    tpu.vector_store %arg5[%361, %c0_147, %c128_148], %364 {strides = array<i32>} : memref<8x8x256xf32, #tpu.memory_space<vmem>>, vector<1x8x128xf32>,
    %c4_i32 = arith.constant 4 : i32
    %c7_i32_149 = arith.constant 7 : i32
    %365 = arith.subi %c7_i32_149, %c4_i32 : i32
    %366 = arith.index_cast %c4_i32 : i32 to index
    %c0_150 = arith.constant 0 : index
    %c0_151 = arith.constant 0 : index
    %367 = vector.load %arg1[%366, %c0_150, %c0_151] : memref<8x8x1024xbf16, #tpu.memory_space<vmem>>, vector<1x8x512xbf16>
    %368 = vector.shape_cast %367 : vector<1x8x512xbf16> to vector<8x512xbf16>
    %c0_152 = arith.constant 0 : index
    %c0_153 = arith.constant 0 : index
    %369 = vector.load %arg6[%c0_152, %c0_153] : memref<8x128xf32, #tpu.memory_space<vmem>>, vector<8x128xf32>
    %c0_154 = arith.constant 0 : index
    %c0_155 = arith.constant 0 : index
    %370 = vector.load %arg7[%c0_154, %c0_155] : memref<8x128xf32, #tpu.memory_space<vmem>>, vector<8x128xf32>
    %371 = arith.extf %368 : vector<8x512xbf16> to vector<8x512xf32>
    %372 = arith.truncf %369 : vector<8x128xf32> to vector<8x128xbf16>
    %c0_156 = arith.constant 0 : index
    %c0_157 = arith.constant 0 : index
    %373 = vector.load %arg2[%c0_156, %c0_157] : memref<128x512xbf16, #tpu.memory_space<vmem>>, vector<128x512xbf16>
    %cst_158 = arith.constant dense<0.000000e+00> : vector<8x512xf32>
    %374 = tpu.matmul %372, %373, %cst_158 {dimension_numbers = #tpu.dot_dimension_numbers<[1], [0], [0], [1], [0, 0, 1, 1], [], []>} : vector<8x128xbf16>, vector<128x512xbf16>, vector<8x512xf32> -> vector<8x512xf32>
    %375 = arith.addf %371, %374 : vector<8x512xf32>
    %376 = vector.extract_strided_slice %375 {offsets = [0, 0], sizes = [8, 384], strides = [1, 1]} : vector<8x512xf32> to vector<8x384xf32>
    %377 = arith.negf %376 : vector<8x384xf32>
    %378 = math.exp %377 : vector<8x384xf32>
    %cst_159 = arith.constant 1.000000e+00 : f32
    %379 = vector.broadcast %cst_159 : f32 to vector<8x384xf32>
    %380 = arith.addf %379, %378 : vector<8x384xf32>
    %381 = arith.divf %379, %380 : vector<8x384xf32>
    %382 = vector.extract_strided_slice %375 {offsets = [0, 384], sizes = [8, 128], strides = [1, 1]} : vector<8x512xf32> to vector<8x128xf32>
    %383 = math.tanh %382 : vector<8x128xf32>
    %384 = vector.extract_strided_slice %381 {offsets = [0, 0], sizes = [8, 128], strides = [1, 1]} : vector<8x384xf32> to vector<8x128xf32>
    %385 = vector.extract_strided_slice %381 {offsets = [0, 128], sizes = [8, 128], strides = [1, 1]} : vector<8x384xf32> to vector<8x128xf32>
    %386 = vector.extract_strided_slice %381 {offsets = [0, 256], sizes = [8, 128], strides = [1, 1]} : vector<8x384xf32> to vector<8x128xf32>
    %387 = arith.mulf %385, %370 : vector<8x128xf32>
    %388 = arith.mulf %384, %383 : vector<8x128xf32>
    %389 = arith.addf %387, %388 : vector<8x128xf32>
    %390 = math.tanh %389 : vector<8x128xf32>
    %391 = arith.mulf %386, %390 : vector<8x128xf32>
    %392 = vector.broadcast %c4_i32 : i32 to vector<8x1xi32>
    %393 = arith.cmpi slt, %392, %8 : vector<8x1xi32>
    %394 = vector.shape_cast %393 : vector<8x1xi1> to vector<8x1xi1>
    %395 = vector.broadcast %394 : vector<8x1xi1> to vector<8x128xi1>
    %396 = arith.select %395, %391, %369 : vector<8x128xi1>, vector<8x128xf32>
    %397 = vector.shape_cast %393 : vector<8x1xi1> to vector<8x1xi1>
    %398 = vector.broadcast %397 : vector<8x1xi1> to vector<8x128xi1>
    %399 = arith.select %398, %389, %370 : vector<8x128xi1>, vector<8x128xf32>
    %cst_160 = arith.constant 0.000000e+00 : f32
    %400 = vector.shape_cast %393 : vector<8x1xi1> to vector<8x1xi1>
    %401 = vector.broadcast %400 : vector<8x1xi1> to vector<8x128xi1>
    %402 = vector.broadcast %cst_160 : f32 to vector<8x128xf32>
    %403 = arith.select %401, %391, %402 : vector<8x128xi1>, vector<8x128xf32>
    %c0_161 = arith.constant 0 : index
    %c0_162 = arith.constant 0 : index
    %404 = vector.load %arg6[%c0_161, %c0_162] : memref<8x128xf32, #tpu.memory_space<vmem>>, vector<8x128xf32>
    tpu.vector_store %arg6[%c0_161, %c0_162], %396 {strides = array<i32>} : memref<8x128xf32, #tpu.memory_space<vmem>>, vector<8x128xf32>,
    %c0_163 = arith.constant 0 : index
    %c0_164 = arith.constant 0 : index
    %405 = vector.load %arg7[%c0_163, %c0_164] : memref<8x128xf32, #tpu.memory_space<vmem>>, vector<8x128xf32>
    tpu.vector_store %arg7[%c0_163, %c0_164], %399 {strides = array<i32>} : memref<8x128xf32, #tpu.memory_space<vmem>>, vector<8x128xf32>,
    %406 = arith.index_cast %c4_i32 : i32 to index
    %c0_165 = arith.constant 0 : index
    %c0_166 = arith.constant 0 : index
    %407 = vector.load %arg5[%406, %c0_165, %c0_166] : memref<8x8x256xf32, #tpu.memory_space<vmem>>, vector<1x8x128xf32>
    %408 = vector.shape_cast %407 : vector<1x8x128xf32> to vector<8x128xf32>
    %409 = vector.shape_cast %403 : vector<8x128xf32> to vector<1x8x128xf32>
    tpu.vector_store %arg5[%406, %c0_165, %c0_166], %409 {strides = array<i32>} : memref<8x8x256xf32, #tpu.memory_space<vmem>>, vector<1x8x128xf32>,
    %410 = arith.index_cast %365 : i32 to index
    %c0_167 = arith.constant 0 : index
    %c512_168 = arith.constant 512 : index
    %411 = vector.load %arg1[%410, %c0_167, %c512_168] : memref<8x8x1024xbf16, #tpu.memory_space<vmem>>, vector<1x8x512xbf16>
    %412 = vector.shape_cast %411 : vector<1x8x512xbf16> to vector<8x512xbf16>
    %c0_169 = arith.constant 0 : index
    %c0_170 = arith.constant 0 : index
    %413 = vector.load %arg8[%c0_169, %c0_170] : memref<8x128xf32, #tpu.memory_space<vmem>>, vector<8x128xf32>
    %c0_171 = arith.constant 0 : index
    %c0_172 = arith.constant 0 : index
    %414 = vector.load %arg9[%c0_171, %c0_172] : memref<8x128xf32, #tpu.memory_space<vmem>>, vector<8x128xf32>
    %415 = arith.extf %412 : vector<8x512xbf16> to vector<8x512xf32>
    %416 = arith.truncf %413 : vector<8x128xf32> to vector<8x128xbf16>
    %c0_173 = arith.constant 0 : index
    %c0_174 = arith.constant 0 : index
    %417 = vector.load %arg3[%c0_173, %c0_174] : memref<128x512xbf16, #tpu.memory_space<vmem>>, vector<128x512xbf16>
    %cst_175 = arith.constant dense<0.000000e+00> : vector<8x512xf32>
    %418 = tpu.matmul %416, %417, %cst_175 {dimension_numbers = #tpu.dot_dimension_numbers<[1], [0], [0], [1], [0, 0, 1, 1], [], []>} : vector<8x128xbf16>, vector<128x512xbf16>, vector<8x512xf32> -> vector<8x512xf32>
    %419 = arith.addf %415, %418 : vector<8x512xf32>
    %420 = vector.extract_strided_slice %419 {offsets = [0, 0], sizes = [8, 384], strides = [1, 1]} : vector<8x512xf32> to vector<8x384xf32>
    %421 = arith.negf %420 : vector<8x384xf32>
    %422 = math.exp %421 : vector<8x384xf32>
    %cst_176 = arith.constant 1.000000e+00 : f32
    %423 = vector.broadcast %cst_176 : f32 to vector<8x384xf32>
    %424 = arith.addf %423, %422 : vector<8x384xf32>
    %425 = arith.divf %423, %424 : vector<8x384xf32>
    %426 = vector.extract_strided_slice %419 {offsets = [0, 384], sizes = [8, 128], strides = [1, 1]} : vector<8x512xf32> to vector<8x128xf32>
    %427 = math.tanh %426 : vector<8x128xf32>
    %428 = vector.extract_strided_slice %425 {offsets = [0, 0], sizes = [8, 128], strides = [1, 1]} : vector<8x384xf32> to vector<8x128xf32>
    %429 = vector.extract_strided_slice %425 {offsets = [0, 128], sizes = [8, 128], strides = [1, 1]} : vector<8x384xf32> to vector<8x128xf32>
    %430 = vector.extract_strided_slice %425 {offsets = [0, 256], sizes = [8, 128], strides = [1, 1]} : vector<8x384xf32> to vector<8x128xf32>
    %431 = arith.mulf %429, %414 : vector<8x128xf32>
    %432 = arith.mulf %428, %427 : vector<8x128xf32>
    %433 = arith.addf %431, %432 : vector<8x128xf32>
    %434 = math.tanh %433 : vector<8x128xf32>
    %435 = arith.mulf %430, %434 : vector<8x128xf32>
    %436 = vector.broadcast %365 : i32 to vector<8x1xi32>
    %437 = arith.cmpi slt, %436, %8 : vector<8x1xi32>
    %438 = vector.shape_cast %437 : vector<8x1xi1> to vector<8x1xi1>
    %439 = vector.broadcast %438 : vector<8x1xi1> to vector<8x128xi1>
    %440 = arith.select %439, %435, %413 : vector<8x128xi1>, vector<8x128xf32>
    %441 = vector.shape_cast %437 : vector<8x1xi1> to vector<8x1xi1>
    %442 = vector.broadcast %441 : vector<8x1xi1> to vector<8x128xi1>
    %443 = arith.select %442, %433, %414 : vector<8x128xi1>, vector<8x128xf32>
    %cst_177 = arith.constant 0.000000e+00 : f32
    %444 = vector.shape_cast %437 : vector<8x1xi1> to vector<8x1xi1>
    %445 = vector.broadcast %444 : vector<8x1xi1> to vector<8x128xi1>
    %446 = vector.broadcast %cst_177 : f32 to vector<8x128xf32>
    %447 = arith.select %445, %435, %446 : vector<8x128xi1>, vector<8x128xf32>
    %c0_178 = arith.constant 0 : index
    %c0_179 = arith.constant 0 : index
    %448 = vector.load %arg8[%c0_178, %c0_179] : memref<8x128xf32, #tpu.memory_space<vmem>>, vector<8x128xf32>
    tpu.vector_store %arg8[%c0_178, %c0_179], %440 {strides = array<i32>} : memref<8x128xf32, #tpu.memory_space<vmem>>, vector<8x128xf32>,
    %c0_180 = arith.constant 0 : index
    %c0_181 = arith.constant 0 : index
    %449 = vector.load %arg9[%c0_180, %c0_181] : memref<8x128xf32, #tpu.memory_space<vmem>>, vector<8x128xf32>
    tpu.vector_store %arg9[%c0_180, %c0_181], %443 {strides = array<i32>} : memref<8x128xf32, #tpu.memory_space<vmem>>, vector<8x128xf32>,
    %450 = arith.index_cast %365 : i32 to index
    %c0_182 = arith.constant 0 : index
    %c128_183 = arith.constant 128 : index
    %451 = vector.load %arg5[%450, %c0_182, %c128_183] : memref<8x8x256xf32, #tpu.memory_space<vmem>>, vector<1x8x128xf32>
    %452 = vector.shape_cast %451 : vector<1x8x128xf32> to vector<8x128xf32>
    %453 = vector.shape_cast %447 : vector<8x128xf32> to vector<1x8x128xf32>
    tpu.vector_store %arg5[%450, %c0_182, %c128_183], %453 {strides = array<i32>} : memref<8x8x256xf32, #tpu.memory_space<vmem>>, vector<1x8x128xf32>,
    %c5_i32 = arith.constant 5 : i32
    %c7_i32_184 = arith.constant 7 : i32
    %454 = arith.subi %c7_i32_184, %c5_i32 : i32
    %455 = arith.index_cast %c5_i32 : i32 to index
    %c0_185 = arith.constant 0 : index
    %c0_186 = arith.constant 0 : index
    %456 = vector.load %arg1[%455, %c0_185, %c0_186] : memref<8x8x1024xbf16, #tpu.memory_space<vmem>>, vector<1x8x512xbf16>
    %457 = vector.shape_cast %456 : vector<1x8x512xbf16> to vector<8x512xbf16>
    %c0_187 = arith.constant 0 : index
    %c0_188 = arith.constant 0 : index
    %458 = vector.load %arg6[%c0_187, %c0_188] : memref<8x128xf32, #tpu.memory_space<vmem>>, vector<8x128xf32>
    %c0_189 = arith.constant 0 : index
    %c0_190 = arith.constant 0 : index
    %459 = vector.load %arg7[%c0_189, %c0_190] : memref<8x128xf32, #tpu.memory_space<vmem>>, vector<8x128xf32>
    %460 = arith.extf %457 : vector<8x512xbf16> to vector<8x512xf32>
    %461 = arith.truncf %458 : vector<8x128xf32> to vector<8x128xbf16>
    %c0_191 = arith.constant 0 : index
    %c0_192 = arith.constant 0 : index
    %462 = vector.load %arg2[%c0_191, %c0_192] : memref<128x512xbf16, #tpu.memory_space<vmem>>, vector<128x512xbf16>
    %cst_193 = arith.constant dense<0.000000e+00> : vector<8x512xf32>
    %463 = tpu.matmul %461, %462, %cst_193 {dimension_numbers = #tpu.dot_dimension_numbers<[1], [0], [0], [1], [0, 0, 1, 1], [], []>} : vector<8x128xbf16>, vector<128x512xbf16>, vector<8x512xf32> -> vector<8x512xf32>
    %464 = arith.addf %460, %463 : vector<8x512xf32>
    %465 = vector.extract_strided_slice %464 {offsets = [0, 0], sizes = [8, 384], strides = [1, 1]} : vector<8x512xf32> to vector<8x384xf32>
    %466 = arith.negf %465 : vector<8x384xf32>
    %467 = math.exp %466 : vector<8x384xf32>
    %cst_194 = arith.constant 1.000000e+00 : f32
    %468 = vector.broadcast %cst_194 : f32 to vector<8x384xf32>
    %469 = arith.addf %468, %467 : vector<8x384xf32>
    %470 = arith.divf %468, %469 : vector<8x384xf32>
    %471 = vector.extract_strided_slice %464 {offsets = [0, 384], sizes = [8, 128], strides = [1, 1]} : vector<8x512xf32> to vector<8x128xf32>
    %472 = math.tanh %471 : vector<8x128xf32>
    %473 = vector.extract_strided_slice %470 {offsets = [0, 0], sizes = [8, 128], strides = [1, 1]} : vector<8x384xf32> to vector<8x128xf32>
    %474 = vector.extract_strided_slice %470 {offsets = [0, 128], sizes = [8, 128], strides = [1, 1]} : vector<8x384xf32> to vector<8x128xf32>
    %475 = vector.extract_strided_slice %470 {offsets = [0, 256], sizes = [8, 128], strides = [1, 1]} : vector<8x384xf32> to vector<8x128xf32>
    %476 = arith.mulf %474, %459 : vector<8x128xf32>
    %477 = arith.mulf %473, %472 : vector<8x128xf32>
    %478 = arith.addf %476, %477 : vector<8x128xf32>
    %479 = math.tanh %478 : vector<8x128xf32>
    %480 = arith.mulf %475, %479 : vector<8x128xf32>
    %481 = vector.broadcast %c5_i32 : i32 to vector<8x1xi32>
    %482 = arith.cmpi slt, %481, %8 : vector<8x1xi32>
    %483 = vector.shape_cast %482 : vector<8x1xi1> to vector<8x1xi1>
    %484 = vector.broadcast %483 : vector<8x1xi1> to vector<8x128xi1>
    %485 = arith.select %484, %480, %458 : vector<8x128xi1>, vector<8x128xf32>
    %486 = vector.shape_cast %482 : vector<8x1xi1> to vector<8x1xi1>
    %487 = vector.broadcast %486 : vector<8x1xi1> to vector<8x128xi1>
    %488 = arith.select %487, %478, %459 : vector<8x128xi1>, vector<8x128xf32>
    %cst_195 = arith.constant 0.000000e+00 : f32
    %489 = vector.shape_cast %482 : vector<8x1xi1> to vector<8x1xi1>
    %490 = vector.broadcast %489 : vector<8x1xi1> to vector<8x128xi1>
    %491 = vector.broadcast %cst_195 : f32 to vector<8x128xf32>
    %492 = arith.select %490, %480, %491 : vector<8x128xi1>, vector<8x128xf32>
    %c0_196 = arith.constant 0 : index
    %c0_197 = arith.constant 0 : index
    %493 = vector.load %arg6[%c0_196, %c0_197] : memref<8x128xf32, #tpu.memory_space<vmem>>, vector<8x128xf32>
    tpu.vector_store %arg6[%c0_196, %c0_197], %485 {strides = array<i32>} : memref<8x128xf32, #tpu.memory_space<vmem>>, vector<8x128xf32>,
    %c0_198 = arith.constant 0 : index
    %c0_199 = arith.constant 0 : index
    %494 = vector.load %arg7[%c0_198, %c0_199] : memref<8x128xf32, #tpu.memory_space<vmem>>, vector<8x128xf32>
    tpu.vector_store %arg7[%c0_198, %c0_199], %488 {strides = array<i32>} : memref<8x128xf32, #tpu.memory_space<vmem>>, vector<8x128xf32>,
    %495 = arith.index_cast %c5_i32 : i32 to index
    %c0_200 = arith.constant 0 : index
    %c0_201 = arith.constant 0 : index
    %496 = vector.load %arg5[%495, %c0_200, %c0_201] : memref<8x8x256xf32, #tpu.memory_space<vmem>>, vector<1x8x128xf32>
    %497 = vector.shape_cast %496 : vector<1x8x128xf32> to vector<8x128xf32>
    %498 = vector.shape_cast %492 : vector<8x128xf32> to vector<1x8x128xf32>
    tpu.vector_store %arg5[%495, %c0_200, %c0_201], %498 {strides = array<i32>} : memref<8x8x256xf32, #tpu.memory_space<vmem>>, vector<1x8x128xf32>,
    %499 = arith.index_cast %454 : i32 to index
    %c0_202 = arith.constant 0 : index
    %c512_203 = arith.constant 512 : index
    %500 = vector.load %arg1[%499, %c0_202, %c512_203] : memref<8x8x1024xbf16, #tpu.memory_space<vmem>>, vector<1x8x512xbf16>
    %501 = vector.shape_cast %500 : vector<1x8x512xbf16> to vector<8x512xbf16>
    %c0_204 = arith.constant 0 : index
    %c0_205 = arith.constant 0 : index
    %502 = vector.load %arg8[%c0_204, %c0_205] : memref<8x128xf32, #tpu.memory_space<vmem>>, vector<8x128xf32>
    %c0_206 = arith.constant 0 : index
    %c0_207 = arith.constant 0 : index
    %503 = vector.load %arg9[%c0_206, %c0_207] : memref<8x128xf32, #tpu.memory_space<vmem>>, vector<8x128xf32>
    %504 = arith.extf %501 : vector<8x512xbf16> to vector<8x512xf32>
    %505 = arith.truncf %502 : vector<8x128xf32> to vector<8x128xbf16>
    %c0_208 = arith.constant 0 : index
    %c0_209 = arith.constant 0 : index
    %506 = vector.load %arg3[%c0_208, %c0_209] : memref<128x512xbf16, #tpu.memory_space<vmem>>, vector<128x512xbf16>
    %cst_210 = arith.constant dense<0.000000e+00> : vector<8x512xf32>
    %507 = tpu.matmul %505, %506, %cst_210 {dimension_numbers = #tpu.dot_dimension_numbers<[1], [0], [0], [1], [0, 0, 1, 1], [], []>} : vector<8x128xbf16>, vector<128x512xbf16>, vector<8x512xf32> -> vector<8x512xf32>
    %508 = arith.addf %504, %507 : vector<8x512xf32>
    %509 = vector.extract_strided_slice %508 {offsets = [0, 0], sizes = [8, 384], strides = [1, 1]} : vector<8x512xf32> to vector<8x384xf32>
    %510 = arith.negf %509 : vector<8x384xf32>
    %511 = math.exp %510 : vector<8x384xf32>
    %cst_211 = arith.constant 1.000000e+00 : f32
    %512 = vector.broadcast %cst_211 : f32 to vector<8x384xf32>
    %513 = arith.addf %512, %511 : vector<8x384xf32>
    %514 = arith.divf %512, %513 : vector<8x384xf32>
    %515 = vector.extract_strided_slice %508 {offsets = [0, 384], sizes = [8, 128], strides = [1, 1]} : vector<8x512xf32> to vector<8x128xf32>
    %516 = math.tanh %515 : vector<8x128xf32>
    %517 = vector.extract_strided_slice %514 {offsets = [0, 0], sizes = [8, 128], strides = [1, 1]} : vector<8x384xf32> to vector<8x128xf32>
    %518 = vector.extract_strided_slice %514 {offsets = [0, 128], sizes = [8, 128], strides = [1, 1]} : vector<8x384xf32> to vector<8x128xf32>
    %519 = vector.extract_strided_slice %514 {offsets = [0, 256], sizes = [8, 128], strides = [1, 1]} : vector<8x384xf32> to vector<8x128xf32>
    %520 = arith.mulf %518, %503 : vector<8x128xf32>
    %521 = arith.mulf %517, %516 : vector<8x128xf32>
    %522 = arith.addf %520, %521 : vector<8x128xf32>
    %523 = math.tanh %522 : vector<8x128xf32>
    %524 = arith.mulf %519, %523 : vector<8x128xf32>
    %525 = vector.broadcast %454 : i32 to vector<8x1xi32>
    %526 = arith.cmpi slt, %525, %8 : vector<8x1xi32>
    %527 = vector.shape_cast %526 : vector<8x1xi1> to vector<8x1xi1>
    %528 = vector.broadcast %527 : vector<8x1xi1> to vector<8x128xi1>
    %529 = arith.select %528, %524, %502 : vector<8x128xi1>, vector<8x128xf32>
    %530 = vector.shape_cast %526 : vector<8x1xi1> to vector<8x1xi1>
    %531 = vector.broadcast %530 : vector<8x1xi1> to vector<8x128xi1>
    %532 = arith.select %531, %522, %503 : vector<8x128xi1>, vector<8x128xf32>
    %cst_212 = arith.constant 0.000000e+00 : f32
    %533 = vector.shape_cast %526 : vector<8x1xi1> to vector<8x1xi1>
    %534 = vector.broadcast %533 : vector<8x1xi1> to vector<8x128xi1>
    %535 = vector.broadcast %cst_212 : f32 to vector<8x128xf32>
    %536 = arith.select %534, %524, %535 : vector<8x128xi1>, vector<8x128xf32>
    %c0_213 = arith.constant 0 : index
    %c0_214 = arith.constant 0 : index
    %537 = vector.load %arg8[%c0_213, %c0_214] : memref<8x128xf32, #tpu.memory_space<vmem>>, vector<8x128xf32>
    tpu.vector_store %arg8[%c0_213, %c0_214], %529 {strides = array<i32>} : memref<8x128xf32, #tpu.memory_space<vmem>>, vector<8x128xf32>,
    %c0_215 = arith.constant 0 : index
    %c0_216 = arith.constant 0 : index
    %538 = vector.load %arg9[%c0_215, %c0_216] : memref<8x128xf32, #tpu.memory_space<vmem>>, vector<8x128xf32>
    tpu.vector_store %arg9[%c0_215, %c0_216], %532 {strides = array<i32>} : memref<8x128xf32, #tpu.memory_space<vmem>>, vector<8x128xf32>,
    %539 = arith.index_cast %454 : i32 to index
    %c0_217 = arith.constant 0 : index
    %c128_218 = arith.constant 128 : index
    %540 = vector.load %arg5[%539, %c0_217, %c128_218] : memref<8x8x256xf32, #tpu.memory_space<vmem>>, vector<1x8x128xf32>
    %541 = vector.shape_cast %540 : vector<1x8x128xf32> to vector<8x128xf32>
    %542 = vector.shape_cast %536 : vector<8x128xf32> to vector<1x8x128xf32>
    tpu.vector_store %arg5[%539, %c0_217, %c128_218], %542 {strides = array<i32>} : memref<8x8x256xf32, #tpu.memory_space<vmem>>, vector<1x8x128xf32>,
    %c6_i32 = arith.constant 6 : i32
    %c7_i32_219 = arith.constant 7 : i32
    %543 = arith.subi %c7_i32_219, %c6_i32 : i32
    %544 = arith.index_cast %c6_i32 : i32 to index
    %c0_220 = arith.constant 0 : index
    %c0_221 = arith.constant 0 : index
    %545 = vector.load %arg1[%544, %c0_220, %c0_221] : memref<8x8x1024xbf16, #tpu.memory_space<vmem>>, vector<1x8x512xbf16>
    %546 = vector.shape_cast %545 : vector<1x8x512xbf16> to vector<8x512xbf16>
    %c0_222 = arith.constant 0 : index
    %c0_223 = arith.constant 0 : index
    %547 = vector.load %arg6[%c0_222, %c0_223] : memref<8x128xf32, #tpu.memory_space<vmem>>, vector<8x128xf32>
    %c0_224 = arith.constant 0 : index
    %c0_225 = arith.constant 0 : index
    %548 = vector.load %arg7[%c0_224, %c0_225] : memref<8x128xf32, #tpu.memory_space<vmem>>, vector<8x128xf32>
    %549 = arith.extf %546 : vector<8x512xbf16> to vector<8x512xf32>
    %550 = arith.truncf %547 : vector<8x128xf32> to vector<8x128xbf16>
    %c0_226 = arith.constant 0 : index
    %c0_227 = arith.constant 0 : index
    %551 = vector.load %arg2[%c0_226, %c0_227] : memref<128x512xbf16, #tpu.memory_space<vmem>>, vector<128x512xbf16>
    %cst_228 = arith.constant dense<0.000000e+00> : vector<8x512xf32>
    %552 = tpu.matmul %550, %551, %cst_228 {dimension_numbers = #tpu.dot_dimension_numbers<[1], [0], [0], [1], [0, 0, 1, 1], [], []>} : vector<8x128xbf16>, vector<128x512xbf16>, vector<8x512xf32> -> vector<8x512xf32>
    %553 = arith.addf %549, %552 : vector<8x512xf32>
    %554 = vector.extract_strided_slice %553 {offsets = [0, 0], sizes = [8, 384], strides = [1, 1]} : vector<8x512xf32> to vector<8x384xf32>
    %555 = arith.negf %554 : vector<8x384xf32>
    %556 = math.exp %555 : vector<8x384xf32>
    %cst_229 = arith.constant 1.000000e+00 : f32
    %557 = vector.broadcast %cst_229 : f32 to vector<8x384xf32>
    %558 = arith.addf %557, %556 : vector<8x384xf32>
    %559 = arith.divf %557, %558 : vector<8x384xf32>
    %560 = vector.extract_strided_slice %553 {offsets = [0, 384], sizes = [8, 128], strides = [1, 1]} : vector<8x512xf32> to vector<8x128xf32>
    %561 = math.tanh %560 : vector<8x128xf32>
    %562 = vector.extract_strided_slice %559 {offsets = [0, 0], sizes = [8, 128], strides = [1, 1]} : vector<8x384xf32> to vector<8x128xf32>
    %563 = vector.extract_strided_slice %559 {offsets = [0, 128], sizes = [8, 128], strides = [1, 1]} : vector<8x384xf32> to vector<8x128xf32>
    %564 = vector.extract_strided_slice %559 {offsets = [0, 256], sizes = [8, 128], strides = [1, 1]} : vector<8x384xf32> to vector<8x128xf32>
    %565 = arith.mulf %563, %548 : vector<8x128xf32>
    %566 = arith.mulf %562, %561 : vector<8x128xf32>
    %567 = arith.addf %565, %566 : vector<8x128xf32>
    %568 = math.tanh %567 : vector<8x128xf32>
    %569 = arith.mulf %564, %568 : vector<8x128xf32>
    %570 = vector.broadcast %c6_i32 : i32 to vector<8x1xi32>
    %571 = arith.cmpi slt, %570, %8 : vector<8x1xi32>
    %572 = vector.shape_cast %571 : vector<8x1xi1> to vector<8x1xi1>
    %573 = vector.broadcast %572 : vector<8x1xi1> to vector<8x128xi1>
    %574 = arith.select %573, %569, %547 : vector<8x128xi1>, vector<8x128xf32>
    %575 = vector.shape_cast %571 : vector<8x1xi1> to vector<8x1xi1>
    %576 = vector.broadcast %575 : vector<8x1xi1> to vector<8x128xi1>
    %577 = arith.select %576, %567, %548 : vector<8x128xi1>, vector<8x128xf32>
    %cst_230 = arith.constant 0.000000e+00 : f32
    %578 = vector.shape_cast %571 : vector<8x1xi1> to vector<8x1xi1>
    %579 = vector.broadcast %578 : vector<8x1xi1> to vector<8x128xi1>
    %580 = vector.broadcast %cst_230 : f32 to vector<8x128xf32>
    %581 = arith.select %579, %569, %580 : vector<8x128xi1>, vector<8x128xf32>
    %c0_231 = arith.constant 0 : index
    %c0_232 = arith.constant 0 : index
    %582 = vector.load %arg6[%c0_231, %c0_232] : memref<8x128xf32, #tpu.memory_space<vmem>>, vector<8x128xf32>
    tpu.vector_store %arg6[%c0_231, %c0_232], %574 {strides = array<i32>} : memref<8x128xf32, #tpu.memory_space<vmem>>, vector<8x128xf32>,
    %c0_233 = arith.constant 0 : index
    %c0_234 = arith.constant 0 : index
    %583 = vector.load %arg7[%c0_233, %c0_234] : memref<8x128xf32, #tpu.memory_space<vmem>>, vector<8x128xf32>
    tpu.vector_store %arg7[%c0_233, %c0_234], %577 {strides = array<i32>} : memref<8x128xf32, #tpu.memory_space<vmem>>, vector<8x128xf32>,
    %584 = arith.index_cast %c6_i32 : i32 to index
    %c0_235 = arith.constant 0 : index
    %c0_236 = arith.constant 0 : index
    %585 = vector.load %arg5[%584, %c0_235, %c0_236] : memref<8x8x256xf32, #tpu.memory_space<vmem>>, vector<1x8x128xf32>
    %586 = vector.shape_cast %585 : vector<1x8x128xf32> to vector<8x128xf32>
    %587 = vector.shape_cast %581 : vector<8x128xf32> to vector<1x8x128xf32>
    tpu.vector_store %arg5[%584, %c0_235, %c0_236], %587 {strides = array<i32>} : memref<8x8x256xf32, #tpu.memory_space<vmem>>, vector<1x8x128xf32>,
    %588 = arith.index_cast %543 : i32 to index
    %c0_237 = arith.constant 0 : index
    %c512_238 = arith.constant 512 : index
    %589 = vector.load %arg1[%588, %c0_237, %c512_238] : memref<8x8x1024xbf16, #tpu.memory_space<vmem>>, vector<1x8x512xbf16>
    %590 = vector.shape_cast %589 : vector<1x8x512xbf16> to vector<8x512xbf16>
    %c0_239 = arith.constant 0 : index
    %c0_240 = arith.constant 0 : index
    %591 = vector.load %arg8[%c0_239, %c0_240] : memref<8x128xf32, #tpu.memory_space<vmem>>, vector<8x128xf32>
    %c0_241 = arith.constant 0 : index
    %c0_242 = arith.constant 0 : index
    %592 = vector.load %arg9[%c0_241, %c0_242] : memref<8x128xf32, #tpu.memory_space<vmem>>, vector<8x128xf32>
    %593 = arith.extf %590 : vector<8x512xbf16> to vector<8x512xf32>
    %594 = arith.truncf %591 : vector<8x128xf32> to vector<8x128xbf16>
    %c0_243 = arith.constant 0 : index
    %c0_244 = arith.constant 0 : index
    %595 = vector.load %arg3[%c0_243, %c0_244] : memref<128x512xbf16, #tpu.memory_space<vmem>>, vector<128x512xbf16>
    %cst_245 = arith.constant dense<0.000000e+00> : vector<8x512xf32>
    %596 = tpu.matmul %594, %595, %cst_245 {dimension_numbers = #tpu.dot_dimension_numbers<[1], [0], [0], [1], [0, 0, 1, 1], [], []>} : vector<8x128xbf16>, vector<128x512xbf16>, vector<8x512xf32> -> vector<8x512xf32>
    %597 = arith.addf %593, %596 : vector<8x512xf32>
    %598 = vector.extract_strided_slice %597 {offsets = [0, 0], sizes = [8, 384], strides = [1, 1]} : vector<8x512xf32> to vector<8x384xf32>
    %599 = arith.negf %598 : vector<8x384xf32>
    %600 = math.exp %599 : vector<8x384xf32>
    %cst_246 = arith.constant 1.000000e+00 : f32
    %601 = vector.broadcast %cst_246 : f32 to vector<8x384xf32>
    %602 = arith.addf %601, %600 : vector<8x384xf32>
    %603 = arith.divf %601, %602 : vector<8x384xf32>
    %604 = vector.extract_strided_slice %597 {offsets = [0, 384], sizes = [8, 128], strides = [1, 1]} : vector<8x512xf32> to vector<8x128xf32>
    %605 = math.tanh %604 : vector<8x128xf32>
    %606 = vector.extract_strided_slice %603 {offsets = [0, 0], sizes = [8, 128], strides = [1, 1]} : vector<8x384xf32> to vector<8x128xf32>
    %607 = vector.extract_strided_slice %603 {offsets = [0, 128], sizes = [8, 128], strides = [1, 1]} : vector<8x384xf32> to vector<8x128xf32>
    %608 = vector.extract_strided_slice %603 {offsets = [0, 256], sizes = [8, 128], strides = [1, 1]} : vector<8x384xf32> to vector<8x128xf32>
    %609 = arith.mulf %607, %592 : vector<8x128xf32>
    %610 = arith.mulf %606, %605 : vector<8x128xf32>
    %611 = arith.addf %609, %610 : vector<8x128xf32>
    %612 = math.tanh %611 : vector<8x128xf32>
    %613 = arith.mulf %608, %612 : vector<8x128xf32>
    %614 = vector.broadcast %543 : i32 to vector<8x1xi32>
    %615 = arith.cmpi slt, %614, %8 : vector<8x1xi32>
    %616 = vector.shape_cast %615 : vector<8x1xi1> to vector<8x1xi1>
    %617 = vector.broadcast %616 : vector<8x1xi1> to vector<8x128xi1>
    %618 = arith.select %617, %613, %591 : vector<8x128xi1>, vector<8x128xf32>
    %619 = vector.shape_cast %615 : vector<8x1xi1> to vector<8x1xi1>
    %620 = vector.broadcast %619 : vector<8x1xi1> to vector<8x128xi1>
    %621 = arith.select %620, %611, %592 : vector<8x128xi1>, vector<8x128xf32>
    %cst_247 = arith.constant 0.000000e+00 : f32
    %622 = vector.shape_cast %615 : vector<8x1xi1> to vector<8x1xi1>
    %623 = vector.broadcast %622 : vector<8x1xi1> to vector<8x128xi1>
    %624 = vector.broadcast %cst_247 : f32 to vector<8x128xf32>
    %625 = arith.select %623, %613, %624 : vector<8x128xi1>, vector<8x128xf32>
    %c0_248 = arith.constant 0 : index
    %c0_249 = arith.constant 0 : index
    %626 = vector.load %arg8[%c0_248, %c0_249] : memref<8x128xf32, #tpu.memory_space<vmem>>, vector<8x128xf32>
    tpu.vector_store %arg8[%c0_248, %c0_249], %618 {strides = array<i32>} : memref<8x128xf32, #tpu.memory_space<vmem>>, vector<8x128xf32>,
    %c0_250 = arith.constant 0 : index
    %c0_251 = arith.constant 0 : index
    %627 = vector.load %arg9[%c0_250, %c0_251] : memref<8x128xf32, #tpu.memory_space<vmem>>, vector<8x128xf32>
    tpu.vector_store %arg9[%c0_250, %c0_251], %621 {strides = array<i32>} : memref<8x128xf32, #tpu.memory_space<vmem>>, vector<8x128xf32>,
    %628 = arith.index_cast %543 : i32 to index
    %c0_252 = arith.constant 0 : index
    %c128_253 = arith.constant 128 : index
    %629 = vector.load %arg5[%628, %c0_252, %c128_253] : memref<8x8x256xf32, #tpu.memory_space<vmem>>, vector<1x8x128xf32>
    %630 = vector.shape_cast %629 : vector<1x8x128xf32> to vector<8x128xf32>
    %631 = vector.shape_cast %625 : vector<8x128xf32> to vector<1x8x128xf32>
    tpu.vector_store %arg5[%628, %c0_252, %c128_253], %631 {strides = array<i32>} : memref<8x8x256xf32, #tpu.memory_space<vmem>>, vector<1x8x128xf32>,
    %c7_i32_254 = arith.constant 7 : i32
    %c7_i32_255 = arith.constant 7 : i32
    %632 = arith.subi %c7_i32_255, %c7_i32_254 : i32
    %633 = arith.index_cast %c7_i32_254 : i32 to index
    %c0_256 = arith.constant 0 : index
    %c0_257 = arith.constant 0 : index
    %634 = vector.load %arg1[%633, %c0_256, %c0_257] : memref<8x8x1024xbf16, #tpu.memory_space<vmem>>, vector<1x8x512xbf16>
    %635 = vector.shape_cast %634 : vector<1x8x512xbf16> to vector<8x512xbf16>
    %c0_258 = arith.constant 0 : index
    %c0_259 = arith.constant 0 : index
    %636 = vector.load %arg6[%c0_258, %c0_259] : memref<8x128xf32, #tpu.memory_space<vmem>>, vector<8x128xf32>
    %c0_260 = arith.constant 0 : index
    %c0_261 = arith.constant 0 : index
    %637 = vector.load %arg7[%c0_260, %c0_261] : memref<8x128xf32, #tpu.memory_space<vmem>>, vector<8x128xf32>
    %638 = arith.extf %635 : vector<8x512xbf16> to vector<8x512xf32>
    %639 = arith.truncf %636 : vector<8x128xf32> to vector<8x128xbf16>
    %c0_262 = arith.constant 0 : index
    %c0_263 = arith.constant 0 : index
    %640 = vector.load %arg2[%c0_262, %c0_263] : memref<128x512xbf16, #tpu.memory_space<vmem>>, vector<128x512xbf16>
    %cst_264 = arith.constant dense<0.000000e+00> : vector<8x512xf32>
    %641 = tpu.matmul %639, %640, %cst_264 {dimension_numbers = #tpu.dot_dimension_numbers<[1], [0], [0], [1], [0, 0, 1, 1], [], []>} : vector<8x128xbf16>, vector<128x512xbf16>, vector<8x512xf32> -> vector<8x512xf32>
    %642 = arith.addf %638, %641 : vector<8x512xf32>
    %643 = vector.extract_strided_slice %642 {offsets = [0, 0], sizes = [8, 384], strides = [1, 1]} : vector<8x512xf32> to vector<8x384xf32>
    %644 = arith.negf %643 : vector<8x384xf32>
    %645 = math.exp %644 : vector<8x384xf32>
    %cst_265 = arith.constant 1.000000e+00 : f32
    %646 = vector.broadcast %cst_265 : f32 to vector<8x384xf32>
    %647 = arith.addf %646, %645 : vector<8x384xf32>
    %648 = arith.divf %646, %647 : vector<8x384xf32>
    %649 = vector.extract_strided_slice %642 {offsets = [0, 384], sizes = [8, 128], strides = [1, 1]} : vector<8x512xf32> to vector<8x128xf32>
    %650 = math.tanh %649 : vector<8x128xf32>
    %651 = vector.extract_strided_slice %648 {offsets = [0, 0], sizes = [8, 128], strides = [1, 1]} : vector<8x384xf32> to vector<8x128xf32>
    %652 = vector.extract_strided_slice %648 {offsets = [0, 128], sizes = [8, 128], strides = [1, 1]} : vector<8x384xf32> to vector<8x128xf32>
    %653 = vector.extract_strided_slice %648 {offsets = [0, 256], sizes = [8, 128], strides = [1, 1]} : vector<8x384xf32> to vector<8x128xf32>
    %654 = arith.mulf %652, %637 : vector<8x128xf32>
    %655 = arith.mulf %651, %650 : vector<8x128xf32>
    %656 = arith.addf %654, %655 : vector<8x128xf32>
    %657 = math.tanh %656 : vector<8x128xf32>
    %658 = arith.mulf %653, %657 : vector<8x128xf32>
    %659 = vector.broadcast %c7_i32_254 : i32 to vector<8x1xi32>
    %660 = arith.cmpi slt, %659, %8 : vector<8x1xi32>
    %661 = vector.shape_cast %660 : vector<8x1xi1> to vector<8x1xi1>
    %662 = vector.broadcast %661 : vector<8x1xi1> to vector<8x128xi1>
    %663 = arith.select %662, %658, %636 : vector<8x128xi1>, vector<8x128xf32>
    %664 = vector.shape_cast %660 : vector<8x1xi1> to vector<8x1xi1>
    %665 = vector.broadcast %664 : vector<8x1xi1> to vector<8x128xi1>
    %666 = arith.select %665, %656, %637 : vector<8x128xi1>, vector<8x128xf32>
    %cst_266 = arith.constant 0.000000e+00 : f32
    %667 = vector.shape_cast %660 : vector<8x1xi1> to vector<8x1xi1>
    %668 = vector.broadcast %667 : vector<8x1xi1> to vector<8x128xi1>
    %669 = vector.broadcast %cst_266 : f32 to vector<8x128xf32>
    %670 = arith.select %668, %658, %669 : vector<8x128xi1>, vector<8x128xf32>
    %c0_267 = arith.constant 0 : index
    %c0_268 = arith.constant 0 : index
    %671 = vector.load %arg6[%c0_267, %c0_268] : memref<8x128xf32, #tpu.memory_space<vmem>>, vector<8x128xf32>
    tpu.vector_store %arg6[%c0_267, %c0_268], %663 {strides = array<i32>} : memref<8x128xf32, #tpu.memory_space<vmem>>, vector<8x128xf32>,
    %c0_269 = arith.constant 0 : index
    %c0_270 = arith.constant 0 : index
    %672 = vector.load %arg7[%c0_269, %c0_270] : memref<8x128xf32, #tpu.memory_space<vmem>>, vector<8x128xf32>
    tpu.vector_store %arg7[%c0_269, %c0_270], %666 {strides = array<i32>} : memref<8x128xf32, #tpu.memory_space<vmem>>, vector<8x128xf32>,
    %673 = arith.index_cast %c7_i32_254 : i32 to index
    %c0_271 = arith.constant 0 : index
    %c0_272 = arith.constant 0 : index
    %674 = vector.load %arg5[%673, %c0_271, %c0_272] : memref<8x8x256xf32, #tpu.memory_space<vmem>>, vector<1x8x128xf32>
    %675 = vector.shape_cast %674 : vector<1x8x128xf32> to vector<8x128xf32>
    %676 = vector.shape_cast %670 : vector<8x128xf32> to vector<1x8x128xf32>
    tpu.vector_store %arg5[%673, %c0_271, %c0_272], %676 {strides = array<i32>} : memref<8x8x256xf32, #tpu.memory_space<vmem>>, vector<1x8x128xf32>,
    %677 = arith.index_cast %632 : i32 to index
    %c0_273 = arith.constant 0 : index
    %c512_274 = arith.constant 512 : index
    %678 = vector.load %arg1[%677, %c0_273, %c512_274] : memref<8x8x1024xbf16, #tpu.memory_space<vmem>>, vector<1x8x512xbf16>
    %679 = vector.shape_cast %678 : vector<1x8x512xbf16> to vector<8x512xbf16>
    %c0_275 = arith.constant 0 : index
    %c0_276 = arith.constant 0 : index
    %680 = vector.load %arg8[%c0_275, %c0_276] : memref<8x128xf32, #tpu.memory_space<vmem>>, vector<8x128xf32>
    %c0_277 = arith.constant 0 : index
    %c0_278 = arith.constant 0 : index
    %681 = vector.load %arg9[%c0_277, %c0_278] : memref<8x128xf32, #tpu.memory_space<vmem>>, vector<8x128xf32>
    %682 = arith.extf %679 : vector<8x512xbf16> to vector<8x512xf32>
    %683 = arith.truncf %680 : vector<8x128xf32> to vector<8x128xbf16>
    %c0_279 = arith.constant 0 : index
    %c0_280 = arith.constant 0 : index
    %684 = vector.load %arg3[%c0_279, %c0_280] : memref<128x512xbf16, #tpu.memory_space<vmem>>, vector<128x512xbf16>
    %cst_281 = arith.constant dense<0.000000e+00> : vector<8x512xf32>
    %685 = tpu.matmul %683, %684, %cst_281 {dimension_numbers = #tpu.dot_dimension_numbers<[1], [0], [0], [1], [0, 0, 1, 1], [], []>} : vector<8x128xbf16>, vector<128x512xbf16>, vector<8x512xf32> -> vector<8x512xf32>
    %686 = arith.addf %682, %685 : vector<8x512xf32>
    %687 = vector.extract_strided_slice %686 {offsets = [0, 0], sizes = [8, 384], strides = [1, 1]} : vector<8x512xf32> to vector<8x384xf32>
    %688 = arith.negf %687 : vector<8x384xf32>
    %689 = math.exp %688 : vector<8x384xf32>
    %cst_282 = arith.constant 1.000000e+00 : f32
    %690 = vector.broadcast %cst_282 : f32 to vector<8x384xf32>
    %691 = arith.addf %690, %689 : vector<8x384xf32>
    %692 = arith.divf %690, %691 : vector<8x384xf32>
    %693 = vector.extract_strided_slice %686 {offsets = [0, 384], sizes = [8, 128], strides = [1, 1]} : vector<8x512xf32> to vector<8x128xf32>
    %694 = math.tanh %693 : vector<8x128xf32>
    %695 = vector.extract_strided_slice %692 {offsets = [0, 0], sizes = [8, 128], strides = [1, 1]} : vector<8x384xf32> to vector<8x128xf32>
    %696 = vector.extract_strided_slice %692 {offsets = [0, 128], sizes = [8, 128], strides = [1, 1]} : vector<8x384xf32> to vector<8x128xf32>
    %697 = vector.extract_strided_slice %692 {offsets = [0, 256], sizes = [8, 128], strides = [1, 1]} : vector<8x384xf32> to vector<8x128xf32>
    %698 = arith.mulf %696, %681 : vector<8x128xf32>
    %699 = arith.mulf %695, %694 : vector<8x128xf32>
    %700 = arith.addf %698, %699 : vector<8x128xf32>
    %701 = math.tanh %700 : vector<8x128xf32>
    %702 = arith.mulf %697, %701 : vector<8x128xf32>
    %703 = vector.broadcast %632 : i32 to vector<8x1xi32>
    %704 = arith.cmpi slt, %703, %8 : vector<8x1xi32>
    %705 = vector.shape_cast %704 : vector<8x1xi1> to vector<8x1xi1>
    %706 = vector.broadcast %705 : vector<8x1xi1> to vector<8x128xi1>
    %707 = arith.select %706, %702, %680 : vector<8x128xi1>, vector<8x128xf32>
    %708 = vector.shape_cast %704 : vector<8x1xi1> to vector<8x1xi1>
    %709 = vector.broadcast %708 : vector<8x1xi1> to vector<8x128xi1>
    %710 = arith.select %709, %700, %681 : vector<8x128xi1>, vector<8x128xf32>
    %cst_283 = arith.constant 0.000000e+00 : f32
    %711 = vector.shape_cast %704 : vector<8x1xi1> to vector<8x1xi1>
    %712 = vector.broadcast %711 : vector<8x1xi1> to vector<8x128xi1>
    %713 = vector.broadcast %cst_283 : f32 to vector<8x128xf32>
    %714 = arith.select %712, %702, %713 : vector<8x128xi1>, vector<8x128xf32>
    %c0_284 = arith.constant 0 : index
    %c0_285 = arith.constant 0 : index
    %715 = vector.load %arg8[%c0_284, %c0_285] : memref<8x128xf32, #tpu.memory_space<vmem>>, vector<8x128xf32>
    tpu.vector_store %arg8[%c0_284, %c0_285], %707 {strides = array<i32>} : memref<8x128xf32, #tpu.memory_space<vmem>>, vector<8x128xf32>,
    %c0_286 = arith.constant 0 : index
    %c0_287 = arith.constant 0 : index
    %716 = vector.load %arg9[%c0_286, %c0_287] : memref<8x128xf32, #tpu.memory_space<vmem>>, vector<8x128xf32>
    tpu.vector_store %arg9[%c0_286, %c0_287], %710 {strides = array<i32>} : memref<8x128xf32, #tpu.memory_space<vmem>>, vector<8x128xf32>,
    %717 = arith.index_cast %632 : i32 to index
    %c0_288 = arith.constant 0 : index
    %c128_289 = arith.constant 128 : index
    %718 = vector.load %arg5[%717, %c0_288, %c128_289] : memref<8x8x256xf32, #tpu.memory_space<vmem>>, vector<1x8x128xf32>
    %719 = vector.shape_cast %718 : vector<1x8x128xf32> to vector<8x128xf32>
    %720 = vector.shape_cast %714 : vector<8x128xf32> to vector<1x8x128xf32>
    tpu.vector_store %arg5[%717, %c0_288, %c128_289], %720 {strides = array<i32>} : memref<8x8x256xf32, #tpu.memory_space<vmem>>, vector<1x8x128xf32>,
    %c8_i32 = arith.constant 8 : i32
    return
  }
  func.func @transform_0(%arg0: i32) -> (i32, i32, i32) {
    %c0_i32 = arith.constant 0 : i32
    %c0_i32_0 = arith.constant 0 : i32
    %c0_i32_1 = arith.constant 0 : i32
    return %c0_i32, %arg0, %c0_i32_0 : i32, i32, i32
  }
  func.func @transform_1(%arg0: i32) -> (i32, i32) {
    %c0_i32 = arith.constant 0 : i32
    %c0_i32_0 = arith.constant 0 : i32
    %c0_i32_1 = arith.constant 0 : i32
    return %c0_i32, %c0_i32_0 : i32, i32
  }
  func.func @transform_2(%arg0: i32) -> (i32, i32) {
    %c0_i32 = arith.constant 0 : i32
    %c0_i32_0 = arith.constant 0 : i32
    %c0_i32_1 = arith.constant 0 : i32
    return %c0_i32, %c0_i32_0 : i32, i32
  }
  func.func @transform_3(%arg0: i32) -> (i32, i32) {
    %c0_i32 = arith.constant 0 : i32
    %c0_i32_0 = arith.constant 0 : i32
    return %arg0, %c0_i32 : i32, i32
  }
  func.func @transform_4(%arg0: i32) -> (i32, i32, i32) {
    %c0_i32 = arith.constant 0 : i32
    %c0_i32_0 = arith.constant 0 : i32
    %c0_i32_1 = arith.constant 0 : i32
    return %c0_i32, %arg0, %c0_i32_0 : i32, i32, i32
  }
}

module attributes {stable_mosaic.version = 11 : i64} {
  func.func @_linear_residual_kernel(%arg0: i32, %arg1: memref<64x256xf32, #tpu.memory_space<vmem>>, %arg2: memref<256x128xbf16, #tpu.memory_space<vmem>>, %arg3: memref<1x128xf32, #tpu.memory_space<vmem>>, %arg4: memref<64x128xf32, #tpu.memory_space<vmem>>, %arg5: memref<64x128xf32, #tpu.memory_space<vmem>>) attributes {dimension_semantics = [#tpu.dimension_semantics<parallel>], iteration_bounds = array<i64: 1>, scalar_prefetch = 0 : i64, scratch_operands = 0 : i64, tpu.core_type = #tpu.core_type<tc>, window_params = [{transform_indices = @transform_0, window_bounds = array<i64: 64, 256>}, {pipeline_mode = #tpu.pipeline_mode<synchronous>, transform_indices = @transform_1, window_bounds = array<i64: 256, 128>}, {pipeline_mode = #tpu.pipeline_mode<synchronous>, transform_indices = @transform_2, window_bounds = array<i64: 1, 128>}, {transform_indices = @transform_3, window_bounds = array<i64: 64, 128>}, {transform_indices = @transform_4, window_bounds = array<i64: 64, 128>}]} {
    %c0 = arith.constant 0 : index
    %c0_0 = arith.constant 0 : index
    %0 = vector.load %arg1[%c0, %c0_0] : memref<64x256xf32, #tpu.memory_space<vmem>>, vector<64x256xf32>
    %1 = arith.truncf %0 : vector<64x256xf32> to vector<64x256xbf16>
    %c0_1 = arith.constant 0 : index
    %c0_2 = arith.constant 0 : index
    %2 = vector.load %arg2[%c0_1, %c0_2] : memref<256x128xbf16, #tpu.memory_space<vmem>>, vector<256x128xbf16>
    %cst = arith.constant dense<0.000000e+00> : vector<64x128xf32>
    %3 = tpu.matmul %1, %2, %cst {dimension_numbers = #tpu.dot_dimension_numbers<[1], [0], [0], [1], [0, 0, 1, 1], [], []>} : vector<64x256xbf16>, vector<256x128xbf16>, vector<64x128xf32> -> vector<64x128xf32>
    %c0_3 = arith.constant 0 : index
    %c0_4 = arith.constant 0 : index
    %4 = vector.load %arg3[%c0_3, %c0_4] : memref<1x128xf32, #tpu.memory_space<vmem>>, vector<1x128xf32>
    %5 = vector.broadcast %4 : vector<1x128xf32> to vector<64x128xf32>
    %6 = arith.addf %3, %5 : vector<64x128xf32>
    %cst_5 = arith.constant 0.000000e+00 : f32
    %7 = vector.broadcast %cst_5 : f32 to vector<64x128xf32>
    %8 = arith.maximumf %6, %7 : vector<64x128xf32>
    %c0_6 = arith.constant 0 : index
    %c0_7 = arith.constant 0 : index
    %9 = vector.load %arg4[%c0_6, %c0_7] : memref<64x128xf32, #tpu.memory_space<vmem>>, vector<64x128xf32>
    %10 = arith.addf %8, %9 : vector<64x128xf32>
    %c0_8 = arith.constant 0 : index
    %c0_9 = arith.constant 0 : index
    %11 = vector.load %arg5[%c0_8, %c0_9] : memref<64x128xf32, #tpu.memory_space<vmem>>, vector<64x128xf32>
    tpu.vector_store %arg5[%c0_8, %c0_9], %10 {strides = array<i32>} : memref<64x128xf32, #tpu.memory_space<vmem>>, vector<64x128xf32>,
    return
  }
  func.func @transform_0(%arg0: i32) -> (i32, i32) {
    %c0_i32 = arith.constant 0 : i32
    %c0_i32_0 = arith.constant 0 : i32
    return %arg0, %c0_i32 : i32, i32
  }
  func.func @transform_1(%arg0: i32) -> (i32, i32) {
    %c0_i32 = arith.constant 0 : i32
    %c0_i32_0 = arith.constant 0 : i32
    %c0_i32_1 = arith.constant 0 : i32
    return %c0_i32, %c0_i32_0 : i32, i32
  }
  func.func @transform_2(%arg0: i32) -> (i32, i32) {
    %c0_i32 = arith.constant 0 : i32
    %c0_i32_0 = arith.constant 0 : i32
    %c0_i32_1 = arith.constant 0 : i32
    return %c0_i32, %c0_i32_0 : i32, i32
  }
  func.func @transform_3(%arg0: i32) -> (i32, i32) {
    %c0_i32 = arith.constant 0 : i32
    %c0_i32_0 = arith.constant 0 : i32
    return %arg0, %c0_i32 : i32, i32
  }
  func.func @transform_4(%arg0: i32) -> (i32, i32) {
    %c0_i32 = arith.constant 0 : i32
    %c0_i32_0 = arith.constant 0 : i32
    return %arg0, %c0_i32 : i32, i32
  }
}

module attributes {stable_mosaic.version = 11 : i64} {
  func.func @_mlp_head_kernel(%arg0: i32, %arg1: memref<64x128xf32, #tpu.memory_space<vmem>>, %arg2: memref<128x64xbf16, #tpu.memory_space<vmem>>, %arg3: memref<1x64xf32, #tpu.memory_space<vmem>>, %arg4: memref<64x128xbf16, #tpu.memory_space<vmem>>, %arg5: memref<1x128xf32, #tpu.memory_space<vmem>>, %arg6: memref<64x128xf32, #tpu.memory_space<vmem>>) attributes {dimension_semantics = [#tpu.dimension_semantics<parallel>], iteration_bounds = array<i64: 1>, scalar_prefetch = 0 : i64, scratch_operands = 0 : i64, tpu.core_type = #tpu.core_type<tc>, window_params = [{transform_indices = @transform_0, window_bounds = array<i64: 64, 128>}, {pipeline_mode = #tpu.pipeline_mode<synchronous>, transform_indices = @transform_1, window_bounds = array<i64: 128, 64>}, {pipeline_mode = #tpu.pipeline_mode<synchronous>, transform_indices = @transform_2, window_bounds = array<i64: 1, 64>}, {pipeline_mode = #tpu.pipeline_mode<synchronous>, transform_indices = @transform_3, window_bounds = array<i64: 64, 128>}, {pipeline_mode = #tpu.pipeline_mode<synchronous>, transform_indices = @transform_4, window_bounds = array<i64: 1, 128>}, {transform_indices = @transform_5, window_bounds = array<i64: 64, 128>}]} {
    %c0 = arith.constant 0 : index
    %c0_0 = arith.constant 0 : index
    %0 = vector.load %arg1[%c0, %c0_0] : memref<64x128xf32, #tpu.memory_space<vmem>>, vector<64x128xf32>
    %1 = arith.truncf %0 : vector<64x128xf32> to vector<64x128xbf16>
    %c0_1 = arith.constant 0 : index
    %c0_2 = arith.constant 0 : index
    %2 = vector.load %arg2[%c0_1, %c0_2] : memref<128x64xbf16, #tpu.memory_space<vmem>>, vector<128x64xbf16>
    %cst = arith.constant dense<0.000000e+00> : vector<64x64xf32>
    %3 = tpu.matmul %1, %2, %cst {dimension_numbers = #tpu.dot_dimension_numbers<[1], [0], [0], [1], [0, 0, 1, 1], [], []>} : vector<64x128xbf16>, vector<128x64xbf16>, vector<64x64xf32> -> vector<64x64xf32>
    %c0_3 = arith.constant 0 : index
    %c0_4 = arith.constant 0 : index
    %4 = vector.load %arg3[%c0_3, %c0_4] : memref<1x64xf32, #tpu.memory_space<vmem>>, vector<1x64xf32>
    %5 = vector.broadcast %4 : vector<1x64xf32> to vector<64x64xf32>
    %6 = arith.addf %3, %5 : vector<64x64xf32>
    %cst_5 = arith.constant 0.000000e+00 : f32
    %7 = vector.broadcast %cst_5 : f32 to vector<64x64xf32>
    %8 = arith.maximumf %6, %7 : vector<64x64xf32>
    %9 = arith.truncf %8 : vector<64x64xf32> to vector<64x64xbf16>
    %c0_6 = arith.constant 0 : index
    %c0_7 = arith.constant 0 : index
    %10 = vector.load %arg4[%c0_6, %c0_7] : memref<64x128xbf16, #tpu.memory_space<vmem>>, vector<64x128xbf16>
    %cst_8 = arith.constant dense<0.000000e+00> : vector<64x128xf32>
    %11 = tpu.matmul %9, %10, %cst_8 {dimension_numbers = #tpu.dot_dimension_numbers<[1], [0], [0], [1], [0, 0, 1, 1], [], []>} : vector<64x64xbf16>, vector<64x128xbf16>, vector<64x128xf32> -> vector<64x128xf32>
    %c0_9 = arith.constant 0 : index
    %c0_10 = arith.constant 0 : index
    %12 = vector.load %arg5[%c0_9, %c0_10] : memref<1x128xf32, #tpu.memory_space<vmem>>, vector<1x128xf32>
    %13 = vector.broadcast %12 : vector<1x128xf32> to vector<64x128xf32>
    %14 = arith.addf %11, %13 : vector<64x128xf32>
    %c0_11 = arith.constant 0 : index
    %c0_12 = arith.constant 0 : index
    %15 = vector.load %arg6[%c0_11, %c0_12] : memref<64x128xf32, #tpu.memory_space<vmem>>, vector<64x128xf32>
    tpu.vector_store %arg6[%c0_11, %c0_12], %14 {strides = array<i32>} : memref<64x128xf32, #tpu.memory_space<vmem>>, vector<64x128xf32>,
    return
  }
  func.func @transform_0(%arg0: i32) -> (i32, i32) {
    %c0_i32 = arith.constant 0 : i32
    %c0_i32_0 = arith.constant 0 : i32
    return %arg0, %c0_i32 : i32, i32
  }
  func.func @transform_1(%arg0: i32) -> (i32, i32) {
    %c0_i32 = arith.constant 0 : i32
    %c0_i32_0 = arith.constant 0 : i32
    %c0_i32_1 = arith.constant 0 : i32
    return %c0_i32, %c0_i32_0 : i32, i32
  }
  func.func @transform_2(%arg0: i32) -> (i32, i32) {
    %c0_i32 = arith.constant 0 : i32
    %c0_i32_0 = arith.constant 0 : i32
    %c0_i32_1 = arith.constant 0 : i32
    return %c0_i32, %c0_i32_0 : i32, i32
  }
  func.func @transform_3(%arg0: i32) -> (i32, i32) {
    %c0_i32 = arith.constant 0 : i32
    %c0_i32_0 = arith.constant 0 : i32
    %c0_i32_1 = arith.constant 0 : i32
    return %c0_i32, %c0_i32_0 : i32, i32
  }
  func.func @transform_4(%arg0: i32) -> (i32, i32) {
    %c0_i32 = arith.constant 0 : i32
    %c0_i32_0 = arith.constant 0 : i32
    %c0_i32_1 = arith.constant 0 : i32
    return %c0_i32, %c0_i32_0 : i32, i32
  }
  func.func @transform_5(%arg0: i32) -> (i32, i32) {
    %c0_i32 = arith.constant 0 : i32
    %c0_i32_0 = arith.constant 0 : i32
    return %arg0, %c0_i32 : i32, i32
  }
}

</mosaic_0001>

<llo_original>
// kernel: ner_lstm_bidi_forward.7
$region0: #{ner_lstm_bidi_forward.7}
  #allocation0 [shape = 'u32[]', space=smem, size = 0x4, offset = 0x4, fixed_abs, tag = 'smem constant byte address 0x4 - core index']
  #allocation1 [shape = 'u32[144,128]{1,0:T(1,128)}', space=vmem, size = 0x12000, scoped, tag = 'internal scratch']
  %s0 = inlined_call_operand.vmem [shape: f32[64,128], index: 0, kind: input, shape index: {}]
  %s1 = inlined_call_operand.vmem [shape: bf16[128,128], index: 1, kind: input, shape index: {}]
  %s2 = inlined_call_operand.vmem [shape: f32[1,128], index: 2, kind: input, shape index: {}]
  %s3 = inlined_call_operand.vmem [shape: f32[64,128], index: 3, kind: output, shape index: {}]
  %s4 = sld [smem:[#allocation0]]
  $region22: #{ner_lstm_bidi_forward.7} parent=0
    _
  %s6 = ssub.s32 1, %s4
  %s7 = scalar_select 0, %s6, %s4
  // Predicated region
  $region2: #{ner_lstm_bidi_forward.7} parent=0 // pred_check
    _
  $region3: #{ner_lstm_bidi_forward.7} parent=0 // pred_check_branch
    %9 = sbr.rel (0) target = $region5
  $region4: #{ner_lstm_bidi_forward.7} parent=0 // pred_region
    _
  $region5: #{ner_lstm_bidi_forward.7} parent=0 // pred_fallthru
    _
  // Predicated region
  $region6: #{ner_lstm_bidi_forward.7} parent=0 // pred_check
    _
  $region7: #{ner_lstm_bidi_forward.7} parent=0 // pred_check_branch
    %11 = sbr.rel (0) target = $region9
  $region8: #{ner_lstm_bidi_forward.7} parent=0 // pred_region
    _
  $region9: #{ner_lstm_bidi_forward.7} parent=0 // pred_fallthru
    _
  // Predicated region
  $region10: #{ner_lstm_bidi_forward.7} parent=0 // pred_check
    _
  $region11: #{ner_lstm_bidi_forward.7} parent=0 // pred_check_branch
    %13 = sbr.rel (0) target = $region13
  $region12: #{ner_lstm_bidi_forward.7} parent=0 // pred_region
    _
  $region13: #{ner_lstm_bidi_forward.7} parent=0 // pred_fallthru
    _
  %v15 = vld [vmem:[%s0] sm:$0xff]
  %v16 = vld [vmem:[%s0 + $0x8] sm:$0xff]
  %v17 = vld [vmem:[%s0 + $0x10] sm:$0xff]
  %v18 = vld [vmem:[%s0 + $0x18] sm:$0xff]
  %v19 = vld [vmem:[%s0 + $0x20] sm:$0xff]
  %v20 = vld [vmem:[%s0 + $0x28] sm:$0xff]
  %v21 = vld [vmem:[%s0 + $0x30] sm:$0xff]
  %v22 = vld [vmem:[%s0 + $0x38] sm:$0xff]
  %v23 = vpack.c.bf16 %v16, %v15
  %v24 = vpack.c.bf16 %v18, %v17
  %v25 = vpack.c.bf16 %v20, %v19
  %v26 = vpack.c.bf16 %v22, %v21
  %v27 = vld [vmem:[%s1] sm:$0xf]
  %v28 = vld [vmem:[%s1 + $0x4] sm:$0xf]
  %v29 = vld [vmem:[%s1 + $0x8] sm:$0xf]
  %v30 = vld [vmem:[%s1 + $0xc] sm:$0xf]
  %v31 = vld [vmem:[%s1 + $0x10] sm:$0xf]
  %v32 = vld [vmem:[%s1 + $0x14] sm:$0xf]
  %v33 = vld [vmem:[%s1 + $0x18] sm:$0xf]
  %v34 = vld [vmem:[%s1 + $0x1c] sm:$0xf]
  %v35 = vld [vmem:[%s1 + $0x20] sm:$0xf]
  %v36 = vld [vmem:[%s1 + $0x24] sm:$0xf]
  %v37 = vld [vmem:[%s1 + $0x28] sm:$0xf]
  %v38 = vld [vmem:[%s1 + $0x2c] sm:$0xf]
  %v39 = vld [vmem:[%s1 + $0x30] sm:$0xf]
  %v40 = vld [vmem:[%s1 + $0x34] sm:$0xf]
  %v41 = vld [vmem:[%s1 + $0x38] sm:$0xf]
  %v42 = vld [vmem:[%s1 + $0x3c] sm:$0xf]
  %v43 = vld [vmem:[%s2] sm:$0x1]
  %v45 = vlaneseq
  %v46 = vshrl.u32 %v45, 7
  %v47 = vsub.s32 0, %v46
  %v48 = vrot.slane %v43, %v47
  %v66 = vunpack.c.l.b16 %v27
  %v67 = vunpack.c.l.b16 %v28
  %v68 = vunpack.c.l.b16 %v29
  %v69 = vunpack.c.l.b16 %v30
  %v70 = vunpack.c.l.b16 %v31
  %v71 = vunpack.c.l.b16 %v32
  %v72 = vunpack.c.l.b16 %v33
  %v73 = vunpack.c.l.b16 %v34
  %v74 = vunpack.c.l.b16 %v35
  %v75 = vunpack.c.l.b16 %v36
  %v76 = vunpack.c.l.b16 %v37
  %v77 = vunpack.c.l.b16 %v38
  %v78 = vunpack.c.l.b16 %v39
  %v79 = vunpack.c.l.b16 %v40
  %v80 = vunpack.c.l.b16 %v41
  %v81 = vunpack.c.l.b16 %v42
  %v82 = vpack.c.b16 %v67, %v66
  %v83 = vpack.c.b16 %v69, %v68
  %v84 = vpack.c.b16 %v71, %v70
  %v85 = vpack.c.b16 %v73, %v72
  %v86 = vpack.c.b16 %v75, %v74
  %v87 = vpack.c.b16 %v77, %v76
  %v88 = vpack.c.b16 %v79, %v78
  %v89 = vpack.c.b16 %v81, %v80
  %98 = vmatprep.subr.bf16.mxu0 0
  %99 = vmatpush1.bf16.msra.mxu0 %v89
  %100 = vmatprep.subr.bf16.mxu0 0
  %101 = vmatpush1.bf16.msra.mxu0 %v88
  %102 = vmatprep.subr.bf16.mxu0 0
  %103 = vmatpush1.bf16.msra.mxu0 %v87
  %104 = vmatprep.subr.bf16.mxu0 0
  %105 = vmatpush1.bf16.msra.mxu0 %v86
  %106 = vmatprep.subr.bf16.mxu0 0
  %107 = vmatpush1.bf16.msra.mxu0 %v85
  %108 = vmatprep.subr.bf16.mxu0 0
  %109 = vmatpush1.bf16.msra.mxu0 %v84
  %110 = vmatprep.subr.bf16.mxu0 0
  %111 = vmatpush1.bf16.msra.mxu0 %v83
  %112 = vmatprep.subr.bf16.mxu0 0
  %113 = vmatpush1.bf16.msra.mxu0 %v82
  %114 = vmatprep.subr.bf16.mxu0 0
  %115 = vmatpush2.bf16.msra.mxu0 0
  %116 = vmatprep.subr.bf16.mxu0 0
  %117 = vmatpush2.bf16.msra.mxu0 0
  %118 = vmatprep.subr.bf16.mxu0 0
  %119 = vmatpush2.bf16.msra.mxu0 0
  %120 = vmatprep.subr.bf16.mxu0 0
  %121 = vmatpush2.bf16.msra.mxu0 0
  %122 = vmatprep.subr.bf16.mxu0 0
  %123 = vmatpush2.bf16.msra.mxu0 0
  %124 = vmatprep.subr.bf16.mxu0 0
  %125 = vmatpush2.bf16.msra.mxu0 0
  %126 = vmatprep.subr.bf16.mxu0 0
  %127 = vmatpush2.bf16.msra.mxu0 0
  %128 = vmatprep.subr.bf16.mxu0 0
  %129 = vmatpush2.bf16.msra.mxu0 0
  %130 = vmatprep.mubr.bf16.mxu0 0
  %131 = vmatmul.mubr.bf16.gmra.mxu0 %v23
  %v132 = vpop.f32.mrf.mxu0
  %v133 = vadd.f32 %v48, %v132
  %v134 = vpop.f32.mrf.mxu0
  %v135 = vpop.f32.mrf.mxu0
  %v136 = vadd.f32 %v48, %v135
  %v137 = vpop.f32.mrf.mxu0
  %138 = vmatprep.mubr.bf16.mxu0 0
  %139 = vmatmul.mubr.bf16.gmra.mxu0 %v24
  %v140 = vpop.f32.mrf.mxu0
  %v141 = vadd.f32 %v48, %v140
  %v142 = vpop.f32.mrf.mxu0
  %v143 = vpop.f32.mrf.mxu0
  %v144 = vadd.f32 %v48, %v143
  %v145 = vpop.f32.mrf.mxu0
  %146 = vmatprep.mubr.bf16.mxu0 0
  %147 = vmatmul.mubr.bf16.gmra.mxu0 %v25
  %v148 = vpop.f32.mrf.mxu0
  %v149 = vadd.f32 %v48, %v148
  %v150 = vpop.f32.mrf.mxu0
  %v151 = vpop.f32.mrf.mxu0
  %v152 = vadd.f32 %v48, %v151
  %v153 = vpop.f32.mrf.mxu0
  %154 = vmatprep.mubr.bf16.mxu0 0
  %155 = vmatmul.mubr.bf16.gmra.mxu0 %v26
  %v156 = vpop.f32.mrf.mxu0
  %v157 = vadd.f32 %v48, %v156
  %v158 = vpop.f32.mrf.mxu0
  %v159 = vpop.f32.mrf.mxu0
  %v160 = vadd.f32 %v48, %v159
  %v161 = vpop.f32.mrf.mxu0
  %162 = vdwg.mxu0
  %v163 = vmax.f32 %v133, 0.0
  %v164 = vmax.f32 %v136, 0.0
  %v165 = vmax.f32 %v141, 0.0
  %v166 = vmax.f32 %v144, 0.0
  %v167 = vmax.f32 %v149, 0.0
  %v168 = vmax.f32 %v152, 0.0
  %v169 = vmax.f32 %v157, 0.0
  %v170 = vmax.f32 %v160, 0.0
  %171 = vst [vmem:[%s3] sm:$0xff] %v163
  %172 = vst [vmem:[%s3 + $0x8] sm:$0xff] %v164
  %173 = vst [vmem:[%s3 + $0x10] sm:$0xff] %v165
  %174 = vst [vmem:[%s3 + $0x18] sm:$0xff] %v166
  %175 = vst [vmem:[%s3 + $0x20] sm:$0xff] %v167
  %176 = vst [vmem:[%s3 + $0x28] sm:$0xff] %v168
  %177 = vst [vmem:[%s3 + $0x30] sm:$0xff] %v169
  %178 = vst [vmem:[%s3 + $0x38] sm:$0xff] %v170
  // Predicated region
  $region14: #{ner_lstm_bidi_forward.7} parent=0 // pred_check
    _
  $region15: #{ner_lstm_bidi_forward.7} parent=0 // pred_check_branch
    %180 = sbr.rel (0) target = $region17
  $region16: #{ner_lstm_bidi_forward.7} parent=0 // pred_region
    _
  $region17: #{ner_lstm_bidi_forward.7} parent=0 // pred_fallthru
    _
  // Predicated region
  $region18: #{ner_lstm_bidi_forward.7} parent=0 // pred_check
    _
  $region19: #{ner_lstm_bidi_forward.7} parent=0 // pred_check_branch
    %182 = sbr.rel (0) target = $region21
  $region20: #{ner_lstm_bidi_forward.7} parent=0 // pred_region
    _
  $region21: #{ner_lstm_bidi_forward.7} parent=0 // pred_fallthru
    _

// kernel: ner_lstm_bidi_forward.8
$region0: #{ner_lstm_bidi_forward.8}
  #allocation0 [shape = 'u32[]', space=smem, size = 0x4, offset = 0x4, fixed_abs, tag = 'smem constant byte address 0x4 - core index']
  #allocation1 [shape = 'u32[144,128]{1,0:T(1,128)}', space=vmem, size = 0x12000, scoped, tag = 'internal scratch']
  %s0 = inlined_call_operand.vmem [shape: f32[64,128], index: 0, kind: input, shape index: {}]
  %s1 = inlined_call_operand.hbm [shape: bf16[128,1024], index: 1, kind: input, shape index: {}]
  %s2 = inlined_call_operand.vmem [shape: f32[1,1024], index: 2, kind: input, shape index: {}]
  %s3 = inlined_call_operand.vmem [shape: bf16[64,1024], index: 3, kind: output, shape index: {}]
  %s4 = sld [smem:[#allocation0]]
  $region26: #{ner_lstm_bidi_forward.8} parent=0
    _
  %s6 = ssub.s32 1, %s4
  %s7 = scalar_select 0, %s6, %s4
  $region1: #{ner_lstm_bidi_forward.8} parent=0
    #allocation2 [shape = 'u8[262144]{0}', space=vmem, size = 0x40000, scoped, tag = 'input window, operand 1, single buffered']
    #allocation3 [shape = 's32[1]{0}', space=sflag, size = 0x4, scoped, tag = 'scoped memory for ner_lstm_bidi_forward.8']
    %8 = vsyncpa [#allocation3], 0
    // Predicated region
    $region2: #{ner_lstm_bidi_forward.8} parent=1 // pred_check
      _
    $region3: #{ner_lstm_bidi_forward.8} parent=1 // pred_check_branch
      %10 = sbr.rel (0) target = $region5
    $region4: #{ner_lstm_bidi_forward.8} parent=1 // pred_region
      _
    $region5: #{ner_lstm_bidi_forward.8} parent=1 // pred_fallthru
      _
    // Predicated region
    $region6: #{ner_lstm_bidi_forward.8} parent=1 // pred_check
      _
    $region7: #{ner_lstm_bidi_forward.8} parent=1 // pred_check_branch
      %12 = sbr.rel (0) target = $region9
    $region8: #{ner_lstm_bidi_forward.8} parent=1 // pred_region
      %s14 = ssub.s32 8192, 8192
      %15 = vsyncadd [#allocation3], %s14
      %s16 = sshll.u32 [#allocation2], 4
      %s17 = int_to_ptr.vmem [resolvable:$true] %s16
      %22 = dma.hbm_to_vmem [thread:$0]  %s1, 8192, %s17, [#allocation3], 512, 512, 32
    $region9: #{ner_lstm_bidi_forward.8} parent=1 // pred_fallthru
      _
    // Predicated region
    $region10: #{ner_lstm_bidi_forward.8} parent=1 // pred_check
      _
    $region11: #{ner_lstm_bidi_forward.8} parent=1 // pred_check_branch
      %24 = sbr.rel (0) target = $region13
    $region12: #{ner_lstm_bidi_forward.8} parent=1 // pred_region
      _
    $region13: #{ner_lstm_bidi_forward.8} parent=1 // pred_fallthru
      _
    // Predicated region
    $region14: #{ner_lstm_bidi_forward.8} parent=1 // pred_check
      _
    $region15: #{ner_lstm_bidi_forward.8} parent=1 // pred_check_branch
      %26 = sbr.rel (0) target = $region17
    $region16: #{ner_lstm_bidi_forward.8} parent=1 // pred_region
      %27 = dma.done [#allocation3], 8192
    $region17: #{ner_lstm_bidi_forward.8} parent=1 // pred_fallthru
      _
    %v29 = vld [vmem:[%s0] sm:$0xff]
    %v30 = vld [vmem:[%s0 + $0x8] sm:$0xff]
    %v31 = vld [vmem:[%s0 + $0x10] sm:$0xff]
    %v32 = vld [vmem:[%s0 + $0x18] sm:$0xff]
    %v33 = vld [vmem:[%s0 + $0x20] sm:$0xff]
    %v34 = vld [vmem:[%s0 + $0x28] sm:$0xff]
    %v35 = vld [vmem:[%s0 + $0x30] sm:$0xff]
    %v36 = vld [vmem:[%s0 + $0x38] sm:$0xff]
    %v37 = vpack.c.bf16 %v30, %v29
    %v38 = vpack.c.bf16 %v32, %v31
    %v39 = vpack.c.bf16 %v34, %v33
    %v40 = vpack.c.bf16 %v36, %v35
    %v41 = vld [vmem:[#allocation2] sm:$0xff]
    %v42 = vld [vmem:[#allocation2 + $0x8] sm:$0xff]
    %v43 = vld [vmem:[#allocation2 + $0x10] sm:$0xff]
    %v44 = vld [vmem:[#allocation2 + $0x18] sm:$0xff]
    %v45 = vld [vmem:[#allocation2 + $0x20] sm:$0xff]
    %v46 = vld [vmem:[#allocation2 + $0x28] sm:$0xff]
    %v47 = vld [vmem:[#allocation2 + $0x30] sm:$0xff]
    %v48 = vld [vmem:[#allocation2 + $0x38] sm:$0xff]
    %v49 = vld [vmem:[#allocation2 + $0x40] sm:$0xff]
    %v50 = vld [vmem:[#allocation2 + $0x48] sm:$0xff]
    %v51 = vld [vmem:[#allocation2 + $0x50] sm:$0xff]
    %v52 = vld [vmem:[#allocation2 + $0x58] sm:$0xff]
    %v53 = vld [vmem:[#allocation2 + $0x60] sm:$0xff]
    %v54 = vld [vmem:[#allocation2 + $0x68] sm:$0xff]
    %v55 = vld [vmem:[#allocation2 + $0x70] sm:$0xff]
    %v56 = vld [vmem:[#allocation2 + $0x78] sm:$0xff]
    %v57 = vld [vmem:[#allocation2 + $0x80] sm:$0xff]
    %v58 = vld [vmem:[#allocation2 + $0x88] sm:$0xff]
    %v59 = vld [vmem:[#allocation2 + $0x90] sm:$0xff]
    %v60 = vld [vmem:[#allocation2 + $0x98] sm:$0xff]
    %v61 = vld [vmem:[#allocation2 + $0xa0] sm:$0xff]
    %v62 = vld [vmem:[#allocation2 + $0xa8] sm:$0xff]
    %v63 = vld [vmem:[#allocation2 + $0xb0] sm:$0xff]
    %v64 = vld [vmem:[#allocation2 + $0xb8] sm:$0xff]
    %v65 = vld [vmem:[#allocation2 + $0xc0] sm:$0xff]
    %v66 = vld [vmem:[#allocation2 + $0xc8] sm:$0xff]
    %v67 = vld [vmem:[#allocation2 + $0xd0] sm:$0xff]
    %v68 = vld [vmem:[#allocation2 + $0xd8] sm:$0xff]
    %v69 = vld [vmem:[#allocation2 + $0xe0] sm:$0xff]
    %v70 = vld [vmem:[#allocation2 + $0xe8] sm:$0xff]
    %v71 = vld [vmem:[#allocation2 + $0xf0] sm:$0xff]
    %v72 = vld [vmem:[#allocation2 + $0xf8] sm:$0xff]
    %v73 = vld [vmem:[#allocation2 + $0x100] sm:$0xff]
    %v74 = vld [vmem:[#allocation2 + $0x108] sm:$0xff]
    %v75 = vld [vmem:[#allocation2 + $0x110] sm:$0xff]
    %v76 = vld [vmem:[#allocation2 + $0x118] sm:$0xff]
    %v77 = vld [vmem:[#allocation2 + $0x120] sm:$0xff]
    %v78 = vld [vmem:[#allocation2 + $0x128] sm:$0xff]
    %v79 = vld [vmem:[#allocation2 + $0x130] sm:$0xff]
    %v80 = vld [vmem:[#allocation2 + $0x138] sm:$0xff]
    %v81 = vld [vmem:[#allocation2 + $0x140] sm:$0xff]
    %v82 = vld [vmem:[#allocation2 + $0x148] sm:$0xff]
    %v83 = vld [vmem:[#allocation2 + $0x150] sm:$0xff]
    %v84 = vld [vmem:[#allocation2 + $0x158] sm:$0xff]
    %v85 = vld [vmem:[#allocation2 + $0x160] sm:$0xff]
    %v86 = vld [vmem:[#allocation2 + $0x168] sm:$0xff]
    %v87 = vld [vmem:[#allocation2 + $0x170] sm:$0xff]
    %v88 = vld [vmem:[#allocation2 + $0x178] sm:$0xff]
    %v89 = vld [vmem:[#allocation2 + $0x180] sm:$0xff]
    %v90 = vld [vmem:[#allocation2 + $0x188] sm:$0xff]
    %v91 = vld [vmem:[#allocation2 + $0x190] sm:$0xff]
    %v92 = vld [vmem:[#allocation2 + $0x198] sm:$0xff]
    %v93 = vld [vmem:[#allocation2 + $0x1a0] sm:$0xff]
    %v94 = vld [vmem:[#allocation2 + $0x1a8] sm:$0xff]
    %v95 = vld [vmem:[#allocation2 + $0x1b0] sm:$0xff]
    %v96 = vld [vmem:[#allocation2 + $0x1b8] sm:$0xff]
    %v97 = vld [vmem:[#allocation2 + $0x1c0] sm:$0xff]
    %v98 = vld [vmem:[#allocation2 + $0x1c8] sm:$0xff]
    %v99 = vld [vmem:[#allocation2 + $0x1d0] sm:$0xff]
    %v100 = vld [vmem:[#allocation2 + $0x1d8] sm:$0xff]
    %v101 = vld [vmem:[#allocation2 + $0x1e0] sm:$0xff]
    %v102 = vld [vmem:[#allocation2 + $0x1e8] sm:$0xff]
    %v103 = vld [vmem:[#allocation2 + $0x1f0] sm:$0xff]
    %v104 = vld [vmem:[#allocation2 + $0x1f8] sm:$0xff]
    %v105 = vld [vmem:[%s2] sm:$0xff]
    %v107 = vlaneseq
    %v108 = vshrl.u32 %v107, 7
    %v109 = vsub.s32 0, %v108
    %v110 = vrot.slane %v105, %v109
    %v111 = vlaneseq
    %v112 = vshrl.u32 %v111, 7
    %v113 = vsub.s32 1, %v112
    %v114 = vrot.slane %v105, %v113
    %v115 = vlaneseq
    %v116 = vshrl.u32 %v115, 7
    %v117 = vsub.s32 2, %v116
    %v118 = vrot.slane %v105, %v117
    %v119 = vlaneseq
    %v120 = vshrl.u32 %v119, 7
    %v121 = vsub.s32 3, %v120
    %v122 = vrot.slane %v105, %v121
    %v123 = vlaneseq
    %v124 = vshrl.u32 %v123, 7
    %v125 = vsub.s32 4, %v124
    %v126 = vrot.slane %v105, %v125
    %v127 = vlaneseq
    %v128 = vshrl.u32 %v127, 7
    %v129 = vsub.s32 5, %v128
    %v130 = vrot.slane %v105, %v129
    %v131 = vlaneseq
    %v132 = vshrl.u32 %v131, 7
    %v133 = vsub.s32 6, %v132
    %v134 = vrot.slane %v105, %v133
    %v135 = vlaneseq
    %v136 = vshrl.u32 %v135, 7
    %v137 = vsub.s32 7, %v136
    %v138 = vrot.slane %v105, %v137
    %v211 = vunpack.c.l.b16 %v41
    %v212 = vunpack.c.h.b16 %v41
    %v213 = vunpack.c.l.b16 %v42
    %v214 = vunpack.c.h.b16 %v42
    %v215 = vunpack.c.l.b16 %v43
    %v216 = vunpack.c.h.b16 %v43
    %v217 = vunpack.c.l.b16 %v44
    %v218 = vunpack.c.h.b16 %v44
    %v219 = vunpack.c.l.b16 %v45
    %v220 = vunpack.c.h.b16 %v45
    %v221 = vunpack.c.l.b16 %v46
    %v222 = vunpack.c.h.b16 %v46
    %v223 = vunpack.c.l.b16 %v47
    %v224 = vunpack.c.h.b16 %v47
    %v225 = vunpack.c.l.b16 %v48
    %v226 = vunpack.c.h.b16 %v48
    %v227 = vunpack.c.l.b16 %v49
    %v228 = vunpack.c.h.b16 %v49
    %v229 = vunpack.c.l.b16 %v50
    %v230 = vunpack.c.h.b16 %v50
    %v231 = vunpack.c.l.b16 %v51
    %v232 = vunpack.c.h.b16 %v51
    %v233 = vunpack.c.l.b16 %v52
    %v234 = vunpack.c.h.b16 %v52
    %v235 = vunpack.c.l.b16 %v53
    %v236 = vunpack.c.h.b16 %v53
    %v237 = vunpack.c.l.b16 %v54
    %v238 = vunpack.c.h.b16 %v54
    %v239 = vunpack.c.l.b16 %v55
    %v240 = vunpack.c.h.b16 %v55
    %v241 = vunpack.c.l.b16 %v56
    %v242 = vunpack.c.h.b16 %v56
    %v243 = vunpack.c.l.b16 %v57
    %v244 = vunpack.c.h.b16 %v57
    %v245 = vunpack.c.l.b16 %v58
    %v246 = vunpack.c.h.b16 %v58
    %v247 = vunpack.c.l.b16 %v59
    %v248 = vunpack.c.h.b16 %v59
    %v249 = vunpack.c.l.b16 %v60
    %v250 = vunpack.c.h.b16 %v60
    %v251 = vunpack.c.l.b16 %v61
    %v252 = vunpack.c.h.b16 %v61
    %v253 = vunpack.c.l.b16 %v62
    %v254 = vunpack.c.h.b16 %v62
    %v255 = vunpack.c.l.b16 %v63
    %v256 = vunpack.c.h.b16 %v63
    %v257 = vunpack.c.l.b16 %v64
    %v258 = vunpack.c.h.b16 %v64
    %v259 = vunpack.c.l.b16 %v65
    %v260 = vunpack.c.h.b16 %v65
    %v261 = vunpack.c.l.b16 %v66
    %v262 = vunpack.c.h.b16 %v66
    %v263 = vunpack.c.l.b16 %v67
    %v264 = vunpack.c.h.b16 %v67
    %v265 = vunpack.c.l.b16 %v68
    %v266 = vunpack.c.h.b16 %v68
    %v267 = vunpack.c.l.b16 %v69
    %v268 = vunpack.c.h.b16 %v69
    %v269 = vunpack.c.l.b16 %v70
    %v270 = vunpack.c.h.b16 %v70
    %v271 = vunpack.c.l.b16 %v71
    %v272 = vunpack.c.h.b16 %v71
    %v273 = vunpack.c.l.b16 %v72
    %v274 = vunpack.c.h.b16 %v72
    %v275 = vunpack.c.l.b16 %v73
    %v276 = vunpack.c.h.b16 %v73
    %v277 = vunpack.c.l.b16 %v74
    %v278 = vunpack.c.h.b16 %v74
    %v279 = vunpack.c.l.b16 %v75
    %v280 = vunpack.c.h.b16 %v75
    %v281 = vunpack.c.l.b16 %v76
    %v282 = vunpack.c.h.b16 %v76
    %v283 = vunpack.c.l.b16 %v77
    %v284 = vunpack.c.h.b16 %v77
    %v285 = vunpack.c.l.b16 %v78
    %v286 = vunpack.c.h.b16 %v78
    %v287 = vunpack.c.l.b16 %v79
    %v288 = vunpack.c.h.b16 %v79
    %v289 = vunpack.c.l.b16 %v80
    %v290 = vunpack.c.h.b16 %v80
    %v291 = vunpack.c.l.b16 %v81
    %v292 = vunpack.c.h.b16 %v81
    %v293 = vunpack.c.l.b16 %v82
    %v294 = vunpack.c.h.b16 %v82
    %v295 = vunpack.c.l.b16 %v83
    %v296 = vunpack.c.h.b16 %v83
    %v297 = vunpack.c.l.b16 %v84
    %v298 = vunpack.c.h.b16 %v84
    %v299 = vunpack.c.l.b16 %v85
    %v300 = vunpack.c.h.b16 %v85
    %v301 = vunpack.c.l.b16 %v86
    %v302 = vunpack.c.h.b16 %v86
    %v303 = vunpack.c.l.b16 %v87
    %v304 = vunpack.c.h.b16 %v87
    %v305 = vunpack.c.l.b16 %v88
    %v306 = vunpack.c.h.b16 %v88
    %v307 = vunpack.c.l.b16 %v89
    %v308 = vunpack.c.h.b16 %v89
    %v309 = vunpack.c.l.b16 %v90
    %v310 = vunpack.c.h.b16 %v90
    %v311 = vunpack.c.l.b16 %v91
    %v312 = vunpack.c.h.b16 %v91
    %v313 = vunpack.c.l.b16 %v92
    %v314 = vunpack.c.h.b16 %v92
    %v315 = vunpack.c.l.b16 %v93
    %v316 = vunpack.c.h.b16 %v93
    %v317 = vunpack.c.l.b16 %v94
    %v318 = vunpack.c.h.b16 %v94
    %v319 = vunpack.c.l.b16 %v95
    %v320 = vunpack.c.h.b16 %v95
    %v321 = vunpack.c.l.b16 %v96
    %v322 = vunpack.c.h.b16 %v96
    %v323 = vunpack.c.l.b16 %v97
    %v324 = vunpack.c.h.b16 %v97
    %v325 = vunpack.c.l.b16 %v98
    %v326 = vunpack.c.h.b16 %v98
    %v327 = vunpack.c.l.b16 %v99
    %v328 = vunpack.c.h.b16 %v99
    %v329 = vunpack.c.l.b16 %v100
    %v330 = vunpack.c.h.b16 %v100
    %v331 = vunpack.c.l.b16 %v101
    %v332 = vunpack.c.h.b16 %v101
    %v333 = vunpack.c.l.b16 %v102
    %v334 = vunpack.c.h.b16 %v102
    %v335 = vunpack.c.l.b16 %v103
    %v336 = vunpack.c.h.b16 %v103
    %v337 = vunpack.c.l.b16 %v104
    %v338 = vunpack.c.h.b16 %v104
    %v339 = vpack.c.b16 %v219, %v211
    %v340 = vpack.c.b16 %v220, %v212
    %v341 = vpack.c.b16 %v221, %v213
    %v342 = vpack.c.b16 %v222, %v214
    %v343 = vpack.c.b16 %v223, %v215
    %v344 = vpack.c.b16 %v224, %v216
    %v345 = vpack.c.b16 %v225, %v217
    %v346 = vpack.c.b16 %v226, %v218
    %v347 = vpack.c.b16 %v235, %v227
    %v348 = vpack.c.b16 %v236, %v228
    %v349 = vpack.c.b16 %v237, %v229
    %v350 = vpack.c.b16 %v238, %v230
    %v351 = vpack.c.b16 %v239, %v231
    %v352 = vpack.c.b16 %v240, %v232
    %v353 = vpack.c.b16 %v241, %v233
    %v354 = vpack.c.b16 %v242, %v234
    %v355 = vpack.c.b16 %v251, %v243
    %v356 = vpack.c.b16 %v252, %v244
    %v357 = vpack.c.b16 %v253, %v245
    %v358 = vpack.c.b16 %v254, %v246
    %v359 = vpack.c.b16 %v255, %v247
    %v360 = vpack.c.b16 %v256, %v248
    %v361 = vpack.c.b16 %v257, %v249
    %v362 = vpack.c.b16 %v258, %v250
    %v363 = vpack.c.b16 %v267, %v259
    %v364 = vpack.c.b16 %v268, %v260
    %v365 = vpack.c.b16 %v269, %v261
    %v366 = vpack.c.b16 %v270, %v262
    %v367 = vpack.c.b16 %v271, %v263
    %v368 = vpack.c.b16 %v272, %v264
    %v369 = vpack.c.b16 %v273, %v265
    %v370 = vpack.c.b16 %v274, %v266
    %v371 = vpack.c.b16 %v283, %v275
    %v372 = vpack.c.b16 %v284, %v276
    %v373 = vpack.c.b16 %v285, %v277
    %v374 = vpack.c.b16 %v286, %v278
    %v375 = vpack.c.b16 %v287, %v279
    %v376 = vpack.c.b16 %v288, %v280
    %v377 = vpack.c.b16 %v289, %v281
    %v378 = vpack.c.b16 %v290, %v282
    %v379 = vpack.c.b16 %v299, %v291
    %v380 = vpack.c.b16 %v300, %v292
    %v381 = vpack.c.b16 %v301, %v293
    %v382 = vpack.c.b16 %v302, %v294
    %v383 = vpack.c.b16 %v303, %v295
    %v384 = vpack.c.b16 %v304, %v296
    %v385 = vpack.c.b16 %v305, %v297
    %v386 = vpack.c.b16 %v306, %v298
    %v387 = vpack.c.b16 %v315, %v307
    %v388 = vpack.c.b16 %v316, %v308
    %v389 = vpack.c.b16 %v317, %v309
    %v390 = vpack.c.b16 %v318, %v310
    %v391 = vpack.c.b16 %v319, %v311
    %v392 = vpack.c.b16 %v320, %v312
    %v393 = vpack.c.b16 %v321, %v313
    %v394 = vpack.c.b16 %v322, %v314
    %v395 = vpack.c.b16 %v331, %v323
    %v396 = vpack.c.b16 %v332, %v324
    %v397 = vpack.c.b16 %v333, %v325
    %v398 = vpack.c.b16 %v334, %v326
    %v399 = vpack.c.b16 %v335, %v327
    %v400 = vpack.c.b16 %v336, %v328
    %v401 = vpack.c.b16 %v337, %v329
    %v402 = vpack.c.b16 %v338, %v330
    %467 = vmatprep.subr.bf16.mxu0 %v396
    %468 = vmatpush1.bf16.msra.mxu0 %v395
    %469 = vmatprep.subr.bf16.mxu0 %v388
    %470 = vmatpush1.bf16.msra.mxu0 %v387
    %471 = vmatprep.subr.bf16.mxu0 %v380
    %472 = vmatpush1.bf16.msra.mxu0 %v379
    %473 = vmatprep.subr.bf16.mxu0 %v372
    %474 = vmatpush1.bf16.msra.mxu0 %v371
    %475 = vmatprep.subr.bf16.mxu0 %v364
    %476 = vmatpush1.bf16.msra.mxu0 %v363
    %477 = vmatprep.subr.bf16.mxu0 %v356
    %478 = vmatpush1.bf16.msra.mxu0 %v355
    %479 = vmatprep.subr.bf16.mxu0 %v348
    %480 = vmatpush1.bf16.msra.mxu0 %v347
    %481 = vmatprep.subr.bf16.mxu0 %v340
    %482 = vmatpush1.bf16.msra.mxu0 %v339
    %483 = vmatprep.subr.bf16.mxu0 0
    %484 = vmatpush2.bf16.msra.mxu0 0
    %485 = vmatprep.subr.bf16.mxu0 0
    %486 = vmatpush2.bf16.msra.mxu0 0
    %487 = vmatprep.subr.bf16.mxu0 0
    %488 = vmatpush2.bf16.msra.mxu0 0
    %489 = vmatprep.subr.bf16.mxu0 0
    %490 = vmatpush2.bf16.msra.mxu0 0
    %491 = vmatprep.subr.bf16.mxu0 0
    %492 = vmatpush2.bf16.msra.mxu0 0
    %493 = vmatprep.subr.bf16.mxu0 0
    %494 = vmatpush2.bf16.msra.mxu0 0
    %495 = vmatprep.subr.bf16.mxu0 0
    %496 = vmatpush2.bf16.msra.mxu0 0
    %497 = vmatprep.subr.bf16.mxu0 0
    %498 = vmatpush2.bf16.msra.mxu0 0
    %499 = vmatprep.mubr.bf16.mxu0 0
    %500 = vmatmul.mubr.bf16.gmra.mxu0 %v37
    %v501 = vpop.f32.mrf.mxu0
    %v502 = vadd.f32 %v110, %v501
    %v503 = vpop.f32.mrf.mxu0
    %v504 = vadd.f32 %v114, %v503
    %v505 = vpop.f32.mrf.mxu0
    %v506 = vadd.f32 %v110, %v505
    %v507 = vpop.f32.mrf.mxu0
    %v508 = vadd.f32 %v114, %v507
    %509 = vmatprep.mubr.bf16.mxu0 0
    %510 = vmatmul.mubr.bf16.gmra.mxu0 %v38
    %v511 = vpop.f32.mrf.mxu0
    %v512 = vadd.f32 %v110, %v511
    %v513 = vpop.f32.mrf.mxu0
    %v514 = vadd.f32 %v114, %v513
    %v515 = vpop.f32.mrf.mxu0
    %v516 = vadd.f32 %v110, %v515
    %v517 = vpop.f32.mrf.mxu0
    %v518 = vadd.f32 %v114, %v517
    %519 = vmatprep.mubr.bf16.mxu0 0
    %520 = vmatmul.mubr.bf16.gmra.mxu0 %v39
    %v521 = vpop.f32.mrf.mxu0
    %v522 = vadd.f32 %v110, %v521
    %v523 = vpop.f32.mrf.mxu0
    %v524 = vadd.f32 %v114, %v523
    %v525 = vpop.f32.mrf.mxu0
    %v526 = vadd.f32 %v110, %v525
    %v527 = vpop.f32.mrf.mxu0
    %v528 = vadd.f32 %v114, %v527
    %529 = vmatprep.mubr.bf16.mxu0 0
    %530 = vmatmul.mubr.bf16.gmra.mxu0 %v40
    %v531 = vpop.f32.mrf.mxu0
    %v532 = vadd.f32 %v110, %v531
    %v533 = vpop.f32.mrf.mxu0
    %v534 = vadd.f32 %v114, %v533
    %v535 = vpop.f32.mrf.mxu0
    %v536 = vadd.f32 %v110, %v535
    %v537 = vpop.f32.mrf.mxu0
    %v538 = vadd.f32 %v114, %v537
    %539 = vdwg.mxu0
    %540 = vmatprep.subr.bf16.mxu0 %v398
    %541 = vmatpush1.bf16.msra.mxu0 %v397
    %542 = vmatprep.subr.bf16.mxu0 %v390
    %543 = vmatpush1.bf16.msra.mxu0 %v389
    %544 = vmatprep.subr.bf16.mxu0 %v382
    %545 = vmatpush1.bf16.msra.mxu0 %v381
    %546 = vmatprep.subr.bf16.mxu0 %v374
    %547 = vmatpush1.bf16.msra.mxu0 %v373
    %548 = vmatprep.subr.bf16.mxu0 %v366
    %549 = vmatpush1.bf16.msra.mxu0 %v365
    %550 = vmatprep.subr.bf16.mxu0 %v358
    %551 = vmatpush1.bf16.msra.mxu0 %v357
    %552 = vmatprep.subr.bf16.mxu0 %v350
    %553 = vmatpush1.bf16.msra.mxu0 %v349
    %554 = vmatprep.subr.bf16.mxu0 %v342
    %555 = vmatpush1.bf16.msra.mxu0 %v341
    %556 = vmatprep.subr.bf16.mxu0 0
    %557 = vmatpush2.bf16.msra.mxu0 0
    %558 = vmatprep.subr.bf16.mxu0 0
    %559 = vmatpush2.bf16.msra.mxu0 0
    %560 = vmatprep.subr.bf16.mxu0 0
    %561 = vmatpush2.bf16.msra.mxu0 0
    %562 = vmatprep.subr.bf16.mxu0 0
    %563 = vmatpush2.bf16.msra.mxu0 0
    %564 = vmatprep.subr.bf16.mxu0 0
    %565 = vmatpush2.bf16.msra.mxu0 0
    %566 = vmatprep.subr.bf16.mxu0 0
    %567 = vmatpush2.bf16.msra.mxu0 0
    %568 = vmatprep.subr.bf16.mxu0 0
    %569 = vmatpush2.bf16.msra.mxu0 0
    %570 = vmatprep.subr.bf16.mxu0 0
    %571 = vmatpush2.bf16.msra.mxu0 0
    %572 = vmatprep.mubr.bf16.mxu0 0
    %573 = vmatmul.mubr.bf16.gmra.mxu0 %v37
    %v574 = vpop.f32.mrf.mxu0
    %v575 = vadd.f32 %v118, %v574
    %v576 = vpop.f32.mrf.mxu0
    %v577 = vadd.f32 %v122, %v576
    %v578 = vpop.f32.mrf.mxu0
    %v579 = vadd.f32 %v118, %v578
    %v580 = vpop.f32.mrf.mxu0
    %v581 = vadd.f32 %v122, %v580
    %582 = vmatprep.mubr.bf16.mxu0 0
    %583 = vmatmul.mubr.bf16.gmra.mxu0 %v38
    %v584 = vpop.f32.mrf.mxu0
    %v585 = vadd.f32 %v118, %v584
    %v586 = vpop.f32.mrf.mxu0
    %v587 = vadd.f32 %v122, %v586
    %v588 = vpop.f32.mrf.mxu0
    %v589 = vadd.f32 %v118, %v588
    %v590 = vpop.f32.mrf.mxu0
    %v591 = vadd.f32 %v122, %v590
    %592 = vmatprep.mubr.bf16.mxu0 0
    %593 = vmatmul.mubr.bf16.gmra.mxu0 %v39
    %v594 = vpop.f32.mrf.mxu0
    %v595 = vadd.f32 %v118, %v594
    %v596 = vpop.f32.mrf.mxu0
    %v597 = vadd.f32 %v122, %v596
    %v598 = vpop.f32.mrf.mxu0
    %v599 = vadd.f32 %v118, %v598
    %v600 = vpop.f32.mrf.mxu0
    %v601 = vadd.f32 %v122, %v600
    %602 = vmatprep.mubr.bf16.mxu0 0
    %603 = vmatmul.mubr.bf16.gmra.mxu0 %v40
    %v604 = vpop.f32.mrf.mxu0
    %v605 = vadd.f32 %v118, %v604
    %v606 = vpop.f32.mrf.mxu0
    %v607 = vadd.f32 %v122, %v606
    %v608 = vpop.f32.mrf.mxu0
    %v609 = vadd.f32 %v118, %v608
    %v610 = vpop.f32.mrf.mxu0
    %v611 = vadd.f32 %v122, %v610
    %612 = vdwg.mxu0
    %613 = vmatprep.subr.bf16.mxu0 %v400
    %614 = vmatpush1.bf16.msra.mxu0 %v399
    %615 = vmatprep.subr.bf16.mxu0 %v392
    %616 = vmatpush1.bf16.msra.mxu0 %v391
    %617 = vmatprep.subr.bf16.mxu0 %v384
    %618 = vmatpush1.bf16.msra.mxu0 %v383
    %619 = vmatprep.subr.bf16.mxu0 %v376
    %620 = vmatpush1.bf16.msra.mxu0 %v375
    %621 = vmatprep.subr.bf16.mxu0 %v368
    %622 = vmatpush1.bf16.msra.mxu0 %v367
    %623 = vmatprep.subr.bf16.mxu0 %v360
    %624 = vmatpush1.bf16.msra.mxu0 %v359
    %625 = vmatprep.subr.bf16.mxu0 %v352
    %626 = vmatpush1.bf16.msra.mxu0 %v351
    %627 = vmatprep.subr.bf16.mxu0 %v344
    %628 = vmatpush1.bf16.msra.mxu0 %v343
    %629 = vmatprep.subr.bf16.mxu0 0
    %630 = vmatpush2.bf16.msra.mxu0 0
    %631 = vmatprep.subr.bf16.mxu0 0
    %632 = vmatpush2.bf16.msra.mxu0 0
    %633 = vmatprep.subr.bf16.mxu0 0
    %634 = vmatpush2.bf16.msra.mxu0 0
    %635 = vmatprep.subr.bf16.mxu0 0
    %636 = vmatpush2.bf16.msra.mxu0 0
    %637 = vmatprep.subr.bf16.mxu0 0
    %638 = vmatpush2.bf16.msra.mxu0 0
    %639 = vmatprep.subr.bf16.mxu0 0
    %640 = vmatpush2.bf16.msra.mxu0 0
    %641 = vmatprep.subr.bf16.mxu0 0
    %642 = vmatpush2.bf16.msra.mxu0 0
    %643 = vmatprep.subr.bf16.mxu0 0
    %644 = vmatpush2.bf16.msra.mxu0 0
    %645 = vmatprep.mubr.bf16.mxu0 0
    %646 = vmatmul.mubr.bf16.gmra.mxu0 %v37
    %v647 = vpop.f32.mrf.mxu0
    %v648 = vadd.f32 %v126, %v647
    %v649 = vpop.f32.mrf.mxu0
    %v650 = vadd.f32 %v130, %v649
    %v651 = vpop.f32.mrf.mxu0
    %v652 = vadd.f32 %v126, %v651
    %v653 = vpop.f32.mrf.mxu0
    %v654 = vadd.f32 %v130, %v653
    %655 = vmatprep.mubr.bf16.mxu0 0
    %656 = vmatmul.mubr.bf16.gmra.mxu0 %v38
    %v657 = vpop.f32.mrf.mxu0
    %v658 = vadd.f32 %v126, %v657
    %v659 = vpop.f32.mrf.mxu0
    %v660 = vadd.f32 %v130, %v659
    %v661 = vpop.f32.mrf.mxu0
    %v662 = vadd.f32 %v126, %v661
    %v663 = vpop.f32.mrf.mxu0
    %v664 = vadd.f32 %v130, %v663
    %665 = vmatprep.mubr.bf16.mxu0 0
    %666 = vmatmul.mubr.bf16.gmra.mxu0 %v39
    %v667 = vpop.f32.mrf.mxu0
    %v668 = vadd.f32 %v126, %v667
    %v669 = vpop.f32.mrf.mxu0
    %v670 = vadd.f32 %v130, %v669
    %v671 = vpop.f32.mrf.mxu0
    %v672 = vadd.f32 %v126, %v671
    %v673 = vpop.f32.mrf.mxu0
    %v674 = vadd.f32 %v130, %v673
    %675 = vmatprep.mubr.bf16.mxu0 0
    %676 = vmatmul.mubr.bf16.gmra.mxu0 %v40
    %v677 = vpop.f32.mrf.mxu0
    %v678 = vadd.f32 %v126, %v677
    %v679 = vpop.f32.mrf.mxu0
    %v680 = vadd.f32 %v130, %v679
    %v681 = vpop.f32.mrf.mxu0
    %v682 = vadd.f32 %v126, %v681
    %v683 = vpop.f32.mrf.mxu0
    %v684 = vadd.f32 %v130, %v683
    %685 = vdwg.mxu0
    %686 = vmatprep.subr.bf16.mxu0 %v402
    %687 = vmatpush1.bf16.msra.mxu0 %v401
    %688 = vmatprep.subr.bf16.mxu0 %v394
    %689 = vmatpush1.bf16.msra.mxu0 %v393
    %690 = vmatprep.subr.bf16.mxu0 %v386
    %691 = vmatpush1.bf16.msra.mxu0 %v385
    %692 = vmatprep.subr.bf16.mxu0 %v378
    %693 = vmatpush1.bf16.msra.mxu0 %v377
    %694 = vmatprep.subr.bf16.mxu0 %v370
    %695 = vmatpush1.bf16.msra.mxu0 %v369
    %696 = vmatprep.subr.bf16.mxu0 %v362
    %697 = vmatpush1.bf16.msra.mxu0 %v361
    %698 = vmatprep.subr.bf16.mxu0 %v354
    %699 = vmatpush1.bf16.msra.mxu0 %v353
    %700 = vmatprep.subr.bf16.mxu0 %v346
    %701 = vmatpush1.bf16.msra.mxu0 %v345
    %702 = vmatprep.subr.bf16.mxu0 0
    %703 = vmatpush2.bf16.msra.mxu0 0
    %704 = vmatprep.subr.bf16.mxu0 0
    %705 = vmatpush2.bf16.msra.mxu0 0
    %706 = vmatprep.subr.bf16.mxu0 0
    %707 = vmatpush2.bf16.msra.mxu0 0
    %708 = vmatprep.subr.bf16.mxu0 0
    %709 = vmatpush2.bf16.msra.mxu0 0
    %710 = vmatprep.subr.bf16.mxu0 0
    %711 = vmatpush2.bf16.msra.mxu0 0
    %712 = vmatprep.subr.bf16.mxu0 0
    %713 = vmatpush2.bf16.msra.mxu0 0
    %714 = vmatprep.subr.bf16.mxu0 0
    %715 = vmatpush2.bf16.msra.mxu0 0
    %716 = vmatprep.subr.bf16.mxu0 0
    %717 = vmatpush2.bf16.msra.mxu0 0
    %718 = vmatprep.mubr.bf16.mxu0 0
    %719 = vmatmul.mubr.bf16.gmra.mxu0 %v37
    %v720 = vpop.f32.mrf.mxu0
    %v721 = vadd.f32 %v134, %v720
    %v722 = vpop.f32.mrf.mxu0
    %v723 = vadd.f32 %v138, %v722
    %v724 = vpop.f32.mrf.mxu0
    %v725 = vadd.f32 %v134, %v724
    %v726 = vpop.f32.mrf.mxu0
    %v727 = vadd.f32 %v138, %v726
    %728 = vmatprep.mubr.bf16.mxu0 0
    %729 = vmatmul.mubr.bf16.gmra.mxu0 %v38
    %v730 = vpop.f32.mrf.mxu0
    %v731 = vadd.f32 %v134, %v730
    %v732 = vpop.f32.mrf.mxu0
    %v733 = vadd.f32 %v138, %v732
    %v734 = vpop.f32.mrf.mxu0
    %v735 = vadd.f32 %v134, %v734
    %v736 = vpop.f32.mrf.mxu0
    %v737 = vadd.f32 %v138, %v736
    %738 = vmatprep.mubr.bf16.mxu0 0
    %739 = vmatmul.mubr.bf16.gmra.mxu0 %v39
    %v740 = vpop.f32.mrf.mxu0
    %v741 = vadd.f32 %v134, %v740
    %v742 = vpop.f32.mrf.mxu0
    %v743 = vadd.f32 %v138, %v742
    %v744 = vpop.f32.mrf.mxu0
    %v745 = vadd.f32 %v134, %v744
    %v746 = vpop.f32.mrf.mxu0
    %v747 = vadd.f32 %v138, %v746
    %748 = vmatprep.mubr.bf16.mxu0 0
    %749 = vmatmul.mubr.bf16.gmra.mxu0 %v40
    %v750 = vpop.f32.mrf.mxu0
    %v751 = vadd.f32 %v134, %v750
    %v752 = vpop.f32.mrf.mxu0
    %v753 = vadd.f32 %v138, %v752
    %v754 = vpop.f32.mrf.mxu0
    %v755 = vadd.f32 %v134, %v754
    %v756 = vpop.f32.mrf.mxu0
    %v757 = vadd.f32 %v138, %v756
    %758 = vdwg.mxu0
    %v759 = vpack.c.bf16 %v506, %v502
    %v760 = vpack.c.bf16 %v508, %v504
    %v761 = vpack.c.bf16 %v579, %v575
    %v762 = vpack.c.bf16 %v581, %v577
    %v763 = vpack.c.bf16 %v652, %v648
    %v764 = vpack.c.bf16 %v654, %v650
    %v765 = vpack.c.bf16 %v725, %v721
    %v766 = vpack.c.bf16 %v727, %v723
    %v767 = vpack.c.bf16 %v516, %v512
    %v768 = vpack.c.bf16 %v518, %v514
    %v769 = vpack.c.bf16 %v589, %v585
    %v770 = vpack.c.bf16 %v591, %v587
    %v771 = vpack.c.bf16 %v662, %v658
    %v772 = vpack.c.bf16 %v664, %v660
    %v773 = vpack.c.bf16 %v735, %v731
    %v774 = vpack.c.bf16 %v737, %v733
    %v775 = vpack.c.bf16 %v526, %v522
    %v776 = vpack.c.bf16 %v528, %v524
    %v777 = vpack.c.bf16 %v599, %v595
    %v778 = vpack.c.bf16 %v601, %v597
    %v779 = vpack.c.bf16 %v672, %v668
    %v780 = vpack.c.bf16 %v674, %v670
    %v781 = vpack.c.bf16 %v745, %v741
    %v782 = vpack.c.bf16 %v747, %v743
    %v783 = vpack.c.bf16 %v536, %v532
    %v784 = vpack.c.bf16 %v538, %v534
    %v785 = vpack.c.bf16 %v609, %v605
    %v786 = vpack.c.bf16 %v611, %v607
    %v787 = vpack.c.bf16 %v682, %v678
    %v788 = vpack.c.bf16 %v684, %v680
    %v789 = vpack.c.bf16 %v755, %v751
    %v790 = vpack.c.bf16 %v757, %v753
    %v823 = vunpack.c.l.b16 %v759
    %v824 = vunpack.c.l.b16 %v760
    %v825 = vunpack.c.l.b16 %v761
    %v826 = vunpack.c.l.b16 %v762
    %v827 = vunpack.c.l.b16 %v763
    %v828 = vunpack.c.l.b16 %v764
    %v829 = vunpack.c.l.b16 %v765
    %v830 = vunpack.c.l.b16 %v766
    %v831 = vunpack.c.h.b16 %v759
    %v832 = vunpack.c.h.b16 %v760
    %v833 = vunpack.c.h.b16 %v761
    %v834 = vunpack.c.h.b16 %v762
    %v835 = vunpack.c.h.b16 %v763
    %v836 = vunpack.c.h.b16 %v764
    %v837 = vunpack.c.h.b16 %v765
    %v838 = vunpack.c.h.b16 %v766
    %v839 = vunpack.c.l.b16 %v767
    %v840 = vunpack.c.l.b16 %v768
    %v841 = vunpack.c.l.b16 %v769
    %v842 = vunpack.c.l.b16 %v770
    %v843 = vunpack.c.l.b16 %v771
    %v844 = vunpack.c.l.b16 %v772
    %v845 = vunpack.c.l.b16 %v773
    %v846 = vunpack.c.l.b16 %v774
    %v847 = vunpack.c.h.b16 %v767
    %v848 = vunpack.c.h.b16 %v768
    %v849 = vunpack.c.h.b16 %v769
    %v850 = vunpack.c.h.b16 %v770
    %v851 = vunpack.c.h.b16 %v771
    %v852 = vunpack.c.h.b16 %v772
    %v853 = vunpack.c.h.b16 %v773
    %v854 = vunpack.c.h.b16 %v774
    %v855 = vunpack.c.l.b16 %v775
    %v856 = vunpack.c.l.b16 %v776
    %v857 = vunpack.c.l.b16 %v777
    %v858 = vunpack.c.l.b16 %v778
    %v859 = vunpack.c.l.b16 %v779
    %v860 = vunpack.c.l.b16 %v780
    %v861 = vunpack.c.l.b16 %v781
    %v862 = vunpack.c.l.b16 %v782
    %v863 = vunpack.c.h.b16 %v775
    %v864 = vunpack.c.h.b16 %v776
    %v865 = vunpack.c.h.b16 %v777
    %v866 = vunpack.c.h.b16 %v778
    %v867 = vunpack.c.h.b16 %v779
    %v868 = vunpack.c.h.b16 %v780
    %v869 = vunpack.c.h.b16 %v781
    %v870 = vunpack.c.h.b16 %v782
    %v871 = vunpack.c.l.b16 %v783
    %v872 = vunpack.c.l.b16 %v784
    %v873 = vunpack.c.l.b16 %v785
    %v874 = vunpack.c.l.b16 %v786
    %v875 = vunpack.c.l.b16 %v787
    %v876 = vunpack.c.l.b16 %v788
    %v877 = vunpack.c.l.b16 %v789
    %v878 = vunpack.c.l.b16 %v790
    %v879 = vunpack.c.h.b16 %v783
    %v880 = vunpack.c.h.b16 %v784
    %v881 = vunpack.c.h.b16 %v785
    %v882 = vunpack.c.h.b16 %v786
    %v883 = vunpack.c.h.b16 %v787
    %v884 = vunpack.c.h.b16 %v788
    %v885 = vunpack.c.h.b16 %v789
    %v886 = vunpack.c.h.b16 %v790
    %v887 = vpack.c.b16 %v824, %v823
    %v888 = vpack.c.b16 %v826, %v825
    %v889 = vpack.c.b16 %v828, %v827
    %v890 = vpack.c.b16 %v830, %v829
    %v891 = vpack.c.b16 %v832, %v831
    %v892 = vpack.c.b16 %v834, %v833
    %v893 = vpack.c.b16 %v836, %v835
    %v894 = vpack.c.b16 %v838, %v837
    %v895 = vpack.c.b16 %v840, %v839
    %v896 = vpack.c.b16 %v842, %v841
    %v897 = vpack.c.b16 %v844, %v843
    %v898 = vpack.c.b16 %v846, %v845
    %v899 = vpack.c.b16 %v848, %v847
    %v900 = vpack.c.b16 %v850, %v849
    %v901 = vpack.c.b16 %v852, %v851
    %v902 = vpack.c.b16 %v854, %v853
    %v903 = vpack.c.b16 %v856, %v855
    %v904 = vpack.c.b16 %v858, %v857
    %v905 = vpack.c.b16 %v860, %v859
    %v906 = vpack.c.b16 %v862, %v861
    %v907 = vpack.c.b16 %v864, %v863
    %v908 = vpack.c.b16 %v866, %v865
    %v909 = vpack.c.b16 %v868, %v867
    %v910 = vpack.c.b16 %v870, %v869
    %v911 = vpack.c.b16 %v872, %v871
    %v912 = vpack.c.b16 %v874, %v873
    %v913 = vpack.c.b16 %v876, %v875
    %v914 = vpack.c.b16 %v878, %v877
    %v915 = vpack.c.b16 %v880, %v879
    %v916 = vpack.c.b16 %v882, %v881
    %v917 = vpack.c.b16 %v884, %v883
    %v918 = vpack.c.b16 %v886, %v885
    %951 = vst [vmem:[%s3] sm:$0xff] %v887
    %952 = vst [vmem:[%s3 + $0x8] sm:$0xff] %v888
    %953 = vst [vmem:[%s3 + $0x10] sm:$0xff] %v889
    %954 = vst [vmem:[%s3 + $0x18] sm:$0xff] %v890
    %955 = vst [vmem:[%s3 + $0x20] sm:$0xff] %v891
    %956 = vst [vmem:[%s3 + $0x28] sm:$0xff] %v892
    %957 = vst [vmem:[%s3 + $0x30] sm:$0xff] %v893
    %958 = vst [vmem:[%s3 + $0x38] sm:$0xff] %v894
    %959 = vst [vmem:[%s3 + $0x40] sm:$0xff] %v895
    %960 = vst [vmem:[%s3 + $0x48] sm:$0xff] %v896
    %961 = vst [vmem:[%s3 + $0x50] sm:$0xff] %v897
    %962 = vst [vmem:[%s3 + $0x58] sm:$0xff] %v898
    %963 = vst [vmem:[%s3 + $0x60] sm:$0xff] %v899
    %964 = vst [vmem:[%s3 + $0x68] sm:$0xff] %v900
    %965 = vst [vmem:[%s3 + $0x70] sm:$0xff] %v901
    %966 = vst [vmem:[%s3 + $0x78] sm:$0xff] %v902
    %967 = vst [vmem:[%s3 + $0x80] sm:$0xff] %v903
    %968 = vst [vmem:[%s3 + $0x88] sm:$0xff] %v904
    %969 = vst [vmem:[%s3 + $0x90] sm:$0xff] %v905
    %970 = vst [vmem:[%s3 + $0x98] sm:$0xff] %v906
    %971 = vst [vmem:[%s3 + $0xa0] sm:$0xff] %v907
    %972 = vst [vmem:[%s3 + $0xa8] sm:$0xff] %v908
    %973 = vst [vmem:[%s3 + $0xb0] sm:$0xff] %v909
    %974 = vst [vmem:[%s3 + $0xb8] sm:$0xff] %v910
    %975 = vst [vmem:[%s3 + $0xc0] sm:$0xff] %v911
    %976 = vst [vmem:[%s3 + $0xc8] sm:$0xff] %v912
    %977 = vst [vmem:[%s3 + $0xd0] sm:$0xff] %v913
    %978 = vst [vmem:[%s3 + $0xd8] sm:$0xff] %v914
    %979 = vst [vmem:[%s3 + $0xe0] sm:$0xff] %v915
    %980 = vst [vmem:[%s3 + $0xe8] sm:$0xff] %v916
    %981 = vst [vmem:[%s3 + $0xf0] sm:$0xff] %v917
    %982 = vst [vmem:[%s3 + $0xf8] sm:$0xff] %v918
    // Predicated region
    $region18: #{ner_lstm_bidi_forward.8} parent=1 // pred_check
      _
    $region19: #{ner_lstm_bidi_forward.8} parent=1 // pred_check_branch
      %984 = sbr.rel (0) target = $region21
    $region20: #{ner_lstm_bidi_forward.8} parent=1 // pred_region
      _
    $region21: #{ner_lstm_bidi_forward.8} parent=1 // pred_fallthru
      _
    // Predicated region
    $region22: #{ner_lstm_bidi_forward.8} parent=1 // pred_check
      _
    $region23: #{ner_lstm_bidi_forward.8} parent=1 // pred_check_branch
      %986 = sbr.rel (0) target = $region25
    $region24: #{ner_lstm_bidi_forward.8} parent=1 // pred_region
      _
    $region25: #{ner_lstm_bidi_forward.8} parent=1 // pred_fallthru
      _
    %987 = vsyncpa [#allocation3], 1

// kernel: ner_lstm_bidi_forward.10
$region0: #{ner_lstm_bidi_forward.10}
  #allocation0 [shape = 'u32[]', space=smem, size = 0x4, offset = 0x4, fixed_abs, tag = 'smem constant byte address 0x4 - core index']
  #allocation1 [shape = 'u32[144,128]{1,0:T(1,128)}', space=vmem, size = 0x12000, scoped, tag = 'internal scratch']
  %s0 = inlined_call_operand.vmem [shape: f32[64,256], index: 0, kind: input, shape index: {}]
  %s1 = inlined_call_operand.vmem [shape: bf16[256,1024], index: 1, kind: input, shape index: {}]
  %s2 = inlined_call_operand.vmem [shape: f32[1,1024], index: 2, kind: input, shape index: {}]
  %s3 = inlined_call_operand.vmem [shape: bf16[64,1024], index: 3, kind: output, shape index: {}]
  %s4 = sld [smem:[#allocation0]]
  $region22: #{ner_lstm_bidi_forward.10} parent=0
    _
  %s6 = ssub.s32 1, %s4
  %s7 = scalar_select 0, %s6, %s4
  // Predicated region
  $region2: #{ner_lstm_bidi_forward.10} parent=0 // pred_check
    _
  $region3: #{ner_lstm_bidi_forward.10} parent=0 // pred_check_branch
    %9 = sbr.rel (0) target = $region5
  $region4: #{ner_lstm_bidi_forward.10} parent=0 // pred_region
    _
  $region5: #{ner_lstm_bidi_forward.10} parent=0 // pred_fallthru
    _
  // Predicated region
  $region6: #{ner_lstm_bidi_forward.10} parent=0 // pred_check
    _
  $region7: #{ner_lstm_bidi_forward.10} parent=0 // pred_check_branch
    %11 = sbr.rel (0) target = $region9
  $region8: #{ner_lstm_bidi_forward.10} parent=0 // pred_region
    _
  $region9: #{ner_lstm_bidi_forward.10} parent=0 // pred_fallthru
    _
  // Predicated region
  $region10: #{ner_lstm_bidi_forward.10} parent=0 // pred_check
    _
  $region11: #{ner_lstm_bidi_forward.10} parent=0 // pred_check_branch
    %13 = sbr.rel (0) target = $region13
  $region12: #{ner_lstm_bidi_forward.10} parent=0 // pred_region
    _
  $region13: #{ner_lstm_bidi_forward.10} parent=0 // pred_fallthru
    _
  %v14 = vld [vmem:[%s0] sm:$0xff]
  %v15 = vld [vmem:[%s0 + $0x8] sm:$0xff]
  %v16 = vld [vmem:[%s0 + $0x10] sm:$0xff]
  %v17 = vld [vmem:[%s0 + $0x18] sm:$0xff]
  %v18 = vld [vmem:[%s0 + $0x20] sm:$0xff]
  %v19 = vld [vmem:[%s0 + $0x28] sm:$0xff]
  %v20 = vld [vmem:[%s0 + $0x30] sm:$0xff]
  %v21 = vld [vmem:[%s0 + $0x38] sm:$0xff]
  %v22 = vld [vmem:[%s0 + $0x40] sm:$0xff]
  %v23 = vld [vmem:[%s0 + $0x48] sm:$0xff]
  %v24 = vld [vmem:[%s0 + $0x50] sm:$0xff]
  %v25 = vld [vmem:[%s0 + $0x58] sm:$0xff]
  %v26 = vld [vmem:[%s0 + $0x60] sm:$0xff]
  %v27 = vld [vmem:[%s0 + $0x68] sm:$0xff]
  %v28 = vld [vmem:[%s0 + $0x70] sm:$0xff]
  %v29 = vld [vmem:[%s0 + $0x78] sm:$0xff]
  %v30 = vpack.c.bf16 %v16, %v14
  %v31 = vpack.c.bf16 %v17, %v15
  %v32 = vpack.c.bf16 %v20, %v18
  %v33 = vpack.c.bf16 %v21, %v19
  %v34 = vpack.c.bf16 %v24, %v22
  %v35 = vpack.c.bf16 %v25, %v23
  %v36 = vpack.c.bf16 %v28, %v26
  %v37 = vpack.c.bf16 %v29, %v27
  %v38 = vld [vmem:[%s1] sm:$0xff]
  %v39 = vld [vmem:[%s1 + $0x8] sm:$0xff]
  %v40 = vld [vmem:[%s1 + $0x10] sm:$0xff]
  %v41 = vld [vmem:[%s1 + $0x18] sm:$0xff]
  %v42 = vld [vmem:[%s1 + $0x20] sm:$0xff]
  %v43 = vld [vmem:[%s1 + $0x28] sm:$0xff]
  %v44 = vld [vmem:[%s1 + $0x30] sm:$0xff]
  %v45 = vld [vmem:[%s1 + $0x38] sm:$0xff]
  %v46 = vld [vmem:[%s1 + $0x40] sm:$0xff]
  %v47 = vld [vmem:[%s1 + $0x48] sm:$0xff]
  %v48 = vld [vmem:[%s1 + $0x50] sm:$0xff]
  %v49 = vld [vmem:[%s1 + $0x58] sm:$0xff]
  %v50 = vld [vmem:[%s1 + $0x60] sm:$0xff]
  %v51 = vld [vmem:[%s1 + $0x68] sm:$0xff]
  %v52 = vld [vmem:[%s1 + $0x70] sm:$0xff]
  %v53 = vld [vmem:[%s1 + $0x78] sm:$0xff]
  %v54 = vld [vmem:[%s1 + $0x80] sm:$0xff]
  %v55 = vld [vmem:[%s1 + $0x88] sm:$0xff]
  %v56 = vld [vmem:[%s1 + $0x90] sm:$0xff]
  %v57 = vld [vmem:[%s1 + $0x98] sm:$0xff]
  %v58 = vld [vmem:[%s1 + $0xa0] sm:$0xff]
  %v59 = vld [vmem:[%s1 + $0xa8] sm:$0xff]
  %v60 = vld [vmem:[%s1 + $0xb0] sm:$0xff]
  %v61 = vld [vmem:[%s1 + $0xb8] sm:$0xff]
  %v62 = vld [vmem:[%s1 + $0xc0] sm:$0xff]
  %v63 = vld [vmem:[%s1 + $0xc8] sm:$0xff]
  %v64 = vld [vmem:[%s1 + $0xd0] sm:$0xff]
  %v65 = vld [vmem:[%s1 + $0xd8] sm:$0xff]
  %v66 = vld [vmem:[%s1 + $0xe0] sm:$0xff]
  %v67 = vld [vmem:[%s1 + $0xe8] sm:$0xff]
  %v68 = vld [vmem:[%s1 + $0xf0] sm:$0xff]
  %v69 = vld [vmem:[%s1 + $0xf8] sm:$0xff]
  %v70 = vld [vmem:[%s1 + $0x100] sm:$0xff]
  %v71 = vld [vmem:[%s1 + $0x108] sm:$0xff]
  %v72 = vld [vmem:[%s1 + $0x110] sm:$0xff]
  %v73 = vld [vmem:[%s1 + $0x118] sm:$0xff]
  %v74 = vld [vmem:[%s1 + $0x120] sm:$0xff]
  %v75 = vld [vmem:[%s1 + $0x128] sm:$0xff]
  %v76 = vld [vmem:[%s1 + $0x130] sm:$0xff]
  %v77 = vld [vmem:[%s1 + $0x138] sm:$0xff]
  %v78 = vld [vmem:[%s1 + $0x140] sm:$0xff]
  %v79 = vld [vmem:[%s1 + $0x148] sm:$0xff]
  %v80 = vld [vmem:[%s1 + $0x150] sm:$0xff]
  %v81 = vld [vmem:[%s1 + $0x158] sm:$0xff]
  %v82 = vld [vmem:[%s1 + $0x160] sm:$0xff]
  %v83 = vld [vmem:[%s1 + $0x168] sm:$0xff]
  %v84 = vld [vmem:[%s1 + $0x170] sm:$0xff]
  %v85 = vld [vmem:[%s1 + $0x178] sm:$0xff]
  %v86 = vld [vmem:[%s1 + $0x180] sm:$0xff]
  %v87 = vld [vmem:[%s1 + $0x188] sm:$0xff]
  %v88 = vld [vmem:[%s1 + $0x190] sm:$0xff]
  %v89 = vld [vmem:[%s1 + $0x198] sm:$0xff]
  %v90 = vld [vmem:[%s1 + $0x1a0] sm:$0xff]
  %v91 = vld [vmem:[%s1 + $0x1a8] sm:$0xff]
  %v92 = vld [vmem:[%s1 + $0x1b0] sm:$0xff]
  %v93 = vld [vmem:[%s1 + $0x1b8] sm:$0xff]
  %v94 = vld [vmem:[%s1 + $0x1c0] sm:$0xff]
  %v95 = vld [vmem:[%s1 + $0x1c8] sm:$0xff]
  %v96 = vld [vmem:[%s1 + $0x1d0] sm:$0xff]
  %v97 = vld [vmem:[%s1 + $0x1d8] sm:$0xff]
  %v98 = vld [vmem:[%s1 + $0x1e0] sm:$0xff]
  %v99 = vld [vmem:[%s1 + $0x1e8] sm:$0xff]
  %v100 = vld [vmem:[%s1 + $0x1f0] sm:$0xff]
  %v101 = vld [vmem:[%s1 + $0x1f8] sm:$0xff]
  %v102 = vld [vmem:[%s1 + $0x200] sm:$0xff]
  %v103 = vld [vmem:[%s1 + $0x208] sm:$0xff]
  %v104 = vld [vmem:[%s1 + $0x210] sm:$0xff]
  %v105 = vld [vmem:[%s1 + $0x218] sm:$0xff]
  %v106 = vld [vmem:[%s1 + $0x220] sm:$0xff]
  %v107 = vld [vmem:[%s1 + $0x228] sm:$0xff]
  %v108 = vld [vmem:[%s1 + $0x230] sm:$0xff]
  %v109 = vld [vmem:[%s1 + $0x238] sm:$0xff]
  %v110 = vld [vmem:[%s1 + $0x240] sm:$0xff]
  %v111 = vld [vmem:[%s1 + $0x248] sm:$0xff]
  %v112 = vld [vmem:[%s1 + $0x250] sm:$0xff]
  %v113 = vld [vmem:[%s1 + $0x258] sm:$0xff]
  %v114 = vld [vmem:[%s1 + $0x260] sm:$0xff]
  %v115 = vld [vmem:[%s1 + $0x268] sm:$0xff]
  %v116 = vld [vmem:[%s1 + $0x270] sm:$0xff]
  %v117 = vld [vmem:[%s1 + $0x278] sm:$0xff]
  %v118 = vld [vmem:[%s1 + $0x280] sm:$0xff]
  %v119 = vld [vmem:[%s1 + $0x288] sm:$0xff]
  %v120 = vld [vmem:[%s1 + $0x290] sm:$0xff]
  %v121 = vld [vmem:[%s1 + $0x298] sm:$0xff]
  %v122 = vld [vmem:[%s1 + $0x2a0] sm:$0xff]
  %v123 = vld [vmem:[%s1 + $0x2a8] sm:$0xff]
  %v124 = vld [vmem:[%s1 + $0x2b0] sm:$0xff]
  %v125 = vld [vmem:[%s1 + $0x2b8] sm:$0xff]
  %v126 = vld [vmem:[%s1 + $0x2c0] sm:$0xff]
  %v127 = vld [vmem:[%s1 + $0x2c8] sm:$0xff]
  %v128 = vld [vmem:[%s1 + $0x2d0] sm:$0xff]
  %v129 = vld [vmem:[%s1 + $0x2d8] sm:$0xff]
  %v130 = vld [vmem:[%s1 + $0x2e0] sm:$0xff]
  %v131 = vld [vmem:[%s1 + $0x2e8] sm:$0xff]
  %v132 = vld [vmem:[%s1 + $0x2f0] sm:$0xff]
  %v133 = vld [vmem:[%s1 + $0x2f8] sm:$0xff]
  %v134 = vld [vmem:[%s1 + $0x300] sm:$0xff]
  %v135 = vld [vmem:[%s1 + $0x308] sm:$0xff]
  %v136 = vld [vmem:[%s1 + $0x310] sm:$0xff]
  %v137 = vld [vmem:[%s1 + $0x318] sm:$0xff]
  %v138 = vld [vmem:[%s1 + $0x320] sm:$0xff]
  %v139 = vld [vmem:[%s1 + $0x328] sm:$0xff]
  %v140 = vld [vmem:[%s1 + $0x330] sm:$0xff]
  %v141 = vld [vmem:[%s1 + $0x338] sm:$0xff]
  %v142 = vld [vmem:[%s1 + $0x340] sm:$0xff]
  %v143 = vld [vmem:[%s1 + $0x348] sm:$0xff]
  %v144 = vld [vmem:[%s1 + $0x350] sm:$0xff]
  %v145 = vld [vmem:[%s1 + $0x358] sm:$0xff]
  %v146 = vld [vmem:[%s1 + $0x360] sm:$0xff]
  %v147 = vld [vmem:[%s1 + $0x368] sm:$0xff]
  %v148 = vld [vmem:[%s1 + $0x370] sm:$0xff]
  %v149 = vld [vmem:[%s1 + $0x378] sm:$0xff]
  %v150 = vld [vmem:[%s1 + $0x380] sm:$0xff]
  %v151 = vld [vmem:[%s1 + $0x388] sm:$0xff]
  %v152 = vld [vmem:[%s1 + $0x390] sm:$0xff]
  %v153 = vld [vmem:[%s1 + $0x398] sm:$0xff]
  %v154 = vld [vmem:[%s1 + $0x3a0] sm:$0xff]
  %v155 = vld [vmem:[%s1 + $0x3a8] sm:$0xff]
  %v156 = vld [vmem:[%s1 + $0x3b0] sm:$0xff]
  %v157 = vld [vmem:[%s1 + $0x3b8] sm:$0xff]
  %v158 = vld [vmem:[%s1 + $0x3c0] sm:$0xff]
  %v159 = vld [vmem:[%s1 + $0x3c8] sm:$0xff]
  %v160 = vld [vmem:[%s1 + $0x3d0] sm:$0xff]
  %v161 = vld [vmem:[%s1 + $0x3d8] sm:$0xff]
  %v162 = vld [vmem:[%s1 + $0x3e0] sm:$0xff]
  %v163 = vld [vmem:[%s1 + $0x3e8] sm:$0xff]
  %v164 = vld [vmem:[%s1 + $0x3f0] sm:$0xff]
  %v165 = vld [vmem:[%s1 + $0x3f8] sm:$0xff]
  %v166 = vld [vmem:[%s2] sm:$0xff]
  %v168 = vlaneseq
  %v169 = vshrl.u32 %v168, 7
  %v170 = vsub.s32 0, %v169
  %v171 = vrot.slane %v166, %v170
  %v172 = vlaneseq
  %v173 = vshrl.u32 %v172, 7
  %v174 = vsub.s32 1, %v173
  %v175 = vrot.slane %v166, %v174
  %v176 = vlaneseq
  %v177 = vshrl.u32 %v176, 7
  %v178 = vsub.s32 2, %v177
  %v179 = vrot.slane %v166, %v178
  %v180 = vlaneseq
  %v181 = vshrl.u32 %v180, 7
  %v182 = vsub.s32 3, %v181
  %v183 = vrot.slane %v166, %v182
  %v184 = vlaneseq
  %v185 = vshrl.u32 %v184, 7
  %v186 = vsub.s32 4, %v185
  %v187 = vrot.slane %v166, %v186
  %v188 = vlaneseq
  %v189 = vshrl.u32 %v188, 7
  %v190 = vsub.s32 5, %v189
  %v191 = vrot.slane %v166, %v190
  %v192 = vlaneseq
  %v193 = vshrl.u32 %v192, 7
  %v194 = vsub.s32 6, %v193
  %v195 = vrot.slane %v166, %v194
  %v196 = vlaneseq
  %v197 = vshrl.u32 %v196, 7
  %v198 = vsub.s32 7, %v197
  %v199 = vrot.slane %v166, %v198
  %v336 = vunpack.c.l.b16 %v38
  %v337 = vunpack.c.h.b16 %v38
  %v338 = vunpack.c.l.b16 %v39
  %v339 = vunpack.c.h.b16 %v39
  %v340 = vunpack.c.l.b16 %v40
  %v341 = vunpack.c.h.b16 %v40
  %v342 = vunpack.c.l.b16 %v41
  %v343 = vunpack.c.h.b16 %v41
  %v344 = vunpack.c.l.b16 %v42
  %v345 = vunpack.c.h.b16 %v42
  %v346 = vunpack.c.l.b16 %v43
  %v347 = vunpack.c.h.b16 %v43
  %v348 = vunpack.c.l.b16 %v44
  %v349 = vunpack.c.h.b16 %v44
  %v350 = vunpack.c.l.b16 %v45
  %v351 = vunpack.c.h.b16 %v45
  %v352 = vunpack.c.l.b16 %v46
  %v353 = vunpack.c.h.b16 %v46
  %v354 = vunpack.c.l.b16 %v47
  %v355 = vunpack.c.h.b16 %v47
  %v356 = vunpack.c.l.b16 %v48
  %v357 = vunpack.c.h.b16 %v48
  %v358 = vunpack.c.l.b16 %v49
  %v359 = vunpack.c.h.b16 %v49
  %v360 = vunpack.c.l.b16 %v50
  %v361 = vunpack.c.h.b16 %v50
  %v362 = vunpack.c.l.b16 %v51
  %v363 = vunpack.c.h.b16 %v51
  %v364 = vunpack.c.l.b16 %v52
  %v365 = vunpack.c.h.b16 %v52
  %v366 = vunpack.c.l.b16 %v53
  %v367 = vunpack.c.h.b16 %v53
  %v368 = vunpack.c.l.b16 %v54
  %v369 = vunpack.c.h.b16 %v54
  %v370 = vunpack.c.l.b16 %v55
  %v371 = vunpack.c.h.b16 %v55
  %v372 = vunpack.c.l.b16 %v56
  %v373 = vunpack.c.h.b16 %v56
  %v374 = vunpack.c.l.b16 %v57
  %v375 = vunpack.c.h.b16 %v57
  %v376 = vunpack.c.l.b16 %v58
  %v377 = vunpack.c.h.b16 %v58
  %v378 = vunpack.c.l.b16 %v59
  %v379 = vunpack.c.h.b16 %v59
  %v380 = vunpack.c.l.b16 %v60
  %v381 = vunpack.c.h.b16 %v60
  %v382 = vunpack.c.l.b16 %v61
  %v383 = vunpack.c.h.b16 %v61
  %v384 = vunpack.c.l.b16 %v62
  %v385 = vunpack.c.h.b16 %v62
  %v386 = vunpack.c.l.b16 %v63
  %v387 = vunpack.c.h.b16 %v63
  %v388 = vunpack.c.l.b16 %v64
  %v389 = vunpack.c.h.b16 %v64
  %v390 = vunpack.c.l.b16 %v65
  %v391 = vunpack.c.h.b16 %v65
  %v392 = vunpack.c.l.b16 %v66
  %v393 = vunpack.c.h.b16 %v66
  %v394 = vunpack.c.l.b16 %v67
  %v395 = vunpack.c.h.b16 %v67
  %v396 = vunpack.c.l.b16 %v68
  %v397 = vunpack.c.h.b16 %v68
  %v398 = vunpack.c.l.b16 %v69
  %v399 = vunpack.c.h.b16 %v69
  %v400 = vunpack.c.l.b16 %v70
  %v401 = vunpack.c.h.b16 %v70
  %v402 = vunpack.c.l.b16 %v71
  %v403 = vunpack.c.h.b16 %v71
  %v404 = vunpack.c.l.b16 %v72
  %v405 = vunpack.c.h.b16 %v72
  %v406 = vunpack.c.l.b16 %v73
  %v407 = vunpack.c.h.b16 %v73
  %v408 = vunpack.c.l.b16 %v74
  %v409 = vunpack.c.h.b16 %v74
  %v410 = vunpack.c.l.b16 %v75
  %v411 = vunpack.c.h.b16 %v75
  %v412 = vunpack.c.l.b16 %v76
  %v413 = vunpack.c.h.b16 %v76
  %v414 = vunpack.c.l.b16 %v77
  %v415 = vunpack.c.h.b16 %v77
  %v416 = vunpack.c.l.b16 %v78
  %v417 = vunpack.c.h.b16 %v78
  %v418 = vunpack.c.l.b16 %v79
  %v419 = vunpack.c.h.b16 %v79
  %v420 = vunpack.c.l.b16 %v80
  %v421 = vunpack.c.h.b16 %v80
  %v422 = vunpack.c.l.b16 %v81
  %v423 = vunpack.c.h.b16 %v81
  %v424 = vunpack.c.l.b16 %v82
  %v425 = vunpack.c.h.b16 %v82
  %v426 = vunpack.c.l.b16 %v83
  %v427 = vunpack.c.h.b16 %v83
  %v428 = vunpack.c.l.b16 %v84
  %v429 = vunpack.c.h.b16 %v84
  %v430 = vunpack.c.l.b16 %v85
  %v431 = vunpack.c.h.b16 %v85
  %v432 = vunpack.c.l.b16 %v86
  %v433 = vunpack.c.h.b16 %v86
  %v434 = vunpack.c.l.b16 %v87
  %v435 = vunpack.c.h.b16 %v87
  %v436 = vunpack.c.l.b16 %v88
  %v437 = vunpack.c.h.b16 %v88
  %v438 = vunpack.c.l.b16 %v89
  %v439 = vunpack.c.h.b16 %v89
  %v440 = vunpack.c.l.b16 %v90
  %v441 = vunpack.c.h.b16 %v90
  %v442 = vunpack.c.l.b16 %v91
  %v443 = vunpack.c.h.b16 %v91
  %v444 = vunpack.c.l.b16 %v92
  %v445 = vunpack.c.h.b16 %v92
  %v446 = vunpack.c.l.b16 %v93
  %v447 = vunpack.c.h.b16 %v93
  %v448 = vunpack.c.l.b16 %v94
  %v449 = vunpack.c.h.b16 %v94
  %v450 = vunpack.c.l.b16 %v95
  %v451 = vunpack.c.h.b16 %v95
  %v452 = vunpack.c.l.b16 %v96
  %v453 = vunpack.c.h.b16 %v96
  %v454 = vunpack.c.l.b16 %v97
  %v455 = vunpack.c.h.b16 %v97
  %v456 = vunpack.c.l.b16 %v98
  %v457 = vunpack.c.h.b16 %v98
  %v458 = vunpack.c.l.b16 %v99
  %v459 = vunpack.c.h.b16 %v99
  %v460 = vunpack.c.l.b16 %v100
  %v461 = vunpack.c.h.b16 %v100
  %v462 = vunpack.c.l.b16 %v101
  %v463 = vunpack.c.h.b16 %v101
  %v464 = vunpack.c.l.b16 %v102
  %v465 = vunpack.c.h.b16 %v102
  %v466 = vunpack.c.l.b16 %v103
  %v467 = vunpack.c.h.b16 %v103
  %v468 = vunpack.c.l.b16 %v104
  %v469 = vunpack.c.h.b16 %v104
  %v470 = vunpack.c.l.b16 %v105
  %v471 = vunpack.c.h.b16 %v105
  %v472 = vunpack.c.l.b16 %v106
  %v473 = vunpack.c.h.b16 %v106
  %v474 = vunpack.c.l.b16 %v107
  %v475 = vunpack.c.h.b16 %v107
  %v476 = vunpack.c.l.b16 %v108
  %v477 = vunpack.c.h.b16 %v108
  %v478 = vunpack.c.l.b16 %v109
  %v479 = vunpack.c.h.b16 %v109
  %v480 = vunpack.c.l.b16 %v110
  %v481 = vunpack.c.h.b16 %v110
  %v482 = vunpack.c.l.b16 %v111
  %v483 = vunpack.c.h.b16 %v111
  %v484 = vunpack.c.l.b16 %v112
  %v485 = vunpack.c.h.b16 %v112
  %v486 = vunpack.c.l.b16 %v113
  %v487 = vunpack.c.h.b16 %v113
  %v488 = vunpack.c.l.b16 %v114
  %v489 = vunpack.c.h.b16 %v114
  %v490 = vunpack.c.l.b16 %v115
  %v491 = vunpack.c.h.b16 %v115
  %v492 = vunpack.c.l.b16 %v116
  %v493 = vunpack.c.h.b16 %v116
  %v494 = vunpack.c.l.b16 %v117
  %v495 = vunpack.c.h.b16 %v117
  %v496 = vunpack.c.l.b16 %v118
  %v497 = vunpack.c.h.b16 %v118
  %v498 = vunpack.c.l.b16 %v119
  %v499 = vunpack.c.h.b16 %v119
  %v500 = vunpack.c.l.b16 %v120
  %v501 = vunpack.c.h.b16 %v120
  %v502 = vunpack.c.l.b16 %v121
  %v503 = vunpack.c.h.b16 %v121
  %v504 = vunpack.c.l.b16 %v122
  %v505 = vunpack.c.h.b16 %v122
  %v506 = vunpack.c.l.b16 %v123
  %v507 = vunpack.c.h.b16 %v123
  %v508 = vunpack.c.l.b16 %v124
  %v509 = vunpack.c.h.b16 %v124
  %v510 = vunpack.c.l.b16 %v125
  %v511 = vunpack.c.h.b16 %v125
  %v512 = vunpack.c.l.b16 %v126
  %v513 = vunpack.c.h.b16 %v126
  %v514 = vunpack.c.l.b16 %v127
  %v515 = vunpack.c.h.b16 %v127
  %v516 = vunpack.c.l.b16 %v128
  %v517 = vunpack.c.h.b16 %v128
  %v518 = vunpack.c.l.b16 %v129
  %v519 = vunpack.c.h.b16 %v129
  %v520 = vunpack.c.l.b16 %v130
  %v521 = vunpack.c.h.b16 %v130
  %v522 = vunpack.c.l.b16 %v131
  %v523 = vunpack.c.h.b16 %v131
  %v524 = vunpack.c.l.b16 %v132
  %v525 = vunpack.c.h.b16 %v132
  %v526 = vunpack.c.l.b16 %v133
  %v527 = vunpack.c.h.b16 %v133
  %v528 = vunpack.c.l.b16 %v134
  %v529 = vunpack.c.h.b16 %v134
  %v530 = vunpack.c.l.b16 %v135
  %v531 = vunpack.c.h.b16 %v135
  %v532 = vunpack.c.l.b16 %v136
  %v533 = vunpack.c.h.b16 %v136
  %v534 = vunpack.c.l.b16 %v137
  %v535 = vunpack.c.h.b16 %v137
  %v536 = vunpack.c.l.b16 %v138
  %v537 = vunpack.c.h.b16 %v138
  %v538 = vunpack.c.l.b16 %v139
  %v539 = vunpack.c.h.b16 %v139
  %v540 = vunpack.c.l.b16 %v140
  %v541 = vunpack.c.h.b16 %v140
  %v542 = vunpack.c.l.b16 %v141
  %v543 = vunpack.c.h.b16 %v141
  %v544 = vunpack.c.l.b16 %v142
  %v545 = vunpack.c.h.b16 %v142
  %v546 = vunpack.c.l.b16 %v143
  %v547 = vunpack.c.h.b16 %v143
  %v548 = vunpack.c.l.b16 %v144
  %v549 = vunpack.c.h.b16 %v144
  %v550 = vunpack.c.l.b16 %v145
  %v551 = vunpack.c.h.b16 %v145
  %v552 = vunpack.c.l.b16 %v146
  %v553 = vunpack.c.h.b16 %v146
  %v554 = vunpack.c.l.b16 %v147
  %v555 = vunpack.c.h.b16 %v147
  %v556 = vunpack.c.l.b16 %v148
  %v557 = vunpack.c.h.b16 %v148
  %v558 = vunpack.c.l.b16 %v149
  %v559 = vunpack.c.h.b16 %v149
  %v560 = vunpack.c.l.b16 %v150
  %v561 = vunpack.c.h.b16 %v150
  %v562 = vunpack.c.l.b16 %v151
  %v563 = vunpack.c.h.b16 %v151
  %v564 = vunpack.c.l.b16 %v152
  %v565 = vunpack.c.h.b16 %v152
  %v566 = vunpack.c.l.b16 %v153
  %v567 = vunpack.c.h.b16 %v153
  %v568 = vunpack.c.l.b16 %v154
  %v569 = vunpack.c.h.b16 %v154
  %v570 = vunpack.c.l.b16 %v155
  %v571 = vunpack.c.h.b16 %v155
  %v572 = vunpack.c.l.b16 %v156
  %v573 = vunpack.c.h.b16 %v156
  %v574 = vunpack.c.l.b16 %v157
  %v575 = vunpack.c.h.b16 %v157
  %v576 = vunpack.c.l.b16 %v158
  %v577 = vunpack.c.h.b16 %v158
  %v578 = vunpack.c.l.b16 %v159
  %v579 = vunpack.c.h.b16 %v159
  %v580 = vunpack.c.l.b16 %v160
  %v581 = vunpack.c.h.b16 %v160
  %v582 = vunpack.c.l.b16 %v161
  %v583 = vunpack.c.h.b16 %v161
  %v584 = vunpack.c.l.b16 %v162
  %v585 = vunpack.c.h.b16 %v162
  %v586 = vunpack.c.l.b16 %v163
  %v587 = vunpack.c.h.b16 %v163
  %v588 = vunpack.c.l.b16 %v164
  %v589 = vunpack.c.h.b16 %v164
  %v590 = vunpack.c.l.b16 %v165
  %v591 = vunpack.c.h.b16 %v165
  %v592 = vpack.c.b16 %v344, %v336
  %v593 = vpack.c.b16 %v345, %v337
  %v594 = vpack.c.b16 %v346, %v338
  %v595 = vpack.c.b16 %v347, %v339
  %v596 = vpack.c.b16 %v348, %v340
  %v597 = vpack.c.b16 %v349, %v341
  %v598 = vpack.c.b16 %v350, %v342
  %v599 = vpack.c.b16 %v351, %v343
  %v600 = vpack.c.b16 %v360, %v352
  %v601 = vpack.c.b16 %v361, %v353
  %v602 = vpack.c.b16 %v362, %v354
  %v603 = vpack.c.b16 %v363, %v355
  %v604 = vpack.c.b16 %v364, %v356
  %v605 = vpack.c.b16 %v365, %v357
  %v606 = vpack.c.b16 %v366, %v358
  %v607 = vpack.c.b16 %v367, %v359
  %v608 = vpack.c.b16 %v376, %v368
  %v609 = vpack.c.b16 %v377, %v369
  %v610 = vpack.c.b16 %v378, %v370
  %v611 = vpack.c.b16 %v379, %v371
  %v612 = vpack.c.b16 %v380, %v372
  %v613 = vpack.c.b16 %v381, %v373
  %v614 = vpack.c.b16 %v382, %v374
  %v615 = vpack.c.b16 %v383, %v375
  %v616 = vpack.c.b16 %v392, %v384
  %v617 = vpack.c.b16 %v393, %v385
  %v618 = vpack.c.b16 %v394, %v386
  %v619 = vpack.c.b16 %v395, %v387
  %v620 = vpack.c.b16 %v396, %v388
  %v621 = vpack.c.b16 %v397, %v389
  %v622 = vpack.c.b16 %v398, %v390
  %v623 = vpack.c.b16 %v399, %v391
  %v624 = vpack.c.b16 %v408, %v400
  %v625 = vpack.c.b16 %v409, %v401
  %v626 = vpack.c.b16 %v410, %v402
  %v627 = vpack.c.b16 %v411, %v403
  %v628 = vpack.c.b16 %v412, %v404
  %v629 = vpack.c.b16 %v413, %v405
  %v630 = vpack.c.b16 %v414, %v406
  %v631 = vpack.c.b16 %v415, %v407
  %v632 = vpack.c.b16 %v424, %v416
  %v633 = vpack.c.b16 %v425, %v417
  %v634 = vpack.c.b16 %v426, %v418
  %v635 = vpack.c.b16 %v427, %v419
  %v636 = vpack.c.b16 %v428, %v420
  %v637 = vpack.c.b16 %v429, %v421
  %v638 = vpack.c.b16 %v430, %v422
  %v639 = vpack.c.b16 %v431, %v423
  %v640 = vpack.c.b16 %v440, %v432
  %v641 = vpack.c.b16 %v441, %v433
  %v642 = vpack.c.b16 %v442, %v434
  %v643 = vpack.c.b16 %v443, %v435
  %v644 = vpack.c.b16 %v444, %v436
  %v645 = vpack.c.b16 %v445, %v437
  %v646 = vpack.c.b16 %v446, %v438
  %v647 = vpack.c.b16 %v447, %v439
  %v648 = vpack.c.b16 %v456, %v448
  %v649 = vpack.c.b16 %v457, %v449
  %v650 = vpack.c.b16 %v458, %v450
  %v651 = vpack.c.b16 %v459, %v451
  %v652 = vpack.c.b16 %v460, %v452
  %v653 = vpack.c.b16 %v461, %v453
  %v654 = vpack.c.b16 %v462, %v454
  %v655 = vpack.c.b16 %v463, %v455
  %v656 = vpack.c.b16 %v472, %v464
  %v657 = vpack.c.b16 %v473, %v465
  %v658 = vpack.c.b16 %v474, %v466
  %v659 = vpack.c.b16 %v475, %v467
  %v660 = vpack.c.b16 %v476, %v468
  %v661 = vpack.c.b16 %v477, %v469
  %v662 = vpack.c.b16 %v478, %v470
  %v663 = vpack.c.b16 %v479, %v471
  %v664 = vpack.c.b16 %v488, %v480
  %v665 = vpack.c.b16 %v489, %v481
  %v666 = vpack.c.b16 %v490, %v482
  %v667 = vpack.c.b16 %v491, %v483
  %v668 = vpack.c.b16 %v492, %v484
  %v669 = vpack.c.b16 %v493, %v485
  %v670 = vpack.c.b16 %v494, %v486
  %v671 = vpack.c.b16 %v495, %v487
  %v672 = vpack.c.b16 %v504, %v496
  %v673 = vpack.c.b16 %v505, %v497
  %v674 = vpack.c.b16 %v506, %v498
  %v675 = vpack.c.b16 %v507, %v499
  %v676 = vpack.c.b16 %v508, %v500
  %v677 = vpack.c.b16 %v509, %v501
  %v678 = vpack.c.b16 %v510, %v502
  %v679 = vpack.c.b16 %v511, %v503
  %v680 = vpack.c.b16 %v520, %v512
  %v681 = vpack.c.b16 %v521, %v513
  %v682 = vpack.c.b16 %v522, %v514
  %v683 = vpack.c.b16 %v523, %v515
  %v684 = vpack.c.b16 %v524, %v516
  %v685 = vpack.c.b16 %v525, %v517
  %v686 = vpack.c.b16 %v526, %v518
  %v687 = vpack.c.b16 %v527, %v519
  %v688 = vpack.c.b16 %v536, %v528
  %v689 = vpack.c.b16 %v537, %v529
  %v690 = vpack.c.b16 %v538, %v530
  %v691 = vpack.c.b16 %v539, %v531
  %v692 = vpack.c.b16 %v540, %v532
  %v693 = vpack.c.b16 %v541, %v533
  %v694 = vpack.c.b16 %v542, %v534
  %v695 = vpack.c.b16 %v543, %v535
  %v696 = vpack.c.b16 %v552, %v544
  %v697 = vpack.c.b16 %v553, %v545
  %v698 = vpack.c.b16 %v554, %v546
  %v699 = vpack.c.b16 %v555, %v547
  %v700 = vpack.c.b16 %v556, %v548
  %v701 = vpack.c.b16 %v557, %v549
  %v702 = vpack.c.b16 %v558, %v550
  %v703 = vpack.c.b16 %v559, %v551
  %v704 = vpack.c.b16 %v568, %v560
  %v705 = vpack.c.b16 %v569, %v561
  %v706 = vpack.c.b16 %v570, %v562
  %v707 = vpack.c.b16 %v571, %v563
  %v708 = vpack.c.b16 %v572, %v564
  %v709 = vpack.c.b16 %v573, %v565
  %v710 = vpack.c.b16 %v574, %v566
  %v711 = vpack.c.b16 %v575, %v567
  %v712 = vpack.c.b16 %v584, %v576
  %v713 = vpack.c.b16 %v585, %v577
  %v714 = vpack.c.b16 %v586, %v578
  %v715 = vpack.c.b16 %v587, %v579
  %v716 = vpack.c.b16 %v588, %v580
  %v717 = vpack.c.b16 %v589, %v581
  %v718 = vpack.c.b16 %v590, %v582
  %v719 = vpack.c.b16 %v591, %v583
  %848 = vmatprep.subr.bf16.mxu0 %v649
  %849 = vmatpush1.bf16.msra.mxu0 %v648
  %850 = vmatprep.subr.bf16.mxu0 %v641
  %851 = vmatpush1.bf16.msra.mxu0 %v640
  %852 = vmatprep.subr.bf16.mxu0 %v633
  %853 = vmatpush1.bf16.msra.mxu0 %v632
  %854 = vmatprep.subr.bf16.mxu0 %v625
  %855 = vmatpush1.bf16.msra.mxu0 %v624
  %856 = vmatprep.subr.bf16.mxu0 %v617
  %857 = vmatpush1.bf16.msra.mxu0 %v616
  %858 = vmatprep.subr.bf16.mxu0 %v609
  %859 = vmatpush1.bf16.msra.mxu0 %v608
  %860 = vmatprep.subr.bf16.mxu0 %v601
  %861 = vmatpush1.bf16.msra.mxu0 %v600
  %862 = vmatprep.subr.bf16.mxu0 %v593
  %863 = vmatpush1.bf16.msra.mxu0 %v592
  %864 = vmatprep.subr.bf16.mxu0 %v713
  %865 = vmatpush2.bf16.msra.mxu0 %v712
  %866 = vmatprep.subr.bf16.mxu0 %v705
  %867 = vmatpush2.bf16.msra.mxu0 %v704
  %868 = vmatprep.subr.bf16.mxu0 %v697
  %869 = vmatpush2.bf16.msra.mxu0 %v696
  %870 = vmatprep.subr.bf16.mxu0 %v689
  %871 = vmatpush2.bf16.msra.mxu0 %v688
  %872 = vmatprep.subr.bf16.mxu0 %v681
  %873 = vmatpush2.bf16.msra.mxu0 %v680
  %874 = vmatprep.subr.bf16.mxu0 %v673
  %875 = vmatpush2.bf16.msra.mxu0 %v672
  %876 = vmatprep.subr.bf16.mxu0 %v665
  %877 = vmatpush2.bf16.msra.mxu0 %v664
  %878 = vmatprep.subr.bf16.mxu0 %v657
  %879 = vmatpush2.bf16.msra.mxu0 %v656
  %880 = vmatprep.mubr.bf16.mxu0 %v31
  %881 = vmatmul.mubr.bf16.gmra.mxu0 %v30
  %v882 = vpop.f32.mrf.mxu0
  %v883 = vadd.f32 %v171, %v882
  %v884 = vpop.f32.mrf.mxu0
  %v885 = vadd.f32 %v175, %v884
  %v886 = vpop.f32.mrf.mxu0
  %v887 = vadd.f32 %v171, %v886
  %v888 = vpop.f32.mrf.mxu0
  %v889 = vadd.f32 %v175, %v888
  %890 = vmatprep.mubr.bf16.mxu0 %v33
  %891 = vmatmul.mubr.bf16.gmra.mxu0 %v32
  %v892 = vpop.f32.mrf.mxu0
  %v893 = vadd.f32 %v171, %v892
  %v894 = vpop.f32.mrf.mxu0
  %v895 = vadd.f32 %v175, %v894
  %v896 = vpop.f32.mrf.mxu0
  %v897 = vadd.f32 %v171, %v896
  %v898 = vpop.f32.mrf.mxu0
  %v899 = vadd.f32 %v175, %v898
  %900 = vmatprep.mubr.bf16.mxu0 %v35
  %901 = vmatmul.mubr.bf16.gmra.mxu0 %v34
  %v902 = vpop.f32.mrf.mxu0
  %v903 = vadd.f32 %v171, %v902
  %v904 = vpop.f32.mrf.mxu0
  %v905 = vadd.f32 %v175, %v904
  %v906 = vpop.f32.mrf.mxu0
  %v907 = vadd.f32 %v171, %v906
  %v908 = vpop.f32.mrf.mxu0
  %v909 = vadd.f32 %v175, %v908
  %910 = vmatprep.mubr.bf16.mxu0 %v37
  %911 = vmatmul.mubr.bf16.gmra.mxu0 %v36
  %v912 = vpop.f32.mrf.mxu0
  %v913 = vadd.f32 %v171, %v912
  %v914 = vpop.f32.mrf.mxu0
  %v915 = vadd.f32 %v175, %v914
  %v916 = vpop.f32.mrf.mxu0
  %v917 = vadd.f32 %v171, %v916
  %v918 = vpop.f32.mrf.mxu0
  %v919 = vadd.f32 %v175, %v918
  %920 = vdwg.mxu0
  %921 = vmatprep.subr.bf16.mxu0 %v651
  %922 = vmatpush1.bf16.msra.mxu0 %v650
  %923 = vmatprep.subr.bf16.mxu0 %v643
  %924 = vmatpush1.bf16.msra.mxu0 %v642
  %925 = vmatprep.subr.bf16.mxu0 %v635
  %926 = vmatpush1.bf16.msra.mxu0 %v634
  %927 = vmatprep.subr.bf16.mxu0 %v627
  %928 = vmatpush1.bf16.msra.mxu0 %v626
  %929 = vmatprep.subr.bf16.mxu0 %v619
  %930 = vmatpush1.bf16.msra.mxu0 %v618
  %931 = vmatprep.subr.bf16.mxu0 %v611
  %932 = vmatpush1.bf16.msra.mxu0 %v610
  %933 = vmatprep.subr.bf16.mxu0 %v603
  %934 = vmatpush1.bf16.msra.mxu0 %v602
  %935 = vmatprep.subr.bf16.mxu0 %v595
  %936 = vmatpush1.bf16.msra.mxu0 %v594
  %937 = vmatprep.subr.bf16.mxu0 %v715
  %938 = vmatpush2.bf16.msra.mxu0 %v714
  %939 = vmatprep.subr.bf16.mxu0 %v707
  %940 = vmatpush2.bf16.msra.mxu0 %v706
  %941 = vmatprep.subr.bf16.mxu0 %v699
  %942 = vmatpush2.bf16.msra.mxu0 %v698
  %943 = vmatprep.subr.bf16.mxu0 %v691
  %944 = vmatpush2.bf16.msra.mxu0 %v690
  %945 = vmatprep.subr.bf16.mxu0 %v683
  %946 = vmatpush2.bf16.msra.mxu0 %v682
  %947 = vmatprep.subr.bf16.mxu0 %v675
  %948 = vmatpush2.bf16.msra.mxu0 %v674
  %949 = vmatprep.subr.bf16.mxu0 %v667
  %950 = vmatpush2.bf16.msra.mxu0 %v666
  %951 = vmatprep.subr.bf16.mxu0 %v659
  %952 = vmatpush2.bf16.msra.mxu0 %v658
  %953 = vmatprep.mubr.bf16.mxu0 %v31
  %954 = vmatmul.mubr.bf16.gmra.mxu0 %v30
  %v955 = vpop.f32.mrf.mxu0
  %v956 = vadd.f32 %v179, %v955
  %v957 = vpop.f32.mrf.mxu0
  %v958 = vadd.f32 %v183, %v957
  %v959 = vpop.f32.mrf.mxu0
  %v960 = vadd.f32 %v179, %v959
  %v961 = vpop.f32.mrf.mxu0
  %v962 = vadd.f32 %v183, %v961
  %963 = vmatprep.mubr.bf16.mxu0 %v33
  %964 = vmatmul.mubr.bf16.gmra.mxu0 %v32
  %v965 = vpop.f32.mrf.mxu0
  %v966 = vadd.f32 %v179, %v965
  %v967 = vpop.f32.mrf.mxu0
  %v968 = vadd.f32 %v183, %v967
  %v969 = vpop.f32.mrf.mxu0
  %v970 = vadd.f32 %v179, %v969
  %v971 = vpop.f32.mrf.mxu0
  %v972 = vadd.f32 %v183, %v971
  %973 = vmatprep.mubr.bf16.mxu0 %v35
  %974 = vmatmul.mubr.bf16.gmra.mxu0 %v34
  %v975 = vpop.f32.mrf.mxu0
  %v976 = vadd.f32 %v179, %v975
  %v977 = vpop.f32.mrf.mxu0
  %v978 = vadd.f32 %v183, %v977
  %v979 = vpop.f32.mrf.mxu0
  %v980 = vadd.f32 %v179, %v979
  %v981 = vpop.f32.mrf.mxu0
  %v982 = vadd.f32 %v183, %v981
  %983 = vmatprep.mubr.bf16.mxu0 %v37
  %984 = vmatmul.mubr.bf16.gmra.mxu0 %v36
  %v985 = vpop.f32.mrf.mxu0
  %v986 = vadd.f32 %v179, %v985
  %v987 = vpop.f32.mrf.mxu0
  %v988 = vadd.f32 %v183, %v987
  %v989 = vpop.f32.mrf.mxu0
  %v990 = vadd.f32 %v179, %v989
  %v991 = vpop.f32.mrf.mxu0
  %v992 = vadd.f32 %v183, %v991
  %993 = vdwg.mxu0
  %994 = vmatprep.subr.bf16.mxu0 %v653
  %995 = vmatpush1.bf16.msra.mxu0 %v652
  %996 = vmatprep.subr.bf16.mxu0 %v645
  %997 = vmatpush1.bf16.msra.mxu0 %v644
  %998 = vmatprep.subr.bf16.mxu0 %v637
  %999 = vmatpush1.bf16.msra.mxu0 %v636
  %1000 = vmatprep.subr.bf16.mxu0 %v629
  %1001 = vmatpush1.bf16.msra.mxu0 %v628
  %1002 = vmatprep.subr.bf16.mxu0 %v621
  %1003 = vmatpush1.bf16.msra.mxu0 %v620
  %1004 = vmatprep.subr.bf16.mxu0 %v613
  %1005 = vmatpush1.bf16.msra.mxu0 %v612
  %1006 = vmatprep.subr.bf16.mxu0 %v605
  %1007 = vmatpush1.bf16.msra.mxu0 %v604
  %1008 = vmatprep.subr.bf16.mxu0 %v597
  %1009 = vmatpush1.bf16.msra.mxu0 %v596
  %1010 = vmatprep.subr.bf16.mxu0 %v717
  %1011 = vmatpush2.bf16.msra.mxu0 %v716
  %1012 = vmatprep.subr.bf16.mxu0 %v709
  %1013 = vmatpush2.bf16.msra.mxu0 %v708
  %1014 = vmatprep.subr.bf16.mxu0 %v701
  %1015 = vmatpush2.bf16.msra.mxu0 %v700
  %1016 = vmatprep.subr.bf16.mxu0 %v693
  %1017 = vmatpush2.bf16.msra.mxu0 %v692
  %1018 = vmatprep.subr.bf16.mxu0 %v685
  %1019 = vmatpush2.bf16.msra.mxu0 %v684
  %1020 = vmatprep.subr.bf16.mxu0 %v677
  %1021 = vmatpush2.bf16.msra.mxu0 %v676
  %1022 = vmatprep.subr.bf16.mxu0 %v669
  %1023 = vmatpush2.bf16.msra.mxu0 %v668
  %1024 = vmatprep.subr.bf16.mxu0 %v661
  %1025 = vmatpush2.bf16.msra.mxu0 %v660
  %1026 = vmatprep.mubr.bf16.mxu0 %v31
  %1027 = vmatmul.mubr.bf16.gmra.mxu0 %v30
  %v1028 = vpop.f32.mrf.mxu0
  %v1029 = vadd.f32 %v187, %v1028
  %v1030 = vpop.f32.mrf.mxu0
  %v1031 = vadd.f32 %v191, %v1030
  %v1032 = vpop.f32.mrf.mxu0
  %v1033 = vadd.f32 %v187, %v1032
  %v1034 = vpop.f32.mrf.mxu0
  %v1035 = vadd.f32 %v191, %v1034
  %1036 = vmatprep.mubr.bf16.mxu0 %v33
  %1037 = vmatmul.mubr.bf16.gmra.mxu0 %v32
  %v1038 = vpop.f32.mrf.mxu0
  %v1039 = vadd.f32 %v187, %v1038
  %v1040 = vpop.f32.mrf.mxu0
  %v1041 = vadd.f32 %v191, %v1040
  %v1042 = vpop.f32.mrf.mxu0
  %v1043 = vadd.f32 %v187, %v1042
  %v1044 = vpop.f32.mrf.mxu0
  %v1045 = vadd.f32 %v191, %v1044
  %1046 = vmatprep.mubr.bf16.mxu0 %v35
  %1047 = vmatmul.mubr.bf16.gmra.mxu0 %v34
  %v1048 = vpop.f32.mrf.mxu0
  %v1049 = vadd.f32 %v187, %v1048
  %v1050 = vpop.f32.mrf.mxu0
  %v1051 = vadd.f32 %v191, %v1050
  %v1052 = vpop.f32.mrf.mxu0
  %v1053 = vadd.f32 %v187, %v1052
  %v1054 = vpop.f32.mrf.mxu0
  %v1055 = vadd.f32 %v191, %v1054
  %1056 = vmatprep.mubr.bf16.mxu0 %v37
  %1057 = vmatmul.mubr.bf16.gmra.mxu0 %v36
  %v1058 = vpop.f32.mrf.mxu0
  %v1059 = vadd.f32 %v187, %v1058
  %v1060 = vpop.f32.mrf.mxu0
  %v1061 = vadd.f32 %v191, %v1060
  %v1062 = vpop.f32.mrf.mxu0
  %v1063 = vadd.f32 %v187, %v1062
  %v1064 = vpop.f32.mrf.mxu0
  %v1065 = vadd.f32 %v191, %v1064
  %1066 = vdwg.mxu0
  %1067 = vmatprep.subr.bf16.mxu0 %v655
  %1068 = vmatpush1.bf16.msra.mxu0 %v654
  %1069 = vmatprep.subr.bf16.mxu0 %v647
  %1070 = vmatpush1.bf16.msra.mxu0 %v646
  %1071 = vmatprep.subr.bf16.mxu0 %v639
  %1072 = vmatpush1.bf16.msra.mxu0 %v638
  %1073 = vmatprep.subr.bf16.mxu0 %v631
  %1074 = vmatpush1.bf16.msra.mxu0 %v630
  %1075 = vmatprep.subr.bf16.mxu0 %v623
  %1076 = vmatpush1.bf16.msra.mxu0 %v622
  %1077 = vmatprep.subr.bf16.mxu0 %v615
  %1078 = vmatpush1.bf16.msra.mxu0 %v614
  %1079 = vmatprep.subr.bf16.mxu0 %v607
  %1080 = vmatpush1.bf16.msra.mxu0 %v606
  %1081 = vmatprep.subr.bf16.mxu0 %v599
  %1082 = vmatpush1.bf16.msra.mxu0 %v598
  %1083 = vmatprep.subr.bf16.mxu0 %v719
  %1084 = vmatpush2.bf16.msra.mxu0 %v718
  %1085 = vmatprep.subr.bf16.mxu0 %v711
  %1086 = vmatpush2.bf16.msra.mxu0 %v710
  %1087 = vmatprep.subr.bf16.mxu0 %v703
  %1088 = vmatpush2.bf16.msra.mxu0 %v702
  %1089 = vmatprep.subr.bf16.mxu0 %v695
  %1090 = vmatpush2.bf16.msra.mxu0 %v694
  %1091 = vmatprep.subr.bf16.mxu0 %v687
  %1092 = vmatpush2.bf16.msra.mxu0 %v686
  %1093 = vmatprep.subr.bf16.mxu0 %v679
  %1094 = vmatpush2.bf16.msra.mxu0 %v678
  %1095 = vmatprep.subr.bf16.mxu0 %v671
  %1096 = vmatpush2.bf16.msra.mxu0 %v670
  %1097 = vmatprep.subr.bf16.mxu0 %v663
  %1098 = vmatpush2.bf16.msra.mxu0 %v662
  %1099 = vmatprep.mubr.bf16.mxu0 %v31
  %1100 = vmatmul.mubr.bf16.gmra.mxu0 %v30
  %v1101 = vpop.f32.mrf.mxu0
  %v1102 = vadd.f32 %v195, %v1101
  %v1103 = vpop.f32.mrf.mxu0
  %v1104 = vadd.f32 %v199, %v1103
  %v1105 = vpop.f32.mrf.mxu0
  %v1106 = vadd.f32 %v195, %v1105
  %v1107 = vpop.f32.mrf.mxu0
  %v1108 = vadd.f32 %v199, %v1107
  %1109 = vmatprep.mubr.bf16.mxu0 %v33
  %1110 = vmatmul.mubr.bf16.gmra.mxu0 %v32
  %v1111 = vpop.f32.mrf.mxu0
  %v1112 = vadd.f32 %v195, %v1111
  %v1113 = vpop.f32.mrf.mxu0
  %v1114 = vadd.f32 %v199, %v1113
  %v1115 = vpop.f32.mrf.mxu0
  %v1116 = vadd.f32 %v195, %v1115
  %v1117 = vpop.f32.mrf.mxu0
  %v1118 = vadd.f32 %v199, %v1117
  %1119 = vmatprep.mubr.bf16.mxu0 %v35
  %1120 = vmatmul.mubr.bf16.gmra.mxu0 %v34
  %v1121 = vpop.f32.mrf.mxu0
  %v1122 = vadd.f32 %v195, %v1121
  %v1123 = vpop.f32.mrf.mxu0
  %v1124 = vadd.f32 %v199, %v1123
  %v1125 = vpop.f32.mrf.mxu0
  %v1126 = vadd.f32 %v195, %v1125
  %v1127 = vpop.f32.mrf.mxu0
  %v1128 = vadd.f32 %v199, %v1127
  %1129 = vmatprep.mubr.bf16.mxu0 %v37
  %1130 = vmatmul.mubr.bf16.gmra.mxu0 %v36
  %v1131 = vpop.f32.mrf.mxu0
  %v1132 = vadd.f32 %v195, %v1131
  %v1133 = vpop.f32.mrf.mxu0
  %v1134 = vadd.f32 %v199, %v1133
  %v1135 = vpop.f32.mrf.mxu0
  %v1136 = vadd.f32 %v195, %v1135
  %v1137 = vpop.f32.mrf.mxu0
  %v1138 = vadd.f32 %v199, %v1137
  %1139 = vdwg.mxu0
  %v1140 = vpack.c.bf16 %v887, %v883
  %v1141 = vpack.c.bf16 %v889, %v885
  %v1142 = vpack.c.bf16 %v960, %v956
  %v1143 = vpack.c.bf16 %v962, %v958
  %v1144 = vpack.c.bf16 %v1033, %v1029
  %v1145 = vpack.c.bf16 %v1035, %v1031
  %v1146 = vpack.c.bf16 %v1106, %v1102
  %v1147 = vpack.c.bf16 %v1108, %v1104
  %v1148 = vpack.c.bf16 %v897, %v893
  %v1149 = vpack.c.bf16 %v899, %v895
  %v1150 = vpack.c.bf16 %v970, %v966
  %v1151 = vpack.c.bf16 %v972, %v968
  %v1152 = vpack.c.bf16 %v1043, %v1039
  %v1153 = vpack.c.bf16 %v1045, %v1041
  %v1154 = vpack.c.bf16 %v1116, %v1112
  %v1155 = vpack.c.bf16 %v1118, %v1114
  %v1156 = vpack.c.bf16 %v907, %v903
  %v1157 = vpack.c.bf16 %v909, %v905
  %v1158 = vpack.c.bf16 %v980, %v976
  %v1159 = vpack.c.bf16 %v982, %v978
  %v1160 = vpack.c.bf16 %v1053, %v1049
  %v1161 = vpack.c.bf16 %v1055, %v1051
  %v1162 = vpack.c.bf16 %v1126, %v1122
  %v1163 = vpack.c.bf16 %v1128, %v1124
  %v1164 = vpack.c.bf16 %v917, %v913
  %v1165 = vpack.c.bf16 %v919, %v915
  %v1166 = vpack.c.bf16 %v990, %v986
  %v1167 = vpack.c.bf16 %v992, %v988
  %v1168 = vpack.c.bf16 %v1063, %v1059
  %v1169 = vpack.c.bf16 %v1065, %v1061
  %v1170 = vpack.c.bf16 %v1136, %v1132
  %v1171 = vpack.c.bf16 %v1138, %v1134
  %v1204 = vunpack.c.l.b16 %v1140
  %v1205 = vunpack.c.l.b16 %v1141
  %v1206 = vunpack.c.l.b16 %v1142
  %v1207 = vunpack.c.l.b16 %v1143
  %v1208 = vunpack.c.l.b16 %v1144
  %v1209 = vunpack.c.l.b16 %v1145
  %v1210 = vunpack.c.l.b16 %v1146
  %v1211 = vunpack.c.l.b16 %v1147
  %v1212 = vunpack.c.h.b16 %v1140
  %v1213 = vunpack.c.h.b16 %v1141
  %v1214 = vunpack.c.h.b16 %v1142
  %v1215 = vunpack.c.h.b16 %v1143
  %v1216 = vunpack.c.h.b16 %v1144
  %v1217 = vunpack.c.h.b16 %v1145
  %v1218 = vunpack.c.h.b16 %v1146
  %v1219 = vunpack.c.h.b16 %v1147
  %v1220 = vunpack.c.l.b16 %v1148
  %v1221 = vunpack.c.l.b16 %v1149
  %v1222 = vunpack.c.l.b16 %v1150
  %v1223 = vunpack.c.l.b16 %v1151
  %v1224 = vunpack.c.l.b16 %v1152
  %v1225 = vunpack.c.l.b16 %v1153
  %v1226 = vunpack.c.l.b16 %v1154
  %v1227 = vunpack.c.l.b16 %v1155
  %v1228 = vunpack.c.h.b16 %v1148
  %v1229 = vunpack.c.h.b16 %v1149
  %v1230 = vunpack.c.h.b16 %v1150
  %v1231 = vunpack.c.h.b16 %v1151
  %v1232 = vunpack.c.h.b16 %v1152
  %v1233 = vunpack.c.h.b16 %v1153
  %v1234 = vunpack.c.h.b16 %v1154
  %v1235 = vunpack.c.h.b16 %v1155
  %v1236 = vunpack.c.l.b16 %v1156
  %v1237 = vunpack.c.l.b16 %v1157
  %v1238 = vunpack.c.l.b16 %v1158
  %v1239 = vunpack.c.l.b16 %v1159
  %v1240 = vunpack.c.l.b16 %v1160
  %v1241 = vunpack.c.l.b16 %v1161
  %v1242 = vunpack.c.l.b16 %v1162
  %v1243 = vunpack.c.l.b16 %v1163
  %v1244 = vunpack.c.h.b16 %v1156
  %v1245 = vunpack.c.h.b16 %v1157
  %v1246 = vunpack.c.h.b16 %v1158
  %v1247 = vunpack.c.h.b16 %v1159
  %v1248 = vunpack.c.h.b16 %v1160
  %v1249 = vunpack.c.h.b16 %v1161
  %v1250 = vunpack.c.h.b16 %v1162
  %v1251 = vunpack.c.h.b16 %v1163
  %v1252 = vunpack.c.l.b16 %v1164
  %v1253 = vunpack.c.l.b16 %v1165
  %v1254 = vunpack.c.l.b16 %v1166
  %v1255 = vunpack.c.l.b16 %v1167
  %v1256 = vunpack.c.l.b16 %v1168
  %v1257 = vunpack.c.l.b16 %v1169
  %v1258 = vunpack.c.l.b16 %v1170
  %v1259 = vunpack.c.l.b16 %v1171
  %v1260 = vunpack.c.h.b16 %v1164
  %v1261 = vunpack.c.h.b16 %v1165
  %v1262 = vunpack.c.h.b16 %v1166
  %v1263 = vunpack.c.h.b16 %v1167
  %v1264 = vunpack.c.h.b16 %v1168
  %v1265 = vunpack.c.h.b16 %v1169
  %v1266 = vunpack.c.h.b16 %v1170
  %v1267 = vunpack.c.h.b16 %v1171
  %v1268 = vpack.c.b16 %v1205, %v1204
  %v1269 = vpack.c.b16 %v1207, %v1206
  %v1270 = vpack.c.b16 %v1209, %v1208
  %v1271 = vpack.c.b16 %v1211, %v1210
  %v1272 = vpack.c.b16 %v1213, %v1212
  %v1273 = vpack.c.b16 %v1215, %v1214
  %v1274 = vpack.c.b16 %v1217, %v1216
  %v1275 = vpack.c.b16 %v1219, %v1218
  %v1276 = vpack.c.b16 %v1221, %v1220
  %v1277 = vpack.c.b16 %v1223, %v1222
  %v1278 = vpack.c.b16 %v1225, %v1224
  %v1279 = vpack.c.b16 %v1227, %v1226
  %v1280 = vpack.c.b16 %v1229, %v1228
  %v1281 = vpack.c.b16 %v1231, %v1230
  %v1282 = vpack.c.b16 %v1233, %v1232
  %v1283 = vpack.c.b16 %v1235, %v1234
  %v1284 = vpack.c.b16 %v1237, %v1236
  %v1285 = vpack.c.b16 %v1239, %v1238
  %v1286 = vpack.c.b16 %v1241, %v1240
  %v1287 = vpack.c.b16 %v1243, %v1242
  %v1288 = vpack.c.b16 %v1245, %v1244
  %v1289 = vpack.c.b16 %v1247, %v1246
  %v1290 = vpack.c.b16 %v1249, %v1248
  %v1291 = vpack.c.b16 %v1251, %v1250
  %v1292 = vpack.c.b16 %v1253, %v1252
  %v1293 = vpack.c.b16 %v1255, %v1254
  %v1294 = vpack.c.b16 %v1257, %v1256
  %v1295 = vpack.c.b16 %v1259, %v1258
  %v1296 = vpack.c.b16 %v1261, %v1260
  %v1297 = vpack.c.b16 %v1263, %v1262
  %v1298 = vpack.c.b16 %v1265, %v1264
  %v1299 = vpack.c.b16 %v1267, %v1266
  %1332 = vst [vmem:[%s3] sm:$0xff] %v1268
  %1333 = vst [vmem:[%s3 + $0x8] sm:$0xff] %v1269
  %1334 = vst [vmem:[%s3 + $0x10] sm:$0xff] %v1270
  %1335 = vst [vmem:[%s3 + $0x18] sm:$0xff] %v1271
  %1336 = vst [vmem:[%s3 + $0x20] sm:$0xff] %v1272
  %1337 = vst [vmem:[%s3 + $0x28] sm:$0xff] %v1273
  %1338 = vst [vmem:[%s3 + $0x30] sm:$0xff] %v1274
  %1339 = vst [vmem:[%s3 + $0x38] sm:$0xff] %v1275
  %1340 = vst [vmem:[%s3 + $0x40] sm:$0xff] %v1276
  %1341 = vst [vmem:[%s3 + $0x48] sm:$0xff] %v1277
  %1342 = vst [vmem:[%s3 + $0x50] sm:$0xff] %v1278
  %1343 = vst [vmem:[%s3 + $0x58] sm:$0xff] %v1279
  %1344 = vst [vmem:[%s3 + $0x60] sm:$0xff] %v1280
  %1345 = vst [vmem:[%s3 + $0x68] sm:$0xff] %v1281
  %1346 = vst [vmem:[%s3 + $0x70] sm:$0xff] %v1282
  %1347 = vst [vmem:[%s3 + $0x78] sm:$0xff] %v1283
  %1348 = vst [vmem:[%s3 + $0x80] sm:$0xff] %v1284
  %1349 = vst [vmem:[%s3 + $0x88] sm:$0xff] %v1285
  %1350 = vst [vmem:[%s3 + $0x90] sm:$0xff] %v1286
  %1351 = vst [vmem:[%s3 + $0x98] sm:$0xff] %v1287
  %1352 = vst [vmem:[%s3 + $0xa0] sm:$0xff] %v1288
  %1353 = vst [vmem:[%s3 + $0xa8] sm:$0xff] %v1289
  %1354 = vst [vmem:[%s3 + $0xb0] sm:$0xff] %v1290
  %1355 = vst [vmem:[%s3 + $0xb8] sm:$0xff] %v1291
  %1356 = vst [vmem:[%s3 + $0xc0] sm:$0xff] %v1292
  %1357 = vst [vmem:[%s3 + $0xc8] sm:$0xff] %v1293
  %1358 = vst [vmem:[%s3 + $0xd0] sm:$0xff] %v1294
  %1359 = vst [vmem:[%s3 + $0xd8] sm:$0xff] %v1295
  %1360 = vst [vmem:[%s3 + $0xe0] sm:$0xff] %v1296
  %1361 = vst [vmem:[%s3 + $0xe8] sm:$0xff] %v1297
  %1362 = vst [vmem:[%s3 + $0xf0] sm:$0xff] %v1298
  %1363 = vst [vmem:[%s3 + $0xf8] sm:$0xff] %v1299
  // Predicated region
  $region14: #{ner_lstm_bidi_forward.10} parent=0 // pred_check
    _
  $region15: #{ner_lstm_bidi_forward.10} parent=0 // pred_check_branch
    %1365 = sbr.rel (0) target = $region17
  $region16: #{ner_lstm_bidi_forward.10} parent=0 // pred_region
    _
  $region17: #{ner_lstm_bidi_forward.10} parent=0 // pred_fallthru
    _
  // Predicated region
  $region18: #{ner_lstm_bidi_forward.10} parent=0 // pred_check
    _
  $region19: #{ner_lstm_bidi_forward.10} parent=0 // pred_check_branch
    %1367 = sbr.rel (0) target = $region21
  $region20: #{ner_lstm_bidi_forward.10} parent=0 // pred_region
    _
  $region21: #{ner_lstm_bidi_forward.10} parent=0 // pred_fallthru
    _

// kernel: ner_lstm_bidi_forward.12
$region0: #{ner_lstm_bidi_forward.12}
  #allocation0 [shape = 'u32[]', space=smem, size = 0x4, offset = 0x4, fixed_abs, tag = 'smem constant byte address 0x4 - core index']
  #allocation1 [shape = 'u32[144,128]{1,0:T(1,128)}', space=vmem, size = 0x12000, scoped, tag = 'internal scratch']
  %s0 = inlined_call_operand.vmem [shape: f32[64,256], index: 0, kind: input, shape index: {}]
  %s1 = inlined_call_operand.vmem [shape: bf16[256,128], index: 1, kind: input, shape index: {}]
  %s2 = inlined_call_operand.vmem [shape: f32[1,128], index: 2, kind: input, shape index: {}]
  %s3 = inlined_call_operand.vmem [shape: f32[64,128], index: 3, kind: input, shape index: {}]
  %s4 = inlined_call_operand.vmem [shape: f32[64,128], index: 4, kind: output, shape index: {}]
  %s5 = sld [smem:[#allocation0]]
  $region26: #{ner_lstm_bidi_forward.12} parent=0
    _
  %s7 = ssub.s32 1, %s5
  %s8 = scalar_select 0, %s7, %s5
  // Predicated region
  $region2: #{ner_lstm_bidi_forward.12} parent=0 // pred_check
    _
  $region3: #{ner_lstm_bidi_forward.12} parent=0 // pred_check_branch
    %10 = sbr.rel (0) target = $region5
  $region4: #{ner_lstm_bidi_forward.12} parent=0 // pred_region
    _
  $region5: #{ner_lstm_bidi_forward.12} parent=0 // pred_fallthru
    _
  // Predicated region
  $region6: #{ner_lstm_bidi_forward.12} parent=0 // pred_check
    _
  $region7: #{ner_lstm_bidi_forward.12} parent=0 // pred_check_branch
    %12 = sbr.rel (0) target = $region9
  $region8: #{ner_lstm_bidi_forward.12} parent=0 // pred_region
    _
  $region9: #{ner_lstm_bidi_forward.12} parent=0 // pred_fallthru
    _
  // Predicated region
  $region10: #{ner_lstm_bidi_forward.12} parent=0 // pred_check
    _
  $region11: #{ner_lstm_bidi_forward.12} parent=0 // pred_check_branch
    %14 = sbr.rel (0) target = $region13
  $region12: #{ner_lstm_bidi_forward.12} parent=0 // pred_region
    _
  $region13: #{ner_lstm_bidi_forward.12} parent=0 // pred_fallthru
    _
  // Predicated region
  $region14: #{ner_lstm_bidi_forward.12} parent=0 // pred_check
    _
  $region15: #{ner_lstm_bidi_forward.12} parent=0 // pred_check_branch
    %16 = sbr.rel (0) target = $region17
  $region16: #{ner_lstm_bidi_forward.12} parent=0 // pred_region
    _
  $region17: #{ner_lstm_bidi_forward.12} parent=0 // pred_fallthru
    _
  %v18 = vld [vmem:[%s0] sm:$0xff]
  %v19 = vld [vmem:[%s0 + $0x8] sm:$0xff]
  %v20 = vld [vmem:[%s0 + $0x10] sm:$0xff]
  %v21 = vld [vmem:[%s0 + $0x18] sm:$0xff]
  %v22 = vld [vmem:[%s0 + $0x20] sm:$0xff]
  %v23 = vld [vmem:[%s0 + $0x28] sm:$0xff]
  %v24 = vld [vmem:[%s0 + $0x30] sm:$0xff]
  %v25 = vld [vmem:[%s0 + $0x38] sm:$0xff]
  %v26 = vld [vmem:[%s0 + $0x40] sm:$0xff]
  %v27 = vld [vmem:[%s0 + $0x48] sm:$0xff]
  %v28 = vld [vmem:[%s0 + $0x50] sm:$0xff]
  %v29 = vld [vmem:[%s0 + $0x58] sm:$0xff]
  %v30 = vld [vmem:[%s0 + $0x60] sm:$0xff]
  %v31 = vld [vmem:[%s0 + $0x68] sm:$0xff]
  %v32 = vld [vmem:[%s0 + $0x70] sm:$0xff]
  %v33 = vld [vmem:[%s0 + $0x78] sm:$0xff]
  %v34 = vpack.c.bf16 %v20, %v18
  %v35 = vpack.c.bf16 %v21, %v19
  %v36 = vpack.c.bf16 %v24, %v22
  %v37 = vpack.c.bf16 %v25, %v23
  %v38 = vpack.c.bf16 %v28, %v26
  %v39 = vpack.c.bf16 %v29, %v27
  %v40 = vpack.c.bf16 %v32, %v30
  %v41 = vpack.c.bf16 %v33, %v31
  %v42 = vld [vmem:[%s1] sm:$0xf]
  %v43 = vld [vmem:[%s1 + $0x4] sm:$0xf]
  %v44 = vld [vmem:[%s1 + $0x8] sm:$0xf]
  %v45 = vld [vmem:[%s1 + $0xc] sm:$0xf]
  %v46 = vld [vmem:[%s1 + $0x10] sm:$0xf]
  %v47 = vld [vmem:[%s1 + $0x14] sm:$0xf]
  %v48 = vld [vmem:[%s1 + $0x18] sm:$0xf]
  %v49 = vld [vmem:[%s1 + $0x1c] sm:$0xf]
  %v50 = vld [vmem:[%s1 + $0x20] sm:$0xf]
  %v51 = vld [vmem:[%s1 + $0x24] sm:$0xf]
  %v52 = vld [vmem:[%s1 + $0x28] sm:$0xf]
  %v53 = vld [vmem:[%s1 + $0x2c] sm:$0xf]
  %v54 = vld [vmem:[%s1 + $0x30] sm:$0xf]
  %v55 = vld [vmem:[%s1 + $0x34] sm:$0xf]
  %v56 = vld [vmem:[%s1 + $0x38] sm:$0xf]
  %v57 = vld [vmem:[%s1 + $0x3c] sm:$0xf]
  %v58 = vld [vmem:[%s1 + $0x40] sm:$0xf]
  %v59 = vld [vmem:[%s1 + $0x44] sm:$0xf]
  %v60 = vld [vmem:[%s1 + $0x48] sm:$0xf]
  %v61 = vld [vmem:[%s1 + $0x4c] sm:$0xf]
  %v62 = vld [vmem:[%s1 + $0x50] sm:$0xf]
  %v63 = vld [vmem:[%s1 + $0x54] sm:$0xf]
  %v64 = vld [vmem:[%s1 + $0x58] sm:$0xf]
  %v65 = vld [vmem:[%s1 + $0x5c] sm:$0xf]
  %v66 = vld [vmem:[%s1 + $0x60] sm:$0xf]
  %v67 = vld [vmem:[%s1 + $0x64] sm:$0xf]
  %v68 = vld [vmem:[%s1 + $0x68] sm:$0xf]
  %v69 = vld [vmem:[%s1 + $0x6c] sm:$0xf]
  %v70 = vld [vmem:[%s1 + $0x70] sm:$0xf]
  %v71 = vld [vmem:[%s1 + $0x74] sm:$0xf]
  %v72 = vld [vmem:[%s1 + $0x78] sm:$0xf]
  %v73 = vld [vmem:[%s1 + $0x7c] sm:$0xf]
  %v74 = vld [vmem:[%s2] sm:$0x1]
  %v76 = vlaneseq
  %v77 = vshrl.u32 %v76, 7
  %v78 = vsub.s32 0, %v77
  %v79 = vrot.slane %v74, %v78
  %v113 = vunpack.c.l.b16 %v42
  %v114 = vunpack.c.l.b16 %v43
  %v115 = vunpack.c.l.b16 %v44
  %v116 = vunpack.c.l.b16 %v45
  %v117 = vunpack.c.l.b16 %v46
  %v118 = vunpack.c.l.b16 %v47
  %v119 = vunpack.c.l.b16 %v48
  %v120 = vunpack.c.l.b16 %v49
  %v121 = vunpack.c.l.b16 %v50
  %v122 = vunpack.c.l.b16 %v51
  %v123 = vunpack.c.l.b16 %v52
  %v124 = vunpack.c.l.b16 %v53
  %v125 = vunpack.c.l.b16 %v54
  %v126 = vunpack.c.l.b16 %v55
  %v127 = vunpack.c.l.b16 %v56
  %v128 = vunpack.c.l.b16 %v57
  %v129 = vunpack.c.l.b16 %v58
  %v130 = vunpack.c.l.b16 %v59
  %v131 = vunpack.c.l.b16 %v60
  %v132 = vunpack.c.l.b16 %v61
  %v133 = vunpack.c.l.b16 %v62
  %v134 = vunpack.c.l.b16 %v63
  %v135 = vunpack.c.l.b16 %v64
  %v136 = vunpack.c.l.b16 %v65
  %v137 = vunpack.c.l.b16 %v66
  %v138 = vunpack.c.l.b16 %v67
  %v139 = vunpack.c.l.b16 %v68
  %v140 = vunpack.c.l.b16 %v69
  %v141 = vunpack.c.l.b16 %v70
  %v142 = vunpack.c.l.b16 %v71
  %v143 = vunpack.c.l.b16 %v72
  %v144 = vunpack.c.l.b16 %v73
  %v145 = vpack.c.b16 %v114, %v113
  %v146 = vpack.c.b16 %v116, %v115
  %v147 = vpack.c.b16 %v118, %v117
  %v148 = vpack.c.b16 %v120, %v119
  %v149 = vpack.c.b16 %v122, %v121
  %v150 = vpack.c.b16 %v124, %v123
  %v151 = vpack.c.b16 %v126, %v125
  %v152 = vpack.c.b16 %v128, %v127
  %v153 = vpack.c.b16 %v130, %v129
  %v154 = vpack.c.b16 %v132, %v131
  %v155 = vpack.c.b16 %v134, %v133
  %v156 = vpack.c.b16 %v136, %v135
  %v157 = vpack.c.b16 %v138, %v137
  %v158 = vpack.c.b16 %v140, %v139
  %v159 = vpack.c.b16 %v142, %v141
  %v160 = vpack.c.b16 %v144, %v143
  %177 = vmatprep.subr.bf16.mxu0 0
  %178 = vmatpush1.bf16.msra.mxu0 %v152
  %179 = vmatprep.subr.bf16.mxu0 0
  %180 = vmatpush1.bf16.msra.mxu0 %v151
  %181 = vmatprep.subr.bf16.mxu0 0
  %182 = vmatpush1.bf16.msra.mxu0 %v150
  %183 = vmatprep.subr.bf16.mxu0 0
  %184 = vmatpush1.bf16.msra.mxu0 %v149
  %185 = vmatprep.subr.bf16.mxu0 0
  %186 = vmatpush1.bf16.msra.mxu0 %v148
  %187 = vmatprep.subr.bf16.mxu0 0
  %188 = vmatpush1.bf16.msra.mxu0 %v147
  %189 = vmatprep.subr.bf16.mxu0 0
  %190 = vmatpush1.bf16.msra.mxu0 %v146
  %191 = vmatprep.subr.bf16.mxu0 0
  %192 = vmatpush1.bf16.msra.mxu0 %v145
  %193 = vmatprep.subr.bf16.mxu0 0
  %194 = vmatpush2.bf16.msra.mxu0 %v160
  %195 = vmatprep.subr.bf16.mxu0 0
  %196 = vmatpush2.bf16.msra.mxu0 %v159
  %197 = vmatprep.subr.bf16.mxu0 0
  %198 = vmatpush2.bf16.msra.mxu0 %v158
  %199 = vmatprep.subr.bf16.mxu0 0
  %200 = vmatpush2.bf16.msra.mxu0 %v157
  %201 = vmatprep.subr.bf16.mxu0 0
  %202 = vmatpush2.bf16.msra.mxu0 %v156
  %203 = vmatprep.subr.bf16.mxu0 0
  %204 = vmatpush2.bf16.msra.mxu0 %v155
  %205 = vmatprep.subr.bf16.mxu0 0
  %206 = vmatpush2.bf16.msra.mxu0 %v154
  %207 = vmatprep.subr.bf16.mxu0 0
  %208 = vmatpush2.bf16.msra.mxu0 %v153
  %209 = vmatprep.mubr.bf16.mxu0 %v35
  %210 = vmatmul.mubr.bf16.gmra.mxu0 %v34
  %v211 = vpop.f32.mrf.mxu0
  %v212 = vadd.f32 %v79, %v211
  %v213 = vpop.f32.mrf.mxu0
  %v214 = vpop.f32.mrf.mxu0
  %v215 = vadd.f32 %v79, %v214
  %v216 = vpop.f32.mrf.mxu0
  %217 = vmatprep.mubr.bf16.mxu0 %v37
  %218 = vmatmul.mubr.bf16.gmra.mxu0 %v36
  %v219 = vpop.f32.mrf.mxu0
  %v220 = vadd.f32 %v79, %v219
  %v221 = vpop.f32.mrf.mxu0
  %v222 = vpop.f32.mrf.mxu0
  %v223 = vadd.f32 %v79, %v222
  %v224 = vpop.f32.mrf.mxu0
  %225 = vmatprep.mubr.bf16.mxu0 %v39
  %226 = vmatmul.mubr.bf16.gmra.mxu0 %v38
  %v227 = vpop.f32.mrf.mxu0
  %v228 = vadd.f32 %v79, %v227
  %v229 = vpop.f32.mrf.mxu0
  %v230 = vpop.f32.mrf.mxu0
  %v231 = vadd.f32 %v79, %v230
  %v232 = vpop.f32.mrf.mxu0
  %233 = vmatprep.mubr.bf16.mxu0 %v41
  %234 = vmatmul.mubr.bf16.gmra.mxu0 %v40
  %v235 = vpop.f32.mrf.mxu0
  %v236 = vadd.f32 %v79, %v235
  %v237 = vpop.f32.mrf.mxu0
  %v238 = vpop.f32.mrf.mxu0
  %v239 = vadd.f32 %v79, %v238
  %v240 = vpop.f32.mrf.mxu0
  %241 = vdwg.mxu0
  %v242 = vmax.f32 %v212, 0.0
  %v243 = vmax.f32 %v215, 0.0
  %v244 = vmax.f32 %v220, 0.0
  %v245 = vmax.f32 %v223, 0.0
  %v246 = vmax.f32 %v228, 0.0
  %v247 = vmax.f32 %v231, 0.0
  %v248 = vmax.f32 %v236, 0.0
  %v249 = vmax.f32 %v239, 0.0
  %v250 = vld [vmem:[%s3] sm:$0xff]
  %v251 = vld [vmem:[%s3 + $0x8] sm:$0xff]
  %v252 = vld [vmem:[%s3 + $0x10] sm:$0xff]
  %v253 = vld [vmem:[%s3 + $0x18] sm:$0xff]
  %v254 = vld [vmem:[%s3 + $0x20] sm:$0xff]
  %v255 = vld [vmem:[%s3 + $0x28] sm:$0xff]
  %v256 = vld [vmem:[%s3 + $0x30] sm:$0xff]
  %v257 = vld [vmem:[%s3 + $0x38] sm:$0xff]
  %v258 = vadd.f32 %v242, %v250
  %v259 = vadd.f32 %v243, %v251
  %v260 = vadd.f32 %v244, %v252
  %v261 = vadd.f32 %v245, %v253
  %v262 = vadd.f32 %v246, %v254
  %v263 = vadd.f32 %v247, %v255
  %v264 = vadd.f32 %v248, %v256
  %v265 = vadd.f32 %v249, %v257
  %266 = vst [vmem:[%s4] sm:$0xff] %v258
  %267 = vst [vmem:[%s4 + $0x8] sm:$0xff] %v259
  %268 = vst [vmem:[%s4 + $0x10] sm:$0xff] %v260
  %269 = vst [vmem:[%s4 + $0x18] sm:$0xff] %v261
  %270 = vst [vmem:[%s4 + $0x20] sm:$0xff] %v262
  %271 = vst [vmem:[%s4 + $0x28] sm:$0xff] %v263
  %272 = vst [vmem:[%s4 + $0x30] sm:$0xff] %v264
  %273 = vst [vmem:[%s4 + $0x38] sm:$0xff] %v265
  // Predicated region
  $region18: #{ner_lstm_bidi_forward.12} parent=0 // pred_check
    _
  $region19: #{ner_lstm_bidi_forward.12} parent=0 // pred_check_branch
    %275 = sbr.rel (0) target = $region21
  $region20: #{ner_lstm_bidi_forward.12} parent=0 // pred_region
    _
  $region21: #{ner_lstm_bidi_forward.12} parent=0 // pred_fallthru
    _
  // Predicated region
  $region22: #{ner_lstm_bidi_forward.12} parent=0 // pred_check
    _
  $region23: #{ner_lstm_bidi_forward.12} parent=0 // pred_check_branch
    %277 = sbr.rel (0) target = $region25
  $region24: #{ner_lstm_bidi_forward.12} parent=0 // pred_region
    _
  $region25: #{ner_lstm_bidi_forward.12} parent=0 // pred_fallthru
    _

// kernel: ner_lstm_bidi_forward.13
$region0: #{ner_lstm_bidi_forward.13}
  #allocation0 [shape = 'u32[]', space=smem, size = 0x4, offset = 0x4, fixed_abs, tag = 'smem constant byte address 0x4 - core index']
  #allocation1 [shape = 'u32[144,128]{1,0:T(1,128)}', space=vmem, size = 0x12000, scoped, tag = 'internal scratch']
  %s0 = inlined_call_operand.vmem [shape: f32[64,128], index: 0, kind: input, shape index: {}]
  %s1 = inlined_call_operand.vmem [shape: bf16[128,64], index: 1, kind: input, shape index: {}]
  %s2 = inlined_call_operand.vmem [shape: f32[1,64], index: 2, kind: input, shape index: {}]
  %s3 = inlined_call_operand.vmem [shape: bf16[64,128], index: 3, kind: input, shape index: {}]
  %s4 = inlined_call_operand.vmem [shape: f32[1,128], index: 4, kind: input, shape index: {}]
  %s5 = inlined_call_operand.vmem [shape: f32[64,128], index: 5, kind: output, shape index: {}]
  %s6 = sld [smem:[#allocation0]]
  $region30: #{ner_lstm_bidi_forward.13} parent=0
    _
  %s8 = ssub.s32 1, %s6
  %s9 = scalar_select 0, %s8, %s6
  // Predicated region
  $region2: #{ner_lstm_bidi_forward.13} parent=0 // pred_check
    _
  $region3: #{ner_lstm_bidi_forward.13} parent=0 // pred_check_branch
    %11 = sbr.rel (0) target = $region5
  $region4: #{ner_lstm_bidi_forward.13} parent=0 // pred_region
    _
  $region5: #{ner_lstm_bidi_forward.13} parent=0 // pred_fallthru
    _
  // Predicated region
  $region6: #{ner_lstm_bidi_forward.13} parent=0 // pred_check
    _
  $region7: #{ner_lstm_bidi_forward.13} parent=0 // pred_check_branch
    %13 = sbr.rel (0) target = $region9
  $region8: #{ner_lstm_bidi_forward.13} parent=0 // pred_region
    _
  $region9: #{ner_lstm_bidi_forward.13} parent=0 // pred_fallthru
    _
  // Predicated region
  $region10: #{ner_lstm_bidi_forward.13} parent=0 // pred_check
    _
  $region11: #{ner_lstm_bidi_forward.13} parent=0 // pred_check_branch
    %15 = sbr.rel (0) target = $region13
  $region12: #{ner_lstm_bidi_forward.13} parent=0 // pred_region
    _
  $region13: #{ner_lstm_bidi_forward.13} parent=0 // pred_fallthru
    _
  // Predicated region
  $region14: #{ner_lstm_bidi_forward.13} parent=0 // pred_check
    _
  $region15: #{ner_lstm_bidi_forward.13} parent=0 // pred_check_branch
    %17 = sbr.rel (0) target = $region17
  $region16: #{ner_lstm_bidi_forward.13} parent=0 // pred_region
    _
  $region17: #{ner_lstm_bidi_forward.13} parent=0 // pred_fallthru
    _
  // Predicated region
  $region18: #{ner_lstm_bidi_forward.13} parent=0 // pred_check
    _
  $region19: #{ner_lstm_bidi_forward.13} parent=0 // pred_check_branch
    %19 = sbr.rel (0) target = $region21
  $region20: #{ner_lstm_bidi_forward.13} parent=0 // pred_region
    _
  $region21: #{ner_lstm_bidi_forward.13} parent=0 // pred_fallthru
    _
  %v21 = vld [vmem:[%s0] sm:$0xff]
  %v22 = vld [vmem:[%s0 + $0x8] sm:$0xff]
  %v23 = vld [vmem:[%s0 + $0x10] sm:$0xff]
  %v24 = vld [vmem:[%s0 + $0x18] sm:$0xff]
  %v25 = vld [vmem:[%s0 + $0x20] sm:$0xff]
  %v26 = vld [vmem:[%s0 + $0x28] sm:$0xff]
  %v27 = vld [vmem:[%s0 + $0x30] sm:$0xff]
  %v28 = vld [vmem:[%s0 + $0x38] sm:$0xff]
  %v29 = vpack.c.bf16 %v22, %v21
  %v30 = vpack.c.bf16 %v24, %v23
  %v31 = vpack.c.bf16 %v26, %v25
  %v32 = vpack.c.bf16 %v28, %v27
  %v33 = vld [vmem:[%s1] sm:$0xf]
  %v34 = vld [vmem:[%s1 + $0x4] sm:$0xf]
  %v35 = vld [vmem:[%s1 + $0x8] sm:$0xf]
  %v36 = vld [vmem:[%s1 + $0xc] sm:$0xf]
  %v37 = vld [vmem:[%s1 + $0x10] sm:$0xf]
  %v38 = vld [vmem:[%s1 + $0x14] sm:$0xf]
  %v39 = vld [vmem:[%s1 + $0x18] sm:$0xf]
  %v40 = vld [vmem:[%s1 + $0x1c] sm:$0xf]
  %v41 = vld [vmem:[%s1 + $0x20] sm:$0xf]
  %v42 = vld [vmem:[%s1 + $0x24] sm:$0xf]
  %v43 = vld [vmem:[%s1 + $0x28] sm:$0xf]
  %v44 = vld [vmem:[%s1 + $0x2c] sm:$0xf]
  %v45 = vld [vmem:[%s1 + $0x30] sm:$0xf]
  %v46 = vld [vmem:[%s1 + $0x34] sm:$0xf]
  %v47 = vld [vmem:[%s1 + $0x38] sm:$0xf]
  %v48 = vld [vmem:[%s1 + $0x3c] sm:$0xf]
  %v49 = vld [vmem:[%s2] sm:$0x1]
  %v51 = vlaneseq
  %v52 = vshrl.u32 %v51, 7
  %v53 = vsub.s32 0, %v52
  %v54 = vrot.slane %v49, %v53
  %v72 = vunpack.c.l.b16 %v33
  %v73 = vunpack.c.l.b16 %v34
  %v74 = vunpack.c.l.b16 %v35
  %v75 = vunpack.c.l.b16 %v36
  %v76 = vunpack.c.l.b16 %v37
  %v77 = vunpack.c.l.b16 %v38
  %v78 = vunpack.c.l.b16 %v39
  %v79 = vunpack.c.l.b16 %v40
  %v80 = vunpack.c.l.b16 %v41
  %v81 = vunpack.c.l.b16 %v42
  %v82 = vunpack.c.l.b16 %v43
  %v83 = vunpack.c.l.b16 %v44
  %v84 = vunpack.c.l.b16 %v45
  %v85 = vunpack.c.l.b16 %v46
  %v86 = vunpack.c.l.b16 %v47
  %v87 = vunpack.c.l.b16 %v48
  %v88 = vpack.c.b16 %v73, %v72
  %v89 = vpack.c.b16 %v75, %v74
  %v90 = vpack.c.b16 %v77, %v76
  %v91 = vpack.c.b16 %v79, %v78
  %v92 = vpack.c.b16 %v81, %v80
  %v93 = vpack.c.b16 %v83, %v82
  %v94 = vpack.c.b16 %v85, %v84
  %v95 = vpack.c.b16 %v87, %v86
  %104 = vmatprep.subr.bf16.mxu0 0
  %105 = vmatpush1.bf16.msra.mxu0 %v95
  %106 = vmatprep.subr.bf16.mxu0 0
  %107 = vmatpush1.bf16.msra.mxu0 %v94
  %108 = vmatprep.subr.bf16.mxu0 0
  %109 = vmatpush1.bf16.msra.mxu0 %v93
  %110 = vmatprep.subr.bf16.mxu0 0
  %111 = vmatpush1.bf16.msra.mxu0 %v92
  %112 = vmatprep.subr.bf16.mxu0 0
  %113 = vmatpush1.bf16.msra.mxu0 %v91
  %114 = vmatprep.subr.bf16.mxu0 0
  %115 = vmatpush1.bf16.msra.mxu0 %v90
  %116 = vmatprep.subr.bf16.mxu0 0
  %117 = vmatpush1.bf16.msra.mxu0 %v89
  %118 = vmatprep.subr.bf16.mxu0 0
  %119 = vmatpush1.bf16.msra.mxu0 %v88
  %120 = vmatprep.subr.bf16.mxu0 0
  %121 = vmatpush2.bf16.msra.mxu0 0
  %122 = vmatprep.subr.bf16.mxu0 0
  %123 = vmatpush2.bf16.msra.mxu0 0
  %124 = vmatprep.subr.bf16.mxu0 0
  %125 = vmatpush2.bf16.msra.mxu0 0
  %126 = vmatprep.subr.bf16.mxu0 0
  %127 = vmatpush2.bf16.msra.mxu0 0
  %128 = vmatprep.subr.bf16.mxu0 0
  %129 = vmatpush2.bf16.msra.mxu0 0
  %130 = vmatprep.subr.bf16.mxu0 0
  %131 = vmatpush2.bf16.msra.mxu0 0
  %132 = vmatprep.subr.bf16.mxu0 0
  %133 = vmatpush2.bf16.msra.mxu0 0
  %134 = vmatprep.subr.bf16.mxu0 0
  %135 = vmatpush2.bf16.msra.mxu0 0
  %136 = vmatprep.mubr.bf16.mxu0 0
  %137 = vmatmul.mubr.bf16.gmra.mxu0 %v29
  %v138 = vpop.f32.mrf.mxu0
  %v139 = vadd.f32 %v54, %v138
  %v140 = vpop.f32.mrf.mxu0
  %v141 = vpop.f32.mrf.mxu0
  %v142 = vadd.f32 %v54, %v141
  %v143 = vpop.f32.mrf.mxu0
  %144 = vmatprep.mubr.bf16.mxu0 0
  %145 = vmatmul.mubr.bf16.gmra.mxu0 %v30
  %v146 = vpop.f32.mrf.mxu0
  %v147 = vadd.f32 %v54, %v146
  %v148 = vpop.f32.mrf.mxu0
  %v149 = vpop.f32.mrf.mxu0
  %v150 = vadd.f32 %v54, %v149
  %v151 = vpop.f32.mrf.mxu0
  %152 = vmatprep.mubr.bf16.mxu0 0
  %153 = vmatmul.mubr.bf16.gmra.mxu0 %v31
  %v154 = vpop.f32.mrf.mxu0
  %v155 = vadd.f32 %v54, %v154
  %v156 = vpop.f32.mrf.mxu0
  %v157 = vpop.f32.mrf.mxu0
  %v158 = vadd.f32 %v54, %v157
  %v159 = vpop.f32.mrf.mxu0
  %160 = vmatprep.mubr.bf16.mxu0 0
  %161 = vmatmul.mubr.bf16.gmra.mxu0 %v32
  %v162 = vpop.f32.mrf.mxu0
  %v163 = vadd.f32 %v54, %v162
  %v164 = vpop.f32.mrf.mxu0
  %v165 = vpop.f32.mrf.mxu0
  %v166 = vadd.f32 %v54, %v165
  %v167 = vpop.f32.mrf.mxu0
  %168 = vdwg.mxu0
  %v169 = vmax.f32 %v139, 0.0
  %v170 = vmax.f32 %v142, 0.0
  %v171 = vmax.f32 %v147, 0.0
  %v172 = vmax.f32 %v150, 0.0
  %v173 = vmax.f32 %v155, 0.0
  %v174 = vmax.f32 %v158, 0.0
  %v175 = vmax.f32 %v163, 0.0
  %v176 = vmax.f32 %v166, 0.0
  %v177 = vpack.c.bf16 %v170, %v169
  %v178 = vpack.c.bf16 %v172, %v171
  %v179 = vpack.c.bf16 %v174, %v173
  %v180 = vpack.c.bf16 %v176, %v175
  %v181 = vld [vmem:[%s3] sm:$0xf]
  %v182 = vld [vmem:[%s3 + $0x4] sm:$0xf]
  %v183 = vld [vmem:[%s3 + $0x8] sm:$0xf]
  %v184 = vld [vmem:[%s3 + $0xc] sm:$0xf]
  %v185 = vld [vmem:[%s3 + $0x10] sm:$0xf]
  %v186 = vld [vmem:[%s3 + $0x14] sm:$0xf]
  %v187 = vld [vmem:[%s3 + $0x18] sm:$0xf]
  %v188 = vld [vmem:[%s3 + $0x1c] sm:$0xf]
  %v189 = vld [vmem:[%s4] sm:$0x1]
  %v191 = vlaneseq
  %v192 = vshrl.u32 %v191, 7
  %v193 = vsub.s32 0, %v192
  %v194 = vrot.slane %v189, %v193
  %v204 = vunpack.c.l.b16 %v181
  %v205 = vunpack.c.l.b16 %v182
  %v206 = vunpack.c.l.b16 %v183
  %v207 = vunpack.c.l.b16 %v184
  %v208 = vunpack.c.l.b16 %v185
  %v209 = vunpack.c.l.b16 %v186
  %v210 = vunpack.c.l.b16 %v187
  %v211 = vunpack.c.l.b16 %v188
  %v212 = vpack.c.b16 %v205, %v204
  %v213 = vpack.c.b16 %v207, %v206
  %v214 = vpack.c.b16 %v209, %v208
  %v215 = vpack.c.b16 %v211, %v210
  %vm220 = vcmask 523264
  %v222 = vsel %vm220, %v177, 0
  %v225 = vsel %vm220, %v178, 0
  %v228 = vsel %vm220, %v179, 0
  %v231 = vsel %vm220, %v180, 0
  %233 = vmatprep.subr.bf16.mxu0 0
  %234 = vmatpush1.bf16.msra.mxu0 0
  %235 = vmatprep.subr.bf16.mxu0 0
  %236 = vmatpush1.bf16.msra.mxu0 0
  %237 = vmatprep.subr.bf16.mxu0 0
  %238 = vmatpush1.bf16.msra.mxu0 0
  %239 = vmatprep.subr.bf16.mxu0 0
  %240 = vmatpush1.bf16.msra.mxu0 0
  %241 = vmatprep.subr.bf16.mxu0 0
  %242 = vmatpush1.bf16.msra.mxu0 %v215
  %243 = vmatprep.subr.bf16.mxu0 0
  %244 = vmatpush1.bf16.msra.mxu0 %v214
  %245 = vmatprep.subr.bf16.mxu0 0
  %246 = vmatpush1.bf16.msra.mxu0 %v213
  %247 = vmatprep.subr.bf16.mxu0 0
  %248 = vmatpush1.bf16.msra.mxu0 %v212
  %249 = vmatprep.subr.bf16.mxu0 0
  %250 = vmatpush2.bf16.msra.mxu0 0
  %251 = vmatprep.subr.bf16.mxu0 0
  %252 = vmatpush2.bf16.msra.mxu0 0
  %253 = vmatprep.subr.bf16.mxu0 0
  %254 = vmatpush2.bf16.msra.mxu0 0
  %255 = vmatprep.subr.bf16.mxu0 0
  %256 = vmatpush2.bf16.msra.mxu0 0
  %257 = vmatprep.subr.bf16.mxu0 0
  %258 = vmatpush2.bf16.msra.mxu0 0
  %259 = vmatprep.subr.bf16.mxu0 0
  %260 = vmatpush2.bf16.msra.mxu0 0
  %261 = vmatprep.subr.bf16.mxu0 0
  %262 = vmatpush2.bf16.msra.mxu0 0
  %263 = vmatprep.subr.bf16.mxu0 0
  %264 = vmatpush2.bf16.msra.mxu0 0
  %265 = vmatprep.mubr.bf16.mxu0 0
  %266 = vmatmul.mubr.bf16.gmra.mxu0 %v222
  %v267 = vpop.f32.mrf.mxu0
  %v268 = vadd.f32 %v194, %v267
  %v269 = vpop.f32.mrf.mxu0
  %v270 = vpop.f32.mrf.mxu0
  %v271 = vadd.f32 %v194, %v270
  %v272 = vpop.f32.mrf.mxu0
  %273 = vmatprep.mubr.bf16.mxu0 0
  %274 = vmatmul.mubr.bf16.gmra.mxu0 %v225
  %v275 = vpop.f32.mrf.mxu0
  %v276 = vadd.f32 %v194, %v275
  %v277 = vpop.f32.mrf.mxu0
  %v278 = vpop.f32.mrf.mxu0
  %v279 = vadd.f32 %v194, %v278
  %v280 = vpop.f32.mrf.mxu0
  %281 = vmatprep.mubr.bf16.mxu0 0
  %282 = vmatmul.mubr.bf16.gmra.mxu0 %v228
  %v283 = vpop.f32.mrf.mxu0
  %v284 = vadd.f32 %v194, %v283
  %v285 = vpop.f32.mrf.mxu0
  %v286 = vpop.f32.mrf.mxu0
  %v287 = vadd.f32 %v194, %v286
  %v288 = vpop.f32.mrf.mxu0
  %289 = vmatprep.mubr.bf16.mxu0 0
  %290 = vmatmul.mubr.bf16.gmra.mxu0 %v231
  %v291 = vpop.f32.mrf.mxu0
  %v292 = vadd.f32 %v194, %v291
  %v293 = vpop.f32.mrf.mxu0
  %v294 = vpop.f32.mrf.mxu0
  %v295 = vadd.f32 %v194, %v294
  %v296 = vpop.f32.mrf.mxu0
  %297 = vdwg.mxu0
  %298 = vst [vmem:[%s5] sm:$0xff] %v268
  %299 = vst [vmem:[%s5 + $0x8] sm:$0xff] %v271
  %300 = vst [vmem:[%s5 + $0x10] sm:$0xff] %v276
  %301 = vst [vmem:[%s5 + $0x18] sm:$0xff] %v279
  %302 = vst [vmem:[%s5 + $0x20] sm:$0xff] %v284
  %303 = vst [vmem:[%s5 + $0x28] sm:$0xff] %v287
  %304 = vst [vmem:[%s5 + $0x30] sm:$0xff] %v292
  %305 = vst [vmem:[%s5 + $0x38] sm:$0xff] %v295
  // Predicated region
  $region22: #{ner_lstm_bidi_forward.13} parent=0 // pred_check
    _
  $region23: #{ner_lstm_bidi_forward.13} parent=0 // pred_check_branch
    %307 = sbr.rel (0) target = $region25
  $region24: #{ner_lstm_bidi_forward.13} parent=0 // pred_region
    _
  $region25: #{ner_lstm_bidi_forward.13} parent=0 // pred_fallthru
    _
  // Predicated region
  $region26: #{ner_lstm_bidi_forward.13} parent=0 // pred_check
    _
  $region27: #{ner_lstm_bidi_forward.13} parent=0 // pred_check_branch
    %309 = sbr.rel (0) target = $region29
  $region28: #{ner_lstm_bidi_forward.13} parent=0 // pred_region
    _
  $region29: #{ner_lstm_bidi_forward.13} parent=0 // pred_fallthru
    _

// kernel: ner_lstm_bidi_forward.9
$region0: #{ner_lstm_bidi_forward.9}
  #allocation0 [shape = 'u32[]', space=smem, size = 0x4, offset = 0x4, fixed_abs, tag = 'smem constant byte address 0x4 - core index']
  #allocation1 [shape = 'u32[144,128]{1,0:T(1,128)}', space=vmem, size = 0x12000, scoped, tag = 'internal scratch']
  #allocation2 [shape = 'f32[8,128]{1,0:T(8,128)}', space=vmem, size = 0x1000, scoped, tag = 'scratch operand']
  #allocation3 [shape = 'f32[8,128]{1,0:T(8,128)}', space=vmem, size = 0x1000, scoped, tag = 'scratch operand']
  #allocation4 [shape = 'f32[8,128]{1,0:T(8,128)}', space=vmem, size = 0x1000, scoped, tag = 'scratch operand']
  #allocation5 [shape = 'f32[8,128]{1,0:T(8,128)}', space=vmem, size = 0x1000, scoped, tag = 'scratch operand']
  %s0 = inlined_call_operand.vmem [shape: bf16[8,8,1024], index: 0, kind: input, shape index: {}]
  %s1 = inlined_call_operand.vmem [shape: bf16[128,512], index: 1, kind: input, shape index: {}]
  %s2 = inlined_call_operand.vmem [shape: bf16[128,512], index: 2, kind: input, shape index: {}]
  %s3 = inlined_call_operand.vmem [shape: s32[8,1], index: 3, kind: input, shape index: {}]
  %s4 = inlined_call_operand.vmem [shape: f32[8,8,256], index: 4, kind: output, shape index: {}]
  %s5 = sld [smem:[#allocation0]]
  $region26: #{ner_lstm_bidi_forward.9} parent=0
    _
  %s7 = ssub.s32 1, %s5
  %s8 = scalar_select 0, %s7, %s5
  // Predicated region
  $region2: #{ner_lstm_bidi_forward.9} parent=0 // pred_check
    _
  $region3: #{ner_lstm_bidi_forward.9} parent=0 // pred_check_branch
    %10 = sbr.rel (0) target = $region5
  $region4: #{ner_lstm_bidi_forward.9} parent=0 // pred_region
    _
  $region5: #{ner_lstm_bidi_forward.9} parent=0 // pred_fallthru
    _
  // Predicated region
  $region6: #{ner_lstm_bidi_forward.9} parent=0 // pred_check
    _
  $region7: #{ner_lstm_bidi_forward.9} parent=0 // pred_check_branch
    %12 = sbr.rel (0) target = $region9
  $region8: #{ner_lstm_bidi_forward.9} parent=0 // pred_region
    _
  $region9: #{ner_lstm_bidi_forward.9} parent=0 // pred_fallthru
    _
  // Predicated region
  $region10: #{ner_lstm_bidi_forward.9} parent=0 // pred_check
    _
  $region11: #{ner_lstm_bidi_forward.9} parent=0 // pred_check_branch
    %14 = sbr.rel (0) target = $region13
  $region12: #{ner_lstm_bidi_forward.9} parent=0 // pred_region
    _
  $region13: #{ner_lstm_bidi_forward.9} parent=0 // pred_fallthru
    _
  // Predicated region
  $region14: #{ner_lstm_bidi_forward.9} parent=0 // pred_check
    _
  $region15: #{ner_lstm_bidi_forward.9} parent=0 // pred_check_branch
    %16 = sbr.rel (0) target = $region17
  $region16: #{ner_lstm_bidi_forward.9} parent=0 // pred_region
    _
  $region17: #{ner_lstm_bidi_forward.9} parent=0 // pred_fallthru
    _
  %18 = vst [vmem:[#allocation2] sm:$0xff] 0.0
  %19 = vst [vmem:[#allocation3] sm:$0xff] 0.0
  %20 = vst [vmem:[#allocation4] sm:$0xff] 0.0
  %21 = vst [vmem:[#allocation5] sm:$0xff] 0.0
  %v22 = vld [vmem:[%s3] sm:$0xff]
  %v23 = vld [vmem:[%s0] sm:$0xff]
  %v24 = vld [vmem:[%s0 + $0x8] sm:$0xff]
  %v25 = vld [vmem:[#allocation2] sm:$0xff]
  %v26 = vld [vmem:[#allocation3] sm:$0xff]
  %v27 = vunpack.c.l.bf16 %v23
  %v28 = vunpack.c.h.bf16 %v23
  %v29 = vunpack.c.l.bf16 %v24
  %v30 = vunpack.c.h.bf16 %v24
  %v31 = vpack.c.bf16 %v25, %v25
  %v32 = vld [vmem:[%s1] sm:$0xff]
  %v33 = vld [vmem:[%s1 + $0x8] sm:$0xff]
  %v34 = vld [vmem:[%s1 + $0x10] sm:$0xff]
  %v35 = vld [vmem:[%s1 + $0x18] sm:$0xff]
  %v36 = vld [vmem:[%s1 + $0x20] sm:$0xff]
  %v37 = vld [vmem:[%s1 + $0x28] sm:$0xff]
  %v38 = vld [vmem:[%s1 + $0x30] sm:$0xff]
  %v39 = vld [vmem:[%s1 + $0x38] sm:$0xff]
  %v40 = vld [vmem:[%s1 + $0x40] sm:$0xff]
  %v41 = vld [vmem:[%s1 + $0x48] sm:$0xff]
  %v42 = vld [vmem:[%s1 + $0x50] sm:$0xff]
  %v43 = vld [vmem:[%s1 + $0x58] sm:$0xff]
  %v44 = vld [vmem:[%s1 + $0x60] sm:$0xff]
  %v45 = vld [vmem:[%s1 + $0x68] sm:$0xff]
  %v46 = vld [vmem:[%s1 + $0x70] sm:$0xff]
  %v47 = vld [vmem:[%s1 + $0x78] sm:$0xff]
  %v48 = vld [vmem:[%s1 + $0x80] sm:$0xff]
  %v49 = vld [vmem:[%s1 + $0x88] sm:$0xff]
  %v50 = vld [vmem:[%s1 + $0x90] sm:$0xff]
  %v51 = vld [vmem:[%s1 + $0x98] sm:$0xff]
  %v52 = vld [vmem:[%s1 + $0xa0] sm:$0xff]
  %v53 = vld [vmem:[%s1 + $0xa8] sm:$0xff]
  %v54 = vld [vmem:[%s1 + $0xb0] sm:$0xff]
  %v55 = vld [vmem:[%s1 + $0xb8] sm:$0xff]
  %v56 = vld [vmem:[%s1 + $0xc0] sm:$0xff]
  %v57 = vld [vmem:[%s1 + $0xc8] sm:$0xff]
  %v58 = vld [vmem:[%s1 + $0xd0] sm:$0xff]
  %v59 = vld [vmem:[%s1 + $0xd8] sm:$0xff]
  %v60 = vld [vmem:[%s1 + $0xe0] sm:$0xff]
  %v61 = vld [vmem:[%s1 + $0xe8] sm:$0xff]
  %v62 = vld [vmem:[%s1 + $0xf0] sm:$0xff]
  %v63 = vld [vmem:[%s1 + $0xf8] sm:$0xff]
  %v96 = vunpack.c.l.b16 %v32
  %v97 = vunpack.c.h.b16 %v32
  %v98 = vunpack.c.l.b16 %v33
  %v99 = vunpack.c.h.b16 %v33
  %v100 = vunpack.c.l.b16 %v34
  %v101 = vunpack.c.h.b16 %v34
  %v102 = vunpack.c.l.b16 %v35
  %v103 = vunpack.c.h.b16 %v35
  %v104 = vunpack.c.l.b16 %v36
  %v105 = vunpack.c.h.b16 %v36
  %v106 = vunpack.c.l.b16 %v37
  %v107 = vunpack.c.h.b16 %v37
  %v108 = vunpack.c.l.b16 %v38
  %v109 = vunpack.c.h.b16 %v38
  %v110 = vunpack.c.l.b16 %v39
  %v111 = vunpack.c.h.b16 %v39
  %v112 = vunpack.c.l.b16 %v40
  %v113 = vunpack.c.h.b16 %v40
  %v114 = vunpack.c.l.b16 %v41
  %v115 = vunpack.c.h.b16 %v41
  %v116 = vunpack.c.l.b16 %v42
  %v117 = vunpack.c.h.b16 %v42
  %v118 = vunpack.c.l.b16 %v43
  %v119 = vunpack.c.h.b16 %v43
  %v120 = vunpack.c.l.b16 %v44
  %v121 = vunpack.c.h.b16 %v44
  %v122 = vunpack.c.l.b16 %v45
  %v123 = vunpack.c.h.b16 %v45
  %v124 = vunpack.c.l.b16 %v46
  %v125 = vunpack.c.h.b16 %v46
  %v126 = vunpack.c.l.b16 %v47
  %v127 = vunpack.c.h.b16 %v47
  %v128 = vunpack.c.l.b16 %v48
  %v129 = vunpack.c.h.b16 %v48
  %v130 = vunpack.c.l.b16 %v49
  %v131 = vunpack.c.h.b16 %v49
  %v132 = vunpack.c.l.b16 %v50
  %v133 = vunpack.c.h.b16 %v50
  %v134 = vunpack.c.l.b16 %v51
  %v135 = vunpack.c.h.b16 %v51
  %v136 = vunpack.c.l.b16 %v52
  %v137 = vunpack.c.h.b16 %v52
  %v138 = vunpack.c.l.b16 %v53
  %v139 = vunpack.c.h.b16 %v53
  %v140 = vunpack.c.l.b16 %v54
  %v141 = vunpack.c.h.b16 %v54
  %v142 = vunpack.c.l.b16 %v55
  %v143 = vunpack.c.h.b16 %v55
  %v144 = vunpack.c.l.b16 %v56
  %v145 = vunpack.c.h.b16 %v56
  %v146 = vunpack.c.l.b16 %v57
  %v147 = vunpack.c.h.b16 %v57
  %v148 = vunpack.c.l.b16 %v58
  %v149 = vunpack.c.h.b16 %v58
  %v150 = vunpack.c.l.b16 %v59
  %v151 = vunpack.c.h.b16 %v59
  %v152 = vunpack.c.l.b16 %v60
  %v153 = vunpack.c.h.b16 %v60
  %v154 = vunpack.c.l.b16 %v61
  %v155 = vunpack.c.h.b16 %v61
  %v156 = vunpack.c.l.b16 %v62
  %v157 = vunpack.c.h.b16 %v62
  %v158 = vunpack.c.l.b16 %v63
  %v159 = vunpack.c.h.b16 %v63
  %v160 = vpack.c.b16 %v100, %v96
  %v161 = vpack.c.b16 %v101, %v97
  %v162 = vpack.c.b16 %v102, %v98
  %v163 = vpack.c.b16 %v103, %v99
  %v164 = vpack.c.b16 %v108, %v104
  %v165 = vpack.c.b16 %v109, %v105
  %v166 = vpack.c.b16 %v110, %v106
  %v167 = vpack.c.b16 %v111, %v107
  %v168 = vpack.c.b16 %v116, %v112
  %v169 = vpack.c.b16 %v117, %v113
  %v170 = vpack.c.b16 %v118, %v114
  %v171 = vpack.c.b16 %v119, %v115
  %v172 = vpack.c.b16 %v124, %v120
  %v173 = vpack.c.b16 %v125, %v121
  %v174 = vpack.c.b16 %v126, %v122
  %v175 = vpack.c.b16 %v127, %v123
  %v176 = vpack.c.b16 %v132, %v128
  %v177 = vpack.c.b16 %v133, %v129
  %v178 = vpack.c.b16 %v134, %v130
  %v179 = vpack.c.b16 %v135, %v131
  %v180 = vpack.c.b16 %v140, %v136
  %v181 = vpack.c.b16 %v141, %v137
  %v182 = vpack.c.b16 %v142, %v138
  %v183 = vpack.c.b16 %v143, %v139
  %v184 = vpack.c.b16 %v148, %v144
  %v185 = vpack.c.b16 %v149, %v145
  %v186 = vpack.c.b16 %v150, %v146
  %v187 = vpack.c.b16 %v151, %v147
  %v188 = vpack.c.b16 %v156, %v152
  %v189 = vpack.c.b16 %v157, %v153
  %v190 = vpack.c.b16 %v158, %v154
  %v191 = vpack.c.b16 %v159, %v155
  %224 = vmatprep.subr.bf16.mxu0 %v189
  %225 = vmatpush1.bf16.msra.mxu0 %v188
  %226 = vmatprep.subr.bf16.mxu0 %v185
  %227 = vmatpush1.bf16.msra.mxu0 %v184
  %228 = vmatprep.subr.bf16.mxu0 %v181
  %229 = vmatpush1.bf16.msra.mxu0 %v180
  %230 = vmatprep.subr.bf16.mxu0 %v177
  %231 = vmatpush1.bf16.msra.mxu0 %v176
  %232 = vmatprep.subr.bf16.mxu0 %v173
  %233 = vmatpush1.bf16.msra.mxu0 %v172
  %234 = vmatprep.subr.bf16.mxu0 %v169
  %235 = vmatpush1.bf16.msra.mxu0 %v168
  %236 = vmatprep.subr.bf16.mxu0 %v165
  %237 = vmatpush1.bf16.msra.mxu0 %v164
  %238 = vmatprep.subr.bf16.mxu0 %v161
  %239 = vmatpush1.bf16.msra.mxu0 %v160
  %240 = vmatprep.subr.bf16.mxu0 0
  %241 = vmatpush2.bf16.msra.mxu0 0
  %242 = vmatprep.subr.bf16.mxu0 0
  %243 = vmatpush2.bf16.msra.mxu0 0
  %244 = vmatprep.subr.bf16.mxu0 0
  %245 = vmatpush2.bf16.msra.mxu0 0
  %246 = vmatprep.subr.bf16.mxu0 0
  %247 = vmatpush2.bf16.msra.mxu0 0
  %248 = vmatprep.subr.bf16.mxu0 0
  %249 = vmatpush2.bf16.msra.mxu0 0
  %250 = vmatprep.subr.bf16.mxu0 0
  %251 = vmatpush2.bf16.msra.mxu0 0
  %252 = vmatprep.subr.bf16.mxu0 0
  %253 = vmatpush2.bf16.msra.mxu0 0
  %254 = vmatprep.subr.bf16.mxu0 0
  %255 = vmatpush2.bf16.msra.mxu0 0
  %256 = vmatprep.mubr.bf16.mxu0 0
  %257 = vmatmul.mubr.bf16.gmra.mxu0 %v31
  %v258 = vpop.f32.mrf.mxu0
  %v259 = vadd.f32 0.0, %v258
  %v260 = vpop.f32.mrf.mxu0
  %v261 = vadd.f32 0.0, %v260
  %v262 = vpop.f32.mrf.mxu0
  %v263 = vpop.f32.mrf.mxu0
  %264 = vdwg.mxu0
  %265 = vmatprep.subr.bf16.mxu0 %v191
  %266 = vmatpush1.bf16.msra.mxu0 %v190
  %267 = vmatprep.subr.bf16.mxu0 %v187
  %268 = vmatpush1.bf16.msra.mxu0 %v186
  %269 = vmatprep.subr.bf16.mxu0 %v183
  %270 = vmatpush1.bf16.msra.mxu0 %v182
  %271 = vmatprep.subr.bf16.mxu0 %v179
  %272 = vmatpush1.bf16.msra.mxu0 %v178
  %273 = vmatprep.subr.bf16.mxu0 %v175
  %274 = vmatpush1.bf16.msra.mxu0 %v174
  %275 = vmatprep.subr.bf16.mxu0 %v171
  %276 = vmatpush1.bf16.msra.mxu0 %v170
  %277 = vmatprep.subr.bf16.mxu0 %v167
  %278 = vmatpush1.bf16.msra.mxu0 %v166
  %279 = vmatprep.subr.bf16.mxu0 %v163
  %280 = vmatpush1.bf16.msra.mxu0 %v162
  %281 = vmatprep.subr.bf16.mxu0 0
  %282 = vmatpush2.bf16.msra.mxu0 0
  %283 = vmatprep.subr.bf16.mxu0 0
  %284 = vmatpush2.bf16.msra.mxu0 0
  %285 = vmatprep.subr.bf16.mxu0 0
  %286 = vmatpush2.bf16.msra.mxu0 0
  %287 = vmatprep.subr.bf16.mxu0 0
  %288 = vmatpush2.bf16.msra.mxu0 0
  %289 = vmatprep.subr.bf16.mxu0 0
  %290 = vmatpush2.bf16.msra.mxu0 0
  %291 = vmatprep.subr.bf16.mxu0 0
  %292 = vmatpush2.bf16.msra.mxu0 0
  %293 = vmatprep.subr.bf16.mxu0 0
  %294 = vmatpush2.bf16.msra.mxu0 0
  %295 = vmatprep.subr.bf16.mxu0 0
  %296 = vmatpush2.bf16.msra.mxu0 0
  %297 = vmatprep.mubr.bf16.mxu0 0
  %298 = vmatmul.mubr.bf16.gmra.mxu0 %v31
  %v299 = vpop.f32.mrf.mxu0
  %v300 = vadd.f32 0.0, %v299
  %v301 = vpop.f32.mrf.mxu0
  %v302 = vadd.f32 0.0, %v301
  %v303 = vpop.f32.mrf.mxu0
  %v304 = vpop.f32.mrf.mxu0
  %305 = vdwg.mxu0
  %v306 = vadd.f32 %v27, %v259
  %v307 = vadd.f32 %v28, %v261
  %v308 = vadd.f32 %v29, %v300
  %v309 = vadd.f32 %v30, %v302
  %v310 = vxor.u32 %v306, 2147483648
  %v311 = vxor.u32 %v307, 2147483648
  %v312 = vxor.u32 %v308, 2147483648
  %v313 = vmul.f32 %v310, 1.442695
  %v314 = vpow.pop %v313
  %v315 = vmul.f32 %v311, 1.442695
  %v316 = vpow.pop %v315
  %v317 = vmul.f32 %v312, 1.442695
  %v318 = vpow.pop %v317
  %v319 = vadd.f32 %v314, 1.0
  %v320 = vadd.f32 %v316, 1.0
  %v321 = vadd.f32 %v318, 1.0
  %v322 = vrcp.pop %v319
  %v323 = vmul.f32 1.0, %v322
  %v324 = vrcp.pop %v320
  %v325 = vmul.f32 1.0, %v324
  %v326 = vrcp.pop %v321
  %v327 = vmul.f32 1.0, %v326
  %v328 = vtanh.pop %v309
  %v329 = vmul.f32 %v325, %v26
  %v330 = vmul.f32 %v323, %v328
  %v331 = vadd.f32 %v329, %v330
  %v332 = vtanh.pop %v331
  %v333 = vmul.f32 %v327, %v332
  %vm334 = vcmp.gt.s32.totalorder %v22, 0
  %v335 = vsel %vm334, 1, 0
  %336 = vset.pattern.permute.xlu0 0
  %337 = vperm.xlu0 %336, %v335
  %v338 = vpop.permute.xlu0 %337
  %vm339 = vcmp.eq.s32.totalorder %v338, 1
  %v340 = vsel %vm339, %v333, %v25
  %v341 = vsel %vm339, %v331, %v26
  %v342 = vsel %vm339, %v333, 0.0
  %343 = vst [vmem:[#allocation2] sm:$0xff] %v340
  %344 = vst [vmem:[#allocation3] sm:$0xff] %v341
  %345 = vst [vmem:[%s4] sm:$0xff] %v342
  %s346 = scalar_lea.vmem %s0, 224
  %v347 = vld [vmem:[%s346 + $0x10] sm:$0xff]
  %v348 = vld [vmem:[%s346 + $0x18] sm:$0xff]
  %v349 = vld [vmem:[#allocation4] sm:$0xff]
  %v350 = vld [vmem:[#allocation5] sm:$0xff]
  %v351 = vunpack.c.l.bf16 %v347
  %v352 = vunpack.c.h.bf16 %v347
  %v353 = vunpack.c.l.bf16 %v348
  %v354 = vunpack.c.h.bf16 %v348
  %v355 = vpack.c.bf16 %v349, %v349
  %v356 = vld [vmem:[%s2] sm:$0xff]
  %v357 = vld [vmem:[%s2 + $0x8] sm:$0xff]
  %v358 = vld [vmem:[%s2 + $0x10] sm:$0xff]
  %v359 = vld [vmem:[%s2 + $0x18] sm:$0xff]
  %v360 = vld [vmem:[%s2 + $0x20] sm:$0xff]
  %v361 = vld [vmem:[%s2 + $0x28] sm:$0xff]
  %v362 = vld [vmem:[%s2 + $0x30] sm:$0xff]
  %v363 = vld [vmem:[%s2 + $0x38] sm:$0xff]
  %v364 = vld [vmem:[%s2 + $0x40] sm:$0xff]
  %v365 = vld [vmem:[%s2 + $0x48] sm:$0xff]
  %v366 = vld [vmem:[%s2 + $0x50] sm:$0xff]
  %v367 = vld [vmem:[%s2 + $0x58] sm:$0xff]
  %v368 = vld [vmem:[%s2 + $0x60] sm:$0xff]
  %v369 = vld [vmem:[%s2 + $0x68] sm:$0xff]
  %v370 = vld [vmem:[%s2 + $0x70] sm:$0xff]
  %v371 = vld [vmem:[%s2 + $0x78] sm:$0xff]
  %v372 = vld [vmem:[%s2 + $0x80] sm:$0xff]
  %v373 = vld [vmem:[%s2 + $0x88] sm:$0xff]
  %v374 = vld [vmem:[%s2 + $0x90] sm:$0xff]
  %v375 = vld [vmem:[%s2 + $0x98] sm:$0xff]
  %v376 = vld [vmem:[%s2 + $0xa0] sm:$0xff]
  %v377 = vld [vmem:[%s2 + $0xa8] sm:$0xff]
  %v378 = vld [vmem:[%s2 + $0xb0] sm:$0xff]
  %v379 = vld [vmem:[%s2 + $0xb8] sm:$0xff]
  %v380 = vld [vmem:[%s2 + $0xc0] sm:$0xff]
  %v381 = vld [vmem:[%s2 + $0xc8] sm:$0xff]
  %v382 = vld [vmem:[%s2 + $0xd0] sm:$0xff]
  %v383 = vld [vmem:[%s2 + $0xd8] sm:$0xff]
  %v384 = vld [vmem:[%s2 + $0xe0] sm:$0xff]
  %v385 = vld [vmem:[%s2 + $0xe8] sm:$0xff]
  %v386 = vld [vmem:[%s2 + $0xf0] sm:$0xff]
  %v387 = vld [vmem:[%s2 + $0xf8] sm:$0xff]
  %v420 = vunpack.c.l.b16 %v356
  %v421 = vunpack.c.h.b16 %v356
  %v422 = vunpack.c.l.b16 %v357
  %v423 = vunpack.c.h.b16 %v357
  %v424 = vunpack.c.l.b16 %v358
  %v425 = vunpack.c.h.b16 %v358
  %v426 = vunpack.c.l.b16 %v359
  %v427 = vunpack.c.h.b16 %v359
  %v428 = vunpack.c.l.b16 %v360
  %v429 = vunpack.c.h.b16 %v360
  %v430 = vunpack.c.l.b16 %v361
  %v431 = vunpack.c.h.b16 %v361
  %v432 = vunpack.c.l.b16 %v362
  %v433 = vunpack.c.h.b16 %v362
  %v434 = vunpack.c.l.b16 %v363
  %v435 = vunpack.c.h.b16 %v363
  %v436 = vunpack.c.l.b16 %v364
  %v437 = vunpack.c.h.b16 %v364
  %v438 = vunpack.c.l.b16 %v365
  %v439 = vunpack.c.h.b16 %v365
  %v440 = vunpack.c.l.b16 %v366
  %v441 = vunpack.c.h.b16 %v366
  %v442 = vunpack.c.l.b16 %v367
  %v443 = vunpack.c.h.b16 %v367
  %v444 = vunpack.c.l.b16 %v368
  %v445 = vunpack.c.h.b16 %v368
  %v446 = vunpack.c.l.b16 %v369
  %v447 = vunpack.c.h.b16 %v369
  %v448 = vunpack.c.l.b16 %v370
  %v449 = vunpack.c.h.b16 %v370
  %v450 = vunpack.c.l.b16 %v371
  %v451 = vunpack.c.h.b16 %v371
  %v452 = vunpack.c.l.b16 %v372
  %v453 = vunpack.c.h.b16 %v372
  %v454 = vunpack.c.l.b16 %v373
  %v455 = vunpack.c.h.b16 %v373
  %v456 = vunpack.c.l.b16 %v374
  %v457 = vunpack.c.h.b16 %v374
  %v458 = vunpack.c.l.b16 %v375
  %v459 = vunpack.c.h.b16 %v375
  %v460 = vunpack.c.l.b16 %v376
  %v461 = vunpack.c.h.b16 %v376
  %v462 = vunpack.c.l.b16 %v377
  %v463 = vunpack.c.h.b16 %v377
  %v464 = vunpack.c.l.b16 %v378
  %v465 = vunpack.c.h.b16 %v378
  %v466 = vunpack.c.l.b16 %v379
  %v467 = vunpack.c.h.b16 %v379
  %v468 = vunpack.c.l.b16 %v380
  %v469 = vunpack.c.h.b16 %v380
  %v470 = vunpack.c.l.b16 %v381
  %v471 = vunpack.c.h.b16 %v381
  %v472 = vunpack.c.l.b16 %v382
  %v473 = vunpack.c.h.b16 %v382
  %v474 = vunpack.c.l.b16 %v383
  %v475 = vunpack.c.h.b16 %v383
  %v476 = vunpack.c.l.b16 %v384
  %v477 = vunpack.c.h.b16 %v384
  %v478 = vunpack.c.l.b16 %v385
  %v479 = vunpack.c.h.b16 %v385
  %v480 = vunpack.c.l.b16 %v386
  %v481 = vunpack.c.h.b16 %v386
  %v482 = vunpack.c.l.b16 %v387
  %v483 = vunpack.c.h.b16 %v387
  %v484 = vpack.c.b16 %v424, %v420
  %v485 = vpack.c.b16 %v425, %v421
  %v486 = vpack.c.b16 %v426, %v422
  %v487 = vpack.c.b16 %v427, %v423
  %v488 = vpack.c.b16 %v432, %v428
  %v489 = vpack.c.b16 %v433, %v429
  %v490 = vpack.c.b16 %v434, %v430
  %v491 = vpack.c.b16 %v435, %v431
  %v492 = vpack.c.b16 %v440, %v436
  %v493 = vpack.c.b16 %v441, %v437
  %v494 = vpack.c.b16 %v442, %v438
  %v495 = vpack.c.b16 %v443, %v439
  %v496 = vpack.c.b16 %v448, %v444
  %v497 = vpack.c.b16 %v449, %v445
  %v498 = vpack.c.b16 %v450, %v446
  %v499 = vpack.c.b16 %v451, %v447
  %v500 = vpack.c.b16 %v456, %v452
  %v501 = vpack.c.b16 %v457, %v453
  %v502 = vpack.c.b16 %v458, %v454
  %v503 = vpack.c.b16 %v459, %v455
  %v504 = vpack.c.b16 %v464, %v460
  %v505 = vpack.c.b16 %v465, %v461
  %v506 = vpack.c.b16 %v466, %v462
  %v507 = vpack.c.b16 %v467, %v463
  %v508 = vpack.c.b16 %v472, %v468
  %v509 = vpack.c.b16 %v473, %v469
  %v510 = vpack.c.b16 %v474, %v470
  %v511 = vpack.c.b16 %v475, %v471
  %v512 = vpack.c.b16 %v480, %v476
  %v513 = vpack.c.b16 %v481, %v477
  %v514 = vpack.c.b16 %v482, %v478
  %v515 = vpack.c.b16 %v483, %v479
  %548 = vmatprep.subr.bf16.mxu0 %v513
  %549 = vmatpush1.bf16.msra.mxu0 %v512
  %550 = vmatprep.subr.bf16.mxu0 %v509
  %551 = vmatpush1.bf16.msra.mxu0 %v508
  %552 = vmatprep.subr.bf16.mxu0 %v505
  %553 = vmatpush1.bf16.msra.mxu0 %v504
  %554 = vmatprep.subr.bf16.mxu0 %v501
  %555 = vmatpush1.bf16.msra.mxu0 %v500
  %556 = vmatprep.subr.bf16.mxu0 %v497
  %557 = vmatpush1.bf16.msra.mxu0 %v496
  %558 = vmatprep.subr.bf16.mxu0 %v493
  %559 = vmatpush1.bf16.msra.mxu0 %v492
  %560 = vmatprep.subr.bf16.mxu0 %v489
  %561 = vmatpush1.bf16.msra.mxu0 %v488
  %562 = vmatprep.subr.bf16.mxu0 %v485
  %563 = vmatpush1.bf16.msra.mxu0 %v484
  %564 = vmatprep.subr.bf16.mxu0 0
  %565 = vmatpush2.bf16.msra.mxu0 0
  %566 = vmatprep.subr.bf16.mxu0 0
  %567 = vmatpush2.bf16.msra.mxu0 0
  %568 = vmatprep.subr.bf16.mxu0 0
  %569 = vmatpush2.bf16.msra.mxu0 0
  %570 = vmatprep.subr.bf16.mxu0 0
  %571 = vmatpush2.bf16.msra.mxu0 0
  %572 = vmatprep.subr.bf16.mxu0 0
  %573 = vmatpush2.bf16.msra.mxu0 0
  %574 = vmatprep.subr.bf16.mxu0 0
  %575 = vmatpush2.bf16.msra.mxu0 0
  %576 = vmatprep.subr.bf16.mxu0 0
  %577 = vmatpush2.bf16.msra.mxu0 0
  %578 = vmatprep.subr.bf16.mxu0 0
  %579 = vmatpush2.bf16.msra.mxu0 0
  %580 = vmatprep.mubr.bf16.mxu0 0
  %581 = vmatmul.mubr.bf16.gmra.mxu0 %v355
  %v582 = vpop.f32.mrf.mxu0
  %v583 = vadd.f32 0.0, %v582
  %v584 = vpop.f32.mrf.mxu0
  %v585 = vadd.f32 0.0, %v584
  %v586 = vpop.f32.mrf.mxu0
  %v587 = vpop.f32.mrf.mxu0
  %588 = vdwg.mxu0
  %589 = vmatprep.subr.bf16.mxu0 %v515
  %590 = vmatpush1.bf16.msra.mxu0 %v514
  %591 = vmatprep.subr.bf16.mxu0 %v511
  %592 = vmatpush1.bf16.msra.mxu0 %v510
  %593 = vmatprep.subr.bf16.mxu0 %v507
  %594 = vmatpush1.bf16.msra.mxu0 %v506
  %595 = vmatprep.subr.bf16.mxu0 %v503
  %596 = vmatpush1.bf16.msra.mxu0 %v502
  %597 = vmatprep.subr.bf16.mxu0 %v499
  %598 = vmatpush1.bf16.msra.mxu0 %v498
  %599 = vmatprep.subr.bf16.mxu0 %v495
  %600 = vmatpush1.bf16.msra.mxu0 %v494
  %601 = vmatprep.subr.bf16.mxu0 %v491
  %602 = vmatpush1.bf16.msra.mxu0 %v490
  %603 = vmatprep.subr.bf16.mxu0 %v487
  %604 = vmatpush1.bf16.msra.mxu0 %v486
  %605 = vmatprep.subr.bf16.mxu0 0
  %606 = vmatpush2.bf16.msra.mxu0 0
  %607 = vmatprep.subr.bf16.mxu0 0
  %608 = vmatpush2.bf16.msra.mxu0 0
  %609 = vmatprep.subr.bf16.mxu0 0
  %610 = vmatpush2.bf16.msra.mxu0 0
  %611 = vmatprep.subr.bf16.mxu0 0
  %612 = vmatpush2.bf16.msra.mxu0 0
  %613 = vmatprep.subr.bf16.mxu0 0
  %614 = vmatpush2.bf16.msra.mxu0 0
  %615 = vmatprep.subr.bf16.mxu0 0
  %616 = vmatpush2.bf16.msra.mxu0 0
  %617 = vmatprep.subr.bf16.mxu0 0
  %618 = vmatpush2.bf16.msra.mxu0 0
  %619 = vmatprep.subr.bf16.mxu0 0
  %620 = vmatpush2.bf16.msra.mxu0 0
  %621 = vmatprep.mubr.bf16.mxu0 0
  %622 = vmatmul.mubr.bf16.gmra.mxu0 %v355
  %v623 = vpop.f32.mrf.mxu0
  %v624 = vadd.f32 0.0, %v623
  %v625 = vpop.f32.mrf.mxu0
  %v626 = vadd.f32 0.0, %v625
  %v627 = vpop.f32.mrf.mxu0
  %v628 = vpop.f32.mrf.mxu0
  %629 = vdwg.mxu0
  %v630 = vadd.f32 %v351, %v583
  %v631 = vadd.f32 %v352, %v585
  %v632 = vadd.f32 %v353, %v624
  %v633 = vadd.f32 %v354, %v626
  %v634 = vxor.u32 %v630, 2147483648
  %v635 = vxor.u32 %v631, 2147483648
  %v636 = vxor.u32 %v632, 2147483648
  %v637 = vmul.f32 %v634, 1.442695
  %v638 = vpow.pop %v637
  %v639 = vmul.f32 %v635, 1.442695
  %v640 = vpow.pop %v639
  %v641 = vmul.f32 %v636, 1.442695
  %v642 = vpow.pop %v641
  %v643 = vadd.f32 %v638, 1.0
  %v644 = vadd.f32 %v640, 1.0
  %v645 = vadd.f32 %v642, 1.0
  %v646 = vrcp.pop %v643
  %v647 = vmul.f32 1.0, %v646
  %v648 = vrcp.pop %v644
  %v649 = vmul.f32 1.0, %v648
  %v650 = vrcp.pop %v645
  %v651 = vmul.f32 1.0, %v650
  %v652 = vtanh.pop %v633
  %v653 = vmul.f32 %v649, %v350
  %v654 = vmul.f32 %v647, %v652
  %v655 = vadd.f32 %v653, %v654
  %v656 = vtanh.pop %v655
  %v657 = vmul.f32 %v651, %v656
  %vm658 = vcmp.gt.s32.totalorder %v22, 7
  %v659 = vsel %vm658, 1, 0
  %660 = vset.pattern.permute.xlu0 0
  %661 = vperm.xlu0 %660, %v659
  %v662 = vpop.permute.xlu0 %661
  %vm663 = vcmp.eq.s32.totalorder %v662, 1
  %v664 = vsel %vm663, %v657, %v349
  %v665 = vsel %vm663, %v655, %v350
  %v666 = vsel %vm663, %v657, 0.0
  %667 = vst [vmem:[#allocation4] sm:$0xff] %v664
  %668 = vst [vmem:[#allocation5] sm:$0xff] %v665
  %s669 = scalar_lea.vmem %s4, 112
  %670 = vst [vmem:[%s669 + $0x8] sm:$0xff] %v666
  %s671 = scalar_lea.vmem %s0, 32
  %v672 = vld [vmem:[%s671] sm:$0xff]
  %v673 = vld [vmem:[%s671 + $0x8] sm:$0xff]
  %v674 = vld [vmem:[#allocation2] sm:$0xff]
  %v675 = vld [vmem:[#allocation3] sm:$0xff]
  %v676 = vunpack.c.l.bf16 %v672
  %v677 = vunpack.c.h.bf16 %v672
  %v678 = vunpack.c.l.bf16 %v673
  %v679 = vunpack.c.h.bf16 %v673
  %v680 = vpack.c.bf16 %v674, %v674
  %v681 = vld [vmem:[%s1] sm:$0xff]
  %v682 = vld [vmem:[%s1 + $0x8] sm:$0xff]
  %v683 = vld [vmem:[%s1 + $0x10] sm:$0xff]
  %v684 = vld [vmem:[%s1 + $0x18] sm:$0xff]
  %v685 = vld [vmem:[%s1 + $0x20] sm:$0xff]
  %v686 = vld [vmem:[%s1 + $0x28] sm:$0xff]
  %v687 = vld [vmem:[%s1 + $0x30] sm:$0xff]
  %v688 = vld [vmem:[%s1 + $0x38] sm:$0xff]
  %v689 = vld [vmem:[%s1 + $0x40] sm:$0xff]
  %v690 = vld [vmem:[%s1 + $0x48] sm:$0xff]
  %v691 = vld [vmem:[%s1 + $0x50] sm:$0xff]
  %v692 = vld [vmem:[%s1 + $0x58] sm:$0xff]
  %v693 = vld [vmem:[%s1 + $0x60] sm:$0xff]
  %v694 = vld [vmem:[%s1 + $0x68] sm:$0xff]
  %v695 = vld [vmem:[%s1 + $0x70] sm:$0xff]
  %v696 = vld [vmem:[%s1 + $0x78] sm:$0xff]
  %v697 = vld [vmem:[%s1 + $0x80] sm:$0xff]
  %v698 = vld [vmem:[%s1 + $0x88] sm:$0xff]
  %v699 = vld [vmem:[%s1 + $0x90] sm:$0xff]
  %v700 = vld [vmem:[%s1 + $0x98] sm:$0xff]
  %v701 = vld [vmem:[%s1 + $0xa0] sm:$0xff]
  %v702 = vld [vmem:[%s1 + $0xa8] sm:$0xff]
  %v703 = vld [vmem:[%s1 + $0xb0] sm:$0xff]
  %v704 = vld [vmem:[%s1 + $0xb8] sm:$0xff]
  %v705 = vld [vmem:[%s1 + $0xc0] sm:$0xff]
  %v706 = vld [vmem:[%s1 + $0xc8] sm:$0xff]
  %v707 = vld [vmem:[%s1 + $0xd0] sm:$0xff]
  %v708 = vld [vmem:[%s1 + $0xd8] sm:$0xff]
  %v709 = vld [vmem:[%s1 + $0xe0] sm:$0xff]
  %v710 = vld [vmem:[%s1 + $0xe8] sm:$0xff]
  %v711 = vld [vmem:[%s1 + $0xf0] sm:$0xff]
  %v712 = vld [vmem:[%s1 + $0xf8] sm:$0xff]
  %v745 = vunpack.c.l.b16 %v681
  %v746 = vunpack.c.h.b16 %v681
  %v747 = vunpack.c.l.b16 %v682
  %v748 = vunpack.c.h.b16 %v682
  %v749 = vunpack.c.l.b16 %v683
  %v750 = vunpack.c.h.b16 %v683
  %v751 = vunpack.c.l.b16 %v684
  %v752 = vunpack.c.h.b16 %v684
  %v753 = vunpack.c.l.b16 %v685
  %v754 = vunpack.c.h.b16 %v685
  %v755 = vunpack.c.l.b16 %v686
  %v756 = vunpack.c.h.b16 %v686
  %v757 = vunpack.c.l.b16 %v687
  %v758 = vunpack.c.h.b16 %v687
  %v759 = vunpack.c.l.b16 %v688
  %v760 = vunpack.c.h.b16 %v688
  %v761 = vunpack.c.l.b16 %v689
  %v762 = vunpack.c.h.b16 %v689
  %v763 = vunpack.c.l.b16 %v690
  %v764 = vunpack.c.h.b16 %v690
  %v765 = vunpack.c.l.b16 %v691
  %v766 = vunpack.c.h.b16 %v691
  %v767 = vunpack.c.l.b16 %v692
  %v768 = vunpack.c.h.b16 %v692
  %v769 = vunpack.c.l.b16 %v693
  %v770 = vunpack.c.h.b16 %v693
  %v771 = vunpack.c.l.b16 %v694
  %v772 = vunpack.c.h.b16 %v694
  %v773 = vunpack.c.l.b16 %v695
  %v774 = vunpack.c.h.b16 %v695
  %v775 = vunpack.c.l.b16 %v696
  %v776 = vunpack.c.h.b16 %v696
  %v777 = vunpack.c.l.b16 %v697
  %v778 = vunpack.c.h.b16 %v697
  %v779 = vunpack.c.l.b16 %v698
  %v780 = vunpack.c.h.b16 %v698
  %v781 = vunpack.c.l.b16 %v699
  %v782 = vunpack.c.h.b16 %v699
  %v783 = vunpack.c.l.b16 %v700
  %v784 = vunpack.c.h.b16 %v700
  %v785 = vunpack.c.l.b16 %v701
  %v786 = vunpack.c.h.b16 %v701
  %v787 = vunpack.c.l.b16 %v702
  %v788 = vunpack.c.h.b16 %v702
  %v789 = vunpack.c.l.b16 %v703
  %v790 = vunpack.c.h.b16 %v703
  %v791 = vunpack.c.l.b16 %v704
  %v792 = vunpack.c.h.b16 %v704
  %v793 = vunpack.c.l.b16 %v705
  %v794 = vunpack.c.h.b16 %v705
  %v795 = vunpack.c.l.b16 %v706
  %v796 = vunpack.c.h.b16 %v706
  %v797 = vunpack.c.l.b16 %v707
  %v798 = vunpack.c.h.b16 %v707
  %v799 = vunpack.c.l.b16 %v708
  %v800 = vunpack.c.h.b16 %v708
  %v801 = vunpack.c.l.b16 %v709
  %v802 = vunpack.c.h.b16 %v709
  %v803 = vunpack.c.l.b16 %v710
  %v804 = vunpack.c.h.b16 %v710
  %v805 = vunpack.c.l.b16 %v711
  %v806 = vunpack.c.h.b16 %v711
  %v807 = vunpack.c.l.b16 %v712
  %v808 = vunpack.c.h.b16 %v712
  %v809 = vpack.c.b16 %v749, %v745
  %v810 = vpack.c.b16 %v750, %v746
  %v811 = vpack.c.b16 %v751, %v747
  %v812 = vpack.c.b16 %v752, %v748
  %v813 = vpack.c.b16 %v757, %v753
  %v814 = vpack.c.b16 %v758, %v754
  %v815 = vpack.c.b16 %v759, %v755
  %v816 = vpack.c.b16 %v760, %v756
  %v817 = vpack.c.b16 %v765, %v761
  %v818 = vpack.c.b16 %v766, %v762
  %v819 = vpack.c.b16 %v767, %v763
  %v820 = vpack.c.b16 %v768, %v764
  %v821 = vpack.c.b16 %v773, %v769
  %v822 = vpack.c.b16 %v774, %v770
  %v823 = vpack.c.b16 %v775, %v771
  %v824 = vpack.c.b16 %v776, %v772
  %v825 = vpack.c.b16 %v781, %v777
  %v826 = vpack.c.b16 %v782, %v778
  %v827 = vpack.c.b16 %v783, %v779
  %v828 = vpack.c.b16 %v784, %v780
  %v829 = vpack.c.b16 %v789, %v785
  %v830 = vpack.c.b16 %v790, %v786
  %v831 = vpack.c.b16 %v791, %v787
  %v832 = vpack.c.b16 %v792, %v788
  %v833 = vpack.c.b16 %v797, %v793
  %v834 = vpack.c.b16 %v798, %v794
  %v835 = vpack.c.b16 %v799, %v795
  %v836 = vpack.c.b16 %v800, %v796
  %v837 = vpack.c.b16 %v805, %v801
  %v838 = vpack.c.b16 %v806, %v802
  %v839 = vpack.c.b16 %v807, %v803
  %v840 = vpack.c.b16 %v808, %v804
  %873 = vmatprep.subr.bf16.mxu0 %v838
  %874 = vmatpush1.bf16.msra.mxu0 %v837
  %875 = vmatprep.subr.bf16.mxu0 %v834
  %876 = vmatpush1.bf16.msra.mxu0 %v833
  %877 = vmatprep.subr.bf16.mxu0 %v830
  %878 = vmatpush1.bf16.msra.mxu0 %v829
  %879 = vmatprep.subr.bf16.mxu0 %v826
  %880 = vmatpush1.bf16.msra.mxu0 %v825
  %881 = vmatprep.subr.bf16.mxu0 %v822
  %882 = vmatpush1.bf16.msra.mxu0 %v821
  %883 = vmatprep.subr.bf16.mxu0 %v818
  %884 = vmatpush1.bf16.msra.mxu0 %v817
  %885 = vmatprep.subr.bf16.mxu0 %v814
  %886 = vmatpush1.bf16.msra.mxu0 %v813
  %887 = vmatprep.subr.bf16.mxu0 %v810
  %888 = vmatpush1.bf16.msra.mxu0 %v809
  %889 = vmatprep.subr.bf16.mxu0 0
  %890 = vmatpush2.bf16.msra.mxu0 0
  %891 = vmatprep.subr.bf16.mxu0 0
  %892 = vmatpush2.bf16.msra.mxu0 0
  %893 = vmatprep.subr.bf16.mxu0 0
  %894 = vmatpush2.bf16.msra.mxu0 0
  %895 = vmatprep.subr.bf16.mxu0 0
  %896 = vmatpush2.bf16.msra.mxu0 0
  %897 = vmatprep.subr.bf16.mxu0 0
  %898 = vmatpush2.bf16.msra.mxu0 0
  %899 = vmatprep.subr.bf16.mxu0 0
  %900 = vmatpush2.bf16.msra.mxu0 0
  %901 = vmatprep.subr.bf16.mxu0 0
  %902 = vmatpush2.bf16.msra.mxu0 0
  %903 = vmatprep.subr.bf16.mxu0 0
  %904 = vmatpush2.bf16.msra.mxu0 0
  %905 = vmatprep.mubr.bf16.mxu0 0
  %906 = vmatmul.mubr.bf16.gmra.mxu0 %v680
  %v907 = vpop.f32.mrf.mxu0
  %v908 = vadd.f32 0.0, %v907
  %v909 = vpop.f32.mrf.mxu0
  %v910 = vadd.f32 0.0, %v909
  %v911 = vpop.f32.mrf.mxu0
  %v912 = vpop.f32.mrf.mxu0
  %913 = vdwg.mxu0
  %914 = vmatprep.subr.bf16.mxu0 %v840
  %915 = vmatpush1.bf16.msra.mxu0 %v839
  %916 = vmatprep.subr.bf16.mxu0 %v836
  %917 = vmatpush1.bf16.msra.mxu0 %v835
  %918 = vmatprep.subr.bf16.mxu0 %v832
  %919 = vmatpush1.bf16.msra.mxu0 %v831
  %920 = vmatprep.subr.bf16.mxu0 %v828
  %921 = vmatpush1.bf16.msra.mxu0 %v827
  %922 = vmatprep.subr.bf16.mxu0 %v824
  %923 = vmatpush1.bf16.msra.mxu0 %v823
  %924 = vmatprep.subr.bf16.mxu0 %v820
  %925 = vmatpush1.bf16.msra.mxu0 %v819
  %926 = vmatprep.subr.bf16.mxu0 %v816
  %927 = vmatpush1.bf16.msra.mxu0 %v815
  %928 = vmatprep.subr.bf16.mxu0 %v812
  %929 = vmatpush1.bf16.msra.mxu0 %v811
  %930 = vmatprep.subr.bf16.mxu0 0
  %931 = vmatpush2.bf16.msra.mxu0 0
  %932 = vmatprep.subr.bf16.mxu0 0
  %933 = vmatpush2.bf16.msra.mxu0 0
  %934 = vmatprep.subr.bf16.mxu0 0
  %935 = vmatpush2.bf16.msra.mxu0 0
  %936 = vmatprep.subr.bf16.mxu0 0
  %937 = vmatpush2.bf16.msra.mxu0 0
  %938 = vmatprep.subr.bf16.mxu0 0
  %939 = vmatpush2.bf16.msra.mxu0 0
  %940 = vmatprep.subr.bf16.mxu0 0
  %941 = vmatpush2.bf16.msra.mxu0 0
  %942 = vmatprep.subr.bf16.mxu0 0
  %943 = vmatpush2.bf16.msra.mxu0 0
  %944 = vmatprep.subr.bf16.mxu0 0
  %945 = vmatpush2.bf16.msra.mxu0 0
  %946 = vmatprep.mubr.bf16.mxu0 0
  %947 = vmatmul.mubr.bf16.gmra.mxu0 %v680
  %v948 = vpop.f32.mrf.mxu0
  %v949 = vadd.f32 0.0, %v948
  %v950 = vpop.f32.mrf.mxu0
  %v951 = vadd.f32 0.0, %v950
  %v952 = vpop.f32.mrf.mxu0
  %v953 = vpop.f32.mrf.mxu0
  %954 = vdwg.mxu0
  %v955 = vadd.f32 %v676, %v908
  %v956 = vadd.f32 %v677, %v910
  %v957 = vadd.f32 %v678, %v949
  %v958 = vadd.f32 %v679, %v951
  %v959 = vxor.u32 %v955, 2147483648
  %v960 = vxor.u32 %v956, 2147483648
  %v961 = vxor.u32 %v957, 2147483648
  %v962 = vmul.f32 %v959, 1.442695
  %v963 = vpow.pop %v962
  %v964 = vmul.f32 %v960, 1.442695
  %v965 = vpow.pop %v964
  %v966 = vmul.f32 %v961, 1.442695
  %v967 = vpow.pop %v966
  %v968 = vadd.f32 %v963, 1.0
  %v969 = vadd.f32 %v965, 1.0
  %v970 = vadd.f32 %v967, 1.0
  %v971 = vrcp.pop %v968
  %v972 = vmul.f32 1.0, %v971
  %v973 = vrcp.pop %v969
  %v974 = vmul.f32 1.0, %v973
  %v975 = vrcp.pop %v970
  %v976 = vmul.f32 1.0, %v975
  %v977 = vtanh.pop %v958
  %v978 = vmul.f32 %v974, %v675
  %v979 = vmul.f32 %v972, %v977
  %v980 = vadd.f32 %v978, %v979
  %v981 = vtanh.pop %v980
  %v982 = vmul.f32 %v976, %v981
  %vm983 = vcmp.gt.s32.totalorder %v22, 1
  %v984 = vsel %vm983, 1, 0
  %985 = vset.pattern.permute.xlu0 0
  %986 = vperm.xlu0 %985, %v984
  %v987 = vpop.permute.xlu0 %986
  %vm988 = vcmp.eq.s32.totalorder %v987, 1
  %v989 = vsel %vm988, %v982, %v674
  %v990 = vsel %vm988, %v980, %v675
  %v991 = vsel %vm988, %v982, 0.0
  %992 = vst [vmem:[#allocation2] sm:$0xff] %v989
  %993 = vst [vmem:[#allocation3] sm:$0xff] %v990
  %s994 = scalar_lea.vmem %s4, 16
  %995 = vst [vmem:[%s994] sm:$0xff] %v991
  %s996 = scalar_lea.vmem %s0, 192
  %v997 = vld [vmem:[%s996 + $0x10] sm:$0xff]
  %v998 = vld [vmem:[%s996 + $0x18] sm:$0xff]
  %v999 = vld [vmem:[#allocation4] sm:$0xff]
  %v1000 = vld [vmem:[#allocation5] sm:$0xff]
  %v1001 = vunpack.c.l.bf16 %v997
  %v1002 = vunpack.c.h.bf16 %v997
  %v1003 = vunpack.c.l.bf16 %v998
  %v1004 = vunpack.c.h.bf16 %v998
  %v1005 = vpack.c.bf16 %v999, %v999
  %v1006 = vld [vmem:[%s2] sm:$0xff]
  %v1007 = vld [vmem:[%s2 + $0x8] sm:$0xff]
  %v1008 = vld [vmem:[%s2 + $0x10] sm:$0xff]
  %v1009 = vld [vmem:[%s2 + $0x18] sm:$0xff]
  %v1010 = vld [vmem:[%s2 + $0x20] sm:$0xff]
  %v1011 = vld [vmem:[%s2 + $0x28] sm:$0xff]
  %v1012 = vld [vmem:[%s2 + $0x30] sm:$0xff]
  %v1013 = vld [vmem:[%s2 + $0x38] sm:$0xff]
  %v1014 = vld [vmem:[%s2 + $0x40] sm:$0xff]
  %v1015 = vld [vmem:[%s2 + $0x48] sm:$0xff]
  %v1016 = vld [vmem:[%s2 + $0x50] sm:$0xff]
  %v1017 = vld [vmem:[%s2 + $0x58] sm:$0xff]
  %v1018 = vld [vmem:[%s2 + $0x60] sm:$0xff]
  %v1019 = vld [vmem:[%s2 + $0x68] sm:$0xff]
  %v1020 = vld [vmem:[%s2 + $0x70] sm:$0xff]
  %v1021 = vld [vmem:[%s2 + $0x78] sm:$0xff]
  %v1022 = vld [vmem:[%s2 + $0x80] sm:$0xff]
  %v1023 = vld [vmem:[%s2 + $0x88] sm:$0xff]
  %v1024 = vld [vmem:[%s2 + $0x90] sm:$0xff]
  %v1025 = vld [vmem:[%s2 + $0x98] sm:$0xff]
  %v1026 = vld [vmem:[%s2 + $0xa0] sm:$0xff]
  %v1027 = vld [vmem:[%s2 + $0xa8] sm:$0xff]
  %v1028 = vld [vmem:[%s2 + $0xb0] sm:$0xff]
  %v1029 = vld [vmem:[%s2 + $0xb8] sm:$0xff]
  %v1030 = vld [vmem:[%s2 + $0xc0] sm:$0xff]
  %v1031 = vld [vmem:[%s2 + $0xc8] sm:$0xff]
  %v1032 = vld [vmem:[%s2 + $0xd0] sm:$0xff]
  %v1033 = vld [vmem:[%s2 + $0xd8] sm:$0xff]
  %v1034 = vld [vmem:[%s2 + $0xe0] sm:$0xff]
  %v1035 = vld [vmem:[%s2 + $0xe8] sm:$0xff]
  %v1036 = vld [vmem:[%s2 + $0xf0] sm:$0xff]
  %v1037 = vld [vmem:[%s2 + $0xf8] sm:$0xff]
  %v1070 = vunpack.c.l.b16 %v1006
  %v1071 = vunpack.c.h.b16 %v1006
  %v1072 = vunpack.c.l.b16 %v1007
  %v1073 = vunpack.c.h.b16 %v1007
  %v1074 = vunpack.c.l.b16 %v1008
  %v1075 = vunpack.c.h.b16 %v1008
  %v1076 = vunpack.c.l.b16 %v1009
  %v1077 = vunpack.c.h.b16 %v1009
  %v1078 = vunpack.c.l.b16 %v1010
  %v1079 = vunpack.c.h.b16 %v1010
  %v1080 = vunpack.c.l.b16 %v1011
  %v1081 = vunpack.c.h.b16 %v1011
  %v1082 = vunpack.c.l.b16 %v1012
  %v1083 = vunpack.c.h.b16 %v1012
  %v1084 = vunpack.c.l.b16 %v1013
  %v1085 = vunpack.c.h.b16 %v1013
  %v1086 = vunpack.c.l.b16 %v1014
  %v1087 = vunpack.c.h.b16 %v1014
  %v1088 = vunpack.c.l.b16 %v1015
  %v1089 = vunpack.c.h.b16 %v1015
  %v1090 = vunpack.c.l.b16 %v1016
  %v1091 = vunpack.c.h.b16 %v1016
  %v1092 = vunpack.c.l.b16 %v1017
  %v1093 = vunpack.c.h.b16 %v1017
  %v1094 = vunpack.c.l.b16 %v1018
  %v1095 = vunpack.c.h.b16 %v1018
  %v1096 = vunpack.c.l.b16 %v1019
  %v1097 = vunpack.c.h.b16 %v1019
  %v1098 = vunpack.c.l.b16 %v1020
  %v1099 = vunpack.c.h.b16 %v1020
  %v1100 = vunpack.c.l.b16 %v1021
  %v1101 = vunpack.c.h.b16 %v1021
  %v1102 = vunpack.c.l.b16 %v1022
  %v1103 = vunpack.c.h.b16 %v1022
  %v1104 = vunpack.c.l.b16 %v1023
  %v1105 = vunpack.c.h.b16 %v1023
  %v1106 = vunpack.c.l.b16 %v1024
  %v1107 = vunpack.c.h.b16 %v1024
  %v1108 = vunpack.c.l.b16 %v1025
  %v1109 = vunpack.c.h.b16 %v1025
  %v1110 = vunpack.c.l.b16 %v1026
  %v1111 = vunpack.c.h.b16 %v1026
  %v1112 = vunpack.c.l.b16 %v1027
  %v1113 = vunpack.c.h.b16 %v1027
  %v1114 = vunpack.c.l.b16 %v1028
  %v1115 = vunpack.c.h.b16 %v1028
  %v1116 = vunpack.c.l.b16 %v1029
  %v1117 = vunpack.c.h.b16 %v1029
  %v1118 = vunpack.c.l.b16 %v1030
  %v1119 = vunpack.c.h.b16 %v1030
  %v1120 = vunpack.c.l.b16 %v1031
  %v1121 = vunpack.c.h.b16 %v1031
  %v1122 = vunpack.c.l.b16 %v1032
  %v1123 = vunpack.c.h.b16 %v1032
  %v1124 = vunpack.c.l.b16 %v1033
  %v1125 = vunpack.c.h.b16 %v1033
  %v1126 = vunpack.c.l.b16 %v1034
  %v1127 = vunpack.c.h.b16 %v1034
  %v1128 = vunpack.c.l.b16 %v1035
  %v1129 = vunpack.c.h.b16 %v1035
  %v1130 = vunpack.c.l.b16 %v1036
  %v1131 = vunpack.c.h.b16 %v1036
  %v1132 = vunpack.c.l.b16 %v1037
  %v1133 = vunpack.c.h.b16 %v1037
  %v1134 = vpack.c.b16 %v1074, %v1070
  %v1135 = vpack.c.b16 %v1075, %v1071
  %v1136 = vpack.c.b16 %v1076, %v1072
  %v1137 = vpack.c.b16 %v1077, %v1073
  %v1138 = vpack.c.b16 %v1082, %v1078
  %v1139 = vpack.c.b16 %v1083, %v1079
  %v1140 = vpack.c.b16 %v1084, %v1080
  %v1141 = vpack.c.b16 %v1085, %v1081
  %v1142 = vpack.c.b16 %v1090, %v1086
  %v1143 = vpack.c.b16 %v1091, %v1087
  %v1144 = vpack.c.b16 %v1092, %v1088
  %v1145 = vpack.c.b16 %v1093, %v1089
  %v1146 = vpack.c.b16 %v1098, %v1094
  %v1147 = vpack.c.b16 %v1099, %v1095
  %v1148 = vpack.c.b16 %v1100, %v1096
  %v1149 = vpack.c.b16 %v1101, %v1097
  %v1150 = vpack.c.b16 %v1106, %v1102
  %v1151 = vpack.c.b16 %v1107, %v1103
  %v1152 = vpack.c.b16 %v1108, %v1104
  %v1153 = vpack.c.b16 %v1109, %v1105
  %v1154 = vpack.c.b16 %v1114, %v1110
  %v1155 = vpack.c.b16 %v1115, %v1111
  %v1156 = vpack.c.b16 %v1116, %v1112
  %v1157 = vpack.c.b16 %v1117, %v1113
  %v1158 = vpack.c.b16 %v1122, %v1118
  %v1159 = vpack.c.b16 %v1123, %v1119
  %v1160 = vpack.c.b16 %v1124, %v1120
  %v1161 = vpack.c.b16 %v1125, %v1121
  %v1162 = vpack.c.b16 %v1130, %v1126
  %v1163 = vpack.c.b16 %v1131, %v1127
  %v1164 = vpack.c.b16 %v1132, %v1128
  %v1165 = vpack.c.b16 %v1133, %v1129
  %1198 = vmatprep.subr.bf16.mxu0 %v1163
  %1199 = vmatpush1.bf16.msra.mxu0 %v1162
  %1200 = vmatprep.subr.bf16.mxu0 %v1159
  %1201 = vmatpush1.bf16.msra.mxu0 %v1158
  %1202 = vmatprep.subr.bf16.mxu0 %v1155
  %1203 = vmatpush1.bf16.msra.mxu0 %v1154
  %1204 = vmatprep.subr.bf16.mxu0 %v1151
  %1205 = vmatpush1.bf16.msra.mxu0 %v1150
  %1206 = vmatprep.subr.bf16.mxu0 %v1147
  %1207 = vmatpush1.bf16.msra.mxu0 %v1146
  %1208 = vmatprep.subr.bf16.mxu0 %v1143
  %1209 = vmatpush1.bf16.msra.mxu0 %v1142
  %1210 = vmatprep.subr.bf16.mxu0 %v1139
  %1211 = vmatpush1.bf16.msra.mxu0 %v1138
  %1212 = vmatprep.subr.bf16.mxu0 %v1135
  %1213 = vmatpush1.bf16.msra.mxu0 %v1134
  %1214 = vmatprep.subr.bf16.mxu0 0
  %1215 = vmatpush2.bf16.msra.mxu0 0
  %1216 = vmatprep.subr.bf16.mxu0 0
  %1217 = vmatpush2.bf16.msra.mxu0 0
  %1218 = vmatprep.subr.bf16.mxu0 0
  %1219 = vmatpush2.bf16.msra.mxu0 0
  %1220 = vmatprep.subr.bf16.mxu0 0
  %1221 = vmatpush2.bf16.msra.mxu0 0
  %1222 = vmatprep.subr.bf16.mxu0 0
  %1223 = vmatpush2.bf16.msra.mxu0 0
  %1224 = vmatprep.subr.bf16.mxu0 0
  %1225 = vmatpush2.bf16.msra.mxu0 0
  %1226 = vmatprep.subr.bf16.mxu0 0
  %1227 = vmatpush2.bf16.msra.mxu0 0
  %1228 = vmatprep.subr.bf16.mxu0 0
  %1229 = vmatpush2.bf16.msra.mxu0 0
  %1230 = vmatprep.mubr.bf16.mxu0 0
  %1231 = vmatmul.mubr.bf16.gmra.mxu0 %v1005
  %v1232 = vpop.f32.mrf.mxu0
  %v1233 = vadd.f32 0.0, %v1232
  %v1234 = vpop.f32.mrf.mxu0
  %v1235 = vadd.f32 0.0, %v1234
  %v1236 = vpop.f32.mrf.mxu0
  %v1237 = vpop.f32.mrf.mxu0
  %1238 = vdwg.mxu0
  %1239 = vmatprep.subr.bf16.mxu0 %v1165
  %1240 = vmatpush1.bf16.msra.mxu0 %v1164
  %1241 = vmatprep.subr.bf16.mxu0 %v1161
  %1242 = vmatpush1.bf16.msra.mxu0 %v1160
  %1243 = vmatprep.subr.bf16.mxu0 %v1157
  %1244 = vmatpush1.bf16.msra.mxu0 %v1156
  %1245 = vmatprep.subr.bf16.mxu0 %v1153
  %1246 = vmatpush1.bf16.msra.mxu0 %v1152
  %1247 = vmatprep.subr.bf16.mxu0 %v1149
  %1248 = vmatpush1.bf16.msra.mxu0 %v1148
  %1249 = vmatprep.subr.bf16.mxu0 %v1145
  %1250 = vmatpush1.bf16.msra.mxu0 %v1144
  %1251 = vmatprep.subr.bf16.mxu0 %v1141
  %1252 = vmatpush1.bf16.msra.mxu0 %v1140
  %1253 = vmatprep.subr.bf16.mxu0 %v1137
  %1254 = vmatpush1.bf16.msra.mxu0 %v1136
  %1255 = vmatprep.subr.bf16.mxu0 0
  %1256 = vmatpush2.bf16.msra.mxu0 0
  %1257 = vmatprep.subr.bf16.mxu0 0
  %1258 = vmatpush2.bf16.msra.mxu0 0
  %1259 = vmatprep.subr.bf16.mxu0 0
  %1260 = vmatpush2.bf16.msra.mxu0 0
  %1261 = vmatprep.subr.bf16.mxu0 0
  %1262 = vmatpush2.bf16.msra.mxu0 0
  %1263 = vmatprep.subr.bf16.mxu0 0
  %1264 = vmatpush2.bf16.msra.mxu0 0
  %1265 = vmatprep.subr.bf16.mxu0 0
  %1266 = vmatpush2.bf16.msra.mxu0 0
  %1267 = vmatprep.subr.bf16.mxu0 0
  %1268 = vmatpush2.bf16.msra.mxu0 0
  %1269 = vmatprep.subr.bf16.mxu0 0
  %1270 = vmatpush2.bf16.msra.mxu0 0
  %1271 = vmatprep.mubr.bf16.mxu0 0
  %1272 = vmatmul.mubr.bf16.gmra.mxu0 %v1005
  %v1273 = vpop.f32.mrf.mxu0
  %v1274 = vadd.f32 0.0, %v1273
  %v1275 = vpop.f32.mrf.mxu0
  %v1276 = vadd.f32 0.0, %v1275
  %v1277 = vpop.f32.mrf.mxu0
  %v1278 = vpop.f32.mrf.mxu0
  %1279 = vdwg.mxu0
  %v1280 = vadd.f32 %v1001, %v1233
  %v1281 = vadd.f32 %v1002, %v1235
  %v1282 = vadd.f32 %v1003, %v1274
  %v1283 = vadd.f32 %v1004, %v1276
  %v1284 = vxor.u32 %v1280, 2147483648
  %v1285 = vxor.u32 %v1281, 2147483648
  %v1286 = vxor.u32 %v1282, 2147483648
  %v1287 = vmul.f32 %v1284, 1.442695
  %v1288 = vpow.pop %v1287
  %v1289 = vmul.f32 %v1285, 1.442695
  %v1290 = vpow.pop %v1289
  %v1291 = vmul.f32 %v1286, 1.442695
  %v1292 = vpow.pop %v1291
  %v1293 = vadd.f32 %v1288, 1.0
  %v1294 = vadd.f32 %v1290, 1.0
  %v1295 = vadd.f32 %v1292, 1.0
  %v1296 = vrcp.pop %v1293
  %v1297 = vmul.f32 1.0, %v1296
  %v1298 = vrcp.pop %v1294
  %v1299 = vmul.f32 1.0, %v1298
  %v1300 = vrcp.pop %v1295
  %v1301 = vmul.f32 1.0, %v1300
  %v1302 = vtanh.pop %v1283
  %v1303 = vmul.f32 %v1299, %v1000
  %v1304 = vmul.f32 %v1297, %v1302
  %v1305 = vadd.f32 %v1303, %v1304
  %v1306 = vtanh.pop %v1305
  %v1307 = vmul.f32 %v1301, %v1306
  %vm1308 = vcmp.gt.s32.totalorder %v22, 6
  %v1309 = vsel %vm1308, 1, 0
  %1310 = vset.pattern.permute.xlu0 0
  %1311 = vperm.xlu0 %1310, %v1309
  %v1312 = vpop.permute.xlu0 %1311
  %vm1313 = vcmp.eq.s32.totalorder %v1312, 1
  %v1314 = vsel %vm1313, %v1307, %v999
  %v1315 = vsel %vm1313, %v1305, %v1000
  %v1316 = vsel %vm1313, %v1307, 0.0
  %1317 = vst [vmem:[#allocation4] sm:$0xff] %v1314
  %1318 = vst [vmem:[#allocation5] sm:$0xff] %v1315
  %s1319 = scalar_lea.vmem %s4, 96
  %1320 = vst [vmem:[%s1319 + $0x8] sm:$0xff] %v1316
  %s1321 = scalar_lea.vmem %s0, 64
  %v1322 = vld [vmem:[%s1321] sm:$0xff]
  %v1323 = vld [vmem:[%s1321 + $0x8] sm:$0xff]
  %v1324 = vld [vmem:[#allocation2] sm:$0xff]
  %v1325 = vld [vmem:[#allocation3] sm:$0xff]
  %v1326 = vunpack.c.l.bf16 %v1322
  %v1327 = vunpack.c.h.bf16 %v1322
  %v1328 = vunpack.c.l.bf16 %v1323
  %v1329 = vunpack.c.h.bf16 %v1323
  %v1330 = vpack.c.bf16 %v1324, %v1324
  %v1331 = vld [vmem:[%s1] sm:$0xff]
  %v1332 = vld [vmem:[%s1 + $0x8] sm:$0xff]
  %v1333 = vld [vmem:[%s1 + $0x10] sm:$0xff]
  %v1334 = vld [vmem:[%s1 + $0x18] sm:$0xff]
  %v1335 = vld [vmem:[%s1 + $0x20] sm:$0xff]
  %v1336 = vld [vmem:[%s1 + $0x28] sm:$0xff]
  %v1337 = vld [vmem:[%s1 + $0x30] sm:$0xff]
  %v1338 = vld [vmem:[%s1 + $0x38] sm:$0xff]
  %v1339 = vld [vmem:[%s1 + $0x40] sm:$0xff]
  %v1340 = vld [vmem:[%s1 + $0x48] sm:$0xff]
  %v1341 = vld [vmem:[%s1 + $0x50] sm:$0xff]
  %v1342 = vld [vmem:[%s1 + $0x58] sm:$0xff]
  %v1343 = vld [vmem:[%s1 + $0x60] sm:$0xff]
  %v1344 = vld [vmem:[%s1 + $0x68] sm:$0xff]
  %v1345 = vld [vmem:[%s1 + $0x70] sm:$0xff]
  %v1346 = vld [vmem:[%s1 + $0x78] sm:$0xff]
  %v1347 = vld [vmem:[%s1 + $0x80] sm:$0xff]
  %v1348 = vld [vmem:[%s1 + $0x88] sm:$0xff]
  %v1349 = vld [vmem:[%s1 + $0x90] sm:$0xff]
  %v1350 = vld [vmem:[%s1 + $0x98] sm:$0xff]
  %v1351 = vld [vmem:[%s1 + $0xa0] sm:$0xff]
  %v1352 = vld [vmem:[%s1 + $0xa8] sm:$0xff]
  %v1353 = vld [vmem:[%s1 + $0xb0] sm:$0xff]
  %v1354 = vld [vmem:[%s1 + $0xb8] sm:$0xff]
  %v1355 = vld [vmem:[%s1 + $0xc0] sm:$0xff]
  %v1356 = vld [vmem:[%s1 + $0xc8] sm:$0xff]
  %v1357 = vld [vmem:[%s1 + $0xd0] sm:$0xff]
  %v1358 = vld [vmem:[%s1 + $0xd8] sm:$0xff]
  %v1359 = vld [vmem:[%s1 + $0xe0] sm:$0xff]
  %v1360 = vld [vmem:[%s1 + $0xe8] sm:$0xff]
  %v1361 = vld [vmem:[%s1 + $0xf0] sm:$0xff]
  %v1362 = vld [vmem:[%s1 + $0xf8] sm:$0xff]
  %v1395 = vunpack.c.l.b16 %v1331
  %v1396 = vunpack.c.h.b16 %v1331
  %v1397 = vunpack.c.l.b16 %v1332
  %v1398 = vunpack.c.h.b16 %v1332
  %v1399 = vunpack.c.l.b16 %v1333
  %v1400 = vunpack.c.h.b16 %v1333
  %v1401 = vunpack.c.l.b16 %v1334
  %v1402 = vunpack.c.h.b16 %v1334
  %v1403 = vunpack.c.l.b16 %v1335
  %v1404 = vunpack.c.h.b16 %v1335
  %v1405 = vunpack.c.l.b16 %v1336
  %v1406 = vunpack.c.h.b16 %v1336
  %v1407 = vunpack.c.l.b16 %v1337
  %v1408 = vunpack.c.h.b16 %v1337
  %v1409 = vunpack.c.l.b16 %v1338
  %v1410 = vunpack.c.h.b16 %v1338
  %v1411 = vunpack.c.l.b16 %v1339
  %v1412 = vunpack.c.h.b16 %v1339
  %v1413 = vunpack.c.l.b16 %v1340
  %v1414 = vunpack.c.h.b16 %v1340
  %v1415 = vunpack.c.l.b16 %v1341
  %v1416 = vunpack.c.h.b16 %v1341
  %v1417 = vunpack.c.l.b16 %v1342
  %v1418 = vunpack.c.h.b16 %v1342
  %v1419 = vunpack.c.l.b16 %v1343
  %v1420 = vunpack.c.h.b16 %v1343
  %v1421 = vunpack.c.l.b16 %v1344
  %v1422 = vunpack.c.h.b16 %v1344
  %v1423 = vunpack.c.l.b16 %v1345
  %v1424 = vunpack.c.h.b16 %v1345
  %v1425 = vunpack.c.l.b16 %v1346
  %v1426 = vunpack.c.h.b16 %v1346
  %v1427 = vunpack.c.l.b16 %v1347
  %v1428 = vunpack.c.h.b16 %v1347
  %v1429 = vunpack.c.l.b16 %v1348
  %v1430 = vunpack.c.h.b16 %v1348
  %v1431 = vunpack.c.l.b16 %v1349
  %v1432 = vunpack.c.h.b16 %v1349
  %v1433 = vunpack.c.l.b16 %v1350
  %v1434 = vunpack.c.h.b16 %v1350
  %v1435 = vunpack.c.l.b16 %v1351
  %v1436 = vunpack.c.h.b16 %v1351
  %v1437 = vunpack.c.l.b16 %v1352
  %v1438 = vunpack.c.h.b16 %v1352
  %v1439 = vunpack.c.l.b16 %v1353
  %v1440 = vunpack.c.h.b16 %v1353
  %v1441 = vunpack.c.l.b16 %v1354
  %v1442 = vunpack.c.h.b16 %v1354
  %v1443 = vunpack.c.l.b16 %v1355
  %v1444 = vunpack.c.h.b16 %v1355
  %v1445 = vunpack.c.l.b16 %v1356
  %v1446 = vunpack.c.h.b16 %v1356
  %v1447 = vunpack.c.l.b16 %v1357
  %v1448 = vunpack.c.h.b16 %v1357
  %v1449 = vunpack.c.l.b16 %v1358
  %v1450 = vunpack.c.h.b16 %v1358
  %v1451 = vunpack.c.l.b16 %v1359
  %v1452 = vunpack.c.h.b16 %v1359
  %v1453 = vunpack.c.l.b16 %v1360
  %v1454 = vunpack.c.h.b16 %v1360
  %v1455 = vunpack.c.l.b16 %v1361
  %v1456 = vunpack.c.h.b16 %v1361
  %v1457 = vunpack.c.l.b16 %v1362
  %v1458 = vunpack.c.h.b16 %v1362
  %v1459 = vpack.c.b16 %v1399, %v1395
  %v1460 = vpack.c.b16 %v1400, %v1396
  %v1461 = vpack.c.b16 %v1401, %v1397
  %v1462 = vpack.c.b16 %v1402, %v1398
  %v1463 = vpack.c.b16 %v1407, %v1403
  %v1464 = vpack.c.b16 %v1408, %v1404
  %v1465 = vpack.c.b16 %v1409, %v1405
  %v1466 = vpack.c.b16 %v1410, %v1406
  %v1467 = vpack.c.b16 %v1415, %v1411
  %v1468 = vpack.c.b16 %v1416, %v1412
  %v1469 = vpack.c.b16 %v1417, %v1413
  %v1470 = vpack.c.b16 %v1418, %v1414
  %v1471 = vpack.c.b16 %v1423, %v1419
  %v1472 = vpack.c.b16 %v1424, %v1420
  %v1473 = vpack.c.b16 %v1425, %v1421
  %v1474 = vpack.c.b16 %v1426, %v1422
  %v1475 = vpack.c.b16 %v1431, %v1427
  %v1476 = vpack.c.b16 %v1432, %v1428
  %v1477 = vpack.c.b16 %v1433, %v1429
  %v1478 = vpack.c.b16 %v1434, %v1430
  %v1479 = vpack.c.b16 %v1439, %v1435
  %v1480 = vpack.c.b16 %v1440, %v1436
  %v1481 = vpack.c.b16 %v1441, %v1437
  %v1482 = vpack.c.b16 %v1442, %v1438
  %v1483 = vpack.c.b16 %v1447, %v1443
  %v1484 = vpack.c.b16 %v1448, %v1444
  %v1485 = vpack.c.b16 %v1449, %v1445
  %v1486 = vpack.c.b16 %v1450, %v1446
  %v1487 = vpack.c.b16 %v1455, %v1451
  %v1488 = vpack.c.b16 %v1456, %v1452
  %v1489 = vpack.c.b16 %v1457, %v1453
  %v1490 = vpack.c.b16 %v1458, %v1454
  %1523 = vmatprep.subr.bf16.mxu0 %v1488
  %1524 = vmatpush1.bf16.msra.mxu0 %v1487
  %1525 = vmatprep.subr.bf16.mxu0 %v1484
  %1526 = vmatpush1.bf16.msra.mxu0 %v1483
  %1527 = vmatprep.subr.bf16.mxu0 %v1480
  %1528 = vmatpush1.bf16.msra.mxu0 %v1479
  %1529 = vmatprep.subr.bf16.mxu0 %v1476
  %1530 = vmatpush1.bf16.msra.mxu0 %v1475
  %1531 = vmatprep.subr.bf16.mxu0 %v1472
  %1532 = vmatpush1.bf16.msra.mxu0 %v1471
  %1533 = vmatprep.subr.bf16.mxu0 %v1468
  %1534 = vmatpush1.bf16.msra.mxu0 %v1467
  %1535 = vmatprep.subr.bf16.mxu0 %v1464
  %1536 = vmatpush1.bf16.msra.mxu0 %v1463
  %1537 = vmatprep.subr.bf16.mxu0 %v1460
  %1538 = vmatpush1.bf16.msra.mxu0 %v1459
  %1539 = vmatprep.subr.bf16.mxu0 0
  %1540 = vmatpush2.bf16.msra.mxu0 0
  %1541 = vmatprep.subr.bf16.mxu0 0
  %1542 = vmatpush2.bf16.msra.mxu0 0
  %1543 = vmatprep.subr.bf16.mxu0 0
  %1544 = vmatpush2.bf16.msra.mxu0 0
  %1545 = vmatprep.subr.bf16.mxu0 0
  %1546 = vmatpush2.bf16.msra.mxu0 0
  %1547 = vmatprep.subr.bf16.mxu0 0
  %1548 = vmatpush2.bf16.msra.mxu0 0
  %1549 = vmatprep.subr.bf16.mxu0 0
  %1550 = vmatpush2.bf16.msra.mxu0 0
  %1551 = vmatprep.subr.bf16.mxu0 0
  %1552 = vmatpush2.bf16.msra.mxu0 0
  %1553 = vmatprep.subr.bf16.mxu0 0
  %1554 = vmatpush2.bf16.msra.mxu0 0
  %1555 = vmatprep.mubr.bf16.mxu0 0
  %1556 = vmatmul.mubr.bf16.gmra.mxu0 %v1330
  %v1557 = vpop.f32.mrf.mxu0
  %v1558 = vadd.f32 0.0, %v1557
  %v1559 = vpop.f32.mrf.mxu0
  %v1560 = vadd.f32 0.0, %v1559
  %v1561 = vpop.f32.mrf.mxu0
  %v1562 = vpop.f32.mrf.mxu0
  %1563 = vdwg.mxu0
  %1564 = vmatprep.subr.bf16.mxu0 %v1490
  %1565 = vmatpush1.bf16.msra.mxu0 %v1489
  %1566 = vmatprep.subr.bf16.mxu0 %v1486
  %1567 = vmatpush1.bf16.msra.mxu0 %v1485
  %1568 = vmatprep.subr.bf16.mxu0 %v1482
  %1569 = vmatpush1.bf16.msra.mxu0 %v1481
  %1570 = vmatprep.subr.bf16.mxu0 %v1478
  %1571 = vmatpush1.bf16.msra.mxu0 %v1477
  %1572 = vmatprep.subr.bf16.mxu0 %v1474
  %1573 = vmatpush1.bf16.msra.mxu0 %v1473
  %1574 = vmatprep.subr.bf16.mxu0 %v1470
  %1575 = vmatpush1.bf16.msra.mxu0 %v1469
  %1576 = vmatprep.subr.bf16.mxu0 %v1466
  %1577 = vmatpush1.bf16.msra.mxu0 %v1465
  %1578 = vmatprep.subr.bf16.mxu0 %v1462
  %1579 = vmatpush1.bf16.msra.mxu0 %v1461
  %1580 = vmatprep.subr.bf16.mxu0 0
  %1581 = vmatpush2.bf16.msra.mxu0 0
  %1582 = vmatprep.subr.bf16.mxu0 0
  %1583 = vmatpush2.bf16.msra.mxu0 0
  %1584 = vmatprep.subr.bf16.mxu0 0
  %1585 = vmatpush2.bf16.msra.mxu0 0
  %1586 = vmatprep.subr.bf16.mxu0 0
  %1587 = vmatpush2.bf16.msra.mxu0 0
  %1588 = vmatprep.subr.bf16.mxu0 0
  %1589 = vmatpush2.bf16.msra.mxu0 0
  %1590 = vmatprep.subr.bf16.mxu0 0
  %1591 = vmatpush2.bf16.msra.mxu0 0
  %1592 = vmatprep.subr.bf16.mxu0 0
  %1593 = vmatpush2.bf16.msra.mxu0 0
  %1594 = vmatprep.subr.bf16.mxu0 0
  %1595 = vmatpush2.bf16.msra.mxu0 0
  %1596 = vmatprep.mubr.bf16.mxu0 0
  %1597 = vmatmul.mubr.bf16.gmra.mxu0 %v1330
  %v1598 = vpop.f32.mrf.mxu0
  %v1599 = vadd.f32 0.0, %v1598
  %v1600 = vpop.f32.mrf.mxu0
  %v1601 = vadd.f32 0.0, %v1600
  %v1602 = vpop.f32.mrf.mxu0
  %v1603 = vpop.f32.mrf.mxu0
  %1604 = vdwg.mxu0
  %v1605 = vadd.f32 %v1326, %v1558
  %v1606 = vadd.f32 %v1327, %v1560
  %v1607 = vadd.f32 %v1328, %v1599
  %v1608 = vadd.f32 %v1329, %v1601
  %v1609 = vxor.u32 %v1605, 2147483648
  %v1610 = vxor.u32 %v1606, 2147483648
  %v1611 = vxor.u32 %v1607, 2147483648
  %v1612 = vmul.f32 %v1609, 1.442695
  %v1613 = vpow.pop %v1612
  %v1614 = vmul.f32 %v1610, 1.442695
  %v1615 = vpow.pop %v1614
  %v1616 = vmul.f32 %v1611, 1.442695
  %v1617 = vpow.pop %v1616
  %v1618 = vadd.f32 %v1613, 1.0
  %v1619 = vadd.f32 %v1615, 1.0
  %v1620 = vadd.f32 %v1617, 1.0
  %v1621 = vrcp.pop %v1618
  %v1622 = vmul.f32 1.0, %v1621
  %v1623 = vrcp.pop %v1619
  %v1624 = vmul.f32 1.0, %v1623
  %v1625 = vrcp.pop %v1620
  %v1626 = vmul.f32 1.0, %v1625
  %v1627 = vtanh.pop %v1608
  %v1628 = vmul.f32 %v1624, %v1325
  %v1629 = vmul.f32 %v1622, %v1627
  %v1630 = vadd.f32 %v1628, %v1629
  %v1631 = vtanh.pop %v1630
  %v1632 = vmul.f32 %v1626, %v1631
  %vm1633 = vcmp.gt.s32.totalorder %v22, 2
  %v1634 = vsel %vm1633, 1, 0
  %1635 = vset.pattern.permute.xlu0 0
  %1636 = vperm.xlu0 %1635, %v1634
  %v1637 = vpop.permute.xlu0 %1636
  %vm1638 = vcmp.eq.s32.totalorder %v1637, 1
  %v1639 = vsel %vm1638, %v1632, %v1324
  %v1640 = vsel %vm1638, %v1630, %v1325
  %v1641 = vsel %vm1638, %v1632, 0.0
  %1642 = vst [vmem:[#allocation2] sm:$0xff] %v1639
  %1643 = vst [vmem:[#allocation3] sm:$0xff] %v1640
  %s1644 = scalar_lea.vmem %s4, 32
  %1645 = vst [vmem:[%s1644] sm:$0xff] %v1641
  %s1646 = scalar_lea.vmem %s0, 160
  %v1647 = vld [vmem:[%s1646 + $0x10] sm:$0xff]
  %v1648 = vld [vmem:[%s1646 + $0x18] sm:$0xff]
  %v1649 = vld [vmem:[#allocation4] sm:$0xff]
  %v1650 = vld [vmem:[#allocation5] sm:$0xff]
  %v1651 = vunpack.c.l.bf16 %v1647
  %v1652 = vunpack.c.h.bf16 %v1647
  %v1653 = vunpack.c.l.bf16 %v1648
  %v1654 = vunpack.c.h.bf16 %v1648
  %v1655 = vpack.c.bf16 %v1649, %v1649
  %v1656 = vld [vmem:[%s2] sm:$0xff]
  %v1657 = vld [vmem:[%s2 + $0x8] sm:$0xff]
  %v1658 = vld [vmem:[%s2 + $0x10] sm:$0xff]
  %v1659 = vld [vmem:[%s2 + $0x18] sm:$0xff]
  %v1660 = vld [vmem:[%s2 + $0x20] sm:$0xff]
  %v1661 = vld [vmem:[%s2 + $0x28] sm:$0xff]
  %v1662 = vld [vmem:[%s2 + $0x30] sm:$0xff]
  %v1663 = vld [vmem:[%s2 + $0x38] sm:$0xff]
  %v1664 = vld [vmem:[%s2 + $0x40] sm:$0xff]
  %v1665 = vld [vmem:[%s2 + $0x48] sm:$0xff]
  %v1666 = vld [vmem:[%s2 + $0x50] sm:$0xff]
  %v1667 = vld [vmem:[%s2 + $0x58] sm:$0xff]
  %v1668 = vld [vmem:[%s2 + $0x60] sm:$0xff]
  %v1669 = vld [vmem:[%s2 + $0x68] sm:$0xff]
  %v1670 = vld [vmem:[%s2 + $0x70] sm:$0xff]
  %v1671 = vld [vmem:[%s2 + $0x78] sm:$0xff]
  %v1672 = vld [vmem:[%s2 + $0x80] sm:$0xff]
  %v1673 = vld [vmem:[%s2 + $0x88] sm:$0xff]
  %v1674 = vld [vmem:[%s2 + $0x90] sm:$0xff]
  %v1675 = vld [vmem:[%s2 + $0x98] sm:$0xff]
  %v1676 = vld [vmem:[%s2 + $0xa0] sm:$0xff]
  %v1677 = vld [vmem:[%s2 + $0xa8] sm:$0xff]
  %v1678 = vld [vmem:[%s2 + $0xb0] sm:$0xff]
  %v1679 = vld [vmem:[%s2 + $0xb8] sm:$0xff]
  %v1680 = vld [vmem:[%s2 + $0xc0] sm:$0xff]
  %v1681 = vld [vmem:[%s2 + $0xc8] sm:$0xff]
  %v1682 = vld [vmem:[%s2 + $0xd0] sm:$0xff]
  %v1683 = vld [vmem:[%s2 + $0xd8] sm:$0xff]
  %v1684 = vld [vmem:[%s2 + $0xe0] sm:$0xff]
  %v1685 = vld [vmem:[%s2 + $0xe8] sm:$0xff]
  %v1686 = vld [vmem:[%s2 + $0xf0] sm:$0xff]
  %v1687 = vld [vmem:[%s2 + $0xf8] sm:$0xff]
  %v1720 = vunpack.c.l.b16 %v1656
  %v1721 = vunpack.c.h.b16 %v1656
  %v1722 = vunpack.c.l.b16 %v1657
  %v1723 = vunpack.c.h.b16 %v1657
  %v1724 = vunpack.c.l.b16 %v1658
  %v1725 = vunpack.c.h.b16 %v1658
  %v1726 = vunpack.c.l.b16 %v1659
  %v1727 = vunpack.c.h.b16 %v1659
  %v1728 = vunpack.c.l.b16 %v1660
  %v1729 = vunpack.c.h.b16 %v1660
  %v1730 = vunpack.c.l.b16 %v1661
  %v1731 = vunpack.c.h.b16 %v1661
  %v1732 = vunpack.c.l.b16 %v1662
  %v1733 = vunpack.c.h.b16 %v1662
  %v1734 = vunpack.c.l.b16 %v1663
  %v1735 = vunpack.c.h.b16 %v1663
  %v1736 = vunpack.c.l.b16 %v1664
  %v1737 = vunpack.c.h.b16 %v1664
  %v1738 = vunpack.c.l.b16 %v1665
  %v1739 = vunpack.c.h.b16 %v1665
  %v1740 = vunpack.c.l.b16 %v1666
  %v1741 = vunpack.c.h.b16 %v1666
  %v1742 = vunpack.c.l.b16 %v1667
  %v1743 = vunpack.c.h.b16 %v1667
  %v1744 = vunpack.c.l.b16 %v1668
  %v1745 = vunpack.c.h.b16 %v1668
  %v1746 = vunpack.c.l.b16 %v1669
  %v1747 = vunpack.c.h.b16 %v1669
  %v1748 = vunpack.c.l.b16 %v1670
  %v1749 = vunpack.c.h.b16 %v1670
  %v1750 = vunpack.c.l.b16 %v1671
  %v1751 = vunpack.c.h.b16 %v1671
  %v1752 = vunpack.c.l.b16 %v1672
  %v1753 = vunpack.c.h.b16 %v1672
  %v1754 = vunpack.c.l.b16 %v1673
  %v1755 = vunpack.c.h.b16 %v1673
  %v1756 = vunpack.c.l.b16 %v1674
  %v1757 = vunpack.c.h.b16 %v1674
  %v1758 = vunpack.c.l.b16 %v1675
  %v1759 = vunpack.c.h.b16 %v1675
  %v1760 = vunpack.c.l.b16 %v1676
  %v1761 = vunpack.c.h.b16 %v1676
  %v1762 = vunpack.c.l.b16 %v1677
  %v1763 = vunpack.c.h.b16 %v1677
  %v1764 = vunpack.c.l.b16 %v1678
  %v1765 = vunpack.c.h.b16 %v1678
  %v1766 = vunpack.c.l.b16 %v1679
  %v1767 = vunpack.c.h.b16 %v1679
  %v1768 = vunpack.c.l.b16 %v1680
  %v1769 = vunpack.c.h.b16 %v1680
  %v1770 = vunpack.c.l.b16 %v1681
  %v1771 = vunpack.c.h.b16 %v1681
  %v1772 = vunpack.c.l.b16 %v1682
  %v1773 = vunpack.c.h.b16 %v1682
  %v1774 = vunpack.c.l.b16 %v1683
  %v1775 = vunpack.c.h.b16 %v1683
  %v1776 = vunpack.c.l.b16 %v1684
  %v1777 = vunpack.c.h.b16 %v1684
  %v1778 = vunpack.c.l.b16 %v1685
  %v1779 = vunpack.c.h.b16 %v1685
  %v1780 = vunpack.c.l.b16 %v1686
  %v1781 = vunpack.c.h.b16 %v1686
  %v1782 = vunpack.c.l.b16 %v1687
  %v1783 = vunpack.c.h.b16 %v1687
  %v1784 = vpack.c.b16 %v1724, %v1720
  %v1785 = vpack.c.b16 %v1725, %v1721
  %v1786 = vpack.c.b16 %v1726, %v1722
  %v1787 = vpack.c.b16 %v1727, %v1723
  %v1788 = vpack.c.b16 %v1732, %v1728
  %v1789 = vpack.c.b16 %v1733, %v1729
  %v1790 = vpack.c.b16 %v1734, %v1730
  %v1791 = vpack.c.b16 %v1735, %v1731
  %v1792 = vpack.c.b16 %v1740, %v1736
  %v1793 = vpack.c.b16 %v1741, %v1737
  %v1794 = vpack.c.b16 %v1742, %v1738
  %v1795 = vpack.c.b16 %v1743, %v1739
  %v1796 = vpack.c.b16 %v1748, %v1744
  %v1797 = vpack.c.b16 %v1749, %v1745
  %v1798 = vpack.c.b16 %v1750, %v1746
  %v1799 = vpack.c.b16 %v1751, %v1747
  %v1800 = vpack.c.b16 %v1756, %v1752
  %v1801 = vpack.c.b16 %v1757, %v1753
  %v1802 = vpack.c.b16 %v1758, %v1754
  %v1803 = vpack.c.b16 %v1759, %v1755
  %v1804 = vpack.c.b16 %v1764, %v1760
  %v1805 = vpack.c.b16 %v1765, %v1761
  %v1806 = vpack.c.b16 %v1766, %v1762
  %v1807 = vpack.c.b16 %v1767, %v1763
  %v1808 = vpack.c.b16 %v1772, %v1768
  %v1809 = vpack.c.b16 %v1773, %v1769
  %v1810 = vpack.c.b16 %v1774, %v1770
  %v1811 = vpack.c.b16 %v1775, %v1771
  %v1812 = vpack.c.b16 %v1780, %v1776
  %v1813 = vpack.c.b16 %v1781, %v1777
  %v1814 = vpack.c.b16 %v1782, %v1778
  %v1815 = vpack.c.b16 %v1783, %v1779
  %1848 = vmatprep.subr.bf16.mxu0 %v1813
  %1849 = vmatpush1.bf16.msra.mxu0 %v1812
  %1850 = vmatprep.subr.bf16.mxu0 %v1809
  %1851 = vmatpush1.bf16.msra.mxu0 %v1808
  %1852 = vmatprep.subr.bf16.mxu0 %v1805
  %1853 = vmatpush1.bf16.msra.mxu0 %v1804
  %1854 = vmatprep.subr.bf16.mxu0 %v1801
  %1855 = vmatpush1.bf16.msra.mxu0 %v1800
  %1856 = vmatprep.subr.bf16.mxu0 %v1797
  %1857 = vmatpush1.bf16.msra.mxu0 %v1796
  %1858 = vmatprep.subr.bf16.mxu0 %v1793
  %1859 = vmatpush1.bf16.msra.mxu0 %v1792
  %1860 = vmatprep.subr.bf16.mxu0 %v1789
  %1861 = vmatpush1.bf16.msra.mxu0 %v1788
  %1862 = vmatprep.subr.bf16.mxu0 %v1785
  %1863 = vmatpush1.bf16.msra.mxu0 %v1784
  %1864 = vmatprep.subr.bf16.mxu0 0
  %1865 = vmatpush2.bf16.msra.mxu0 0
  %1866 = vmatprep.subr.bf16.mxu0 0
  %1867 = vmatpush2.bf16.msra.mxu0 0
  %1868 = vmatprep.subr.bf16.mxu0 0
  %1869 = vmatpush2.bf16.msra.mxu0 0
  %1870 = vmatprep.subr.bf16.mxu0 0
  %1871 = vmatpush2.bf16.msra.mxu0 0
  %1872 = vmatprep.subr.bf16.mxu0 0
  %1873 = vmatpush2.bf16.msra.mxu0 0
  %1874 = vmatprep.subr.bf16.mxu0 0
  %1875 = vmatpush2.bf16.msra.mxu0 0
  %1876 = vmatprep.subr.bf16.mxu0 0
  %1877 = vmatpush2.bf16.msra.mxu0 0
  %1878 = vmatprep.subr.bf16.mxu0 0
  %1879 = vmatpush2.bf16.msra.mxu0 0
  %1880 = vmatprep.mubr.bf16.mxu0 0
  %1881 = vmatmul.mubr.bf16.gmra.mxu0 %v1655
  %v1882 = vpop.f32.mrf.mxu0
  %v1883 = vadd.f32 0.0, %v1882
  %v1884 = vpop.f32.mrf.mxu0
  %v1885 = vadd.f32 0.0, %v1884
  %v1886 = vpop.f32.mrf.mxu0
  %v1887 = vpop.f32.mrf.mxu0
  %1888 = vdwg.mxu0
  %1889 = vmatprep.subr.bf16.mxu0 %v1815
  %1890 = vmatpush1.bf16.msra.mxu0 %v1814
  %1891 = vmatprep.subr.bf16.mxu0 %v1811
  %1892 = vmatpush1.bf16.msra.mxu0 %v1810
  %1893 = vmatprep.subr.bf16.mxu0 %v1807
  %1894 = vmatpush1.bf16.msra.mxu0 %v1806
  %1895 = vmatprep.subr.bf16.mxu0 %v1803
  %1896 = vmatpush1.bf16.msra.mxu0 %v1802
  %1897 = vmatprep.subr.bf16.mxu0 %v1799
  %1898 = vmatpush1.bf16.msra.mxu0 %v1798
  %1899 = vmatprep.subr.bf16.mxu0 %v1795
  %1900 = vmatpush1.bf16.msra.mxu0 %v1794
  %1901 = vmatprep.subr.bf16.mxu0 %v1791
  %1902 = vmatpush1.bf16.msra.mxu0 %v1790
  %1903 = vmatprep.subr.bf16.mxu0 %v1787
  %1904 = vmatpush1.bf16.msra.mxu0 %v1786
  %1905 = vmatprep.subr.bf16.mxu0 0
  %1906 = vmatpush2.bf16.msra.mxu0 0
  %1907 = vmatprep.subr.bf16.mxu0 0
  %1908 = vmatpush2.bf16.msra.mxu0 0
  %1909 = vmatprep.subr.bf16.mxu0 0
  %1910 = vmatpush2.bf16.msra.mxu0 0
  %1911 = vmatprep.subr.bf16.mxu0 0
  %1912 = vmatpush2.bf16.msra.mxu0 0
  %1913 = vmatprep.subr.bf16.mxu0 0
  %1914 = vmatpush2.bf16.msra.mxu0 0
  %1915 = vmatprep.subr.bf16.mxu0 0
  %1916 = vmatpush2.bf16.msra.mxu0 0
  %1917 = vmatprep.subr.bf16.mxu0 0
  %1918 = vmatpush2.bf16.msra.mxu0 0
  %1919 = vmatprep.subr.bf16.mxu0 0
  %1920 = vmatpush2.bf16.msra.mxu0 0
  %1921 = vmatprep.mubr.bf16.mxu0 0
  %1922 = vmatmul.mubr.bf16.gmra.mxu0 %v1655
  %v1923 = vpop.f32.mrf.mxu0
  %v1924 = vadd.f32 0.0, %v1923
  %v1925 = vpop.f32.mrf.mxu0
  %v1926 = vadd.f32 0.0, %v1925
  %v1927 = vpop.f32.mrf.mxu0
  %v1928 = vpop.f32.mrf.mxu0
  %1929 = vdwg.mxu0
  %v1930 = vadd.f32 %v1651, %v1883
  %v1931 = vadd.f32 %v1652, %v1885
  %v1932 = vadd.f32 %v1653, %v1924
  %v1933 = vadd.f32 %v1654, %v1926
  %v1934 = vxor.u32 %v1930, 2147483648
  %v1935 = vxor.u32 %v1931, 2147483648
  %v1936 = vxor.u32 %v1932, 2147483648
  %v1937 = vmul.f32 %v1934, 1.442695
  %v1938 = vpow.pop %v1937
  %v1939 = vmul.f32 %v1935, 1.442695
  %v1940 = vpow.pop %v1939
  %v1941 = vmul.f32 %v1936, 1.442695
  %v1942 = vpow.pop %v1941
  %v1943 = vadd.f32 %v1938, 1.0
  %v1944 = vadd.f32 %v1940, 1.0
  %v1945 = vadd.f32 %v1942, 1.0
  %v1946 = vrcp.pop %v1943
  %v1947 = vmul.f32 1.0, %v1946
  %v1948 = vrcp.pop %v1944
  %v1949 = vmul.f32 1.0, %v1948
  %v1950 = vrcp.pop %v1945
  %v1951 = vmul.f32 1.0, %v1950
  %v1952 = vtanh.pop %v1933
  %v1953 = vmul.f32 %v1949, %v1650
  %v1954 = vmul.f32 %v1947, %v1952
  %v1955 = vadd.f32 %v1953, %v1954
  %v1956 = vtanh.pop %v1955
  %v1957 = vmul.f32 %v1951, %v1956
  %vm1958 = vcmp.gt.s32.totalorder %v22, 5
  %v1959 = vsel %vm1958, 1, 0
  %1960 = vset.pattern.permute.xlu0 0
  %1961 = vperm.xlu0 %1960, %v1959
  %v1962 = vpop.permute.xlu0 %1961
  %vm1963 = vcmp.eq.s32.totalorder %v1962, 1
  %v1964 = vsel %vm1963, %v1957, %v1649
  %v1965 = vsel %vm1963, %v1955, %v1650
  %v1966 = vsel %vm1963, %v1957, 0.0
  %1967 = vst [vmem:[#allocation4] sm:$0xff] %v1964
  %1968 = vst [vmem:[#allocation5] sm:$0xff] %v1965
  %s1969 = scalar_lea.vmem %s4, 80
  %1970 = vst [vmem:[%s1969 + $0x8] sm:$0xff] %v1966
  %s1971 = scalar_lea.vmem %s0, 96
  %v1972 = vld [vmem:[%s1971] sm:$0xff]
  %v1973 = vld [vmem:[%s1971 + $0x8] sm:$0xff]
  %v1974 = vld [vmem:[#allocation2] sm:$0xff]
  %v1975 = vld [vmem:[#allocation3] sm:$0xff]
  %v1976 = vunpack.c.l.bf16 %v1972
  %v1977 = vunpack.c.h.bf16 %v1972
  %v1978 = vunpack.c.l.bf16 %v1973
  %v1979 = vunpack.c.h.bf16 %v1973
  %v1980 = vpack.c.bf16 %v1974, %v1974
  %v1981 = vld [vmem:[%s1] sm:$0xff]
  %v1982 = vld [vmem:[%s1 + $0x8] sm:$0xff]
  %v1983 = vld [vmem:[%s1 + $0x10] sm:$0xff]
  %v1984 = vld [vmem:[%s1 + $0x18] sm:$0xff]
  %v1985 = vld [vmem:[%s1 + $0x20] sm:$0xff]
  %v1986 = vld [vmem:[%s1 + $0x28] sm:$0xff]
  %v1987 = vld [vmem:[%s1 + $0x30] sm:$0xff]
  %v1988 = vld [vmem:[%s1 + $0x38] sm:$0xff]
  %v1989 = vld [vmem:[%s1 + $0x40] sm:$0xff]
  %v1990 = vld [vmem:[%s1 + $0x48] sm:$0xff]
  %v1991 = vld [vmem:[%s1 + $0x50] sm:$0xff]
  %v1992 = vld [vmem:[%s1 + $0x58] sm:$0xff]
  %v1993 = vld [vmem:[%s1 + $0x60] sm:$0xff]
  %v1994 = vld [vmem:[%s1 + $0x68] sm:$0xff]
  %v1995 = vld [vmem:[%s1 + $0x70] sm:$0xff]
  %v1996 = vld [vmem:[%s1 + $0x78] sm:$0xff]
  %v1997 = vld [vmem:[%s1 + $0x80] sm:$0xff]
  %v1998 = vld [vmem:[%s1 + $0x88] sm:$0xff]
  %v1999 = vld [vmem:[%s1 + $0x90] sm:$0xff]
  %v2000 = vld [vmem:[%s1 + $0x98] sm:$0xff]
  %v2001 = vld [vmem:[%s1 + $0xa0] sm:$0xff]
  %v2002 = vld [vmem:[%s1 + $0xa8] sm:$0xff]
  %v2003 = vld [vmem:[%s1 + $0xb0] sm:$0xff]
  %v2004 = vld [vmem:[%s1 + $0xb8] sm:$0xff]
  %v2005 = vld [vmem:[%s1 + $0xc0] sm:$0xff]
  %v2006 = vld [vmem:[%s1 + $0xc8] sm:$0xff]
  %v2007 = vld [vmem:[%s1 + $0xd0] sm:$0xff]
  %v2008 = vld [vmem:[%s1 + $0xd8] sm:$0xff]
  %v2009 = vld [vmem:[%s1 + $0xe0] sm:$0xff]
  %v2010 = vld [vmem:[%s1 + $0xe8] sm:$0xff]
  %v2011 = vld [vmem:[%s1 + $0xf0] sm:$0xff]
  %v2012 = vld [vmem:[%s1 + $0xf8] sm:$0xff]
  %v2045 = vunpack.c.l.b16 %v1981
  %v2046 = vunpack.c.h.b16 %v1981
  %v2047 = vunpack.c.l.b16 %v1982
  %v2048 = vunpack.c.h.b16 %v1982
  %v2049 = vunpack.c.l.b16 %v1983
  %v2050 = vunpack.c.h.b16 %v1983
  %v2051 = vunpack.c.l.b16 %v1984
  %v2052 = vunpack.c.h.b16 %v1984
  %v2053 = vunpack.c.l.b16 %v1985
  %v2054 = vunpack.c.h.b16 %v1985
  %v2055 = vunpack.c.l.b16 %v1986
  %v2056 = vunpack.c.h.b16 %v1986
  %v2057 = vunpack.c.l.b16 %v1987
  %v2058 = vunpack.c.h.b16 %v1987
  %v2059 = vunpack.c.l.b16 %v1988
  %v2060 = vunpack.c.h.b16 %v1988
  %v2061 = vunpack.c.l.b16 %v1989
  %v2062 = vunpack.c.h.b16 %v1989
  %v2063 = vunpack.c.l.b16 %v1990
  %v2064 = vunpack.c.h.b16 %v1990
  %v2065 = vunpack.c.l.b16 %v1991
  %v2066 = vunpack.c.h.b16 %v1991
  %v2067 = vunpack.c.l.b16 %v1992
  %v2068 = vunpack.c.h.b16 %v1992
  %v2069 = vunpack.c.l.b16 %v1993
  %v2070 = vunpack.c.h.b16 %v1993
  %v2071 = vunpack.c.l.b16 %v1994
  %v2072 = vunpack.c.h.b16 %v1994
  %v2073 = vunpack.c.l.b16 %v1995
  %v2074 = vunpack.c.h.b16 %v1995
  %v2075 = vunpack.c.l.b16 %v1996
  %v2076 = vunpack.c.h.b16 %v1996
  %v2077 = vunpack.c.l.b16 %v1997
  %v2078 = vunpack.c.h.b16 %v1997
  %v2079 = vunpack.c.l.b16 %v1998
  %v2080 = vunpack.c.h.b16 %v1998
  %v2081 = vunpack.c.l.b16 %v1999
  %v2082 = vunpack.c.h.b16 %v1999
  %v2083 = vunpack.c.l.b16 %v2000
  %v2084 = vunpack.c.h.b16 %v2000
  %v2085 = vunpack.c.l.b16 %v2001
  %v2086 = vunpack.c.h.b16 %v2001
  %v2087 = vunpack.c.l.b16 %v2002
  %v2088 = vunpack.c.h.b16 %v2002
  %v2089 = vunpack.c.l.b16 %v2003
  %v2090 = vunpack.c.h.b16 %v2003
  %v2091 = vunpack.c.l.b16 %v2004
  %v2092 = vunpack.c.h.b16 %v2004
  %v2093 = vunpack.c.l.b16 %v2005
  %v2094 = vunpack.c.h.b16 %v2005
  %v2095 = vunpack.c.l.b16 %v2006
  %v2096 = vunpack.c.h.b16 %v2006
  %v2097 = vunpack.c.l.b16 %v2007
  %v2098 = vunpack.c.h.b16 %v2007
  %v2099 = vunpack.c.l.b16 %v2008
  %v2100 = vunpack.c.h.b16 %v2008
  %v2101 = vunpack.c.l.b16 %v2009
  %v2102 = vunpack.c.h.b16 %v2009
  %v2103 = vunpack.c.l.b16 %v2010
  %v2104 = vunpack.c.h.b16 %v2010
  %v2105 = vunpack.c.l.b16 %v2011
  %v2106 = vunpack.c.h.b16 %v2011
  %v2107 = vunpack.c.l.b16 %v2012
  %v2108 = vunpack.c.h.b16 %v2012
  %v2109 = vpack.c.b16 %v2049, %v2045
  %v2110 = vpack.c.b16 %v2050, %v2046
  %v2111 = vpack.c.b16 %v2051, %v2047
  %v2112 = vpack.c.b16 %v2052, %v2048
  %v2113 = vpack.c.b16 %v2057, %v2053
  %v2114 = vpack.c.b16 %v2058, %v2054
  %v2115 = vpack.c.b16 %v2059, %v2055
  %v2116 = vpack.c.b16 %v2060, %v2056
  %v2117 = vpack.c.b16 %v2065, %v2061
  %v2118 = vpack.c.b16 %v2066, %v2062
  %v2119 = vpack.c.b16 %v2067, %v2063
  %v2120 = vpack.c.b16 %v2068, %v2064
  %v2121 = vpack.c.b16 %v2073, %v2069
  %v2122 = vpack.c.b16 %v2074, %v2070
  %v2123 = vpack.c.b16 %v2075, %v2071
  %v2124 = vpack.c.b16 %v2076, %v2072
  %v2125 = vpack.c.b16 %v2081, %v2077
  %v2126 = vpack.c.b16 %v2082, %v2078
  %v2127 = vpack.c.b16 %v2083, %v2079
  %v2128 = vpack.c.b16 %v2084, %v2080
  %v2129 = vpack.c.b16 %v2089, %v2085
  %v2130 = vpack.c.b16 %v2090, %v2086
  %v2131 = vpack.c.b16 %v2091, %v2087
  %v2132 = vpack.c.b16 %v2092, %v2088
  %v2133 = vpack.c.b16 %v2097, %v2093
  %v2134 = vpack.c.b16 %v2098, %v2094
  %v2135 = vpack.c.b16 %v2099, %v2095
  %v2136 = vpack.c.b16 %v2100, %v2096
  %v2137 = vpack.c.b16 %v2105, %v2101
  %v2138 = vpack.c.b16 %v2106, %v2102
  %v2139 = vpack.c.b16 %v2107, %v2103
  %v2140 = vpack.c.b16 %v2108, %v2104
  %2173 = vmatprep.subr.bf16.mxu0 %v2138
  %2174 = vmatpush1.bf16.msra.mxu0 %v2137
  %2175 = vmatprep.subr.bf16.mxu0 %v2134
  %2176 = vmatpush1.bf16.msra.mxu0 %v2133
  %2177 = vmatprep.subr.bf16.mxu0 %v2130
  %2178 = vmatpush1.bf16.msra.mxu0 %v2129
  %2179 = vmatprep.subr.bf16.mxu0 %v2126
  %2180 = vmatpush1.bf16.msra.mxu0 %v2125
  %2181 = vmatprep.subr.bf16.mxu0 %v2122
  %2182 = vmatpush1.bf16.msra.mxu0 %v2121
  %2183 = vmatprep.subr.bf16.mxu0 %v2118
  %2184 = vmatpush1.bf16.msra.mxu0 %v2117
  %2185 = vmatprep.subr.bf16.mxu0 %v2114
  %2186 = vmatpush1.bf16.msra.mxu0 %v2113
  %2187 = vmatprep.subr.bf16.mxu0 %v2110
  %2188 = vmatpush1.bf16.msra.mxu0 %v2109
  %2189 = vmatprep.subr.bf16.mxu0 0
  %2190 = vmatpush2.bf16.msra.mxu0 0
  %2191 = vmatprep.subr.bf16.mxu0 0
  %2192 = vmatpush2.bf16.msra.mxu0 0
  %2193 = vmatprep.subr.bf16.mxu0 0
  %2194 = vmatpush2.bf16.msra.mxu0 0
  %2195 = vmatprep.subr.bf16.mxu0 0
  %2196 = vmatpush2.bf16.msra.mxu0 0
  %2197 = vmatprep.subr.bf16.mxu0 0
  %2198 = vmatpush2.bf16.msra.mxu0 0
  %2199 = vmatprep.subr.bf16.mxu0 0
  %2200 = vmatpush2.bf16.msra.mxu0 0
  %2201 = vmatprep.subr.bf16.mxu0 0
  %2202 = vmatpush2.bf16.msra.mxu0 0
  %2203 = vmatprep.subr.bf16.mxu0 0
  %2204 = vmatpush2.bf16.msra.mxu0 0
  %2205 = vmatprep.mubr.bf16.mxu0 0
  %2206 = vmatmul.mubr.bf16.gmra.mxu0 %v1980
  %v2207 = vpop.f32.mrf.mxu0
  %v2208 = vadd.f32 0.0, %v2207
  %v2209 = vpop.f32.mrf.mxu0
  %v2210 = vadd.f32 0.0, %v2209
  %v2211 = vpop.f32.mrf.mxu0
  %v2212 = vpop.f32.mrf.mxu0
  %2213 = vdwg.mxu0
  %2214 = vmatprep.subr.bf16.mxu0 %v2140
  %2215 = vmatpush1.bf16.msra.mxu0 %v2139
  %2216 = vmatprep.subr.bf16.mxu0 %v2136
  %2217 = vmatpush1.bf16.msra.mxu0 %v2135
  %2218 = vmatprep.subr.bf16.mxu0 %v2132
  %2219 = vmatpush1.bf16.msra.mxu0 %v2131
  %2220 = vmatprep.subr.bf16.mxu0 %v2128
  %2221 = vmatpush1.bf16.msra.mxu0 %v2127
  %2222 = vmatprep.subr.bf16.mxu0 %v2124
  %2223 = vmatpush1.bf16.msra.mxu0 %v2123
  %2224 = vmatprep.subr.bf16.mxu0 %v2120
  %2225 = vmatpush1.bf16.msra.mxu0 %v2119
  %2226 = vmatprep.subr.bf16.mxu0 %v2116
  %2227 = vmatpush1.bf16.msra.mxu0 %v2115
  %2228 = vmatprep.subr.bf16.mxu0 %v2112
  %2229 = vmatpush1.bf16.msra.mxu0 %v2111
  %2230 = vmatprep.subr.bf16.mxu0 0
  %2231 = vmatpush2.bf16.msra.mxu0 0
  %2232 = vmatprep.subr.bf16.mxu0 0
  %2233 = vmatpush2.bf16.msra.mxu0 0
  %2234 = vmatprep.subr.bf16.mxu0 0
  %2235 = vmatpush2.bf16.msra.mxu0 0
  %2236 = vmatprep.subr.bf16.mxu0 0
  %2237 = vmatpush2.bf16.msra.mxu0 0
  %2238 = vmatprep.subr.bf16.mxu0 0
  %2239 = vmatpush2.bf16.msra.mxu0 0
  %2240 = vmatprep.subr.bf16.mxu0 0
  %2241 = vmatpush2.bf16.msra.mxu0 0
  %2242 = vmatprep.subr.bf16.mxu0 0
  %2243 = vmatpush2.bf16.msra.mxu0 0
  %2244 = vmatprep.subr.bf16.mxu0 0
  %2245 = vmatpush2.bf16.msra.mxu0 0
  %2246 = vmatprep.mubr.bf16.mxu0 0
  %2247 = vmatmul.mubr.bf16.gmra.mxu0 %v1980
  %v2248 = vpop.f32.mrf.mxu0
  %v2249 = vadd.f32 0.0, %v2248
  %v2250 = vpop.f32.mrf.mxu0
  %v2251 = vadd.f32 0.0, %v2250
  %v2252 = vpop.f32.mrf.mxu0
  %v2253 = vpop.f32.mrf.mxu0
  %2254 = vdwg.mxu0
  %v2255 = vadd.f32 %v1976, %v2208
  %v2256 = vadd.f32 %v1977, %v2210
  %v2257 = vadd.f32 %v1978, %v2249
  %v2258 = vadd.f32 %v1979, %v2251
  %v2259 = vxor.u32 %v2255, 2147483648
  %v2260 = vxor.u32 %v2256, 2147483648
  %v2261 = vxor.u32 %v2257, 2147483648
  %v2262 = vmul.f32 %v2259, 1.442695
  %v2263 = vpow.pop %v2262
  %v2264 = vmul.f32 %v2260, 1.442695
  %v2265 = vpow.pop %v2264
  %v2266 = vmul.f32 %v2261, 1.442695
  %v2267 = vpow.pop %v2266
  %v2268 = vadd.f32 %v2263, 1.0
  %v2269 = vadd.f32 %v2265, 1.0
  %v2270 = vadd.f32 %v2267, 1.0
  %v2271 = vrcp.pop %v2268
  %v2272 = vmul.f32 1.0, %v2271
  %v2273 = vrcp.pop %v2269
  %v2274 = vmul.f32 1.0, %v2273
  %v2275 = vrcp.pop %v2270
  %v2276 = vmul.f32 1.0, %v2275
  %v2277 = vtanh.pop %v2258
  %v2278 = vmul.f32 %v2274, %v1975
  %v2279 = vmul.f32 %v2272, %v2277
  %v2280 = vadd.f32 %v2278, %v2279
  %v2281 = vtanh.pop %v2280
  %v2282 = vmul.f32 %v2276, %v2281
  %vm2283 = vcmp.gt.s32.totalorder %v22, 3
  %v2284 = vsel %vm2283, 1, 0
  %2285 = vset.pattern.permute.xlu0 0
  %2286 = vperm.xlu0 %2285, %v2284
  %v2287 = vpop.permute.xlu0 %2286
  %vm2288 = vcmp.eq.s32.totalorder %v2287, 1
  %v2289 = vsel %vm2288, %v2282, %v1974
  %v2290 = vsel %vm2288, %v2280, %v1975
  %v2291 = vsel %vm2288, %v2282, 0.0
  %2292 = vst [vmem:[#allocation2] sm:$0xff] %v2289
  %2293 = vst [vmem:[#allocation3] sm:$0xff] %v2290
  %s2294 = scalar_lea.vmem %s4, 48
  %2295 = vst [vmem:[%s2294] sm:$0xff] %v2291
  %s2296 = scalar_lea.vmem %s0, 128
  %v2297 = vld [vmem:[%s2296 + $0x10] sm:$0xff]
  %v2298 = vld [vmem:[%s2296 + $0x18] sm:$0xff]
  %v2299 = vld [vmem:[#allocation4] sm:$0xff]
  %v2300 = vld [vmem:[#allocation5] sm:$0xff]
  %v2301 = vunpack.c.l.bf16 %v2297
  %v2302 = vunpack.c.h.bf16 %v2297
  %v2303 = vunpack.c.l.bf16 %v2298
  %v2304 = vunpack.c.h.bf16 %v2298
  %v2305 = vpack.c.bf16 %v2299, %v2299
  %v2306 = vld [vmem:[%s2] sm:$0xff]
  %v2307 = vld [vmem:[%s2 + $0x8] sm:$0xff]
  %v2308 = vld [vmem:[%s2 + $0x10] sm:$0xff]
  %v2309 = vld [vmem:[%s2 + $0x18] sm:$0xff]
  %v2310 = vld [vmem:[%s2 + $0x20] sm:$0xff]
  %v2311 = vld [vmem:[%s2 + $0x28] sm:$0xff]
  %v2312 = vld [vmem:[%s2 + $0x30] sm:$0xff]
  %v2313 = vld [vmem:[%s2 + $0x38] sm:$0xff]
  %v2314 = vld [vmem:[%s2 + $0x40] sm:$0xff]
  %v2315 = vld [vmem:[%s2 + $0x48] sm:$0xff]
  %v2316 = vld [vmem:[%s2 + $0x50] sm:$0xff]
  %v2317 = vld [vmem:[%s2 + $0x58] sm:$0xff]
  %v2318 = vld [vmem:[%s2 + $0x60] sm:$0xff]
  %v2319 = vld [vmem:[%s2 + $0x68] sm:$0xff]
  %v2320 = vld [vmem:[%s2 + $0x70] sm:$0xff]
  %v2321 = vld [vmem:[%s2 + $0x78] sm:$0xff]
  %v2322 = vld [vmem:[%s2 + $0x80] sm:$0xff]
  %v2323 = vld [vmem:[%s2 + $0x88] sm:$0xff]
  %v2324 = vld [vmem:[%s2 + $0x90] sm:$0xff]
  %v2325 = vld [vmem:[%s2 + $0x98] sm:$0xff]
  %v2326 = vld [vmem:[%s2 + $0xa0] sm:$0xff]
  %v2327 = vld [vmem:[%s2 + $0xa8] sm:$0xff]
  %v2328 = vld [vmem:[%s2 + $0xb0] sm:$0xff]
  %v2329 = vld [vmem:[%s2 + $0xb8] sm:$0xff]
  %v2330 = vld [vmem:[%s2 + $0xc0] sm:$0xff]
  %v2331 = vld [vmem:[%s2 + $0xc8] sm:$0xff]
  %v2332 = vld [vmem:[%s2 + $0xd0] sm:$0xff]
  %v2333 = vld [vmem:[%s2 + $0xd8] sm:$0xff]
  %v2334 = vld [vmem:[%s2 + $0xe0] sm:$0xff]
  %v2335 = vld [vmem:[%s2 + $0xe8] sm:$0xff]
  %v2336 = vld [vmem:[%s2 + $0xf0] sm:$0xff]
  %v2337 = vld [vmem:[%s2 + $0xf8] sm:$0xff]
  %v2370 = vunpack.c.l.b16 %v2306
  %v2371 = vunpack.c.h.b16 %v2306
  %v2372 = vunpack.c.l.b16 %v2307
  %v2373 = vunpack.c.h.b16 %v2307
  %v2374 = vunpack.c.l.b16 %v2308
  %v2375 = vunpack.c.h.b16 %v2308
  %v2376 = vunpack.c.l.b16 %v2309
  %v2377 = vunpack.c.h.b16 %v2309
  %v2378 = vunpack.c.l.b16 %v2310
  %v2379 = vunpack.c.h.b16 %v2310
  %v2380 = vunpack.c.l.b16 %v2311
  %v2381 = vunpack.c.h.b16 %v2311
  %v2382 = vunpack.c.l.b16 %v2312
  %v2383 = vunpack.c.h.b16 %v2312
  %v2384 = vunpack.c.l.b16 %v2313
  %v2385 = vunpack.c.h.b16 %v2313
  %v2386 = vunpack.c.l.b16 %v2314
  %v2387 = vunpack.c.h.b16 %v2314
  %v2388 = vunpack.c.l.b16 %v2315
  %v2389 = vunpack.c.h.b16 %v2315
  %v2390 = vunpack.c.l.b16 %v2316
  %v2391 = vunpack.c.h.b16 %v2316
  %v2392 = vunpack.c.l.b16 %v2317
  %v2393 = vunpack.c.h.b16 %v2317
  %v2394 = vunpack.c.l.b16 %v2318
  %v2395 = vunpack.c.h.b16 %v2318
  %v2396 = vunpack.c.l.b16 %v2319
  %v2397 = vunpack.c.h.b16 %v2319
  %v2398 = vunpack.c.l.b16 %v2320
  %v2399 = vunpack.c.h.b16 %v2320
  %v2400 = vunpack.c.l.b16 %v2321
  %v2401 = vunpack.c.h.b16 %v2321
  %v2402 = vunpack.c.l.b16 %v2322
  %v2403 = vunpack.c.h.b16 %v2322
  %v2404 = vunpack.c.l.b16 %v2323
  %v2405 = vunpack.c.h.b16 %v2323
  %v2406 = vunpack.c.l.b16 %v2324
  %v2407 = vunpack.c.h.b16 %v2324
  %v2408 = vunpack.c.l.b16 %v2325
  %v2409 = vunpack.c.h.b16 %v2325
  %v2410 = vunpack.c.l.b16 %v2326
  %v2411 = vunpack.c.h.b16 %v2326
  %v2412 = vunpack.c.l.b16 %v2327
  %v2413 = vunpack.c.h.b16 %v2327
  %v2414 = vunpack.c.l.b16 %v2328
  %v2415 = vunpack.c.h.b16 %v2328
  %v2416 = vunpack.c.l.b16 %v2329
  %v2417 = vunpack.c.h.b16 %v2329
  %v2418 = vunpack.c.l.b16 %v2330
  %v2419 = vunpack.c.h.b16 %v2330
  %v2420 = vunpack.c.l.b16 %v2331
  %v2421 = vunpack.c.h.b16 %v2331
  %v2422 = vunpack.c.l.b16 %v2332
  %v2423 = vunpack.c.h.b16 %v2332
  %v2424 = vunpack.c.l.b16 %v2333
  %v2425 = vunpack.c.h.b16 %v2333
  %v2426 = vunpack.c.l.b16 %v2334
  %v2427 = vunpack.c.h.b16 %v2334
  %v2428 = vunpack.c.l.b16 %v2335
  %v2429 = vunpack.c.h.b16 %v2335
  %v2430 = vunpack.c.l.b16 %v2336
  %v2431 = vunpack.c.h.b16 %v2336
  %v2432 = vunpack.c.l.b16 %v2337
  %v2433 = vunpack.c.h.b16 %v2337
  %v2434 = vpack.c.b16 %v2374, %v2370
  %v2435 = vpack.c.b16 %v2375, %v2371
  %v2436 = vpack.c.b16 %v2376, %v2372
  %v2437 = vpack.c.b16 %v2377, %v2373
  %v2438 = vpack.c.b16 %v2382, %v2378
  %v2439 = vpack.c.b16 %v2383, %v2379
  %v2440 = vpack.c.b16 %v2384, %v2380
  %v2441 = vpack.c.b16 %v2385, %v2381
  %v2442 = vpack.c.b16 %v2390, %v2386
  %v2443 = vpack.c.b16 %v2391, %v2387
  %v2444 = vpack.c.b16 %v2392, %v2388
  %v2445 = vpack.c.b16 %v2393, %v2389
  %v2446 = vpack.c.b16 %v2398, %v2394
  %v2447 = vpack.c.b16 %v2399, %v2395
  %v2448 = vpack.c.b16 %v2400, %v2396
  %v2449 = vpack.c.b16 %v2401, %v2397
  %v2450 = vpack.c.b16 %v2406, %v2402
  %v2451 = vpack.c.b16 %v2407, %v2403
  %v2452 = vpack.c.b16 %v2408, %v2404
  %v2453 = vpack.c.b16 %v2409, %v2405
  %v2454 = vpack.c.b16 %v2414, %v2410
  %v2455 = vpack.c.b16 %v2415, %v2411
  %v2456 = vpack.c.b16 %v2416, %v2412
  %v2457 = vpack.c.b16 %v2417, %v2413
  %v2458 = vpack.c.b16 %v2422, %v2418
  %v2459 = vpack.c.b16 %v2423, %v2419
  %v2460 = vpack.c.b16 %v2424, %v2420
  %v2461 = vpack.c.b16 %v2425, %v2421
  %v2462 = vpack.c.b16 %v2430, %v2426
  %v2463 = vpack.c.b16 %v2431, %v2427
  %v2464 = vpack.c.b16 %v2432, %v2428
  %v2465 = vpack.c.b16 %v2433, %v2429
  %2498 = vmatprep.subr.bf16.mxu0 %v2463
  %2499 = vmatpush1.bf16.msra.mxu0 %v2462
  %2500 = vmatprep.subr.bf16.mxu0 %v2459
  %2501 = vmatpush1.bf16.msra.mxu0 %v2458
  %2502 = vmatprep.subr.bf16.mxu0 %v2455
  %2503 = vmatpush1.bf16.msra.mxu0 %v2454
  %2504 = vmatprep.subr.bf16.mxu0 %v2451
  %2505 = vmatpush1.bf16.msra.mxu0 %v2450
  %2506 = vmatprep.subr.bf16.mxu0 %v2447
  %2507 = vmatpush1.bf16.msra.mxu0 %v2446
  %2508 = vmatprep.subr.bf16.mxu0 %v2443
  %2509 = vmatpush1.bf16.msra.mxu0 %v2442
  %2510 = vmatprep.subr.bf16.mxu0 %v2439
  %2511 = vmatpush1.bf16.msra.mxu0 %v2438
  %2512 = vmatprep.subr.bf16.mxu0 %v2435
  %2513 = vmatpush1.bf16.msra.mxu0 %v2434
  %2514 = vmatprep.subr.bf16.mxu0 0
  %2515 = vmatpush2.bf16.msra.mxu0 0
  %2516 = vmatprep.subr.bf16.mxu0 0
  %2517 = vmatpush2.bf16.msra.mxu0 0
  %2518 = vmatprep.subr.bf16.mxu0 0
  %2519 = vmatpush2.bf16.msra.mxu0 0
  %2520 = vmatprep.subr.bf16.mxu0 0
  %2521 = vmatpush2.bf16.msra.mxu0 0
  %2522 = vmatprep.subr.bf16.mxu0 0
  %2523 = vmatpush2.bf16.msra.mxu0 0
  %2524 = vmatprep.subr.bf16.mxu0 0
  %2525 = vmatpush2.bf16.msra.mxu0 0
  %2526 = vmatprep.subr.bf16.mxu0 0
  %2527 = vmatpush2.bf16.msra.mxu0 0
  %2528 = vmatprep.subr.bf16.mxu0 0
  %2529 = vmatpush2.bf16.msra.mxu0 0
  %2530 = vmatprep.mubr.bf16.mxu0 0
  %2531 = vmatmul.mubr.bf16.gmra.mxu0 %v2305
  %v2532 = vpop.f32.mrf.mxu0
  %v2533 = vadd.f32 0.0, %v2532
  %v2534 = vpop.f32.mrf.mxu0
  %v2535 = vadd.f32 0.0, %v2534
  %v2536 = vpop.f32.mrf.mxu0
  %v2537 = vpop.f32.mrf.mxu0
  %2538 = vdwg.mxu0
  %2539 = vmatprep.subr.bf16.mxu0 %v2465
  %2540 = vmatpush1.bf16.msra.mxu0 %v2464
  %2541 = vmatprep.subr.bf16.mxu0 %v2461
  %2542 = vmatpush1.bf16.msra.mxu0 %v2460
  %2543 = vmatprep.subr.bf16.mxu0 %v2457
  %2544 = vmatpush1.bf16.msra.mxu0 %v2456
  %2545 = vmatprep.subr.bf16.mxu0 %v2453
  %2546 = vmatpush1.bf16.msra.mxu0 %v2452
  %2547 = vmatprep.subr.bf16.mxu0 %v2449
  %2548 = vmatpush1.bf16.msra.mxu0 %v2448
  %2549 = vmatprep.subr.bf16.mxu0 %v2445
  %2550 = vmatpush1.bf16.msra.mxu0 %v2444
  %2551 = vmatprep.subr.bf16.mxu0 %v2441
  %2552 = vmatpush1.bf16.msra.mxu0 %v2440
  %2553 = vmatprep.subr.bf16.mxu0 %v2437
  %2554 = vmatpush1.bf16.msra.mxu0 %v2436
  %2555 = vmatprep.subr.bf16.mxu0 0
  %2556 = vmatpush2.bf16.msra.mxu0 0
  %2557 = vmatprep.subr.bf16.mxu0 0
  %2558 = vmatpush2.bf16.msra.mxu0 0
  %2559 = vmatprep.subr.bf16.mxu0 0
  %2560 = vmatpush2.bf16.msra.mxu0 0
  %2561 = vmatprep.subr.bf16.mxu0 0
  %2562 = vmatpush2.bf16.msra.mxu0 0
  %2563 = vmatprep.subr.bf16.mxu0 0
  %2564 = vmatpush2.bf16.msra.mxu0 0
  %2565 = vmatprep.subr.bf16.mxu0 0
  %2566 = vmatpush2.bf16.msra.mxu0 0
  %2567 = vmatprep.subr.bf16.mxu0 0
  %2568 = vmatpush2.bf16.msra.mxu0 0
  %2569 = vmatprep.subr.bf16.mxu0 0
  %2570 = vmatpush2.bf16.msra.mxu0 0
  %2571 = vmatprep.mubr.bf16.mxu0 0
  %2572 = vmatmul.mubr.bf16.gmra.mxu0 %v2305
  %v2573 = vpop.f32.mrf.mxu0
  %v2574 = vadd.f32 0.0, %v2573
  %v2575 = vpop.f32.mrf.mxu0
  %v2576 = vadd.f32 0.0, %v2575
  %v2577 = vpop.f32.mrf.mxu0
  %v2578 = vpop.f32.mrf.mxu0
  %2579 = vdwg.mxu0
  %v2580 = vadd.f32 %v2301, %v2533
  %v2581 = vadd.f32 %v2302, %v2535
  %v2582 = vadd.f32 %v2303, %v2574
  %v2583 = vadd.f32 %v2304, %v2576
  %v2584 = vxor.u32 %v2580, 2147483648
  %v2585 = vxor.u32 %v2581, 2147483648
  %v2586 = vxor.u32 %v2582, 2147483648
  %v2587 = vmul.f32 %v2584, 1.442695
  %v2588 = vpow.pop %v2587
  %v2589 = vmul.f32 %v2585, 1.442695
  %v2590 = vpow.pop %v2589
  %v2591 = vmul.f32 %v2586, 1.442695
  %v2592 = vpow.pop %v2591
  %v2593 = vadd.f32 %v2588, 1.0
  %v2594 = vadd.f32 %v2590, 1.0
  %v2595 = vadd.f32 %v2592, 1.0
  %v2596 = vrcp.pop %v2593
  %v2597 = vmul.f32 1.0, %v2596
  %v2598 = vrcp.pop %v2594
  %v2599 = vmul.f32 1.0, %v2598
  %v2600 = vrcp.pop %v2595
  %v2601 = vmul.f32 1.0, %v2600
  %v2602 = vtanh.pop %v2583
  %v2603 = vmul.f32 %v2599, %v2300
  %v2604 = vmul.f32 %v2597, %v2602
  %v2605 = vadd.f32 %v2603, %v2604
  %v2606 = vtanh.pop %v2605
  %v2607 = vmul.f32 %v2601, %v2606
  %vm2608 = vcmp.gt.s32.totalorder %v22, 4
  %v2609 = vsel %vm2608, 1, 0
  %2610 = vset.pattern.permute.xlu0 0
  %2611 = vperm.xlu0 %2610, %v2609
  %v2612 = vpop.permute.xlu0 %2611
  %vm2613 = vcmp.eq.s32.totalorder %v2612, 1
  %v2614 = vsel %vm2613, %v2607, %v2299
  %v2615 = vsel %vm2613, %v2605, %v2300
  %v2616 = vsel %vm2613, %v2607, 0.0
  %2617 = vst [vmem:[#allocation4] sm:$0xff] %v2614
  %2618 = vst [vmem:[#allocation5] sm:$0xff] %v2615
  %s2619 = scalar_lea.vmem %s4, 64
  %2620 = vst [vmem:[%s2619 + $0x8] sm:$0xff] %v2616
  %v2621 = vld [vmem:[%s2296] sm:$0xff]
  %v2622 = vld [vmem:[%s2296 + $0x8] sm:$0xff]
  %v2623 = vld [vmem:[#allocation2] sm:$0xff]
  %v2624 = vld [vmem:[#allocation3] sm:$0xff]
  %v2625 = vunpack.c.l.bf16 %v2621
  %v2626 = vunpack.c.h.bf16 %v2621
  %v2627 = vunpack.c.l.bf16 %v2622
  %v2628 = vunpack.c.h.bf16 %v2622
  %v2629 = vpack.c.bf16 %v2623, %v2623
  %v2630 = vld [vmem:[%s1] sm:$0xff]
  %v2631 = vld [vmem:[%s1 + $0x8] sm:$0xff]
  %v2632 = vld [vmem:[%s1 + $0x10] sm:$0xff]
  %v2633 = vld [vmem:[%s1 + $0x18] sm:$0xff]
  %v2634 = vld [vmem:[%s1 + $0x20] sm:$0xff]
  %v2635 = vld [vmem:[%s1 + $0x28] sm:$0xff]
  %v2636 = vld [vmem:[%s1 + $0x30] sm:$0xff]
  %v2637 = vld [vmem:[%s1 + $0x38] sm:$0xff]
  %v2638 = vld [vmem:[%s1 + $0x40] sm:$0xff]
  %v2639 = vld [vmem:[%s1 + $0x48] sm:$0xff]
  %v2640 = vld [vmem:[%s1 + $0x50] sm:$0xff]
  %v2641 = vld [vmem:[%s1 + $0x58] sm:$0xff]
  %v2642 = vld [vmem:[%s1 + $0x60] sm:$0xff]
  %v2643 = vld [vmem:[%s1 + $0x68] sm:$0xff]
  %v2644 = vld [vmem:[%s1 + $0x70] sm:$0xff]
  %v2645 = vld [vmem:[%s1 + $0x78] sm:$0xff]
  %v2646 = vld [vmem:[%s1 + $0x80] sm:$0xff]
  %v2647 = vld [vmem:[%s1 + $0x88] sm:$0xff]
  %v2648 = vld [vmem:[%s1 + $0x90] sm:$0xff]
  %v2649 = vld [vmem:[%s1 + $0x98] sm:$0xff]
  %v2650 = vld [vmem:[%s1 + $0xa0] sm:$0xff]
  %v2651 = vld [vmem:[%s1 + $0xa8] sm:$0xff]
  %v2652 = vld [vmem:[%s1 + $0xb0] sm:$0xff]
  %v2653 = vld [vmem:[%s1 + $0xb8] sm:$0xff]
  %v2654 = vld [vmem:[%s1 + $0xc0] sm:$0xff]
  %v2655 = vld [vmem:[%s1 + $0xc8] sm:$0xff]
  %v2656 = vld [vmem:[%s1 + $0xd0] sm:$0xff]
  %v2657 = vld [vmem:[%s1 + $0xd8] sm:$0xff]
  %v2658 = vld [vmem:[%s1 + $0xe0] sm:$0xff]
  %v2659 = vld [vmem:[%s1 + $0xe8] sm:$0xff]
  %v2660 = vld [vmem:[%s1 + $0xf0] sm:$0xff]
  %v2661 = vld [vmem:[%s1 + $0xf8] sm:$0xff]
  %v2694 = vunpack.c.l.b16 %v2630
  %v2695 = vunpack.c.h.b16 %v2630
  %v2696 = vunpack.c.l.b16 %v2631
  %v2697 = vunpack.c.h.b16 %v2631
  %v2698 = vunpack.c.l.b16 %v2632
  %v2699 = vunpack.c.h.b16 %v2632
  %v2700 = vunpack.c.l.b16 %v2633
  %v2701 = vunpack.c.h.b16 %v2633
  %v2702 = vunpack.c.l.b16 %v2634
  %v2703 = vunpack.c.h.b16 %v2634
  %v2704 = vunpack.c.l.b16 %v2635
  %v2705 = vunpack.c.h.b16 %v2635
  %v2706 = vunpack.c.l.b16 %v2636
  %v2707 = vunpack.c.h.b16 %v2636
  %v2708 = vunpack.c.l.b16 %v2637
  %v2709 = vunpack.c.h.b16 %v2637
  %v2710 = vunpack.c.l.b16 %v2638
  %v2711 = vunpack.c.h.b16 %v2638
  %v2712 = vunpack.c.l.b16 %v2639
  %v2713 = vunpack.c.h.b16 %v2639
  %v2714 = vunpack.c.l.b16 %v2640
  %v2715 = vunpack.c.h.b16 %v2640
  %v2716 = vunpack.c.l.b16 %v2641
  %v2717 = vunpack.c.h.b16 %v2641
  %v2718 = vunpack.c.l.b16 %v2642
  %v2719 = vunpack.c.h.b16 %v2642
  %v2720 = vunpack.c.l.b16 %v2643
  %v2721 = vunpack.c.h.b16 %v2643
  %v2722 = vunpack.c.l.b16 %v2644
  %v2723 = vunpack.c.h.b16 %v2644
  %v2724 = vunpack.c.l.b16 %v2645
  %v2725 = vunpack.c.h.b16 %v2645
  %v2726 = vunpack.c.l.b16 %v2646
  %v2727 = vunpack.c.h.b16 %v2646
  %v2728 = vunpack.c.l.b16 %v2647
  %v2729 = vunpack.c.h.b16 %v2647
  %v2730 = vunpack.c.l.b16 %v2648
  %v2731 = vunpack.c.h.b16 %v2648
  %v2732 = vunpack.c.l.b16 %v2649
  %v2733 = vunpack.c.h.b16 %v2649
  %v2734 = vunpack.c.l.b16 %v2650
  %v2735 = vunpack.c.h.b16 %v2650
  %v2736 = vunpack.c.l.b16 %v2651
  %v2737 = vunpack.c.h.b16 %v2651
  %v2738 = vunpack.c.l.b16 %v2652
  %v2739 = vunpack.c.h.b16 %v2652
  %v2740 = vunpack.c.l.b16 %v2653
  %v2741 = vunpack.c.h.b16 %v2653
  %v2742 = vunpack.c.l.b16 %v2654
  %v2743 = vunpack.c.h.b16 %v2654
  %v2744 = vunpack.c.l.b16 %v2655
  %v2745 = vunpack.c.h.b16 %v2655
  %v2746 = vunpack.c.l.b16 %v2656
  %v2747 = vunpack.c.h.b16 %v2656
  %v2748 = vunpack.c.l.b16 %v2657
  %v2749 = vunpack.c.h.b16 %v2657
  %v2750 = vunpack.c.l.b16 %v2658
  %v2751 = vunpack.c.h.b16 %v2658
  %v2752 = vunpack.c.l.b16 %v2659
  %v2753 = vunpack.c.h.b16 %v2659
  %v2754 = vunpack.c.l.b16 %v2660
  %v2755 = vunpack.c.h.b16 %v2660
  %v2756 = vunpack.c.l.b16 %v2661
  %v2757 = vunpack.c.h.b16 %v2661
  %v2758 = vpack.c.b16 %v2698, %v2694
  %v2759 = vpack.c.b16 %v2699, %v2695
  %v2760 = vpack.c.b16 %v2700, %v2696
  %v2761 = vpack.c.b16 %v2701, %v2697
  %v2762 = vpack.c.b16 %v2706, %v2702
  %v2763 = vpack.c.b16 %v2707, %v2703
  %v2764 = vpack.c.b16 %v2708, %v2704
  %v2765 = vpack.c.b16 %v2709, %v2705
  %v2766 = vpack.c.b16 %v2714, %v2710
  %v2767 = vpack.c.b16 %v2715, %v2711
  %v2768 = vpack.c.b16 %v2716, %v2712
  %v2769 = vpack.c.b16 %v2717, %v2713
  %v2770 = vpack.c.b16 %v2722, %v2718
  %v2771 = vpack.c.b16 %v2723, %v2719
  %v2772 = vpack.c.b16 %v2724, %v2720
  %v2773 = vpack.c.b16 %v2725, %v2721
  %v2774 = vpack.c.b16 %v2730, %v2726
  %v2775 = vpack.c.b16 %v2731, %v2727
  %v2776 = vpack.c.b16 %v2732, %v2728
  %v2777 = vpack.c.b16 %v2733, %v2729
  %v2778 = vpack.c.b16 %v2738, %v2734
  %v2779 = vpack.c.b16 %v2739, %v2735
  %v2780 = vpack.c.b16 %v2740, %v2736
  %v2781 = vpack.c.b16 %v2741, %v2737
  %v2782 = vpack.c.b16 %v2746, %v2742
  %v2783 = vpack.c.b16 %v2747, %v2743
  %v2784 = vpack.c.b16 %v2748, %v2744
  %v2785 = vpack.c.b16 %v2749, %v2745
  %v2786 = vpack.c.b16 %v2754, %v2750
  %v2787 = vpack.c.b16 %v2755, %v2751
  %v2788 = vpack.c.b16 %v2756, %v2752
  %v2789 = vpack.c.b16 %v2757, %v2753
  %2822 = vmatprep.subr.bf16.mxu0 %v2787
  %2823 = vmatpush1.bf16.msra.mxu0 %v2786
  %2824 = vmatprep.subr.bf16.mxu0 %v2783
  %2825 = vmatpush1.bf16.msra.mxu0 %v2782
  %2826 = vmatprep.subr.bf16.mxu0 %v2779
  %2827 = vmatpush1.bf16.msra.mxu0 %v2778
  %2828 = vmatprep.subr.bf16.mxu0 %v2775
  %2829 = vmatpush1.bf16.msra.mxu0 %v2774
  %2830 = vmatprep.subr.bf16.mxu0 %v2771
  %2831 = vmatpush1.bf16.msra.mxu0 %v2770
  %2832 = vmatprep.subr.bf16.mxu0 %v2767
  %2833 = vmatpush1.bf16.msra.mxu0 %v2766
  %2834 = vmatprep.subr.bf16.mxu0 %v2763
  %2835 = vmatpush1.bf16.msra.mxu0 %v2762
  %2836 = vmatprep.subr.bf16.mxu0 %v2759
  %2837 = vmatpush1.bf16.msra.mxu0 %v2758
  %2838 = vmatprep.subr.bf16.mxu0 0
  %2839 = vmatpush2.bf16.msra.mxu0 0
  %2840 = vmatprep.subr.bf16.mxu0 0
  %2841 = vmatpush2.bf16.msra.mxu0 0
  %2842 = vmatprep.subr.bf16.mxu0 0
  %2843 = vmatpush2.bf16.msra.mxu0 0
  %2844 = vmatprep.subr.bf16.mxu0 0
  %2845 = vmatpush2.bf16.msra.mxu0 0
  %2846 = vmatprep.subr.bf16.mxu0 0
  %2847 = vmatpush2.bf16.msra.mxu0 0
  %2848 = vmatprep.subr.bf16.mxu0 0
  %2849 = vmatpush2.bf16.msra.mxu0 0
  %2850 = vmatprep.subr.bf16.mxu0 0
  %2851 = vmatpush2.bf16.msra.mxu0 0
  %2852 = vmatprep.subr.bf16.mxu0 0
  %2853 = vmatpush2.bf16.msra.mxu0 0
  %2854 = vmatprep.mubr.bf16.mxu0 0
  %2855 = vmatmul.mubr.bf16.gmra.mxu0 %v2629
  %v2856 = vpop.f32.mrf.mxu0
  %v2857 = vadd.f32 0.0, %v2856
  %v2858 = vpop.f32.mrf.mxu0
  %v2859 = vadd.f32 0.0, %v2858
  %v2860 = vpop.f32.mrf.mxu0
  %v2861 = vpop.f32.mrf.mxu0
  %2862 = vdwg.mxu0
  %2863 = vmatprep.subr.bf16.mxu0 %v2789
  %2864 = vmatpush1.bf16.msra.mxu0 %v2788
  %2865 = vmatprep.subr.bf16.mxu0 %v2785
  %2866 = vmatpush1.bf16.msra.mxu0 %v2784
  %2867 = vmatprep.subr.bf16.mxu0 %v2781
  %2868 = vmatpush1.bf16.msra.mxu0 %v2780
  %2869 = vmatprep.subr.bf16.mxu0 %v2777
  %2870 = vmatpush1.bf16.msra.mxu0 %v2776
  %2871 = vmatprep.subr.bf16.mxu0 %v2773
  %2872 = vmatpush1.bf16.msra.mxu0 %v2772
  %2873 = vmatprep.subr.bf16.mxu0 %v2769
  %2874 = vmatpush1.bf16.msra.mxu0 %v2768
  %2875 = vmatprep.subr.bf16.mxu0 %v2765
  %2876 = vmatpush1.bf16.msra.mxu0 %v2764
  %2877 = vmatprep.subr.bf16.mxu0 %v2761
  %2878 = vmatpush1.bf16.msra.mxu0 %v2760
  %2879 = vmatprep.subr.bf16.mxu0 0
  %2880 = vmatpush2.bf16.msra.mxu0 0
  %2881 = vmatprep.subr.bf16.mxu0 0
  %2882 = vmatpush2.bf16.msra.mxu0 0
  %2883 = vmatprep.subr.bf16.mxu0 0
  %2884 = vmatpush2.bf16.msra.mxu0 0
  %2885 = vmatprep.subr.bf16.mxu0 0
  %2886 = vmatpush2.bf16.msra.mxu0 0
  %2887 = vmatprep.subr.bf16.mxu0 0
  %2888 = vmatpush2.bf16.msra.mxu0 0
  %2889 = vmatprep.subr.bf16.mxu0 0
  %2890 = vmatpush2.bf16.msra.mxu0 0
  %2891 = vmatprep.subr.bf16.mxu0 0
  %2892 = vmatpush2.bf16.msra.mxu0 0
  %2893 = vmatprep.subr.bf16.mxu0 0
  %2894 = vmatpush2.bf16.msra.mxu0 0
  %2895 = vmatprep.mubr.bf16.mxu0 0
  %2896 = vmatmul.mubr.bf16.gmra.mxu0 %v2629
  %v2897 = vpop.f32.mrf.mxu0
  %v2898 = vadd.f32 0.0, %v2897
  %v2899 = vpop.f32.mrf.mxu0
  %v2900 = vadd.f32 0.0, %v2899
  %v2901 = vpop.f32.mrf.mxu0
  %v2902 = vpop.f32.mrf.mxu0
  %2903 = vdwg.mxu0
  %v2904 = vadd.f32 %v2625, %v2857
  %v2905 = vadd.f32 %v2626, %v2859
  %v2906 = vadd.f32 %v2627, %v2898
  %v2907 = vadd.f32 %v2628, %v2900
  %v2908 = vxor.u32 %v2904, 2147483648
  %v2909 = vxor.u32 %v2905, 2147483648
  %v2910 = vxor.u32 %v2906, 2147483648
  %v2911 = vmul.f32 %v2908, 1.442695
  %v2912 = vpow.pop %v2911
  %v2913 = vmul.f32 %v2909, 1.442695
  %v2914 = vpow.pop %v2913
  %v2915 = vmul.f32 %v2910, 1.442695
  %v2916 = vpow.pop %v2915
  %v2917 = vadd.f32 %v2912, 1.0
  %v2918 = vadd.f32 %v2914, 1.0
  %v2919 = vadd.f32 %v2916, 1.0
  %v2920 = vrcp.pop %v2917
  %v2921 = vmul.f32 1.0, %v2920
  %v2922 = vrcp.pop %v2918
  %v2923 = vmul.f32 1.0, %v2922
  %v2924 = vrcp.pop %v2919
  %v2925 = vmul.f32 1.0, %v2924
  %v2926 = vtanh.pop %v2907
  %v2927 = vmul.f32 %v2923, %v2624
  %v2928 = vmul.f32 %v2921, %v2926
  %v2929 = vadd.f32 %v2927, %v2928
  %v2930 = vtanh.pop %v2929
  %v2931 = vmul.f32 %v2925, %v2930
  %v2932 = vsel %vm2613, %v2931, %v2623
  %v2933 = vsel %vm2613, %v2929, %v2624
  %v2934 = vsel %vm2613, %v2931, 0.0
  %2935 = vst [vmem:[#allocation2] sm:$0xff] %v2932
  %2936 = vst [vmem:[#allocation3] sm:$0xff] %v2933
  %2937 = vst [vmem:[%s2619] sm:$0xff] %v2934
  %v2938 = vld [vmem:[%s1971 + $0x10] sm:$0xff]
  %v2939 = vld [vmem:[%s1971 + $0x18] sm:$0xff]
  %v2940 = vld [vmem:[#allocation4] sm:$0xff]
  %v2941 = vld [vmem:[#allocation5] sm:$0xff]
  %v2942 = vunpack.c.l.bf16 %v2938
  %v2943 = vunpack.c.h.bf16 %v2938
  %v2944 = vunpack.c.l.bf16 %v2939
  %v2945 = vunpack.c.h.bf16 %v2939
  %v2946 = vpack.c.bf16 %v2940, %v2940
  %v2947 = vld [vmem:[%s2] sm:$0xff]
  %v2948 = vld [vmem:[%s2 + $0x8] sm:$0xff]
  %v2949 = vld [vmem:[%s2 + $0x10] sm:$0xff]
  %v2950 = vld [vmem:[%s2 + $0x18] sm:$0xff]
  %v2951 = vld [vmem:[%s2 + $0x20] sm:$0xff]
  %v2952 = vld [vmem:[%s2 + $0x28] sm:$0xff]
  %v2953 = vld [vmem:[%s2 + $0x30] sm:$0xff]
  %v2954 = vld [vmem:[%s2 + $0x38] sm:$0xff]
  %v2955 = vld [vmem:[%s2 + $0x40] sm:$0xff]
  %v2956 = vld [vmem:[%s2 + $0x48] sm:$0xff]
  %v2957 = vld [vmem:[%s2 + $0x50] sm:$0xff]
  %v2958 = vld [vmem:[%s2 + $0x58] sm:$0xff]
  %v2959 = vld [vmem:[%s2 + $0x60] sm:$0xff]
  %v2960 = vld [vmem:[%s2 + $0x68] sm:$0xff]
  %v2961 = vld [vmem:[%s2 + $0x70] sm:$0xff]
  %v2962 = vld [vmem:[%s2 + $0x78] sm:$0xff]
  %v2963 = vld [vmem:[%s2 + $0x80] sm:$0xff]
  %v2964 = vld [vmem:[%s2 + $0x88] sm:$0xff]
  %v2965 = vld [vmem:[%s2 + $0x90] sm:$0xff]
  %v2966 = vld [vmem:[%s2 + $0x98] sm:$0xff]
  %v2967 = vld [vmem:[%s2 + $0xa0] sm:$0xff]
  %v2968 = vld [vmem:[%s2 + $0xa8] sm:$0xff]
  %v2969 = vld [vmem:[%s2 + $0xb0] sm:$0xff]
  %v2970 = vld [vmem:[%s2 + $0xb8] sm:$0xff]
  %v2971 = vld [vmem:[%s2 + $0xc0] sm:$0xff]
  %v2972 = vld [vmem:[%s2 + $0xc8] sm:$0xff]
  %v2973 = vld [vmem:[%s2 + $0xd0] sm:$0xff]
  %v2974 = vld [vmem:[%s2 + $0xd8] sm:$0xff]
  %v2975 = vld [vmem:[%s2 + $0xe0] sm:$0xff]
  %v2976 = vld [vmem:[%s2 + $0xe8] sm:$0xff]
  %v2977 = vld [vmem:[%s2 + $0xf0] sm:$0xff]
  %v2978 = vld [vmem:[%s2 + $0xf8] sm:$0xff]
  %v3011 = vunpack.c.l.b16 %v2947
  %v3012 = vunpack.c.h.b16 %v2947
  %v3013 = vunpack.c.l.b16 %v2948
  %v3014 = vunpack.c.h.b16 %v2948
  %v3015 = vunpack.c.l.b16 %v2949
  %v3016 = vunpack.c.h.b16 %v2949
  %v3017 = vunpack.c.l.b16 %v2950
  %v3018 = vunpack.c.h.b16 %v2950
  %v3019 = vunpack.c.l.b16 %v2951
  %v3020 = vunpack.c.h.b16 %v2951
  %v3021 = vunpack.c.l.b16 %v2952
  %v3022 = vunpack.c.h.b16 %v2952
  %v3023 = vunpack.c.l.b16 %v2953
  %v3024 = vunpack.c.h.b16 %v2953
  %v3025 = vunpack.c.l.b16 %v2954
  %v3026 = vunpack.c.h.b16 %v2954
  %v3027 = vunpack.c.l.b16 %v2955
  %v3028 = vunpack.c.h.b16 %v2955
  %v3029 = vunpack.c.l.b16 %v2956
  %v3030 = vunpack.c.h.b16 %v2956
  %v3031 = vunpack.c.l.b16 %v2957
  %v3032 = vunpack.c.h.b16 %v2957
  %v3033 = vunpack.c.l.b16 %v2958
  %v3034 = vunpack.c.h.b16 %v2958
  %v3035 = vunpack.c.l.b16 %v2959
  %v3036 = vunpack.c.h.b16 %v2959
  %v3037 = vunpack.c.l.b16 %v2960
  %v3038 = vunpack.c.h.b16 %v2960
  %v3039 = vunpack.c.l.b16 %v2961
  %v3040 = vunpack.c.h.b16 %v2961
  %v3041 = vunpack.c.l.b16 %v2962
  %v3042 = vunpack.c.h.b16 %v2962
  %v3043 = vunpack.c.l.b16 %v2963
  %v3044 = vunpack.c.h.b16 %v2963
  %v3045 = vunpack.c.l.b16 %v2964
  %v3046 = vunpack.c.h.b16 %v2964
  %v3047 = vunpack.c.l.b16 %v2965
  %v3048 = vunpack.c.h.b16 %v2965
  %v3049 = vunpack.c.l.b16 %v2966
  %v3050 = vunpack.c.h.b16 %v2966
  %v3051 = vunpack.c.l.b16 %v2967
  %v3052 = vunpack.c.h.b16 %v2967
  %v3053 = vunpack.c.l.b16 %v2968
  %v3054 = vunpack.c.h.b16 %v2968
  %v3055 = vunpack.c.l.b16 %v2969
  %v3056 = vunpack.c.h.b16 %v2969
  %v3057 = vunpack.c.l.b16 %v2970
  %v3058 = vunpack.c.h.b16 %v2970
  %v3059 = vunpack.c.l.b16 %v2971
  %v3060 = vunpack.c.h.b16 %v2971
  %v3061 = vunpack.c.l.b16 %v2972
  %v3062 = vunpack.c.h.b16 %v2972
  %v3063 = vunpack.c.l.b16 %v2973
  %v3064 = vunpack.c.h.b16 %v2973
  %v3065 = vunpack.c.l.b16 %v2974
  %v3066 = vunpack.c.h.b16 %v2974
  %v3067 = vunpack.c.l.b16 %v2975
  %v3068 = vunpack.c.h.b16 %v2975
  %v3069 = vunpack.c.l.b16 %v2976
  %v3070 = vunpack.c.h.b16 %v2976
  %v3071 = vunpack.c.l.b16 %v2977
  %v3072 = vunpack.c.h.b16 %v2977
  %v3073 = vunpack.c.l.b16 %v2978
  %v3074 = vunpack.c.h.b16 %v2978
  %v3075 = vpack.c.b16 %v3015, %v3011
  %v3076 = vpack.c.b16 %v3016, %v3012
  %v3077 = vpack.c.b16 %v3017, %v3013
  %v3078 = vpack.c.b16 %v3018, %v3014
  %v3079 = vpack.c.b16 %v3023, %v3019
  %v3080 = vpack.c.b16 %v3024, %v3020
  %v3081 = vpack.c.b16 %v3025, %v3021
  %v3082 = vpack.c.b16 %v3026, %v3022
  %v3083 = vpack.c.b16 %v3031, %v3027
  %v3084 = vpack.c.b16 %v3032, %v3028
  %v3085 = vpack.c.b16 %v3033, %v3029
  %v3086 = vpack.c.b16 %v3034, %v3030
  %v3087 = vpack.c.b16 %v3039, %v3035
  %v3088 = vpack.c.b16 %v3040, %v3036
  %v3089 = vpack.c.b16 %v3041, %v3037
  %v3090 = vpack.c.b16 %v3042, %v3038
  %v3091 = vpack.c.b16 %v3047, %v3043
  %v3092 = vpack.c.b16 %v3048, %v3044
  %v3093 = vpack.c.b16 %v3049, %v3045
  %v3094 = vpack.c.b16 %v3050, %v3046
  %v3095 = vpack.c.b16 %v3055, %v3051
  %v3096 = vpack.c.b16 %v3056, %v3052
  %v3097 = vpack.c.b16 %v3057, %v3053
  %v3098 = vpack.c.b16 %v3058, %v3054
  %v3099 = vpack.c.b16 %v3063, %v3059
  %v3100 = vpack.c.b16 %v3064, %v3060
  %v3101 = vpack.c.b16 %v3065, %v3061
  %v3102 = vpack.c.b16 %v3066, %v3062
  %v3103 = vpack.c.b16 %v3071, %v3067
  %v3104 = vpack.c.b16 %v3072, %v3068
  %v3105 = vpack.c.b16 %v3073, %v3069
  %v3106 = vpack.c.b16 %v3074, %v3070
  %3139 = vmatprep.subr.bf16.mxu0 %v3104
  %3140 = vmatpush1.bf16.msra.mxu0 %v3103
  %3141 = vmatprep.subr.bf16.mxu0 %v3100
  %3142 = vmatpush1.bf16.msra.mxu0 %v3099
  %3143 = vmatprep.subr.bf16.mxu0 %v3096
  %3144 = vmatpush1.bf16.msra.mxu0 %v3095
  %3145 = vmatprep.subr.bf16.mxu0 %v3092
  %3146 = vmatpush1.bf16.msra.mxu0 %v3091
  %3147 = vmatprep.subr.bf16.mxu0 %v3088
  %3148 = vmatpush1.bf16.msra.mxu0 %v3087
  %3149 = vmatprep.subr.bf16.mxu0 %v3084
  %3150 = vmatpush1.bf16.msra.mxu0 %v3083
  %3151 = vmatprep.subr.bf16.mxu0 %v3080
  %3152 = vmatpush1.bf16.msra.mxu0 %v3079
  %3153 = vmatprep.subr.bf16.mxu0 %v3076
  %3154 = vmatpush1.bf16.msra.mxu0 %v3075
  %3155 = vmatprep.subr.bf16.mxu0 0
  %3156 = vmatpush2.bf16.msra.mxu0 0
  %3157 = vmatprep.subr.bf16.mxu0 0
  %3158 = vmatpush2.bf16.msra.mxu0 0
  %3159 = vmatprep.subr.bf16.mxu0 0
  %3160 = vmatpush2.bf16.msra.mxu0 0
  %3161 = vmatprep.subr.bf16.mxu0 0
  %3162 = vmatpush2.bf16.msra.mxu0 0
  %3163 = vmatprep.subr.bf16.mxu0 0
  %3164 = vmatpush2.bf16.msra.mxu0 0
  %3165 = vmatprep.subr.bf16.mxu0 0
  %3166 = vmatpush2.bf16.msra.mxu0 0
  %3167 = vmatprep.subr.bf16.mxu0 0
  %3168 = vmatpush2.bf16.msra.mxu0 0
  %3169 = vmatprep.subr.bf16.mxu0 0
  %3170 = vmatpush2.bf16.msra.mxu0 0
  %3171 = vmatprep.mubr.bf16.mxu0 0
  %3172 = vmatmul.mubr.bf16.gmra.mxu0 %v2946
  %v3173 = vpop.f32.mrf.mxu0
  %v3174 = vadd.f32 0.0, %v3173
  %v3175 = vpop.f32.mrf.mxu0
  %v3176 = vadd.f32 0.0, %v3175
  %v3177 = vpop.f32.mrf.mxu0
  %v3178 = vpop.f32.mrf.mxu0
  %3179 = vdwg.mxu0
  %3180 = vmatprep.subr.bf16.mxu0 %v3106
  %3181 = vmatpush1.bf16.msra.mxu0 %v3105
  %3182 = vmatprep.subr.bf16.mxu0 %v3102
  %3183 = vmatpush1.bf16.msra.mxu0 %v3101
  %3184 = vmatprep.subr.bf16.mxu0 %v3098
  %3185 = vmatpush1.bf16.msra.mxu0 %v3097
  %3186 = vmatprep.subr.bf16.mxu0 %v3094
  %3187 = vmatpush1.bf16.msra.mxu0 %v3093
  %3188 = vmatprep.subr.bf16.mxu0 %v3090
  %3189 = vmatpush1.bf16.msra.mxu0 %v3089
  %3190 = vmatprep.subr.bf16.mxu0 %v3086
  %3191 = vmatpush1.bf16.msra.mxu0 %v3085
  %3192 = vmatprep.subr.bf16.mxu0 %v3082
  %3193 = vmatpush1.bf16.msra.mxu0 %v3081
  %3194 = vmatprep.subr.bf16.mxu0 %v3078
  %3195 = vmatpush1.bf16.msra.mxu0 %v3077
  %3196 = vmatprep.subr.bf16.mxu0 0
  %3197 = vmatpush2.bf16.msra.mxu0 0
  %3198 = vmatprep.subr.bf16.mxu0 0
  %3199 = vmatpush2.bf16.msra.mxu0 0
  %3200 = vmatprep.subr.bf16.mxu0 0
  %3201 = vmatpush2.bf16.msra.mxu0 0
  %3202 = vmatprep.subr.bf16.mxu0 0
  %3203 = vmatpush2.bf16.msra.mxu0 0
  %3204 = vmatprep.subr.bf16.mxu0 0
  %3205 = vmatpush2.bf16.msra.mxu0 0
  %3206 = vmatprep.subr.bf16.mxu0 0
  %3207 = vmatpush2.bf16.msra.mxu0 0
  %3208 = vmatprep.subr.bf16.mxu0 0
  %3209 = vmatpush2.bf16.msra.mxu0 0
  %3210 = vmatprep.subr.bf16.mxu0 0
  %3211 = vmatpush2.bf16.msra.mxu0 0
  %3212 = vmatprep.mubr.bf16.mxu0 0
  %3213 = vmatmul.mubr.bf16.gmra.mxu0 %v2946
  %v3214 = vpop.f32.mrf.mxu0
  %v3215 = vadd.f32 0.0, %v3214
  %v3216 = vpop.f32.mrf.mxu0
  %v3217 = vadd.f32 0.0, %v3216
  %v3218 = vpop.f32.mrf.mxu0
  %v3219 = vpop.f32.mrf.mxu0
  %3220 = vdwg.mxu0
  %v3221 = vadd.f32 %v2942, %v3174
  %v3222 = vadd.f32 %v2943, %v3176
  %v3223 = vadd.f32 %v2944, %v3215
  %v3224 = vadd.f32 %v2945, %v3217
  %v3225 = vxor.u32 %v3221, 2147483648
  %v3226 = vxor.u32 %v3222, 2147483648
  %v3227 = vxor.u32 %v3223, 2147483648
  %v3228 = vmul.f32 %v3225, 1.442695
  %v3229 = vpow.pop %v3228
  %v3230 = vmul.f32 %v3226, 1.442695
  %v3231 = vpow.pop %v3230
  %v3232 = vmul.f32 %v3227, 1.442695
  %v3233 = vpow.pop %v3232
  %v3234 = vadd.f32 %v3229, 1.0
  %v3235 = vadd.f32 %v3231, 1.0
  %v3236 = vadd.f32 %v3233, 1.0
  %v3237 = vrcp.pop %v3234
  %v3238 = vmul.f32 1.0, %v3237
  %v3239 = vrcp.pop %v3235
  %v3240 = vmul.f32 1.0, %v3239
  %v3241 = vrcp.pop %v3236
  %v3242 = vmul.f32 1.0, %v3241
  %v3243 = vtanh.pop %v3224
  %v3244 = vmul.f32 %v3240, %v2941
  %v3245 = vmul.f32 %v3238, %v3243
  %v3246 = vadd.f32 %v3244, %v3245
  %v3247 = vtanh.pop %v3246
  %v3248 = vmul.f32 %v3242, %v3247
  %v3249 = vsel %vm2288, %v3248, %v2940
  %v3250 = vsel %vm2288, %v3246, %v2941
  %v3251 = vsel %vm2288, %v3248, 0.0
  %3252 = vst [vmem:[#allocation4] sm:$0xff] %v3249
  %3253 = vst [vmem:[#allocation5] sm:$0xff] %v3250
  %3254 = vst [vmem:[%s2294 + $0x8] sm:$0xff] %v3251
  %v3255 = vld [vmem:[%s1646] sm:$0xff]
  %v3256 = vld [vmem:[%s1646 + $0x8] sm:$0xff]
  %v3257 = vld [vmem:[#allocation2] sm:$0xff]
  %v3258 = vld [vmem:[#allocation3] sm:$0xff]
  %v3259 = vunpack.c.l.bf16 %v3255
  %v3260 = vunpack.c.h.bf16 %v3255
  %v3261 = vunpack.c.l.bf16 %v3256
  %v3262 = vunpack.c.h.bf16 %v3256
  %v3263 = vpack.c.bf16 %v3257, %v3257
  %v3264 = vld [vmem:[%s1] sm:$0xff]
  %v3265 = vld [vmem:[%s1 + $0x8] sm:$0xff]
  %v3266 = vld [vmem:[%s1 + $0x10] sm:$0xff]
  %v3267 = vld [vmem:[%s1 + $0x18] sm:$0xff]
  %v3268 = vld [vmem:[%s1 + $0x20] sm:$0xff]
  %v3269 = vld [vmem:[%s1 + $0x28] sm:$0xff]
  %v3270 = vld [vmem:[%s1 + $0x30] sm:$0xff]
  %v3271 = vld [vmem:[%s1 + $0x38] sm:$0xff]
  %v3272 = vld [vmem:[%s1 + $0x40] sm:$0xff]
  %v3273 = vld [vmem:[%s1 + $0x48] sm:$0xff]
  %v3274 = vld [vmem:[%s1 + $0x50] sm:$0xff]
  %v3275 = vld [vmem:[%s1 + $0x58] sm:$0xff]
  %v3276 = vld [vmem:[%s1 + $0x60] sm:$0xff]
  %v3277 = vld [vmem:[%s1 + $0x68] sm:$0xff]
  %v3278 = vld [vmem:[%s1 + $0x70] sm:$0xff]
  %v3279 = vld [vmem:[%s1 + $0x78] sm:$0xff]
  %v3280 = vld [vmem:[%s1 + $0x80] sm:$0xff]
  %v3281 = vld [vmem:[%s1 + $0x88] sm:$0xff]
  %v3282 = vld [vmem:[%s1 + $0x90] sm:$0xff]
  %v3283 = vld [vmem:[%s1 + $0x98] sm:$0xff]
  %v3284 = vld [vmem:[%s1 + $0xa0] sm:$0xff]
  %v3285 = vld [vmem:[%s1 + $0xa8] sm:$0xff]
  %v3286 = vld [vmem:[%s1 + $0xb0] sm:$0xff]
  %v3287 = vld [vmem:[%s1 + $0xb8] sm:$0xff]
  %v3288 = vld [vmem:[%s1 + $0xc0] sm:$0xff]
  %v3289 = vld [vmem:[%s1 + $0xc8] sm:$0xff]
  %v3290 = vld [vmem:[%s1 + $0xd0] sm:$0xff]
  %v3291 = vld [vmem:[%s1 + $0xd8] sm:$0xff]
  %v3292 = vld [vmem:[%s1 + $0xe0] sm:$0xff]
  %v3293 = vld [vmem:[%s1 + $0xe8] sm:$0xff]
  %v3294 = vld [vmem:[%s1 + $0xf0] sm:$0xff]
  %v3295 = vld [vmem:[%s1 + $0xf8] sm:$0xff]
  %v3328 = vunpack.c.l.b16 %v3264
  %v3329 = vunpack.c.h.b16 %v3264
  %v3330 = vunpack.c.l.b16 %v3265
  %v3331 = vunpack.c.h.b16 %v3265
  %v3332 = vunpack.c.l.b16 %v3266
  %v3333 = vunpack.c.h.b16 %v3266
  %v3334 = vunpack.c.l.b16 %v3267
  %v3335 = vunpack.c.h.b16 %v3267
  %v3336 = vunpack.c.l.b16 %v3268
  %v3337 = vunpack.c.h.b16 %v3268
  %v3338 = vunpack.c.l.b16 %v3269
  %v3339 = vunpack.c.h.b16 %v3269
  %v3340 = vunpack.c.l.b16 %v3270
  %v3341 = vunpack.c.h.b16 %v3270
  %v3342 = vunpack.c.l.b16 %v3271
  %v3343 = vunpack.c.h.b16 %v3271
  %v3344 = vunpack.c.l.b16 %v3272
  %v3345 = vunpack.c.h.b16 %v3272
  %v3346 = vunpack.c.l.b16 %v3273
  %v3347 = vunpack.c.h.b16 %v3273
  %v3348 = vunpack.c.l.b16 %v3274
  %v3349 = vunpack.c.h.b16 %v3274
  %v3350 = vunpack.c.l.b16 %v3275
  %v3351 = vunpack.c.h.b16 %v3275
  %v3352 = vunpack.c.l.b16 %v3276
  %v3353 = vunpack.c.h.b16 %v3276
  %v3354 = vunpack.c.l.b16 %v3277
  %v3355 = vunpack.c.h.b16 %v3277
  %v3356 = vunpack.c.l.b16 %v3278
  %v3357 = vunpack.c.h.b16 %v3278
  %v3358 = vunpack.c.l.b16 %v3279
  %v3359 = vunpack.c.h.b16 %v3279
  %v3360 = vunpack.c.l.b16 %v3280
  %v3361 = vunpack.c.h.b16 %v3280
  %v3362 = vunpack.c.l.b16 %v3281
  %v3363 = vunpack.c.h.b16 %v3281
  %v3364 = vunpack.c.l.b16 %v3282
  %v3365 = vunpack.c.h.b16 %v3282
  %v3366 = vunpack.c.l.b16 %v3283
  %v3367 = vunpack.c.h.b16 %v3283
  %v3368 = vunpack.c.l.b16 %v3284
  %v3369 = vunpack.c.h.b16 %v3284
  %v3370 = vunpack.c.l.b16 %v3285
  %v3371 = vunpack.c.h.b16 %v3285
  %v3372 = vunpack.c.l.b16 %v3286
  %v3373 = vunpack.c.h.b16 %v3286
  %v3374 = vunpack.c.l.b16 %v3287
  %v3375 = vunpack.c.h.b16 %v3287
  %v3376 = vunpack.c.l.b16 %v3288
  %v3377 = vunpack.c.h.b16 %v3288
  %v3378 = vunpack.c.l.b16 %v3289
  %v3379 = vunpack.c.h.b16 %v3289
  %v3380 = vunpack.c.l.b16 %v3290
  %v3381 = vunpack.c.h.b16 %v3290
  %v3382 = vunpack.c.l.b16 %v3291
  %v3383 = vunpack.c.h.b16 %v3291
  %v3384 = vunpack.c.l.b16 %v3292
  %v3385 = vunpack.c.h.b16 %v3292
  %v3386 = vunpack.c.l.b16 %v3293
  %v3387 = vunpack.c.h.b16 %v3293
  %v3388 = vunpack.c.l.b16 %v3294
  %v3389 = vunpack.c.h.b16 %v3294
  %v3390 = vunpack.c.l.b16 %v3295
  %v3391 = vunpack.c.h.b16 %v3295
  %v3392 = vpack.c.b16 %v3332, %v3328
  %v3393 = vpack.c.b16 %v3333, %v3329
  %v3394 = vpack.c.b16 %v3334, %v3330
  %v3395 = vpack.c.b16 %v3335, %v3331
  %v3396 = vpack.c.b16 %v3340, %v3336
  %v3397 = vpack.c.b16 %v3341, %v3337
  %v3398 = vpack.c.b16 %v3342, %v3338
  %v3399 = vpack.c.b16 %v3343, %v3339
  %v3400 = vpack.c.b16 %v3348, %v3344
  %v3401 = vpack.c.b16 %v3349, %v3345
  %v3402 = vpack.c.b16 %v3350, %v3346
  %v3403 = vpack.c.b16 %v3351, %v3347
  %v3404 = vpack.c.b16 %v3356, %v3352
  %v3405 = vpack.c.b16 %v3357, %v3353
  %v3406 = vpack.c.b16 %v3358, %v3354
  %v3407 = vpack.c.b16 %v3359, %v3355
  %v3408 = vpack.c.b16 %v3364, %v3360
  %v3409 = vpack.c.b16 %v3365, %v3361
  %v3410 = vpack.c.b16 %v3366, %v3362
  %v3411 = vpack.c.b16 %v3367, %v3363
  %v3412 = vpack.c.b16 %v3372, %v3368
  %v3413 = vpack.c.b16 %v3373, %v3369
  %v3414 = vpack.c.b16 %v3374, %v3370
  %v3415 = vpack.c.b16 %v3375, %v3371
  %v3416 = vpack.c.b16 %v3380, %v3376
  %v3417 = vpack.c.b16 %v3381, %v3377
  %v3418 = vpack.c.b16 %v3382, %v3378
  %v3419 = vpack.c.b16 %v3383, %v3379
  %v3420 = vpack.c.b16 %v3388, %v3384
  %v3421 = vpack.c.b16 %v3389, %v3385
  %v3422 = vpack.c.b16 %v3390, %v3386
  %v3423 = vpack.c.b16 %v3391, %v3387
  %3456 = vmatprep.subr.bf16.mxu0 %v3421
  %3457 = vmatpush1.bf16.msra.mxu0 %v3420
  %3458 = vmatprep.subr.bf16.mxu0 %v3417
  %3459 = vmatpush1.bf16.msra.mxu0 %v3416
  %3460 = vmatprep.subr.bf16.mxu0 %v3413
  %3461 = vmatpush1.bf16.msra.mxu0 %v3412
  %3462 = vmatprep.subr.bf16.mxu0 %v3409
  %3463 = vmatpush1.bf16.msra.mxu0 %v3408
  %3464 = vmatprep.subr.bf16.mxu0 %v3405
  %3465 = vmatpush1.bf16.msra.mxu0 %v3404
  %3466 = vmatprep.subr.bf16.mxu0 %v3401
  %3467 = vmatpush1.bf16.msra.mxu0 %v3400
  %3468 = vmatprep.subr.bf16.mxu0 %v3397
  %3469 = vmatpush1.bf16.msra.mxu0 %v3396
  %3470 = vmatprep.subr.bf16.mxu0 %v3393
  %3471 = vmatpush1.bf16.msra.mxu0 %v3392
  %3472 = vmatprep.subr.bf16.mxu0 0
  %3473 = vmatpush2.bf16.msra.mxu0 0
  %3474 = vmatprep.subr.bf16.mxu0 0
  %3475 = vmatpush2.bf16.msra.mxu0 0
  %3476 = vmatprep.subr.bf16.mxu0 0
  %3477 = vmatpush2.bf16.msra.mxu0 0
  %3478 = vmatprep.subr.bf16.mxu0 0
  %3479 = vmatpush2.bf16.msra.mxu0 0
  %3480 = vmatprep.subr.bf16.mxu0 0
  %3481 = vmatpush2.bf16.msra.mxu0 0
  %3482 = vmatprep.subr.bf16.mxu0 0
  %3483 = vmatpush2.bf16.msra.mxu0 0
  %3484 = vmatprep.subr.bf16.mxu0 0
  %3485 = vmatpush2.bf16.msra.mxu0 0
  %3486 = vmatprep.subr.bf16.mxu0 0
  %3487 = vmatpush2.bf16.msra.mxu0 0
  %3488 = vmatprep.mubr.bf16.mxu0 0
  %3489 = vmatmul.mubr.bf16.gmra.mxu0 %v3263
  %v3490 = vpop.f32.mrf.mxu0
  %v3491 = vadd.f32 0.0, %v3490
  %v3492 = vpop.f32.mrf.mxu0
  %v3493 = vadd.f32 0.0, %v3492
  %v3494 = vpop.f32.mrf.mxu0
  %v3495 = vpop.f32.mrf.mxu0
  %3496 = vdwg.mxu0
  %3497 = vmatprep.subr.bf16.mxu0 %v3423
  %3498 = vmatpush1.bf16.msra.mxu0 %v3422
  %3499 = vmatprep.subr.bf16.mxu0 %v3419
  %3500 = vmatpush1.bf16.msra.mxu0 %v3418
  %3501 = vmatprep.subr.bf16.mxu0 %v3415
  %3502 = vmatpush1.bf16.msra.mxu0 %v3414
  %3503 = vmatprep.subr.bf16.mxu0 %v3411
  %3504 = vmatpush1.bf16.msra.mxu0 %v3410
  %3505 = vmatprep.subr.bf16.mxu0 %v3407
  %3506 = vmatpush1.bf16.msra.mxu0 %v3406
  %3507 = vmatprep.subr.bf16.mxu0 %v3403
  %3508 = vmatpush1.bf16.msra.mxu0 %v3402
  %3509 = vmatprep.subr.bf16.mxu0 %v3399
  %3510 = vmatpush1.bf16.msra.mxu0 %v3398
  %3511 = vmatprep.subr.bf16.mxu0 %v3395
  %3512 = vmatpush1.bf16.msra.mxu0 %v3394
  %3513 = vmatprep.subr.bf16.mxu0 0
  %3514 = vmatpush2.bf16.msra.mxu0 0
  %3515 = vmatprep.subr.bf16.mxu0 0
  %3516 = vmatpush2.bf16.msra.mxu0 0
  %3517 = vmatprep.subr.bf16.mxu0 0
  %3518 = vmatpush2.bf16.msra.mxu0 0
  %3519 = vmatprep.subr.bf16.mxu0 0
  %3520 = vmatpush2.bf16.msra.mxu0 0
  %3521 = vmatprep.subr.bf16.mxu0 0
  %3522 = vmatpush2.bf16.msra.mxu0 0
  %3523 = vmatprep.subr.bf16.mxu0 0
  %3524 = vmatpush2.bf16.msra.mxu0 0
  %3525 = vmatprep.subr.bf16.mxu0 0
  %3526 = vmatpush2.bf16.msra.mxu0 0
  %3527 = vmatprep.subr.bf16.mxu0 0
  %3528 = vmatpush2.bf16.msra.mxu0 0
  %3529 = vmatprep.mubr.bf16.mxu0 0
  %3530 = vmatmul.mubr.bf16.gmra.mxu0 %v3263
  %v3531 = vpop.f32.mrf.mxu0
  %v3532 = vadd.f32 0.0, %v3531
  %v3533 = vpop.f32.mrf.mxu0
  %v3534 = vadd.f32 0.0, %v3533
  %v3535 = vpop.f32.mrf.mxu0
  %v3536 = vpop.f32.mrf.mxu0
  %3537 = vdwg.mxu0
  %v3538 = vadd.f32 %v3259, %v3491
  %v3539 = vadd.f32 %v3260, %v3493
  %v3540 = vadd.f32 %v3261, %v3532
  %v3541 = vadd.f32 %v3262, %v3534
  %v3542 = vxor.u32 %v3538, 2147483648
  %v3543 = vxor.u32 %v3539, 2147483648
  %v3544 = vxor.u32 %v3540, 2147483648
  %v3545 = vmul.f32 %v3542, 1.442695
  %v3546 = vpow.pop %v3545
  %v3547 = vmul.f32 %v3543, 1.442695
  %v3548 = vpow.pop %v3547
  %v3549 = vmul.f32 %v3544, 1.442695
  %v3550 = vpow.pop %v3549
  %v3551 = vadd.f32 %v3546, 1.0
  %v3552 = vadd.f32 %v3548, 1.0
  %v3553 = vadd.f32 %v3550, 1.0
  %v3554 = vrcp.pop %v3551
  %v3555 = vmul.f32 1.0, %v3554
  %v3556 = vrcp.pop %v3552
  %v3557 = vmul.f32 1.0, %v3556
  %v3558 = vrcp.pop %v3553
  %v3559 = vmul.f32 1.0, %v3558
  %v3560 = vtanh.pop %v3541
  %v3561 = vmul.f32 %v3557, %v3258
  %v3562 = vmul.f32 %v3555, %v3560
  %v3563 = vadd.f32 %v3561, %v3562
  %v3564 = vtanh.pop %v3563
  %v3565 = vmul.f32 %v3559, %v3564
  %v3566 = vsel %vm1963, %v3565, %v3257
  %v3567 = vsel %vm1963, %v3563, %v3258
  %v3568 = vsel %vm1963, %v3565, 0.0
  %3569 = vst [vmem:[#allocation2] sm:$0xff] %v3566
  %3570 = vst [vmem:[#allocation3] sm:$0xff] %v3567
  %3571 = vst [vmem:[%s1969] sm:$0xff] %v3568
  %v3572 = vld [vmem:[%s1321 + $0x10] sm:$0xff]
  %v3573 = vld [vmem:[%s1321 + $0x18] sm:$0xff]
  %v3574 = vld [vmem:[#allocation4] sm:$0xff]
  %v3575 = vld [vmem:[#allocation5] sm:$0xff]
  %v3576 = vunpack.c.l.bf16 %v3572
  %v3577 = vunpack.c.h.bf16 %v3572
  %v3578 = vunpack.c.l.bf16 %v3573
  %v3579 = vunpack.c.h.bf16 %v3573
  %v3580 = vpack.c.bf16 %v3574, %v3574
  %v3581 = vld [vmem:[%s2] sm:$0xff]
  %v3582 = vld [vmem:[%s2 + $0x8] sm:$0xff]
  %v3583 = vld [vmem:[%s2 + $0x10] sm:$0xff]
  %v3584 = vld [vmem:[%s2 + $0x18] sm:$0xff]
  %v3585 = vld [vmem:[%s2 + $0x20] sm:$0xff]
  %v3586 = vld [vmem:[%s2 + $0x28] sm:$0xff]
  %v3587 = vld [vmem:[%s2 + $0x30] sm:$0xff]
  %v3588 = vld [vmem:[%s2 + $0x38] sm:$0xff]
  %v3589 = vld [vmem:[%s2 + $0x40] sm:$0xff]
  %v3590 = vld [vmem:[%s2 + $0x48] sm:$0xff]
  %v3591 = vld [vmem:[%s2 + $0x50] sm:$0xff]
  %v3592 = vld [vmem:[%s2 + $0x58] sm:$0xff]
  %v3593 = vld [vmem:[%s2 + $0x60] sm:$0xff]
  %v3594 = vld [vmem:[%s2 + $0x68] sm:$0xff]
  %v3595 = vld [vmem:[%s2 + $0x70] sm:$0xff]
  %v3596 = vld [vmem:[%s2 + $0x78] sm:$0xff]
  %v3597 = vld [vmem:[%s2 + $0x80] sm:$0xff]
  %v3598 = vld [vmem:[%s2 + $0x88] sm:$0xff]
  %v3599 = vld [vmem:[%s2 + $0x90] sm:$0xff]
  %v3600 = vld [vmem:[%s2 + $0x98] sm:$0xff]
  %v3601 = vld [vmem:[%s2 + $0xa0] sm:$0xff]
  %v3602 = vld [vmem:[%s2 + $0xa8] sm:$0xff]
  %v3603 = vld [vmem:[%s2 + $0xb0] sm:$0xff]
  %v3604 = vld [vmem:[%s2 + $0xb8] sm:$0xff]
  %v3605 = vld [vmem:[%s2 + $0xc0] sm:$0xff]
  %v3606 = vld [vmem:[%s2 + $0xc8] sm:$0xff]
  %v3607 = vld [vmem:[%s2 + $0xd0] sm:$0xff]
  %v3608 = vld [vmem:[%s2 + $0xd8] sm:$0xff]
  %v3609 = vld [vmem:[%s2 + $0xe0] sm:$0xff]
  %v3610 = vld [vmem:[%s2 + $0xe8] sm:$0xff]
  %v3611 = vld [vmem:[%s2 + $0xf0] sm:$0xff]
  %v3612 = vld [vmem:[%s2 + $0xf8] sm:$0xff]
  %v3645 = vunpack.c.l.b16 %v3581
  %v3646 = vunpack.c.h.b16 %v3581
  %v3647 = vunpack.c.l.b16 %v3582
  %v3648 = vunpack.c.h.b16 %v3582
  %v3649 = vunpack.c.l.b16 %v3583
  %v3650 = vunpack.c.h.b16 %v3583
  %v3651 = vunpack.c.l.b16 %v3584
  %v3652 = vunpack.c.h.b16 %v3584
  %v3653 = vunpack.c.l.b16 %v3585
  %v3654 = vunpack.c.h.b16 %v3585
  %v3655 = vunpack.c.l.b16 %v3586
  %v3656 = vunpack.c.h.b16 %v3586
  %v3657 = vunpack.c.l.b16 %v3587
  %v3658 = vunpack.c.h.b16 %v3587
  %v3659 = vunpack.c.l.b16 %v3588
  %v3660 = vunpack.c.h.b16 %v3588
  %v3661 = vunpack.c.l.b16 %v3589
  %v3662 = vunpack.c.h.b16 %v3589
  %v3663 = vunpack.c.l.b16 %v3590
  %v3664 = vunpack.c.h.b16 %v3590
  %v3665 = vunpack.c.l.b16 %v3591
  %v3666 = vunpack.c.h.b16 %v3591
  %v3667 = vunpack.c.l.b16 %v3592
  %v3668 = vunpack.c.h.b16 %v3592
  %v3669 = vunpack.c.l.b16 %v3593
  %v3670 = vunpack.c.h.b16 %v3593
  %v3671 = vunpack.c.l.b16 %v3594
  %v3672 = vunpack.c.h.b16 %v3594
  %v3673 = vunpack.c.l.b16 %v3595
  %v3674 = vunpack.c.h.b16 %v3595
  %v3675 = vunpack.c.l.b16 %v3596
  %v3676 = vunpack.c.h.b16 %v3596
  %v3677 = vunpack.c.l.b16 %v3597
  %v3678 = vunpack.c.h.b16 %v3597
  %v3679 = vunpack.c.l.b16 %v3598
  %v3680 = vunpack.c.h.b16 %v3598
  %v3681 = vunpack.c.l.b16 %v3599
  %v3682 = vunpack.c.h.b16 %v3599
  %v3683 = vunpack.c.l.b16 %v3600
  %v3684 = vunpack.c.h.b16 %v3600
  %v3685 = vunpack.c.l.b16 %v3601
  %v3686 = vunpack.c.h.b16 %v3601
  %v3687 = vunpack.c.l.b16 %v3602
  %v3688 = vunpack.c.h.b16 %v3602
  %v3689 = vunpack.c.l.b16 %v3603
  %v3690 = vunpack.c.h.b16 %v3603
  %v3691 = vunpack.c.l.b16 %v3604
  %v3692 = vunpack.c.h.b16 %v3604
  %v3693 = vunpack.c.l.b16 %v3605
  %v3694 = vunpack.c.h.b16 %v3605
  %v3695 = vunpack.c.l.b16 %v3606
  %v3696 = vunpack.c.h.b16 %v3606
  %v3697 = vunpack.c.l.b16 %v3607
  %v3698 = vunpack.c.h.b16 %v3607
  %v3699 = vunpack.c.l.b16 %v3608
  %v3700 = vunpack.c.h.b16 %v3608
  %v3701 = vunpack.c.l.b16 %v3609
  %v3702 = vunpack.c.h.b16 %v3609
  %v3703 = vunpack.c.l.b16 %v3610
  %v3704 = vunpack.c.h.b16 %v3610
  %v3705 = vunpack.c.l.b16 %v3611
  %v3706 = vunpack.c.h.b16 %v3611
  %v3707 = vunpack.c.l.b16 %v3612
  %v3708 = vunpack.c.h.b16 %v3612
  %v3709 = vpack.c.b16 %v3649, %v3645
  %v3710 = vpack.c.b16 %v3650, %v3646
  %v3711 = vpack.c.b16 %v3651, %v3647
  %v3712 = vpack.c.b16 %v3652, %v3648
  %v3713 = vpack.c.b16 %v3657, %v3653
  %v3714 = vpack.c.b16 %v3658, %v3654
  %v3715 = vpack.c.b16 %v3659, %v3655
  %v3716 = vpack.c.b16 %v3660, %v3656
  %v3717 = vpack.c.b16 %v3665, %v3661
  %v3718 = vpack.c.b16 %v3666, %v3662
  %v3719 = vpack.c.b16 %v3667, %v3663
  %v3720 = vpack.c.b16 %v3668, %v3664
  %v3721 = vpack.c.b16 %v3673, %v3669
  %v3722 = vpack.c.b16 %v3674, %v3670
  %v3723 = vpack.c.b16 %v3675, %v3671
  %v3724 = vpack.c.b16 %v3676, %v3672
  %v3725 = vpack.c.b16 %v3681, %v3677
  %v3726 = vpack.c.b16 %v3682, %v3678
  %v3727 = vpack.c.b16 %v3683, %v3679
  %v3728 = vpack.c.b16 %v3684, %v3680
  %v3729 = vpack.c.b16 %v3689, %v3685
  %v3730 = vpack.c.b16 %v3690, %v3686
  %v3731 = vpack.c.b16 %v3691, %v3687
  %v3732 = vpack.c.b16 %v3692, %v3688
  %v3733 = vpack.c.b16 %v3697, %v3693
  %v3734 = vpack.c.b16 %v3698, %v3694
  %v3735 = vpack.c.b16 %v3699, %v3695
  %v3736 = vpack.c.b16 %v3700, %v3696
  %v3737 = vpack.c.b16 %v3705, %v3701
  %v3738 = vpack.c.b16 %v3706, %v3702
  %v3739 = vpack.c.b16 %v3707, %v3703
  %v3740 = vpack.c.b16 %v3708, %v3704
  %3773 = vmatprep.subr.bf16.mxu0 %v3738
  %3774 = vmatpush1.bf16.msra.mxu0 %v3737
  %3775 = vmatprep.subr.bf16.mxu0 %v3734
  %3776 = vmatpush1.bf16.msra.mxu0 %v3733
  %3777 = vmatprep.subr.bf16.mxu0 %v3730
  %3778 = vmatpush1.bf16.msra.mxu0 %v3729
  %3779 = vmatprep.subr.bf16.mxu0 %v3726
  %3780 = vmatpush1.bf16.msra.mxu0 %v3725
  %3781 = vmatprep.subr.bf16.mxu0 %v3722
  %3782 = vmatpush1.bf16.msra.mxu0 %v3721
  %3783 = vmatprep.subr.bf16.mxu0 %v3718
  %3784 = vmatpush1.bf16.msra.mxu0 %v3717
  %3785 = vmatprep.subr.bf16.mxu0 %v3714
  %3786 = vmatpush1.bf16.msra.mxu0 %v3713
  %3787 = vmatprep.subr.bf16.mxu0 %v3710
  %3788 = vmatpush1.bf16.msra.mxu0 %v3709
  %3789 = vmatprep.subr.bf16.mxu0 0
  %3790 = vmatpush2.bf16.msra.mxu0 0
  %3791 = vmatprep.subr.bf16.mxu0 0
  %3792 = vmatpush2.bf16.msra.mxu0 0
  %3793 = vmatprep.subr.bf16.mxu0 0
  %3794 = vmatpush2.bf16.msra.mxu0 0
  %3795 = vmatprep.subr.bf16.mxu0 0
  %3796 = vmatpush2.bf16.msra.mxu0 0
  %3797 = vmatprep.subr.bf16.mxu0 0
  %3798 = vmatpush2.bf16.msra.mxu0 0
  %3799 = vmatprep.subr.bf16.mxu0 0
  %3800 = vmatpush2.bf16.msra.mxu0 0
  %3801 = vmatprep.subr.bf16.mxu0 0
  %3802 = vmatpush2.bf16.msra.mxu0 0
  %3803 = vmatprep.subr.bf16.mxu0 0
  %3804 = vmatpush2.bf16.msra.mxu0 0
  %3805 = vmatprep.mubr.bf16.mxu0 0
  %3806 = vmatmul.mubr.bf16.gmra.mxu0 %v3580
  %v3807 = vpop.f32.mrf.mxu0
  %v3808 = vadd.f32 0.0, %v3807
  %v3809 = vpop.f32.mrf.mxu0
  %v3810 = vadd.f32 0.0, %v3809
  %v3811 = vpop.f32.mrf.mxu0
  %v3812 = vpop.f32.mrf.mxu0
  %3813 = vdwg.mxu0
  %3814 = vmatprep.subr.bf16.mxu0 %v3740
  %3815 = vmatpush1.bf16.msra.mxu0 %v3739
  %3816 = vmatprep.subr.bf16.mxu0 %v3736
  %3817 = vmatpush1.bf16.msra.mxu0 %v3735
  %3818 = vmatprep.subr.bf16.mxu0 %v3732
  %3819 = vmatpush1.bf16.msra.mxu0 %v3731
  %3820 = vmatprep.subr.bf16.mxu0 %v3728
  %3821 = vmatpush1.bf16.msra.mxu0 %v3727
  %3822 = vmatprep.subr.bf16.mxu0 %v3724
  %3823 = vmatpush1.bf16.msra.mxu0 %v3723
  %3824 = vmatprep.subr.bf16.mxu0 %v3720
  %3825 = vmatpush1.bf16.msra.mxu0 %v3719
  %3826 = vmatprep.subr.bf16.mxu0 %v3716
  %3827 = vmatpush1.bf16.msra.mxu0 %v3715
  %3828 = vmatprep.subr.bf16.mxu0 %v3712
  %3829 = vmatpush1.bf16.msra.mxu0 %v3711
  %3830 = vmatprep.subr.bf16.mxu0 0
  %3831 = vmatpush2.bf16.msra.mxu0 0
  %3832 = vmatprep.subr.bf16.mxu0 0
  %3833 = vmatpush2.bf16.msra.mxu0 0
  %3834 = vmatprep.subr.bf16.mxu0 0
  %3835 = vmatpush2.bf16.msra.mxu0 0
  %3836 = vmatprep.subr.bf16.mxu0 0
  %3837 = vmatpush2.bf16.msra.mxu0 0
  %3838 = vmatprep.subr.bf16.mxu0 0
  %3839 = vmatpush2.bf16.msra.mxu0 0
  %3840 = vmatprep.subr.bf16.mxu0 0
  %3841 = vmatpush2.bf16.msra.mxu0 0
  %3842 = vmatprep.subr.bf16.mxu0 0
  %3843 = vmatpush2.bf16.msra.mxu0 0
  %3844 = vmatprep.subr.bf16.mxu0 0
  %3845 = vmatpush2.bf16.msra.mxu0 0
  %3846 = vmatprep.mubr.bf16.mxu0 0
  %3847 = vmatmul.mubr.bf16.gmra.mxu0 %v3580
  %v3848 = vpop.f32.mrf.mxu0
  %v3849 = vadd.f32 0.0, %v3848
  %v3850 = vpop.f32.mrf.mxu0
  %v3851 = vadd.f32 0.0, %v3850
  %v3852 = vpop.f32.mrf.mxu0
  %v3853 = vpop.f32.mrf.mxu0
  %3854 = vdwg.mxu0
  %v3855 = vadd.f32 %v3576, %v3808
  %v3856 = vadd.f32 %v3577, %v3810
  %v3857 = vadd.f32 %v3578, %v3849
  %v3858 = vadd.f32 %v3579, %v3851
  %v3859 = vxor.u32 %v3855, 2147483648
  %v3860 = vxor.u32 %v3856, 2147483648
  %v3861 = vxor.u32 %v3857, 2147483648
  %v3862 = vmul.f32 %v3859, 1.442695
  %v3863 = vpow.pop %v3862
  %v3864 = vmul.f32 %v3860, 1.442695
  %v3865 = vpow.pop %v3864
  %v3866 = vmul.f32 %v3861, 1.442695
  %v3867 = vpow.pop %v3866
  %v3868 = vadd.f32 %v3863, 1.0
  %v3869 = vadd.f32 %v3865, 1.0
  %v3870 = vadd.f32 %v3867, 1.0
  %v3871 = vrcp.pop %v3868
  %v3872 = vmul.f32 1.0, %v3871
  %v3873 = vrcp.pop %v3869
  %v3874 = vmul.f32 1.0, %v3873
  %v3875 = vrcp.pop %v3870
  %v3876 = vmul.f32 1.0, %v3875
  %v3877 = vtanh.pop %v3858
  %v3878 = vmul.f32 %v3874, %v3575
  %v3879 = vmul.f32 %v3872, %v3877
  %v3880 = vadd.f32 %v3878, %v3879
  %v3881 = vtanh.pop %v3880
  %v3882 = vmul.f32 %v3876, %v3881
  %v3883 = vsel %vm1638, %v3882, %v3574
  %v3884 = vsel %vm1638, %v3880, %v3575
  %v3885 = vsel %vm1638, %v3882, 0.0
  %3886 = vst [vmem:[#allocation4] sm:$0xff] %v3883
  %3887 = vst [vmem:[#allocation5] sm:$0xff] %v3884
  %3888 = vst [vmem:[%s1644 + $0x8] sm:$0xff] %v3885
  %v3889 = vld [vmem:[%s996] sm:$0xff]
  %v3890 = vld [vmem:[%s996 + $0x8] sm:$0xff]
  %v3891 = vld [vmem:[#allocation2] sm:$0xff]
  %v3892 = vld [vmem:[#allocation3] sm:$0xff]
  %v3893 = vunpack.c.l.bf16 %v3889
  %v3894 = vunpack.c.h.bf16 %v3889
  %v3895 = vunpack.c.l.bf16 %v3890
  %v3896 = vunpack.c.h.bf16 %v3890
  %v3897 = vpack.c.bf16 %v3891, %v3891
  %v3898 = vld [vmem:[%s1] sm:$0xff]
  %v3899 = vld [vmem:[%s1 + $0x8] sm:$0xff]
  %v3900 = vld [vmem:[%s1 + $0x10] sm:$0xff]
  %v3901 = vld [vmem:[%s1 + $0x18] sm:$0xff]
  %v3902 = vld [vmem:[%s1 + $0x20] sm:$0xff]
  %v3903 = vld [vmem:[%s1 + $0x28] sm:$0xff]
  %v3904 = vld [vmem:[%s1 + $0x30] sm:$0xff]
  %v3905 = vld [vmem:[%s1 + $0x38] sm:$0xff]
  %v3906 = vld [vmem:[%s1 + $0x40] sm:$0xff]
  %v3907 = vld [vmem:[%s1 + $0x48] sm:$0xff]
  %v3908 = vld [vmem:[%s1 + $0x50] sm:$0xff]
  %v3909 = vld [vmem:[%s1 + $0x58] sm:$0xff]
  %v3910 = vld [vmem:[%s1 + $0x60] sm:$0xff]
  %v3911 = vld [vmem:[%s1 + $0x68] sm:$0xff]
  %v3912 = vld [vmem:[%s1 + $0x70] sm:$0xff]
  %v3913 = vld [vmem:[%s1 + $0x78] sm:$0xff]
  %v3914 = vld [vmem:[%s1 + $0x80] sm:$0xff]
  %v3915 = vld [vmem:[%s1 + $0x88] sm:$0xff]
  %v3916 = vld [vmem:[%s1 + $0x90] sm:$0xff]
  %v3917 = vld [vmem:[%s1 + $0x98] sm:$0xff]
  %v3918 = vld [vmem:[%s1 + $0xa0] sm:$0xff]
  %v3919 = vld [vmem:[%s1 + $0xa8] sm:$0xff]
  %v3920 = vld [vmem:[%s1 + $0xb0] sm:$0xff]
  %v3921 = vld [vmem:[%s1 + $0xb8] sm:$0xff]
  %v3922 = vld [vmem:[%s1 + $0xc0] sm:$0xff]
  %v3923 = vld [vmem:[%s1 + $0xc8] sm:$0xff]
  %v3924 = vld [vmem:[%s1 + $0xd0] sm:$0xff]
  %v3925 = vld [vmem:[%s1 + $0xd8] sm:$0xff]
  %v3926 = vld [vmem:[%s1 + $0xe0] sm:$0xff]
  %v3927 = vld [vmem:[%s1 + $0xe8] sm:$0xff]
  %v3928 = vld [vmem:[%s1 + $0xf0] sm:$0xff]
  %v3929 = vld [vmem:[%s1 + $0xf8] sm:$0xff]
  %v3962 = vunpack.c.l.b16 %v3898
  %v3963 = vunpack.c.h.b16 %v3898
  %v3964 = vunpack.c.l.b16 %v3899
  %v3965 = vunpack.c.h.b16 %v3899
  %v3966 = vunpack.c.l.b16 %v3900
  %v3967 = vunpack.c.h.b16 %v3900
  %v3968 = vunpack.c.l.b16 %v3901
  %v3969 = vunpack.c.h.b16 %v3901
  %v3970 = vunpack.c.l.b16 %v3902
  %v3971 = vunpack.c.h.b16 %v3902
  %v3972 = vunpack.c.l.b16 %v3903
  %v3973 = vunpack.c.h.b16 %v3903
  %v3974 = vunpack.c.l.b16 %v3904
  %v3975 = vunpack.c.h.b16 %v3904
  %v3976 = vunpack.c.l.b16 %v3905
  %v3977 = vunpack.c.h.b16 %v3905
  %v3978 = vunpack.c.l.b16 %v3906
  %v3979 = vunpack.c.h.b16 %v3906
  %v3980 = vunpack.c.l.b16 %v3907
  %v3981 = vunpack.c.h.b16 %v3907
  %v3982 = vunpack.c.l.b16 %v3908
  %v3983 = vunpack.c.h.b16 %v3908
  %v3984 = vunpack.c.l.b16 %v3909
  %v3985 = vunpack.c.h.b16 %v3909
  %v3986 = vunpack.c.l.b16 %v3910
  %v3987 = vunpack.c.h.b16 %v3910
  %v3988 = vunpack.c.l.b16 %v3911
  %v3989 = vunpack.c.h.b16 %v3911
  %v3990 = vunpack.c.l.b16 %v3912
  %v3991 = vunpack.c.h.b16 %v3912
  %v3992 = vunpack.c.l.b16 %v3913
  %v3993 = vunpack.c.h.b16 %v3913
  %v3994 = vunpack.c.l.b16 %v3914
  %v3995 = vunpack.c.h.b16 %v3914
  %v3996 = vunpack.c.l.b16 %v3915
  %v3997 = vunpack.c.h.b16 %v3915
  %v3998 = vunpack.c.l.b16 %v3916
  %v3999 = vunpack.c.h.b16 %v3916
  %v4000 = vunpack.c.l.b16 %v3917
  %v4001 = vunpack.c.h.b16 %v3917
  %v4002 = vunpack.c.l.b16 %v3918
  %v4003 = vunpack.c.h.b16 %v3918
  %v4004 = vunpack.c.l.b16 %v3919
  %v4005 = vunpack.c.h.b16 %v3919
  %v4006 = vunpack.c.l.b16 %v3920
  %v4007 = vunpack.c.h.b16 %v3920
  %v4008 = vunpack.c.l.b16 %v3921
  %v4009 = vunpack.c.h.b16 %v3921
  %v4010 = vunpack.c.l.b16 %v3922
  %v4011 = vunpack.c.h.b16 %v3922
  %v4012 = vunpack.c.l.b16 %v3923
  %v4013 = vunpack.c.h.b16 %v3923
  %v4014 = vunpack.c.l.b16 %v3924
  %v4015 = vunpack.c.h.b16 %v3924
  %v4016 = vunpack.c.l.b16 %v3925
  %v4017 = vunpack.c.h.b16 %v3925
  %v4018 = vunpack.c.l.b16 %v3926
  %v4019 = vunpack.c.h.b16 %v3926
  %v4020 = vunpack.c.l.b16 %v3927
  %v4021 = vunpack.c.h.b16 %v3927
  %v4022 = vunpack.c.l.b16 %v3928
  %v4023 = vunpack.c.h.b16 %v3928
  %v4024 = vunpack.c.l.b16 %v3929
  %v4025 = vunpack.c.h.b16 %v3929
  %v4026 = vpack.c.b16 %v3966, %v3962
  %v4027 = vpack.c.b16 %v3967, %v3963
  %v4028 = vpack.c.b16 %v3968, %v3964
  %v4029 = vpack.c.b16 %v3969, %v3965
  %v4030 = vpack.c.b16 %v3974, %v3970
  %v4031 = vpack.c.b16 %v3975, %v3971
  %v4032 = vpack.c.b16 %v3976, %v3972
  %v4033 = vpack.c.b16 %v3977, %v3973
  %v4034 = vpack.c.b16 %v3982, %v3978
  %v4035 = vpack.c.b16 %v3983, %v3979
  %v4036 = vpack.c.b16 %v3984, %v3980
  %v4037 = vpack.c.b16 %v3985, %v3981
  %v4038 = vpack.c.b16 %v3990, %v3986
  %v4039 = vpack.c.b16 %v3991, %v3987
  %v4040 = vpack.c.b16 %v3992, %v3988
  %v4041 = vpack.c.b16 %v3993, %v3989
  %v4042 = vpack.c.b16 %v3998, %v3994
  %v4043 = vpack.c.b16 %v3999, %v3995
  %v4044 = vpack.c.b16 %v4000, %v3996
  %v4045 = vpack.c.b16 %v4001, %v3997
  %v4046 = vpack.c.b16 %v4006, %v4002
  %v4047 = vpack.c.b16 %v4007, %v4003
  %v4048 = vpack.c.b16 %v4008, %v4004
  %v4049 = vpack.c.b16 %v4009, %v4005
  %v4050 = vpack.c.b16 %v4014, %v4010
  %v4051 = vpack.c.b16 %v4015, %v4011
  %v4052 = vpack.c.b16 %v4016, %v4012
  %v4053 = vpack.c.b16 %v4017, %v4013
  %v4054 = vpack.c.b16 %v4022, %v4018
  %v4055 = vpack.c.b16 %v4023, %v4019
  %v4056 = vpack.c.b16 %v4024, %v4020
  %v4057 = vpack.c.b16 %v4025, %v4021
  %4090 = vmatprep.subr.bf16.mxu0 %v4055
  %4091 = vmatpush1.bf16.msra.mxu0 %v4054
  %4092 = vmatprep.subr.bf16.mxu0 %v4051
  %4093 = vmatpush1.bf16.msra.mxu0 %v4050
  %4094 = vmatprep.subr.bf16.mxu0 %v4047
  %4095 = vmatpush1.bf16.msra.mxu0 %v4046
  %4096 = vmatprep.subr.bf16.mxu0 %v4043
  %4097 = vmatpush1.bf16.msra.mxu0 %v4042
  %4098 = vmatprep.subr.bf16.mxu0 %v4039
  %4099 = vmatpush1.bf16.msra.mxu0 %v4038
  %4100 = vmatprep.subr.bf16.mxu0 %v4035
  %4101 = vmatpush1.bf16.msra.mxu0 %v4034
  %4102 = vmatprep.subr.bf16.mxu0 %v4031
  %4103 = vmatpush1.bf16.msra.mxu0 %v4030
  %4104 = vmatprep.subr.bf16.mxu0 %v4027
  %4105 = vmatpush1.bf16.msra.mxu0 %v4026
  %4106 = vmatprep.subr.bf16.mxu0 0
  %4107 = vmatpush2.bf16.msra.mxu0 0
  %4108 = vmatprep.subr.bf16.mxu0 0
  %4109 = vmatpush2.bf16.msra.mxu0 0
  %4110 = vmatprep.subr.bf16.mxu0 0
  %4111 = vmatpush2.bf16.msra.mxu0 0
  %4112 = vmatprep.subr.bf16.mxu0 0
  %4113 = vmatpush2.bf16.msra.mxu0 0
  %4114 = vmatprep.subr.bf16.mxu0 0
  %4115 = vmatpush2.bf16.msra.mxu0 0
  %4116 = vmatprep.subr.bf16.mxu0 0
  %4117 = vmatpush2.bf16.msra.mxu0 0
  %4118 = vmatprep.subr.bf16.mxu0 0
  %4119 = vmatpush2.bf16.msra.mxu0 0
  %4120 = vmatprep.subr.bf16.mxu0 0
  %4121 = vmatpush2.bf16.msra.mxu0 0
  %4122 = vmatprep.mubr.bf16.mxu0 0
  %4123 = vmatmul.mubr.bf16.gmra.mxu0 %v3897
  %v4124 = vpop.f32.mrf.mxu0
  %v4125 = vadd.f32 0.0, %v4124
  %v4126 = vpop.f32.mrf.mxu0
  %v4127 = vadd.f32 0.0, %v4126
  %v4128 = vpop.f32.mrf.mxu0
  %v4129 = vpop.f32.mrf.mxu0
  %4130 = vdwg.mxu0
  %4131 = vmatprep.subr.bf16.mxu0 %v4057
  %4132 = vmatpush1.bf16.msra.mxu0 %v4056
  %4133 = vmatprep.subr.bf16.mxu0 %v4053
  %4134 = vmatpush1.bf16.msra.mxu0 %v4052
  %4135 = vmatprep.subr.bf16.mxu0 %v4049
  %4136 = vmatpush1.bf16.msra.mxu0 %v4048
  %4137 = vmatprep.subr.bf16.mxu0 %v4045
  %4138 = vmatpush1.bf16.msra.mxu0 %v4044
  %4139 = vmatprep.subr.bf16.mxu0 %v4041
  %4140 = vmatpush1.bf16.msra.mxu0 %v4040
  %4141 = vmatprep.subr.bf16.mxu0 %v4037
  %4142 = vmatpush1.bf16.msra.mxu0 %v4036
  %4143 = vmatprep.subr.bf16.mxu0 %v4033
  %4144 = vmatpush1.bf16.msra.mxu0 %v4032
  %4145 = vmatprep.subr.bf16.mxu0 %v4029
  %4146 = vmatpush1.bf16.msra.mxu0 %v4028
  %4147 = vmatprep.subr.bf16.mxu0 0
  %4148 = vmatpush2.bf16.msra.mxu0 0
  %4149 = vmatprep.subr.bf16.mxu0 0
  %4150 = vmatpush2.bf16.msra.mxu0 0
  %4151 = vmatprep.subr.bf16.mxu0 0
  %4152 = vmatpush2.bf16.msra.mxu0 0
  %4153 = vmatprep.subr.bf16.mxu0 0
  %4154 = vmatpush2.bf16.msra.mxu0 0
  %4155 = vmatprep.subr.bf16.mxu0 0
  %4156 = vmatpush2.bf16.msra.mxu0 0
  %4157 = vmatprep.subr.bf16.mxu0 0
  %4158 = vmatpush2.bf16.msra.mxu0 0
  %4159 = vmatprep.subr.bf16.mxu0 0
  %4160 = vmatpush2.bf16.msra.mxu0 0
  %4161 = vmatprep.subr.bf16.mxu0 0
  %4162 = vmatpush2.bf16.msra.mxu0 0
  %4163 = vmatprep.mubr.bf16.mxu0 0
  %4164 = vmatmul.mubr.bf16.gmra.mxu0 %v3897
  %v4165 = vpop.f32.mrf.mxu0
  %v4166 = vadd.f32 0.0, %v4165
  %v4167 = vpop.f32.mrf.mxu0
  %v4168 = vadd.f32 0.0, %v4167
  %v4169 = vpop.f32.mrf.mxu0
  %v4170 = vpop.f32.mrf.mxu0
  %4171 = vdwg.mxu0
  %v4172 = vadd.f32 %v3893, %v4125
  %v4173 = vadd.f32 %v3894, %v4127
  %v4174 = vadd.f32 %v3895, %v4166
  %v4175 = vadd.f32 %v3896, %v4168
  %v4176 = vxor.u32 %v4172, 2147483648
  %v4177 = vxor.u32 %v4173, 2147483648
  %v4178 = vxor.u32 %v4174, 2147483648
  %v4179 = vmul.f32 %v4176, 1.442695
  %v4180 = vpow.pop %v4179
  %v4181 = vmul.f32 %v4177, 1.442695
  %v4182 = vpow.pop %v4181
  %v4183 = vmul.f32 %v4178, 1.442695
  %v4184 = vpow.pop %v4183
  %v4185 = vadd.f32 %v4180, 1.0
  %v4186 = vadd.f32 %v4182, 1.0
  %v4187 = vadd.f32 %v4184, 1.0
  %v4188 = vrcp.pop %v4185
  %v4189 = vmul.f32 1.0, %v4188
  %v4190 = vrcp.pop %v4186
  %v4191 = vmul.f32 1.0, %v4190
  %v4192 = vrcp.pop %v4187
  %v4193 = vmul.f32 1.0, %v4192
  %v4194 = vtanh.pop %v4175
  %v4195 = vmul.f32 %v4191, %v3892
  %v4196 = vmul.f32 %v4189, %v4194
  %v4197 = vadd.f32 %v4195, %v4196
  %v4198 = vtanh.pop %v4197
  %v4199 = vmul.f32 %v4193, %v4198
  %v4200 = vsel %vm1313, %v4199, %v3891
  %v4201 = vsel %vm1313, %v4197, %v3892
  %v4202 = vsel %vm1313, %v4199, 0.0
  %4203 = vst [vmem:[#allocation2] sm:$0xff] %v4200
  %4204 = vst [vmem:[#allocation3] sm:$0xff] %v4201
  %4205 = vst [vmem:[%s1319] sm:$0xff] %v4202
  %v4206 = vld [vmem:[%s671 + $0x10] sm:$0xff]
  %v4207 = vld [vmem:[%s671 + $0x18] sm:$0xff]
  %v4208 = vld [vmem:[#allocation4] sm:$0xff]
  %v4209 = vld [vmem:[#allocation5] sm:$0xff]
  %v4210 = vunpack.c.l.bf16 %v4206
  %v4211 = vunpack.c.h.bf16 %v4206
  %v4212 = vunpack.c.l.bf16 %v4207
  %v4213 = vunpack.c.h.bf16 %v4207
  %v4214 = vpack.c.bf16 %v4208, %v4208
  %v4215 = vld [vmem:[%s2] sm:$0xff]
  %v4216 = vld [vmem:[%s2 + $0x8] sm:$0xff]
  %v4217 = vld [vmem:[%s2 + $0x10] sm:$0xff]
  %v4218 = vld [vmem:[%s2 + $0x18] sm:$0xff]
  %v4219 = vld [vmem:[%s2 + $0x20] sm:$0xff]
  %v4220 = vld [vmem:[%s2 + $0x28] sm:$0xff]
  %v4221 = vld [vmem:[%s2 + $0x30] sm:$0xff]
  %v4222 = vld [vmem:[%s2 + $0x38] sm:$0xff]
  %v4223 = vld [vmem:[%s2 + $0x40] sm:$0xff]
  %v4224 = vld [vmem:[%s2 + $0x48] sm:$0xff]
  %v4225 = vld [vmem:[%s2 + $0x50] sm:$0xff]
  %v4226 = vld [vmem:[%s2 + $0x58] sm:$0xff]
  %v4227 = vld [vmem:[%s2 + $0x60] sm:$0xff]
  %v4228 = vld [vmem:[%s2 + $0x68] sm:$0xff]
  %v4229 = vld [vmem:[%s2 + $0x70] sm:$0xff]
  %v4230 = vld [vmem:[%s2 + $0x78] sm:$0xff]
  %v4231 = vld [vmem:[%s2 + $0x80] sm:$0xff]
  %v4232 = vld [vmem:[%s2 + $0x88] sm:$0xff]
  %v4233 = vld [vmem:[%s2 + $0x90] sm:$0xff]
  %v4234 = vld [vmem:[%s2 + $0x98] sm:$0xff]
  %v4235 = vld [vmem:[%s2 + $0xa0] sm:$0xff]
  %v4236 = vld [vmem:[%s2 + $0xa8] sm:$0xff]
  %v4237 = vld [vmem:[%s2 + $0xb0] sm:$0xff]
  %v4238 = vld [vmem:[%s2 + $0xb8] sm:$0xff]
  %v4239 = vld [vmem:[%s2 + $0xc0] sm:$0xff]
  %v4240 = vld [vmem:[%s2 + $0xc8] sm:$0xff]
  %v4241 = vld [vmem:[%s2 + $0xd0] sm:$0xff]
  %v4242 = vld [vmem:[%s2 + $0xd8] sm:$0xff]
  %v4243 = vld [vmem:[%s2 + $0xe0] sm:$0xff]
  %v4244 = vld [vmem:[%s2 + $0xe8] sm:$0xff]
  %v4245 = vld [vmem:[%s2 + $0xf0] sm:$0xff]
  %v4246 = vld [vmem:[%s2 + $0xf8] sm:$0xff]
  %v4279 = vunpack.c.l.b16 %v4215
  %v4280 = vunpack.c.h.b16 %v4215
  %v4281 = vunpack.c.l.b16 %v4216
  %v4282 = vunpack.c.h.b16 %v4216
  %v4283 = vunpack.c.l.b16 %v4217
  %v4284 = vunpack.c.h.b16 %v4217
  %v4285 = vunpack.c.l.b16 %v4218
  %v4286 = vunpack.c.h.b16 %v4218
  %v4287 = vunpack.c.l.b16 %v4219
  %v4288 = vunpack.c.h.b16 %v4219
  %v4289 = vunpack.c.l.b16 %v4220
  %v4290 = vunpack.c.h.b16 %v4220
  %v4291 = vunpack.c.l.b16 %v4221
  %v4292 = vunpack.c.h.b16 %v4221
  %v4293 = vunpack.c.l.b16 %v4222
  %v4294 = vunpack.c.h.b16 %v4222
  %v4295 = vunpack.c.l.b16 %v4223
  %v4296 = vunpack.c.h.b16 %v4223
  %v4297 = vunpack.c.l.b16 %v4224
  %v4298 = vunpack.c.h.b16 %v4224
  %v4299 = vunpack.c.l.b16 %v4225
  %v4300 = vunpack.c.h.b16 %v4225
  %v4301 = vunpack.c.l.b16 %v4226
  %v4302 = vunpack.c.h.b16 %v4226
  %v4303 = vunpack.c.l.b16 %v4227
  %v4304 = vunpack.c.h.b16 %v4227
  %v4305 = vunpack.c.l.b16 %v4228
  %v4306 = vunpack.c.h.b16 %v4228
  %v4307 = vunpack.c.l.b16 %v4229
  %v4308 = vunpack.c.h.b16 %v4229
  %v4309 = vunpack.c.l.b16 %v4230
  %v4310 = vunpack.c.h.b16 %v4230
  %v4311 = vunpack.c.l.b16 %v4231
  %v4312 = vunpack.c.h.b16 %v4231
  %v4313 = vunpack.c.l.b16 %v4232
  %v4314 = vunpack.c.h.b16 %v4232
  %v4315 = vunpack.c.l.b16 %v4233
  %v4316 = vunpack.c.h.b16 %v4233
  %v4317 = vunpack.c.l.b16 %v4234
  %v4318 = vunpack.c.h.b16 %v4234
  %v4319 = vunpack.c.l.b16 %v4235
  %v4320 = vunpack.c.h.b16 %v4235
  %v4321 = vunpack.c.l.b16 %v4236
  %v4322 = vunpack.c.h.b16 %v4236
  %v4323 = vunpack.c.l.b16 %v4237
  %v4324 = vunpack.c.h.b16 %v4237
  %v4325 = vunpack.c.l.b16 %v4238
  %v4326 = vunpack.c.h.b16 %v4238
  %v4327 = vunpack.c.l.b16 %v4239
  %v4328 = vunpack.c.h.b16 %v4239
  %v4329 = vunpack.c.l.b16 %v4240
  %v4330 = vunpack.c.h.b16 %v4240
  %v4331 = vunpack.c.l.b16 %v4241
  %v4332 = vunpack.c.h.b16 %v4241
  %v4333 = vunpack.c.l.b16 %v4242
  %v4334 = vunpack.c.h.b16 %v4242
  %v4335 = vunpack.c.l.b16 %v4243
  %v4336 = vunpack.c.h.b16 %v4243
  %v4337 = vunpack.c.l.b16 %v4244
  %v4338 = vunpack.c.h.b16 %v4244
  %v4339 = vunpack.c.l.b16 %v4245
  %v4340 = vunpack.c.h.b16 %v4245
  %v4341 = vunpack.c.l.b16 %v4246
  %v4342 = vunpack.c.h.b16 %v4246
  %v4343 = vpack.c.b16 %v4283, %v4279
  %v4344 = vpack.c.b16 %v4284, %v4280
  %v4345 = vpack.c.b16 %v4285, %v4281
  %v4346 = vpack.c.b16 %v4286, %v4282
  %v4347 = vpack.c.b16 %v4291, %v4287
  %v4348 = vpack.c.b16 %v4292, %v4288
  %v4349 = vpack.c.b16 %v4293, %v4289
  %v4350 = vpack.c.b16 %v4294, %v4290
  %v4351 = vpack.c.b16 %v4299, %v4295
  %v4352 = vpack.c.b16 %v4300, %v4296
  %v4353 = vpack.c.b16 %v4301, %v4297
  %v4354 = vpack.c.b16 %v4302, %v4298
  %v4355 = vpack.c.b16 %v4307, %v4303
  %v4356 = vpack.c.b16 %v4308, %v4304
  %v4357 = vpack.c.b16 %v4309, %v4305
  %v4358 = vpack.c.b16 %v4310, %v4306
  %v4359 = vpack.c.b16 %v4315, %v4311
  %v4360 = vpack.c.b16 %v4316, %v4312
  %v4361 = vpack.c.b16 %v4317, %v4313
  %v4362 = vpack.c.b16 %v4318, %v4314
  %v4363 = vpack.c.b16 %v4323, %v4319
  %v4364 = vpack.c.b16 %v4324, %v4320
  %v4365 = vpack.c.b16 %v4325, %v4321
  %v4366 = vpack.c.b16 %v4326, %v4322
  %v4367 = vpack.c.b16 %v4331, %v4327
  %v4368 = vpack.c.b16 %v4332, %v4328
  %v4369 = vpack.c.b16 %v4333, %v4329
  %v4370 = vpack.c.b16 %v4334, %v4330
  %v4371 = vpack.c.b16 %v4339, %v4335
  %v4372 = vpack.c.b16 %v4340, %v4336
  %v4373 = vpack.c.b16 %v4341, %v4337
  %v4374 = vpack.c.b16 %v4342, %v4338
  %4407 = vmatprep.subr.bf16.mxu0 %v4372
  %4408 = vmatpush1.bf16.msra.mxu0 %v4371
  %4409 = vmatprep.subr.bf16.mxu0 %v4368
  %4410 = vmatpush1.bf16.msra.mxu0 %v4367
  %4411 = vmatprep.subr.bf16.mxu0 %v4364
  %4412 = vmatpush1.bf16.msra.mxu0 %v4363
  %4413 = vmatprep.subr.bf16.mxu0 %v4360
  %4414 = vmatpush1.bf16.msra.mxu0 %v4359
  %4415 = vmatprep.subr.bf16.mxu0 %v4356
  %4416 = vmatpush1.bf16.msra.mxu0 %v4355
  %4417 = vmatprep.subr.bf16.mxu0 %v4352
  %4418 = vmatpush1.bf16.msra.mxu0 %v4351
  %4419 = vmatprep.subr.bf16.mxu0 %v4348
  %4420 = vmatpush1.bf16.msra.mxu0 %v4347
  %4421 = vmatprep.subr.bf16.mxu0 %v4344
  %4422 = vmatpush1.bf16.msra.mxu0 %v4343
  %4423 = vmatprep.subr.bf16.mxu0 0
  %4424 = vmatpush2.bf16.msra.mxu0 0
  %4425 = vmatprep.subr.bf16.mxu0 0
  %4426 = vmatpush2.bf16.msra.mxu0 0
  %4427 = vmatprep.subr.bf16.mxu0 0
  %4428 = vmatpush2.bf16.msra.mxu0 0
  %4429 = vmatprep.subr.bf16.mxu0 0
  %4430 = vmatpush2.bf16.msra.mxu0 0
  %4431 = vmatprep.subr.bf16.mxu0 0
  %4432 = vmatpush2.bf16.msra.mxu0 0
  %4433 = vmatprep.subr.bf16.mxu0 0
  %4434 = vmatpush2.bf16.msra.mxu0 0
  %4435 = vmatprep.subr.bf16.mxu0 0
  %4436 = vmatpush2.bf16.msra.mxu0 0
  %4437 = vmatprep.subr.bf16.mxu0 0
  %4438 = vmatpush2.bf16.msra.mxu0 0
  %4439 = vmatprep.mubr.bf16.mxu0 0
  %4440 = vmatmul.mubr.bf16.gmra.mxu0 %v4214
  %v4441 = vpop.f32.mrf.mxu0
  %v4442 = vadd.f32 0.0, %v4441
  %v4443 = vpop.f32.mrf.mxu0
  %v4444 = vadd.f32 0.0, %v4443
  %v4445 = vpop.f32.mrf.mxu0
  %v4446 = vpop.f32.mrf.mxu0
  %4447 = vdwg.mxu0
  %4448 = vmatprep.subr.bf16.mxu0 %v4374
  %4449 = vmatpush1.bf16.msra.mxu0 %v4373
  %4450 = vmatprep.subr.bf16.mxu0 %v4370
  %4451 = vmatpush1.bf16.msra.mxu0 %v4369
  %4452 = vmatprep.subr.bf16.mxu0 %v4366
  %4453 = vmatpush1.bf16.msra.mxu0 %v4365
  %4454 = vmatprep.subr.bf16.mxu0 %v4362
  %4455 = vmatpush1.bf16.msra.mxu0 %v4361
  %4456 = vmatprep.subr.bf16.mxu0 %v4358
  %4457 = vmatpush1.bf16.msra.mxu0 %v4357
  %4458 = vmatprep.subr.bf16.mxu0 %v4354
  %4459 = vmatpush1.bf16.msra.mxu0 %v4353
  %4460 = vmatprep.subr.bf16.mxu0 %v4350
  %4461 = vmatpush1.bf16.msra.mxu0 %v4349
  %4462 = vmatprep.subr.bf16.mxu0 %v4346
  %4463 = vmatpush1.bf16.msra.mxu0 %v4345
  %4464 = vmatprep.subr.bf16.mxu0 0
  %4465 = vmatpush2.bf16.msra.mxu0 0
  %4466 = vmatprep.subr.bf16.mxu0 0
  %4467 = vmatpush2.bf16.msra.mxu0 0
  %4468 = vmatprep.subr.bf16.mxu0 0
  %4469 = vmatpush2.bf16.msra.mxu0 0
  %4470 = vmatprep.subr.bf16.mxu0 0
  %4471 = vmatpush2.bf16.msra.mxu0 0
  %4472 = vmatprep.subr.bf16.mxu0 0
  %4473 = vmatpush2.bf16.msra.mxu0 0
  %4474 = vmatprep.subr.bf16.mxu0 0
  %4475 = vmatpush2.bf16.msra.mxu0 0
  %4476 = vmatprep.subr.bf16.mxu0 0
  %4477 = vmatpush2.bf16.msra.mxu0 0
  %4478 = vmatprep.subr.bf16.mxu0 0
  %4479 = vmatpush2.bf16.msra.mxu0 0
  %4480 = vmatprep.mubr.bf16.mxu0 0
  %4481 = vmatmul.mubr.bf16.gmra.mxu0 %v4214
  %v4482 = vpop.f32.mrf.mxu0
  %v4483 = vadd.f32 0.0, %v4482
  %v4484 = vpop.f32.mrf.mxu0
  %v4485 = vadd.f32 0.0, %v4484
  %v4486 = vpop.f32.mrf.mxu0
  %v4487 = vpop.f32.mrf.mxu0
  %4488 = vdwg.mxu0
  %v4489 = vadd.f32 %v4210, %v4442
  %v4490 = vadd.f32 %v4211, %v4444
  %v4491 = vadd.f32 %v4212, %v4483
  %v4492 = vadd.f32 %v4213, %v4485
  %v4493 = vxor.u32 %v4489, 2147483648
  %v4494 = vxor.u32 %v4490, 2147483648
  %v4495 = vxor.u32 %v4491, 2147483648
  %v4496 = vmul.f32 %v4493, 1.442695
  %v4497 = vpow.pop %v4496
  %v4498 = vmul.f32 %v4494, 1.442695
  %v4499 = vpow.pop %v4498
  %v4500 = vmul.f32 %v4495, 1.442695
  %v4501 = vpow.pop %v4500
  %v4502 = vadd.f32 %v4497, 1.0
  %v4503 = vadd.f32 %v4499, 1.0
  %v4504 = vadd.f32 %v4501, 1.0
  %v4505 = vrcp.pop %v4502
  %v4506 = vmul.f32 1.0, %v4505
  %v4507 = vrcp.pop %v4503
  %v4508 = vmul.f32 1.0, %v4507
  %v4509 = vrcp.pop %v4504
  %v4510 = vmul.f32 1.0, %v4509
  %v4511 = vtanh.pop %v4492
  %v4512 = vmul.f32 %v4508, %v4209
  %v4513 = vmul.f32 %v4506, %v4511
  %v4514 = vadd.f32 %v4512, %v4513
  %v4515 = vtanh.pop %v4514
  %v4516 = vmul.f32 %v4510, %v4515
  %v4517 = vsel %vm988, %v4516, %v4208
  %v4518 = vsel %vm988, %v4514, %v4209
  %v4519 = vsel %vm988, %v4516, 0.0
  %4520 = vst [vmem:[#allocation4] sm:$0xff] %v4517
  %4521 = vst [vmem:[#allocation5] sm:$0xff] %v4518
  %4522 = vst [vmem:[%s994 + $0x8] sm:$0xff] %v4519
  %v4523 = vld [vmem:[%s346] sm:$0xff]
  %v4524 = vld [vmem:[%s346 + $0x8] sm:$0xff]
  %v4525 = vld [vmem:[#allocation2] sm:$0xff]
  %v4526 = vld [vmem:[#allocation3] sm:$0xff]
  %v4527 = vunpack.c.l.bf16 %v4523
  %v4528 = vunpack.c.h.bf16 %v4523
  %v4529 = vunpack.c.l.bf16 %v4524
  %v4530 = vunpack.c.h.bf16 %v4524
  %v4531 = vpack.c.bf16 %v4525, %v4525
  %v4532 = vld [vmem:[%s1] sm:$0xff]
  %v4533 = vld [vmem:[%s1 + $0x8] sm:$0xff]
  %v4534 = vld [vmem:[%s1 + $0x10] sm:$0xff]
  %v4535 = vld [vmem:[%s1 + $0x18] sm:$0xff]
  %v4536 = vld [vmem:[%s1 + $0x20] sm:$0xff]
  %v4537 = vld [vmem:[%s1 + $0x28] sm:$0xff]
  %v4538 = vld [vmem:[%s1 + $0x30] sm:$0xff]
  %v4539 = vld [vmem:[%s1 + $0x38] sm:$0xff]
  %v4540 = vld [vmem:[%s1 + $0x40] sm:$0xff]
  %v4541 = vld [vmem:[%s1 + $0x48] sm:$0xff]
  %v4542 = vld [vmem:[%s1 + $0x50] sm:$0xff]
  %v4543 = vld [vmem:[%s1 + $0x58] sm:$0xff]
  %v4544 = vld [vmem:[%s1 + $0x60] sm:$0xff]
  %v4545 = vld [vmem:[%s1 + $0x68] sm:$0xff]
  %v4546 = vld [vmem:[%s1 + $0x70] sm:$0xff]
  %v4547 = vld [vmem:[%s1 + $0x78] sm:$0xff]
  %v4548 = vld [vmem:[%s1 + $0x80] sm:$0xff]
  %v4549 = vld [vmem:[%s1 + $0x88] sm:$0xff]
  %v4550 = vld [vmem:[%s1 + $0x90] sm:$0xff]
  %v4551 = vld [vmem:[%s1 + $0x98] sm:$0xff]
  %v4552 = vld [vmem:[%s1 + $0xa0] sm:$0xff]
  %v4553 = vld [vmem:[%s1 + $0xa8] sm:$0xff]
  %v4554 = vld [vmem:[%s1 + $0xb0] sm:$0xff]
  %v4555 = vld [vmem:[%s1 + $0xb8] sm:$0xff]
  %v4556 = vld [vmem:[%s1 + $0xc0] sm:$0xff]
  %v4557 = vld [vmem:[%s1 + $0xc8] sm:$0xff]
  %v4558 = vld [vmem:[%s1 + $0xd0] sm:$0xff]
  %v4559 = vld [vmem:[%s1 + $0xd8] sm:$0xff]
  %v4560 = vld [vmem:[%s1 + $0xe0] sm:$0xff]
  %v4561 = vld [vmem:[%s1 + $0xe8] sm:$0xff]
  %v4562 = vld [vmem:[%s1 + $0xf0] sm:$0xff]
  %v4563 = vld [vmem:[%s1 + $0xf8] sm:$0xff]
  %v4596 = vunpack.c.l.b16 %v4532
  %v4597 = vunpack.c.h.b16 %v4532
  %v4598 = vunpack.c.l.b16 %v4533
  %v4599 = vunpack.c.h.b16 %v4533
  %v4600 = vunpack.c.l.b16 %v4534
  %v4601 = vunpack.c.h.b16 %v4534
  %v4602 = vunpack.c.l.b16 %v4535
  %v4603 = vunpack.c.h.b16 %v4535
  %v4604 = vunpack.c.l.b16 %v4536
  %v4605 = vunpack.c.h.b16 %v4536
  %v4606 = vunpack.c.l.b16 %v4537
  %v4607 = vunpack.c.h.b16 %v4537
  %v4608 = vunpack.c.l.b16 %v4538
  %v4609 = vunpack.c.h.b16 %v4538
  %v4610 = vunpack.c.l.b16 %v4539
  %v4611 = vunpack.c.h.b16 %v4539
  %v4612 = vunpack.c.l.b16 %v4540
  %v4613 = vunpack.c.h.b16 %v4540
  %v4614 = vunpack.c.l.b16 %v4541
  %v4615 = vunpack.c.h.b16 %v4541
  %v4616 = vunpack.c.l.b16 %v4542
  %v4617 = vunpack.c.h.b16 %v4542
  %v4618 = vunpack.c.l.b16 %v4543
  %v4619 = vunpack.c.h.b16 %v4543
  %v4620 = vunpack.c.l.b16 %v4544
  %v4621 = vunpack.c.h.b16 %v4544
  %v4622 = vunpack.c.l.b16 %v4545
  %v4623 = vunpack.c.h.b16 %v4545
  %v4624 = vunpack.c.l.b16 %v4546
  %v4625 = vunpack.c.h.b16 %v4546
  %v4626 = vunpack.c.l.b16 %v4547
  %v4627 = vunpack.c.h.b16 %v4547
  %v4628 = vunpack.c.l.b16 %v4548
  %v4629 = vunpack.c.h.b16 %v4548
  %v4630 = vunpack.c.l.b16 %v4549
  %v4631 = vunpack.c.h.b16 %v4549
  %v4632 = vunpack.c.l.b16 %v4550
  %v4633 = vunpack.c.h.b16 %v4550
  %v4634 = vunpack.c.l.b16 %v4551
  %v4635 = vunpack.c.h.b16 %v4551
  %v4636 = vunpack.c.l.b16 %v4552
  %v4637 = vunpack.c.h.b16 %v4552
  %v4638 = vunpack.c.l.b16 %v4553
  %v4639 = vunpack.c.h.b16 %v4553
  %v4640 = vunpack.c.l.b16 %v4554
  %v4641 = vunpack.c.h.b16 %v4554
  %v4642 = vunpack.c.l.b16 %v4555
  %v4643 = vunpack.c.h.b16 %v4555
  %v4644 = vunpack.c.l.b16 %v4556
  %v4645 = vunpack.c.h.b16 %v4556
  %v4646 = vunpack.c.l.b16 %v4557
  %v4647 = vunpack.c.h.b16 %v4557
  %v4648 = vunpack.c.l.b16 %v4558
  %v4649 = vunpack.c.h.b16 %v4558
  %v4650 = vunpack.c.l.b16 %v4559
  %v4651 = vunpack.c.h.b16 %v4559
  %v4652 = vunpack.c.l.b16 %v4560
  %v4653 = vunpack.c.h.b16 %v4560
  %v4654 = vunpack.c.l.b16 %v4561
  %v4655 = vunpack.c.h.b16 %v4561
  %v4656 = vunpack.c.l.b16 %v4562
  %v4657 = vunpack.c.h.b16 %v4562
  %v4658 = vunpack.c.l.b16 %v4563
  %v4659 = vunpack.c.h.b16 %v4563
  %v4660 = vpack.c.b16 %v4600, %v4596
  %v4661 = vpack.c.b16 %v4601, %v4597
  %v4662 = vpack.c.b16 %v4602, %v4598
  %v4663 = vpack.c.b16 %v4603, %v4599
  %v4664 = vpack.c.b16 %v4608, %v4604
  %v4665 = vpack.c.b16 %v4609, %v4605
  %v4666 = vpack.c.b16 %v4610, %v4606
  %v4667 = vpack.c.b16 %v4611, %v4607
  %v4668 = vpack.c.b16 %v4616, %v4612
  %v4669 = vpack.c.b16 %v4617, %v4613
  %v4670 = vpack.c.b16 %v4618, %v4614
  %v4671 = vpack.c.b16 %v4619, %v4615
  %v4672 = vpack.c.b16 %v4624, %v4620
  %v4673 = vpack.c.b16 %v4625, %v4621
  %v4674 = vpack.c.b16 %v4626, %v4622
  %v4675 = vpack.c.b16 %v4627, %v4623
  %v4676 = vpack.c.b16 %v4632, %v4628
  %v4677 = vpack.c.b16 %v4633, %v4629
  %v4678 = vpack.c.b16 %v4634, %v4630
  %v4679 = vpack.c.b16 %v4635, %v4631
  %v4680 = vpack.c.b16 %v4640, %v4636
  %v4681 = vpack.c.b16 %v4641, %v4637
  %v4682 = vpack.c.b16 %v4642, %v4638
  %v4683 = vpack.c.b16 %v4643, %v4639
  %v4684 = vpack.c.b16 %v4648, %v4644
  %v4685 = vpack.c.b16 %v4649, %v4645
  %v4686 = vpack.c.b16 %v4650, %v4646
  %v4687 = vpack.c.b16 %v4651, %v4647
  %v4688 = vpack.c.b16 %v4656, %v4652
  %v4689 = vpack.c.b16 %v4657, %v4653
  %v4690 = vpack.c.b16 %v4658, %v4654
  %v4691 = vpack.c.b16 %v4659, %v4655
  %4724 = vmatprep.subr.bf16.mxu0 %v4689
  %4725 = vmatpush1.bf16.msra.mxu0 %v4688
  %4726 = vmatprep.subr.bf16.mxu0 %v4685
  %4727 = vmatpush1.bf16.msra.mxu0 %v4684
  %4728 = vmatprep.subr.bf16.mxu0 %v4681
  %4729 = vmatpush1.bf16.msra.mxu0 %v4680
  %4730 = vmatprep.subr.bf16.mxu0 %v4677
  %4731 = vmatpush1.bf16.msra.mxu0 %v4676
  %4732 = vmatprep.subr.bf16.mxu0 %v4673
  %4733 = vmatpush1.bf16.msra.mxu0 %v4672
  %4734 = vmatprep.subr.bf16.mxu0 %v4669
  %4735 = vmatpush1.bf16.msra.mxu0 %v4668
  %4736 = vmatprep.subr.bf16.mxu0 %v4665
  %4737 = vmatpush1.bf16.msra.mxu0 %v4664
  %4738 = vmatprep.subr.bf16.mxu0 %v4661
  %4739 = vmatpush1.bf16.msra.mxu0 %v4660
  %4740 = vmatprep.subr.bf16.mxu0 0
  %4741 = vmatpush2.bf16.msra.mxu0 0
  %4742 = vmatprep.subr.bf16.mxu0 0
  %4743 = vmatpush2.bf16.msra.mxu0 0
  %4744 = vmatprep.subr.bf16.mxu0 0
  %4745 = vmatpush2.bf16.msra.mxu0 0
  %4746 = vmatprep.subr.bf16.mxu0 0
  %4747 = vmatpush2.bf16.msra.mxu0 0
  %4748 = vmatprep.subr.bf16.mxu0 0
  %4749 = vmatpush2.bf16.msra.mxu0 0
  %4750 = vmatprep.subr.bf16.mxu0 0
  %4751 = vmatpush2.bf16.msra.mxu0 0
  %4752 = vmatprep.subr.bf16.mxu0 0
  %4753 = vmatpush2.bf16.msra.mxu0 0
  %4754 = vmatprep.subr.bf16.mxu0 0
  %4755 = vmatpush2.bf16.msra.mxu0 0
  %4756 = vmatprep.mubr.bf16.mxu0 0
  %4757 = vmatmul.mubr.bf16.gmra.mxu0 %v4531
  %v4758 = vpop.f32.mrf.mxu0
  %v4759 = vadd.f32 0.0, %v4758
  %v4760 = vpop.f32.mrf.mxu0
  %v4761 = vadd.f32 0.0, %v4760
  %v4762 = vpop.f32.mrf.mxu0
  %v4763 = vpop.f32.mrf.mxu0
  %4764 = vdwg.mxu0
  %4765 = vmatprep.subr.bf16.mxu0 %v4691
  %4766 = vmatpush1.bf16.msra.mxu0 %v4690
  %4767 = vmatprep.subr.bf16.mxu0 %v4687
  %4768 = vmatpush1.bf16.msra.mxu0 %v4686
  %4769 = vmatprep.subr.bf16.mxu0 %v4683
  %4770 = vmatpush1.bf16.msra.mxu0 %v4682
  %4771 = vmatprep.subr.bf16.mxu0 %v4679
  %4772 = vmatpush1.bf16.msra.mxu0 %v4678
  %4773 = vmatprep.subr.bf16.mxu0 %v4675
  %4774 = vmatpush1.bf16.msra.mxu0 %v4674
  %4775 = vmatprep.subr.bf16.mxu0 %v4671
  %4776 = vmatpush1.bf16.msra.mxu0 %v4670
  %4777 = vmatprep.subr.bf16.mxu0 %v4667
  %4778 = vmatpush1.bf16.msra.mxu0 %v4666
  %4779 = vmatprep.subr.bf16.mxu0 %v4663
  %4780 = vmatpush1.bf16.msra.mxu0 %v4662
  %4781 = vmatprep.subr.bf16.mxu0 0
  %4782 = vmatpush2.bf16.msra.mxu0 0
  %4783 = vmatprep.subr.bf16.mxu0 0
  %4784 = vmatpush2.bf16.msra.mxu0 0
  %4785 = vmatprep.subr.bf16.mxu0 0
  %4786 = vmatpush2.bf16.msra.mxu0 0
  %4787 = vmatprep.subr.bf16.mxu0 0
  %4788 = vmatpush2.bf16.msra.mxu0 0
  %4789 = vmatprep.subr.bf16.mxu0 0
  %4790 = vmatpush2.bf16.msra.mxu0 0
  %4791 = vmatprep.subr.bf16.mxu0 0
  %4792 = vmatpush2.bf16.msra.mxu0 0
  %4793 = vmatprep.subr.bf16.mxu0 0
  %4794 = vmatpush2.bf16.msra.mxu0 0
  %4795 = vmatprep.subr.bf16.mxu0 0
  %4796 = vmatpush2.bf16.msra.mxu0 0
  %4797 = vmatprep.mubr.bf16.mxu0 0
  %4798 = vmatmul.mubr.bf16.gmra.mxu0 %v4531
  %v4799 = vpop.f32.mrf.mxu0
  %v4800 = vadd.f32 0.0, %v4799
  %v4801 = vpop.f32.mrf.mxu0
  %v4802 = vadd.f32 0.0, %v4801
  %v4803 = vpop.f32.mrf.mxu0
  %v4804 = vpop.f32.mrf.mxu0
  %4805 = vdwg.mxu0
  %v4806 = vadd.f32 %v4527, %v4759
  %v4807 = vadd.f32 %v4528, %v4761
  %v4808 = vadd.f32 %v4529, %v4800
  %v4809 = vadd.f32 %v4530, %v4802
  %v4810 = vxor.u32 %v4806, 2147483648
  %v4811 = vxor.u32 %v4807, 2147483648
  %v4812 = vxor.u32 %v4808, 2147483648
  %v4813 = vmul.f32 %v4810, 1.442695
  %v4814 = vpow.pop %v4813
  %v4815 = vmul.f32 %v4811, 1.442695
  %v4816 = vpow.pop %v4815
  %v4817 = vmul.f32 %v4812, 1.442695
  %v4818 = vpow.pop %v4817
  %v4819 = vadd.f32 %v4814, 1.0
  %v4820 = vadd.f32 %v4816, 1.0
  %v4821 = vadd.f32 %v4818, 1.0
  %v4822 = vrcp.pop %v4819
  %v4823 = vmul.f32 1.0, %v4822
  %v4824 = vrcp.pop %v4820
  %v4825 = vmul.f32 1.0, %v4824
  %v4826 = vrcp.pop %v4821
  %v4827 = vmul.f32 1.0, %v4826
  %v4828 = vtanh.pop %v4809
  %v4829 = vmul.f32 %v4825, %v4526
  %v4830 = vmul.f32 %v4823, %v4828
  %v4831 = vadd.f32 %v4829, %v4830
  %v4832 = vtanh.pop %v4831
  %v4833 = vmul.f32 %v4827, %v4832
  %v4834 = vsel %vm663, %v4833, %v4525
  %v4835 = vsel %vm663, %v4831, %v4526
  %v4836 = vsel %vm663, %v4833, 0.0
  %4837 = vst [vmem:[#allocation2] sm:$0xff] %v4834
  %4838 = vst [vmem:[#allocation3] sm:$0xff] %v4835
  %4839 = vst [vmem:[%s669] sm:$0xff] %v4836
  %v4840 = vld [vmem:[%s0 + $0x10] sm:$0xff]
  %v4841 = vld [vmem:[%s0 + $0x18] sm:$0xff]
  %v4842 = vld [vmem:[#allocation4] sm:$0xff]
  %v4843 = vld [vmem:[#allocation5] sm:$0xff]
  %v4844 = vunpack.c.l.bf16 %v4840
  %v4845 = vunpack.c.h.bf16 %v4840
  %v4846 = vunpack.c.l.bf16 %v4841
  %v4847 = vunpack.c.h.bf16 %v4841
  %v4848 = vpack.c.bf16 %v4842, %v4842
  %v4849 = vld [vmem:[%s2] sm:$0xff]
  %v4850 = vld [vmem:[%s2 + $0x8] sm:$0xff]
  %v4851 = vld [vmem:[%s2 + $0x10] sm:$0xff]
  %v4852 = vld [vmem:[%s2 + $0x18] sm:$0xff]
  %v4853 = vld [vmem:[%s2 + $0x20] sm:$0xff]
  %v4854 = vld [vmem:[%s2 + $0x28] sm:$0xff]
  %v4855 = vld [vmem:[%s2 + $0x30] sm:$0xff]
  %v4856 = vld [vmem:[%s2 + $0x38] sm:$0xff]
  %v4857 = vld [vmem:[%s2 + $0x40] sm:$0xff]
  %v4858 = vld [vmem:[%s2 + $0x48] sm:$0xff]
  %v4859 = vld [vmem:[%s2 + $0x50] sm:$0xff]
  %v4860 = vld [vmem:[%s2 + $0x58] sm:$0xff]
  %v4861 = vld [vmem:[%s2 + $0x60] sm:$0xff]
  %v4862 = vld [vmem:[%s2 + $0x68] sm:$0xff]
  %v4863 = vld [vmem:[%s2 + $0x70] sm:$0xff]
  %v4864 = vld [vmem:[%s2 + $0x78] sm:$0xff]
  %v4865 = vld [vmem:[%s2 + $0x80] sm:$0xff]
  %v4866 = vld [vmem:[%s2 + $0x88] sm:$0xff]
  %v4867 = vld [vmem:[%s2 + $0x90] sm:$0xff]
  %v4868 = vld [vmem:[%s2 + $0x98] sm:$0xff]
  %v4869 = vld [vmem:[%s2 + $0xa0] sm:$0xff]
  %v4870 = vld [vmem:[%s2 + $0xa8] sm:$0xff]
  %v4871 = vld [vmem:[%s2 + $0xb0] sm:$0xff]
  %v4872 = vld [vmem:[%s2 + $0xb8] sm:$0xff]
  %v4873 = vld [vmem:[%s2 + $0xc0] sm:$0xff]
  %v4874 = vld [vmem:[%s2 + $0xc8] sm:$0xff]
  %v4875 = vld [vmem:[%s2 + $0xd0] sm:$0xff]
  %v4876 = vld [vmem:[%s2 + $0xd8] sm:$0xff]
  %v4877 = vld [vmem:[%s2 + $0xe0] sm:$0xff]
  %v4878 = vld [vmem:[%s2 + $0xe8] sm:$0xff]
  %v4879 = vld [vmem:[%s2 + $0xf0] sm:$0xff]
  %v4880 = vld [vmem:[%s2 + $0xf8] sm:$0xff]
  %v4913 = vunpack.c.l.b16 %v4849
  %v4914 = vunpack.c.h.b16 %v4849
  %v4915 = vunpack.c.l.b16 %v4850
  %v4916 = vunpack.c.h.b16 %v4850
  %v4917 = vunpack.c.l.b16 %v4851
  %v4918 = vunpack.c.h.b16 %v4851
  %v4919 = vunpack.c.l.b16 %v4852
  %v4920 = vunpack.c.h.b16 %v4852
  %v4921 = vunpack.c.l.b16 %v4853
  %v4922 = vunpack.c.h.b16 %v4853
  %v4923 = vunpack.c.l.b16 %v4854
  %v4924 = vunpack.c.h.b16 %v4854
  %v4925 = vunpack.c.l.b16 %v4855
  %v4926 = vunpack.c.h.b16 %v4855
  %v4927 = vunpack.c.l.b16 %v4856
  %v4928 = vunpack.c.h.b16 %v4856
  %v4929 = vunpack.c.l.b16 %v4857
  %v4930 = vunpack.c.h.b16 %v4857
  %v4931 = vunpack.c.l.b16 %v4858
  %v4932 = vunpack.c.h.b16 %v4858
  %v4933 = vunpack.c.l.b16 %v4859
  %v4934 = vunpack.c.h.b16 %v4859
  %v4935 = vunpack.c.l.b16 %v4860
  %v4936 = vunpack.c.h.b16 %v4860
  %v4937 = vunpack.c.l.b16 %v4861
  %v4938 = vunpack.c.h.b16 %v4861
  %v4939 = vunpack.c.l.b16 %v4862
  %v4940 = vunpack.c.h.b16 %v4862
  %v4941 = vunpack.c.l.b16 %v4863
  %v4942 = vunpack.c.h.b16 %v4863
  %v4943 = vunpack.c.l.b16 %v4864
  %v4944 = vunpack.c.h.b16 %v4864
  %v4945 = vunpack.c.l.b16 %v4865
  %v4946 = vunpack.c.h.b16 %v4865
  %v4947 = vunpack.c.l.b16 %v4866
  %v4948 = vunpack.c.h.b16 %v4866
  %v4949 = vunpack.c.l.b16 %v4867
  %v4950 = vunpack.c.h.b16 %v4867
  %v4951 = vunpack.c.l.b16 %v4868
  %v4952 = vunpack.c.h.b16 %v4868
  %v4953 = vunpack.c.l.b16 %v4869
  %v4954 = vunpack.c.h.b16 %v4869
  %v4955 = vunpack.c.l.b16 %v4870
  %v4956 = vunpack.c.h.b16 %v4870
  %v4957 = vunpack.c.l.b16 %v4871
  %v4958 = vunpack.c.h.b16 %v4871
  %v4959 = vunpack.c.l.b16 %v4872
  %v4960 = vunpack.c.h.b16 %v4872
  %v4961 = vunpack.c.l.b16 %v4873
  %v4962 = vunpack.c.h.b16 %v4873
  %v4963 = vunpack.c.l.b16 %v4874
  %v4964 = vunpack.c.h.b16 %v4874
  %v4965 = vunpack.c.l.b16 %v4875
  %v4966 = vunpack.c.h.b16 %v4875
  %v4967 = vunpack.c.l.b16 %v4876
  %v4968 = vunpack.c.h.b16 %v4876
  %v4969 = vunpack.c.l.b16 %v4877
  %v4970 = vunpack.c.h.b16 %v4877
  %v4971 = vunpack.c.l.b16 %v4878
  %v4972 = vunpack.c.h.b16 %v4878
  %v4973 = vunpack.c.l.b16 %v4879
  %v4974 = vunpack.c.h.b16 %v4879
  %v4975 = vunpack.c.l.b16 %v4880
  %v4976 = vunpack.c.h.b16 %v4880
  %v4977 = vpack.c.b16 %v4917, %v4913
  %v4978 = vpack.c.b16 %v4918, %v4914
  %v4979 = vpack.c.b16 %v4919, %v4915
  %v4980 = vpack.c.b16 %v4920, %v4916
  %v4981 = vpack.c.b16 %v4925, %v4921
  %v4982 = vpack.c.b16 %v4926, %v4922
  %v4983 = vpack.c.b16 %v4927, %v4923
  %v4984 = vpack.c.b16 %v4928, %v4924
  %v4985 = vpack.c.b16 %v4933, %v4929
  %v4986 = vpack.c.b16 %v4934, %v4930
  %v4987 = vpack.c.b16 %v4935, %v4931
  %v4988 = vpack.c.b16 %v4936, %v4932
  %v4989 = vpack.c.b16 %v4941, %v4937
  %v4990 = vpack.c.b16 %v4942, %v4938
  %v4991 = vpack.c.b16 %v4943, %v4939
  %v4992 = vpack.c.b16 %v4944, %v4940
  %v4993 = vpack.c.b16 %v4949, %v4945
  %v4994 = vpack.c.b16 %v4950, %v4946
  %v4995 = vpack.c.b16 %v4951, %v4947
  %v4996 = vpack.c.b16 %v4952, %v4948
  %v4997 = vpack.c.b16 %v4957, %v4953
  %v4998 = vpack.c.b16 %v4958, %v4954
  %v4999 = vpack.c.b16 %v4959, %v4955
  %v5000 = vpack.c.b16 %v4960, %v4956
  %v5001 = vpack.c.b16 %v4965, %v4961
  %v5002 = vpack.c.b16 %v4966, %v4962
  %v5003 = vpack.c.b16 %v4967, %v4963
  %v5004 = vpack.c.b16 %v4968, %v4964
  %v5005 = vpack.c.b16 %v4973, %v4969
  %v5006 = vpack.c.b16 %v4974, %v4970
  %v5007 = vpack.c.b16 %v4975, %v4971
  %v5008 = vpack.c.b16 %v4976, %v4972
  %5041 = vmatprep.subr.bf16.mxu0 %v5006
  %5042 = vmatpush1.bf16.msra.mxu0 %v5005
  %5043 = vmatprep.subr.bf16.mxu0 %v5002
  %5044 = vmatpush1.bf16.msra.mxu0 %v5001
  %5045 = vmatprep.subr.bf16.mxu0 %v4998
  %5046 = vmatpush1.bf16.msra.mxu0 %v4997
  %5047 = vmatprep.subr.bf16.mxu0 %v4994
  %5048 = vmatpush1.bf16.msra.mxu0 %v4993
  %5049 = vmatprep.subr.bf16.mxu0 %v4990
  %5050 = vmatpush1.bf16.msra.mxu0 %v4989
  %5051 = vmatprep.subr.bf16.mxu0 %v4986
  %5052 = vmatpush1.bf16.msra.mxu0 %v4985
  %5053 = vmatprep.subr.bf16.mxu0 %v4982
  %5054 = vmatpush1.bf16.msra.mxu0 %v4981
  %5055 = vmatprep.subr.bf16.mxu0 %v4978
  %5056 = vmatpush1.bf16.msra.mxu0 %v4977
  %5057 = vmatprep.subr.bf16.mxu0 0
  %5058 = vmatpush2.bf16.msra.mxu0 0
  %5059 = vmatprep.subr.bf16.mxu0 0
  %5060 = vmatpush2.bf16.msra.mxu0 0
  %5061 = vmatprep.subr.bf16.mxu0 0
  %5062 = vmatpush2.bf16.msra.mxu0 0
  %5063 = vmatprep.subr.bf16.mxu0 0
  %5064 = vmatpush2.bf16.msra.mxu0 0
  %5065 = vmatprep.subr.bf16.mxu0 0
  %5066 = vmatpush2.bf16.msra.mxu0 0
  %5067 = vmatprep.subr.bf16.mxu0 0
  %5068 = vmatpush2.bf16.msra.mxu0 0
  %5069 = vmatprep.subr.bf16.mxu0 0
  %5070 = vmatpush2.bf16.msra.mxu0 0
  %5071 = vmatprep.subr.bf16.mxu0 0
  %5072 = vmatpush2.bf16.msra.mxu0 0
  %5073 = vmatprep.mubr.bf16.mxu0 0
  %5074 = vmatmul.mubr.bf16.gmra.mxu0 %v4848
  %v5075 = vpop.f32.mrf.mxu0
  %v5076 = vadd.f32 0.0, %v5075
  %v5077 = vpop.f32.mrf.mxu0
  %v5078 = vadd.f32 0.0, %v5077
  %v5079 = vpop.f32.mrf.mxu0
  %v5080 = vpop.f32.mrf.mxu0
  %5081 = vdwg.mxu0
  %5082 = vmatprep.subr.bf16.mxu0 %v5008
  %5083 = vmatpush1.bf16.msra.mxu0 %v5007
  %5084 = vmatprep.subr.bf16.mxu0 %v5004
  %5085 = vmatpush1.bf16.msra.mxu0 %v5003
  %5086 = vmatprep.subr.bf16.mxu0 %v5000
  %5087 = vmatpush1.bf16.msra.mxu0 %v4999
  %5088 = vmatprep.subr.bf16.mxu0 %v4996
  %5089 = vmatpush1.bf16.msra.mxu0 %v4995
  %5090 = vmatprep.subr.bf16.mxu0 %v4992
  %5091 = vmatpush1.bf16.msra.mxu0 %v4991
  %5092 = vmatprep.subr.bf16.mxu0 %v4988
  %5093 = vmatpush1.bf16.msra.mxu0 %v4987
  %5094 = vmatprep.subr.bf16.mxu0 %v4984
  %5095 = vmatpush1.bf16.msra.mxu0 %v4983
  %5096 = vmatprep.subr.bf16.mxu0 %v4980
  %5097 = vmatpush1.bf16.msra.mxu0 %v4979
  %5098 = vmatprep.subr.bf16.mxu0 0
  %5099 = vmatpush2.bf16.msra.mxu0 0
  %5100 = vmatprep.subr.bf16.mxu0 0
  %5101 = vmatpush2.bf16.msra.mxu0 0
  %5102 = vmatprep.subr.bf16.mxu0 0
  %5103 = vmatpush2.bf16.msra.mxu0 0
  %5104 = vmatprep.subr.bf16.mxu0 0
  %5105 = vmatpush2.bf16.msra.mxu0 0
  %5106 = vmatprep.subr.bf16.mxu0 0
  %5107 = vmatpush2.bf16.msra.mxu0 0
  %5108 = vmatprep.subr.bf16.mxu0 0
  %5109 = vmatpush2.bf16.msra.mxu0 0
  %5110 = vmatprep.subr.bf16.mxu0 0
  %5111 = vmatpush2.bf16.msra.mxu0 0
  %5112 = vmatprep.subr.bf16.mxu0 0
  %5113 = vmatpush2.bf16.msra.mxu0 0
  %5114 = vmatprep.mubr.bf16.mxu0 0
  %5115 = vmatmul.mubr.bf16.gmra.mxu0 %v4848
  %v5116 = vpop.f32.mrf.mxu0
  %v5117 = vadd.f32 0.0, %v5116
  %v5118 = vpop.f32.mrf.mxu0
  %v5119 = vadd.f32 0.0, %v5118
  %v5120 = vpop.f32.mrf.mxu0
  %v5121 = vpop.f32.mrf.mxu0
  %5122 = vdwg.mxu0
  %v5123 = vadd.f32 %v4844, %v5076
  %v5124 = vadd.f32 %v4845, %v5078
  %v5125 = vadd.f32 %v4846, %v5117
  %v5126 = vadd.f32 %v4847, %v5119
  %v5127 = vxor.u32 %v5123, 2147483648
  %v5128 = vxor.u32 %v5124, 2147483648
  %v5129 = vxor.u32 %v5125, 2147483648
  %v5130 = vmul.f32 %v5127, 1.442695
  %v5131 = vpow.pop %v5130
  %v5132 = vmul.f32 %v5128, 1.442695
  %v5133 = vpow.pop %v5132
  %v5134 = vmul.f32 %v5129, 1.442695
  %v5135 = vpow.pop %v5134
  %v5136 = vadd.f32 %v5131, 1.0
  %v5137 = vadd.f32 %v5133, 1.0
  %v5138 = vadd.f32 %v5135, 1.0
  %v5139 = vrcp.pop %v5136
  %v5140 = vmul.f32 1.0, %v5139
  %v5141 = vrcp.pop %v5137
  %v5142 = vmul.f32 1.0, %v5141
  %v5143 = vrcp.pop %v5138
  %v5144 = vmul.f32 1.0, %v5143
  %v5145 = vtanh.pop %v5126
  %v5146 = vmul.f32 %v5142, %v4843
  %v5147 = vmul.f32 %v5140, %v5145
  %v5148 = vadd.f32 %v5146, %v5147
  %v5149 = vtanh.pop %v5148
  %v5150 = vmul.f32 %v5144, %v5149
  %v5151 = vsel %vm339, %v5150, %v4842
  %v5152 = vsel %vm339, %v5148, %v4843
  %v5153 = vsel %vm339, %v5150, 0.0
  %5154 = vst [vmem:[#allocation4] sm:$0xff] %v5151
  %5155 = vst [vmem:[#allocation5] sm:$0xff] %v5152
  %5156 = vst [vmem:[%s4 + $0x8] sm:$0xff] %v5153
  // Predicated region
  $region18: #{ner_lstm_bidi_forward.9} parent=0 // pred_check
    _
  $region19: #{ner_lstm_bidi_forward.9} parent=0 // pred_check_branch
    %5158 = sbr.rel (0) target = $region21
  $region20: #{ner_lstm_bidi_forward.9} parent=0 // pred_region
    _
  $region21: #{ner_lstm_bidi_forward.9} parent=0 // pred_fallthru
    _
  // Predicated region
  $region22: #{ner_lstm_bidi_forward.9} parent=0 // pred_check
    _
  $region23: #{ner_lstm_bidi_forward.9} parent=0 // pred_check_branch
    %5160 = sbr.rel (0) target = $region25
  $region24: #{ner_lstm_bidi_forward.9} parent=0 // pred_region
    _
  $region25: #{ner_lstm_bidi_forward.9} parent=0 // pred_fallthru
    _

</llo_original>
